<compile_context>
chip_gen: v6e
topology: v6e:2x2x1
jax: 0.10.0
libtpu: 0.0.40
codegen_flags: <defaults>
</compile_context>

<pallas_src>
import jax
import jax.numpy as jnp
from jax.experimental import pallas as pl
from jax.experimental.pallas import tpu as pltpu

BN_EPS = 1e-5
LANE = 128
TM_MAX = 512   # rows per M tile (review: 512-1024-row tiles reach ~85% of HBM roofline)

# (cin, cout, kernel, stride, padding) for the six conv_bn_relu blocks;
# MaxPool2d(3, stride=2) sits between block 3 and block 4.
LAYER_CFG = [
    (3, 32, 3, 2, "valid"),
    (32, 32, 3, 1, "valid"),
    (32, 64, 3, 1, "same"),
    (64, 80, 1, 1, "same"),
    (80, 192, 3, 1, "valid"),
    (192, 256, 3, 2, "valid"),
]


def _round_up(x, m):
    return (x + m - 1) // m * m


def _cdiv(a, b):
    return -(-a // b)


# ---------------------------------------------------------------------------
# Pallas kernels
# ---------------------------------------------------------------------------
def _conv_stats_kernel(p_ref, w_ref, y_ref, stat_ref):
    """Pass 1: im2col-matmul tile (bf16 in, f32 acc on the MXU) + one-pass BN stats.

    p_ref:    (TM, K)   bf16 patch tile
    w_ref:    (K, Cp)   bf16 weight, resident across the grid
    y_ref:    (TM, Cp)  f32 raw conv output tile
    stat_ref: (2, Cp)   f32 [sum; sum of squares], resident accumulator over M tiles
    """
    y = jnp.dot(p_ref[...], w_ref[...], preferred_element_type=jnp.float32)
    y_ref[...] = y

    @pl.when(pl.program_id(0) == 0)
    def _init():
        stat_ref[...] = jnp.zeros_like(stat_ref)

    stat_ref[...] += jnp.concatenate(
        [jnp.sum(y, axis=0, keepdims=True),
         jnp.sum(y * y, axis=0, keepdims=True)], axis=0)


def _bn_relu_kernel(y_ref, scale_ref, shift_ref, o_ref):
    """Pass 2: y * scale + shift (folded BN mean/var/gamma/beta) + ReLU."""
    o_ref[...] = jnp.maximum(
        y_ref[...] * scale_ref[...] + shift_ref[...], 0.0).astype(o_ref.dtype)


def _maxpool3x3s2_kernel(x_ref, o_ref):
    """3x3 / stride-2 max pool of one image, windowed fully in-kernel.

    Each 3-tap stride-2 reduction is the elementwise max of two non-overlapping
    pair reductions (reshape + max), so no strided ref reads and no 9x HBM copies.
    """
    ho, wo = o_ref.shape[1], o_ref.shape[2]
    x = x_ref[0]                                       # (H, W, C)
    wdim, c = x.shape[1], x.shape[2]
    # height axis
    a = jnp.max(x[0:2 * ho].reshape(ho, 2, wdim, c), axis=1)       # rows (2o, 2o+1)
    b = jnp.max(x[1:1 + 2 * ho].reshape(ho, 2, wdim, c), axis=1)   # rows (2o+1, 2o+2)
    xh = jnp.maximum(a, b)                              # (Ho, W, C)
    # width axis
    a = jnp.max(xh[:, 0:2 * wo].reshape(ho, wo, 2, c), axis=2)
    b = jnp.max(xh[:, 1:1 + 2 * wo].reshape(ho, wo, 2, c), axis=2)
    o_ref[0] = jnp.maximum(a, b)


# ---------------------------------------------------------------------------
# Plain-JAX glue (data movement only)
# ---------------------------------------------------------------------------
def _extract_patches(x, kh, kw, stride, padding):
    """x: (N,H,W,Cin) -> bf16 (N*Ho*Wo, kh*kw*Cin) im2col patches."""
    # TODO(synk): build patches per-M-tile inside the conv kernel from a haloed NHWC
    # block (manual DMA) to remove the kh*kw HBM duplication; bf16 already halves it.
    x = x.astype(jnp.bfloat16)
    if padding == "same":                     # all 'same' layers here use stride 1
        ph, pw = (kh - 1) // 2, (kw - 1) // 2
        x = jnp.pad(x, ((0, 0), (ph, kh - 1 - ph), (pw, kw - 1 - pw), (0, 0)))
    n, h, w, c = x.shape
    ho = (h - kh) // stride + 1
    wo = (w - kw) // stride + 1
    cols = []
    for i in range(kh):
        for j in range(kw):
            cols.append(x[:, i:i + ho * stride:stride, j:j + wo * stride:stride, :])
    patches = jnp.concatenate(cols, axis=-1)            # (N, Ho, Wo, kh*kw*Cin)
    return patches.reshape(n * ho * wo, kh * kw * c), (n, ho, wo)


# ---------------------------------------------------------------------------
# Layer wrappers
# ---------------------------------------------------------------------------
def _conv_bn_relu_layer(x, p, cin, cout, k, stride, padding,
                        out_dtype=jnp.bfloat16):
    # Strip lane-padding channels from the previous layer before im2col.
    patches, (n, ho, wo) = _extract_patches(x[..., :cin], k, k, stride, padding)
    m, kdim = patches.shape
    cp = _round_up(cout, LANE)                 # lane-dense output channels

    n_tiles = _cdiv(m, TM_MAX)
    tm = _round_up(_cdiv(m, n_tiles), 16)
    mp = tm * n_tiles
    if mp > m:                                 # zero rows: contribute 0 to BN sums
        patches = jnp.pad(patches, ((0, mp - m), (0, 0)))

    w2d = jnp.pad(p["w"], ((0, 0), (0, 0), (0, 0), (0, cp - cout)))
    w2d = w2d.reshape(kdim, cp).astype(jnp.bfloat16)

    # ---- pass 1: M-tiled conv matmul + BN batch-stat accumulation ----------
    y, stats = pl.pallas_call(
        _conv_stats_kernel,
        grid=(n_tiles,),
        in_specs=[pl.BlockSpec((tm, kdim), lambda i: (i, 0)),
                  pl.BlockSpec((kdim, cp), lambda i: (0, 0))],
        out_specs=[pl.BlockSpec((tm, cp), lambda i: (i, 0)),
                   pl.BlockSpec((2, cp), lambda i: (0, 0))],
        out_shape=[jax.ShapeDtypeStruct((mp, cp), jnp.float32),
                   jax.ShapeDtypeStruct((2, cp), jnp.float32)],
        compiler_params=pltpu.CompilerParams(
            dimension_semantics=("arbitrary",)),      # stats output is resident
        cost_estimate=pl.CostEstimate(
            flops=2 * mp * kdim * cp, transcendentals=0,
            bytes_accessed=mp * kdim * 2 + kdim * cp * 2 + mp * cp * 4),
    )(patches, w2d)

    # ---- fold train-mode BN stats + gamma/beta into per-channel scale/shift ---
    gamma = jnp.pad(p["gamma"], ((0, 0), (0, cp - cout)))
    beta = jnp.pad(p["beta"], ((0, 0), (0, cp - cout)))
    mean = stats[0:1] / float(m)
    var = jnp.maximum(stats[1:2] / float(m) - mean * mean, 0.0)   # biased variance
    scale = gamma * jax.lax.rsqrt(var + BN_EPS)
    shift = beta - mean * scale
    # NOTE: the Conv2d bias is intentionally omitted — train-mode BatchNorm subtracts
    # the batch mean immediately after the conv, which cancels the bias exactly.

    # ---- pass 2: normalize + ReLU (parallel over M tiles) --------------------
    out = pl.pallas_call(
        _bn_relu_kernel,
        grid=(n_tiles,),
        in_specs=[pl.BlockSpec((tm, cp), lambda i: (i, 0)),
                  pl.BlockSpec((1, cp), lambda i: (0, 0)),
                  pl.BlockSpec((1, cp), lambda i: (0, 0))],
        out_specs=pl.BlockSpec((tm, cp), lambda i: (i, 0)),
        out_shape=jax.ShapeDtypeStruct((mp, cp), out_dtype),
        compiler_params=pltpu.CompilerParams(
            dimension_semantics=("parallel",)),
        cost_estimate=pl.CostEstimate(
            flops=2 * mp * cp, transcendentals=0,
            bytes_accessed=mp * cp * 4 + mp * cp * jnp.dtype(out_dtype).itemsize),
    )(y, scale, shift)

    return out[:m].reshape(n, ho, wo, cp)


def _maxpool_layer(x, k, stride):
    assert k == 3 and stride == 2
    n, h, w, c = x.shape
    ho = (h - k) // stride + 1
    wo = (w - k) // stride + 1
    itemsize = jnp.dtype(x.dtype).itemsize
    return pl.pallas_call(
        _maxpool3x3s2_kernel,
        grid=(n,),
        in_specs=[pl.BlockSpec((1, h, w, c), lambda i: (i, 0, 0, 0))],
        out_specs=pl.BlockSpec((1, ho, wo, c), lambda i: (i, 0, 0, 0)),
        out_shape=jax.ShapeDtypeStruct((n, ho, wo, c), x.dtype),
        compiler_params=pltpu.CompilerParams(dimension_semantics=("parallel",)),
        cost_estimate=pl.CostEstimate(
            flops=9 * n * ho * wo * c, transcendentals=0,
            bytes_accessed=(n * h * w * c + n * ho * wo * c) * itemsize),
    )(x)


# ---------------------------------------------------------------------------
# Parameters & full forward pass
# ---------------------------------------------------------------------------
def init_params(key):
    params = []
    for (cin, cout, k, _, _) in LAYER_CFG:
        key, kw_, kg_, kbe_ = jax.random.split(key, 4)
        params.append({
            # conv weight stored in HWIO = (kh, kw, cin, cout); no conv bias kept:
            # train-mode BatchNorm cancels it exactly (see review).
            "w": 0.1 * jax.random.normal(kw_, (k, k, cin, cout), jnp.float32),
            "gamma": 1.0 + 0.1 * jax.random.normal(kg_, (1, cout), jnp.float32),
            "beta": 0.1 * jax.random.normal(kbe_, (1, cout), jnp.float32),
        })
    return params
    # TODO(synk): BN running_mean/running_var buffer updates (training side effect)
    # are not modelled; normalization uses batch statistics as in train mode.


@jax.jit
def stem_v1_forward(x_nchw, params):
    x = jnp.transpose(x_nchw, (0, 2, 3, 1)).astype(jnp.float32)   # NCHW -> NHWC
    # blocks 1..3
    for li in range(3):
        cin, cout, k, s, pad = LAYER_CFG[li]
        x = _conv_bn_relu_layer(x, params[li], cin, cout, k, s, pad)
    # MaxPool2d(kernel=3, stride=2), valid / floor mode
    x = _maxpool_layer(x, 3, 2)
    # blocks 4..6 (last layer emits f32)
    for li in range(3, 6):
        cin, cout, k, s, pad = LAYER_CFG[li]
        out_dtype = jnp.float32 if li == 5 else jnp.bfloat16
        x = _conv_bn_relu_layer(x, params[li], cin, cout, k, s, pad,
                                out_dtype=out_dtype)
    x = x[..., :LAYER_CFG[-1][1]]                                 # drop lane padding
    return jnp.transpose(x, (0, 3, 1, 2))                         # NHWC -> NCHW


if __name__ == "__main__":
    key = jax.random.PRNGKey(0)
    kx, kp = jax.random.split(key)
    # small input: batch=2, 3 channels, 39x39 spatial (keeps every stage >= 1)
    x = jax.random.normal(kx, (2, 3, 39, 39), jnp.float32)
    params = init_params(kp)

    out = stem_v1_forward(x, params)
    out = jax.block_until_ready(out)

    # expected spatial trace: 39 ->19 ->17 ->17 ->pool 8 ->8 ->6 ->2
    assert out.shape == (2, 256, 2, 2), out.shape
    assert out.dtype == jnp.float32
    assert bool(jnp.all(jnp.isfinite(out)))
    print("KERNEL_OK")
</pallas_src>

<mosaic_0001>
module attributes {stable_mosaic.version = 11 : i64} {
  func.func @_conv_stats_kernel(%arg0: i32, %arg1: memref<368x27xbf16, #tpu.memory_space<vmem>>, %arg2: memref<27x128xbf16, #tpu.memory_space<vmem>>, %arg3: memref<368x128xf32, #tpu.memory_space<vmem>>, %arg4: memref<2x128xf32, #tpu.memory_space<vmem>>) attributes {dimension_semantics = [#tpu.dimension_semantics<arbitrary>], iteration_bounds = array<i64: 2>, scalar_prefetch = 0 : i64, scratch_operands = 0 : i64, tpu.core_type = #tpu.core_type<tc>, window_params = [{transform_indices = @transform_0, window_bounds = array<i64: 368, 27>}, {pipeline_mode = #tpu.pipeline_mode<synchronous>, transform_indices = @transform_1, window_bounds = array<i64: 27, 128>}, {transform_indices = @transform_2, window_bounds = array<i64: 368, 128>}, {pipeline_mode = #tpu.pipeline_mode<synchronous>, transform_indices = @transform_3, window_bounds = array<i64: 2, 128>}]} {
    %c0 = arith.constant 0 : index
    %c0_0 = arith.constant 0 : index
    %0 = vector.load %arg1[%c0, %c0_0] : memref<368x27xbf16, #tpu.memory_space<vmem>>, vector<368x27xbf16>
    %c0_1 = arith.constant 0 : index
    %c0_2 = arith.constant 0 : index
    %1 = vector.load %arg2[%c0_1, %c0_2] : memref<27x128xbf16, #tpu.memory_space<vmem>>, vector<27x128xbf16>
    %cst = arith.constant dense<0.000000e+00> : vector<368x128xf32>
    %2 = tpu.matmul %0, %1, %cst {dimension_numbers = #tpu.dot_dimension_numbers<[1], [0], [0], [1], [0, 0, 1, 1], [], []>} : vector<368x27xbf16>, vector<27x128xbf16>, vector<368x128xf32> -> vector<368x128xf32>
    %c0_3 = arith.constant 0 : index
    %c0_4 = arith.constant 0 : index
    %3 = vector.load %arg3[%c0_3, %c0_4] : memref<368x128xf32, #tpu.memory_space<vmem>>, vector<368x128xf32>
    tpu.vector_store %arg3[%c0_3, %c0_4], %2 {strides = array<i32>} : memref<368x128xf32, #tpu.memory_space<vmem>>, vector<368x128xf32>,
    %c0_i32 = arith.constant 0 : i32
    %4 = arith.cmpi eq, %arg0, %c0_i32 : i32
    %5 = arith.extui %4 : i1 to i32
    %c0_i32_5 = arith.constant 0 : i32
    %6 = arith.cmpi ne, %5, %c0_i32_5 : i32
    scf.if %6 {
      %cst_12 = arith.constant 0.000000e+00 : f32
      %16 = vector.broadcast %cst_12 : f32 to vector<2x128xf32>
      %c0_13 = arith.constant 0 : index
      %c0_14 = arith.constant 0 : index
      %17 = vector.load %arg4[%c0_13, %c0_14] : memref<2x128xf32, #tpu.memory_space<vmem>>, vector<2x128xf32>
      tpu.vector_store %arg4[%c0_13, %c0_14], %16 {strides = array<i32>} : memref<2x128xf32, #tpu.memory_space<vmem>>, vector<2x128xf32>,
    } else {
    }
    %c0_6 = arith.constant 0 : index
    %c0_7 = arith.constant 0 : index
    %7 = vector.load %arg4[%c0_6, %c0_7] : memref<2x128xf32, #tpu.memory_space<vmem>>, vector<2x128xf32>
    %cst_8 = arith.constant dense<0.000000e+00> : vector<128xf32>
    %8 = vector.multi_reduction <add>, %2, %cst_8 [0] : vector<368x128xf32> to vector<128xf32>
    %9 = vector.shape_cast %8 : vector<128xf32> to vector<1x128xf32>
    %10 = arith.mulf %2, %2 : vector<368x128xf32>
    %cst_9 = arith.constant dense<0.000000e+00> : vector<128xf32>
    %11 = vector.multi_reduction <add>, %10, %cst_9 [0] : vector<368x128xf32> to vector<128xf32>
    %12 = vector.shape_cast %11 : vector<128xf32> to vector<1x128xf32>
    %13 = tpu.concatenate %9, %12 in 0 : vector<1x128xf32>, vector<1x128xf32> -> vector<2x128xf32>
    %14 = arith.addf %7, %13 : vector<2x128xf32>
    %c0_10 = arith.constant 0 : index
    %c0_11 = arith.constant 0 : index
    %15 = vector.load %arg4[%c0_10, %c0_11] : memref<2x128xf32, #tpu.memory_space<vmem>>, vector<2x128xf32>
    tpu.vector_store %arg4[%c0_10, %c0_11], %14 {strides = array<i32>} : memref<2x128xf32, #tpu.memory_space<vmem>>, vector<2x128xf32>,
    return
  }
  func.func @transform_0(%arg0: i32) -> (i32, i32) {
    %c0_i32 = arith.constant 0 : i32
    %c0_i32_0 = arith.constant 0 : i32
    return %arg0, %c0_i32 : i32, i32
  }
  func.func @transform_1(%arg0: i32) -> (i32, i32) {
    %c0_i32 = arith.constant 0 : i32
    %c0_i32_0 = arith.constant 0 : i32
    %c0_i32_1 = arith.constant 0 : i32
    return %c0_i32, %c0_i32_0 : i32, i32
  }
  func.func @transform_2(%arg0: i32) -> (i32, i32) {
    %c0_i32 = arith.constant 0 : i32
    %c0_i32_0 = arith.constant 0 : i32
    return %arg0, %c0_i32 : i32, i32
  }
  func.func @transform_3(%arg0: i32) -> (i32, i32) {
    %c0_i32 = arith.constant 0 : i32
    %c0_i32_0 = arith.constant 0 : i32
    %c0_i32_1 = arith.constant 0 : i32
    return %c0_i32, %c0_i32_0 : i32, i32
  }
}

module attributes {stable_mosaic.version = 11 : i64} {
  func.func @_bn_relu_kernel(%arg0: i32, %arg1: memref<368x128xf32, #tpu.memory_space<vmem>>, %arg2: memref<1x128xf32, #tpu.memory_space<vmem>>, %arg3: memref<1x128xf32, #tpu.memory_space<vmem>>, %arg4: memref<368x128xbf16, #tpu.memory_space<vmem>>) attributes {dimension_semantics = [#tpu.dimension_semantics<parallel>], iteration_bounds = array<i64: 2>, scalar_prefetch = 0 : i64, scratch_operands = 0 : i64, tpu.core_type = #tpu.core_type<tc>, window_params = [{transform_indices = @transform_0, window_bounds = array<i64: 368, 128>}, {pipeline_mode = #tpu.pipeline_mode<synchronous>, transform_indices = @transform_1, window_bounds = array<i64: 1, 128>}, {pipeline_mode = #tpu.pipeline_mode<synchronous>, transform_indices = @transform_2, window_bounds = array<i64: 1, 128>}, {transform_indices = @transform_3, window_bounds = array<i64: 368, 128>}]} {
    %c0 = arith.constant 0 : index
    %c0_0 = arith.constant 0 : index
    %0 = vector.load %arg1[%c0, %c0_0] : memref<368x128xf32, #tpu.memory_space<vmem>>, vector<368x128xf32>
    %c0_1 = arith.constant 0 : index
    %c0_2 = arith.constant 0 : index
    %1 = vector.load %arg2[%c0_1, %c0_2] : memref<1x128xf32, #tpu.memory_space<vmem>>, vector<1x128xf32>
    %2 = vector.broadcast %1 : vector<1x128xf32> to vector<368x128xf32>
    %3 = arith.mulf %0, %2 : vector<368x128xf32>
    %c0_3 = arith.constant 0 : index
    %c0_4 = arith.constant 0 : index
    %4 = vector.load %arg3[%c0_3, %c0_4] : memref<1x128xf32, #tpu.memory_space<vmem>>, vector<1x128xf32>
    %5 = vector.broadcast %4 : vector<1x128xf32> to vector<368x128xf32>
    %6 = arith.addf %3, %5 : vector<368x128xf32>
    %cst = arith.constant 0.000000e+00 : f32
    %7 = vector.broadcast %cst : f32 to vector<368x128xf32>
    %8 = arith.maximumf %6, %7 : vector<368x128xf32>
    %9 = arith.truncf %8 : vector<368x128xf32> to vector<368x128xbf16>
    %c0_5 = arith.constant 0 : index
    %c0_6 = arith.constant 0 : index
    %10 = vector.load %arg4[%c0_5, %c0_6] : memref<368x128xbf16, #tpu.memory_space<vmem>>, vector<368x128xbf16>
    tpu.vector_store %arg4[%c0_5, %c0_6], %9 {strides = array<i32>} : memref<368x128xbf16, #tpu.memory_space<vmem>>, vector<368x128xbf16>,
    return
  }
  func.func @transform_0(%arg0: i32) -> (i32, i32) {
    %c0_i32 = arith.constant 0 : i32
    %c0_i32_0 = arith.constant 0 : i32
    return %arg0, %c0_i32 : i32, i32
  }
  func.func @transform_1(%arg0: i32) -> (i32, i32) {
    %c0_i32 = arith.constant 0 : i32
    %c0_i32_0 = arith.constant 0 : i32
    %c0_i32_1 = arith.constant 0 : i32
    return %c0_i32, %c0_i32_0 : i32, i32
  }
  func.func @transform_2(%arg0: i32) -> (i32, i32) {
    %c0_i32 = arith.constant 0 : i32
    %c0_i32_0 = arith.constant 0 : i32
    %c0_i32_1 = arith.constant 0 : i32
    return %c0_i32, %c0_i32_0 : i32, i32
  }
  func.func @transform_3(%arg0: i32) -> (i32, i32) {
    %c0_i32 = arith.constant 0 : i32
    %c0_i32_0 = arith.constant 0 : i32
    return %arg0, %c0_i32 : i32, i32
  }
}

module attributes {stable_mosaic.version = 11 : i64} {
  func.func @_conv_stats_kernel(%arg0: i32, %arg1: memref<304x288xbf16, #tpu.memory_space<vmem>>, %arg2: memref<288x128xbf16, #tpu.memory_space<vmem>>, %arg3: memref<304x128xf32, #tpu.memory_space<vmem>>, %arg4: memref<2x128xf32, #tpu.memory_space<vmem>>) attributes {dimension_semantics = [#tpu.dimension_semantics<arbitrary>], iteration_bounds = array<i64: 2>, scalar_prefetch = 0 : i64, scratch_operands = 0 : i64, tpu.core_type = #tpu.core_type<tc>, window_params = [{transform_indices = @transform_0, window_bounds = array<i64: 304, 288>}, {pipeline_mode = #tpu.pipeline_mode<synchronous>, transform_indices = @transform_1, window_bounds = array<i64: 288, 128>}, {transform_indices = @transform_2, window_bounds = array<i64: 304, 128>}, {pipeline_mode = #tpu.pipeline_mode<synchronous>, transform_indices = @transform_3, window_bounds = array<i64: 2, 128>}]} {
    %c0 = arith.constant 0 : index
    %c0_0 = arith.constant 0 : index
    %0 = vector.load %arg1[%c0, %c0_0] : memref<304x288xbf16, #tpu.memory_space<vmem>>, vector<304x288xbf16>
    %c0_1 = arith.constant 0 : index
    %c0_2 = arith.constant 0 : index
    %1 = vector.load %arg2[%c0_1, %c0_2] : memref<288x128xbf16, #tpu.memory_space<vmem>>, vector<288x128xbf16>
    %cst = arith.constant dense<0.000000e+00> : vector<304x128xf32>
    %2 = tpu.matmul %0, %1, %cst {dimension_numbers = #tpu.dot_dimension_numbers<[1], [0], [0], [1], [0, 0, 1, 1], [], []>} : vector<304x288xbf16>, vector<288x128xbf16>, vector<304x128xf32> -> vector<304x128xf32>
    %c0_3 = arith.constant 0 : index
    %c0_4 = arith.constant 0 : index
    %3 = vector.load %arg3[%c0_3, %c0_4] : memref<304x128xf32, #tpu.memory_space<vmem>>, vector<304x128xf32>
    tpu.vector_store %arg3[%c0_3, %c0_4], %2 {strides = array<i32>} : memref<304x128xf32, #tpu.memory_space<vmem>>, vector<304x128xf32>,
    %c0_i32 = arith.constant 0 : i32
    %4 = arith.cmpi eq, %arg0, %c0_i32 : i32
    %5 = arith.extui %4 : i1 to i32
    %c0_i32_5 = arith.constant 0 : i32
    %6 = arith.cmpi ne, %5, %c0_i32_5 : i32
    scf.if %6 {
      %cst_12 = arith.constant 0.000000e+00 : f32
      %16 = vector.broadcast %cst_12 : f32 to vector<2x128xf32>
      %c0_13 = arith.constant 0 : index
      %c0_14 = arith.constant 0 : index
      %17 = vector.load %arg4[%c0_13, %c0_14] : memref<2x128xf32, #tpu.memory_space<vmem>>, vector<2x128xf32>
      tpu.vector_store %arg4[%c0_13, %c0_14], %16 {strides = array<i32>} : memref<2x128xf32, #tpu.memory_space<vmem>>, vector<2x128xf32>,
    } else {
    }
    %c0_6 = arith.constant 0 : index
    %c0_7 = arith.constant 0 : index
    %7 = vector.load %arg4[%c0_6, %c0_7] : memref<2x128xf32, #tpu.memory_space<vmem>>, vector<2x128xf32>
    %cst_8 = arith.constant dense<0.000000e+00> : vector<128xf32>
    %8 = vector.multi_reduction <add>, %2, %cst_8 [0] : vector<304x128xf32> to vector<128xf32>
    %9 = vector.shape_cast %8 : vector<128xf32> to vector<1x128xf32>
    %10 = arith.mulf %2, %2 : vector<304x128xf32>
    %cst_9 = arith.constant dense<0.000000e+00> : vector<128xf32>
    %11 = vector.multi_reduction <add>, %10, %cst_9 [0] : vector<304x128xf32> to vector<128xf32>
    %12 = vector.shape_cast %11 : vector<128xf32> to vector<1x128xf32>
    %13 = tpu.concatenate %9, %12 in 0 : vector<1x128xf32>, vector<1x128xf32> -> vector<2x128xf32>
    %14 = arith.addf %7, %13 : vector<2x128xf32>
    %c0_10 = arith.constant 0 : index
    %c0_11 = arith.constant 0 : index
    %15 = vector.load %arg4[%c0_10, %c0_11] : memref<2x128xf32, #tpu.memory_space<vmem>>, vector<2x128xf32>
    tpu.vector_store %arg4[%c0_10, %c0_11], %14 {strides = array<i32>} : memref<2x128xf32, #tpu.memory_space<vmem>>, vector<2x128xf32>,
    return
  }
  func.func @transform_0(%arg0: i32) -> (i32, i32) {
    %c0_i32 = arith.constant 0 : i32
    %c0_i32_0 = arith.constant 0 : i32
    return %arg0, %c0_i32 : i32, i32
  }
  func.func @transform_1(%arg0: i32) -> (i32, i32) {
    %c0_i32 = arith.constant 0 : i32
    %c0_i32_0 = arith.constant 0 : i32
    %c0_i32_1 = arith.constant 0 : i32
    return %c0_i32, %c0_i32_0 : i32, i32
  }
  func.func @transform_2(%arg0: i32) -> (i32, i32) {
    %c0_i32 = arith.constant 0 : i32
    %c0_i32_0 = arith.constant 0 : i32
    return %arg0, %c0_i32 : i32, i32
  }
  func.func @transform_3(%arg0: i32) -> (i32, i32) {
    %c0_i32 = arith.constant 0 : i32
    %c0_i32_0 = arith.constant 0 : i32
    %c0_i32_1 = arith.constant 0 : i32
    return %c0_i32, %c0_i32_0 : i32, i32
  }
}

module attributes {stable_mosaic.version = 11 : i64} {
  func.func @_bn_relu_kernel(%arg0: i32, %arg1: memref<304x128xf32, #tpu.memory_space<vmem>>, %arg2: memref<1x128xf32, #tpu.memory_space<vmem>>, %arg3: memref<1x128xf32, #tpu.memory_space<vmem>>, %arg4: memref<304x128xbf16, #tpu.memory_space<vmem>>) attributes {dimension_semantics = [#tpu.dimension_semantics<parallel>], iteration_bounds = array<i64: 2>, scalar_prefetch = 0 : i64, scratch_operands = 0 : i64, tpu.core_type = #tpu.core_type<tc>, window_params = [{transform_indices = @transform_0, window_bounds = array<i64: 304, 128>}, {pipeline_mode = #tpu.pipeline_mode<synchronous>, transform_indices = @transform_1, window_bounds = array<i64: 1, 128>}, {pipeline_mode = #tpu.pipeline_mode<synchronous>, transform_indices = @transform_2, window_bounds = array<i64: 1, 128>}, {transform_indices = @transform_3, window_bounds = array<i64: 304, 128>}]} {
    %c0 = arith.constant 0 : index
    %c0_0 = arith.constant 0 : index
    %0 = vector.load %arg1[%c0, %c0_0] : memref<304x128xf32, #tpu.memory_space<vmem>>, vector<304x128xf32>
    %c0_1 = arith.constant 0 : index
    %c0_2 = arith.constant 0 : index
    %1 = vector.load %arg2[%c0_1, %c0_2] : memref<1x128xf32, #tpu.memory_space<vmem>>, vector<1x128xf32>
    %2 = vector.broadcast %1 : vector<1x128xf32> to vector<304x128xf32>
    %3 = arith.mulf %0, %2 : vector<304x128xf32>
    %c0_3 = arith.constant 0 : index
    %c0_4 = arith.constant 0 : index
    %4 = vector.load %arg3[%c0_3, %c0_4] : memref<1x128xf32, #tpu.memory_space<vmem>>, vector<1x128xf32>
    %5 = vector.broadcast %4 : vector<1x128xf32> to vector<304x128xf32>
    %6 = arith.addf %3, %5 : vector<304x128xf32>
    %cst = arith.constant 0.000000e+00 : f32
    %7 = vector.broadcast %cst : f32 to vector<304x128xf32>
    %8 = arith.maximumf %6, %7 : vector<304x128xf32>
    %9 = arith.truncf %8 : vector<304x128xf32> to vector<304x128xbf16>
    %c0_5 = arith.constant 0 : index
    %c0_6 = arith.constant 0 : index
    %10 = vector.load %arg4[%c0_5, %c0_6] : memref<304x128xbf16, #tpu.memory_space<vmem>>, vector<304x128xbf16>
    tpu.vector_store %arg4[%c0_5, %c0_6], %9 {strides = array<i32>} : memref<304x128xbf16, #tpu.memory_space<vmem>>, vector<304x128xbf16>,
    return
  }
  func.func @transform_0(%arg0: i32) -> (i32, i32) {
    %c0_i32 = arith.constant 0 : i32
    %c0_i32_0 = arith.constant 0 : i32
    return %arg0, %c0_i32 : i32, i32
  }
  func.func @transform_1(%arg0: i32) -> (i32, i32) {
    %c0_i32 = arith.constant 0 : i32
    %c0_i32_0 = arith.constant 0 : i32
    %c0_i32_1 = arith.constant 0 : i32
    return %c0_i32, %c0_i32_0 : i32, i32
  }
  func.func @transform_2(%arg0: i32) -> (i32, i32) {
    %c0_i32 = arith.constant 0 : i32
    %c0_i32_0 = arith.constant 0 : i32
    %c0_i32_1 = arith.constant 0 : i32
    return %c0_i32, %c0_i32_0 : i32, i32
  }
  func.func @transform_3(%arg0: i32) -> (i32, i32) {
    %c0_i32 = arith.constant 0 : i32
    %c0_i32_0 = arith.constant 0 : i32
    return %arg0, %c0_i32 : i32, i32
  }
}

module attributes {stable_mosaic.version = 11 : i64} {
  func.func @_maxpool3x3s2_kernel(%arg0: i32, %arg1: memref<1x17x17x128xbf16, #tpu.memory_space<vmem>>, %arg2: memref<1x8x8x128xbf16, #tpu.memory_space<vmem>>) attributes {dimension_semantics = [#tpu.dimension_semantics<parallel>], iteration_bounds = array<i64: 2>, scalar_prefetch = 0 : i64, scratch_operands = 0 : i64, tpu.core_type = #tpu.core_type<tc>, window_params = [{transform_indices = @transform_0, window_bounds = array<i64: 1, 17, 17, 128>}, {transform_indices = @transform_1, window_bounds = array<i64: 1, 8, 8, 128>}]} {
    %c0 = arith.constant 0 : index
    %c0_0 = arith.constant 0 : index
    %c0_1 = arith.constant 0 : index
    %c0_2 = arith.constant 0 : index
    %0 = vector.load %arg1[%c0, %c0_0, %c0_1, %c0_2] : memref<1x17x17x128xbf16, #tpu.memory_space<vmem>>, vector<1x17x17x128xbf16>
    %1 = vector.shape_cast %0 : vector<1x17x17x128xbf16> to vector<17x17x128xbf16>
    %2 = vector.extract_strided_slice %1 {offsets = [0, 0, 0], sizes = [16, 17, 128], strides = [1, 1, 1]} : vector<17x17x128xbf16> to vector<16x17x128xbf16>
    %3 = vector.shape_cast %2 : vector<16x17x128xbf16> to vector<8x2x17x128xbf16>
    %cst = arith.constant dense<0xFF80> : vector<8x17x128xbf16>
    %4 = vector.multi_reduction <maximumf>, %3, %cst [1] : vector<8x2x17x128xbf16> to vector<8x17x128xbf16>
    %5 = vector.extract_strided_slice %1 {offsets = [1, 0, 0], sizes = [16, 17, 128], strides = [1, 1, 1]} : vector<17x17x128xbf16> to vector<16x17x128xbf16>
    %6 = vector.shape_cast %5 : vector<16x17x128xbf16> to vector<8x2x17x128xbf16>
    %cst_3 = arith.constant dense<0xFF80> : vector<8x17x128xbf16>
    %7 = vector.multi_reduction <maximumf>, %6, %cst_3 [1] : vector<8x2x17x128xbf16> to vector<8x17x128xbf16>
    %8 = arith.maximumf %4, %7 : vector<8x17x128xbf16>
    %9 = vector.extract_strided_slice %8 {offsets = [0, 0, 0], sizes = [8, 16, 128], strides = [1, 1, 1]} : vector<8x17x128xbf16> to vector<8x16x128xbf16>
    %10 = vector.shape_cast %9 : vector<8x16x128xbf16> to vector<8x8x2x128xbf16>
    %cst_4 = arith.constant dense<0xFF80> : vector<8x8x128xbf16>
    %11 = vector.multi_reduction <maximumf>, %10, %cst_4 [2] : vector<8x8x2x128xbf16> to vector<8x8x128xbf16>
    %12 = vector.extract_strided_slice %8 {offsets = [0, 1, 0], sizes = [8, 16, 128], strides = [1, 1, 1]} : vector<8x17x128xbf16> to vector<8x16x128xbf16>
    %13 = vector.shape_cast %12 : vector<8x16x128xbf16> to vector<8x8x2x128xbf16>
    %cst_5 = arith.constant dense<0xFF80> : vector<8x8x128xbf16>
    %14 = vector.multi_reduction <maximumf>, %13, %cst_5 [2] : vector<8x8x2x128xbf16> to vector<8x8x128xbf16>
    %15 = arith.maximumf %11, %14 : vector<8x8x128xbf16>
    %c0_6 = arith.constant 0 : index
    %c0_7 = arith.constant 0 : index
    %c0_8 = arith.constant 0 : index
    %c0_9 = arith.constant 0 : index
    %16 = vector.load %arg2[%c0_6, %c0_7, %c0_8, %c0_9] : memref<1x8x8x128xbf16, #tpu.memory_space<vmem>>, vector<1x8x8x128xbf16>
    %17 = vector.shape_cast %16 : vector<1x8x8x128xbf16> to vector<8x8x128xbf16>
    %18 = vector.shape_cast %15 : vector<8x8x128xbf16> to vector<1x8x8x128xbf16>
    tpu.vector_store %arg2[%c0_6, %c0_7, %c0_8, %c0_9], %18 {strides = array<i32>} : memref<1x8x8x128xbf16, #tpu.memory_space<vmem>>, vector<1x8x8x128xbf16>,
    return
  }
  func.func @transform_0(%arg0: i32) -> (i32, i32, i32, i32) {
    %c0_i32 = arith.constant 0 : i32
    %c0_i32_0 = arith.constant 0 : i32
    %c0_i32_1 = arith.constant 0 : i32
    %c0_i32_2 = arith.constant 0 : i32
    return %arg0, %c0_i32, %c0_i32_0, %c0_i32_1 : i32, i32, i32, i32
  }
  func.func @transform_1(%arg0: i32) -> (i32, i32, i32, i32) {
    %c0_i32 = arith.constant 0 : i32
    %c0_i32_0 = arith.constant 0 : i32
    %c0_i32_1 = arith.constant 0 : i32
    %c0_i32_2 = arith.constant 0 : i32
    return %arg0, %c0_i32, %c0_i32_0, %c0_i32_1 : i32, i32, i32, i32
  }
}

module attributes {stable_mosaic.version = 11 : i64} {
  func.func @_conv_stats_kernel(%arg0: i32, %arg1: memref<128x64xbf16, #tpu.memory_space<vmem>>, %arg2: memref<64x128xbf16, #tpu.memory_space<vmem>>, %arg3: memref<128x128xf32, #tpu.memory_space<vmem>>, %arg4: memref<2x128xf32, #tpu.memory_space<vmem>>) attributes {dimension_semantics = [#tpu.dimension_semantics<arbitrary>], iteration_bounds = array<i64: 1>, scalar_prefetch = 0 : i64, scratch_operands = 0 : i64, tpu.core_type = #tpu.core_type<tc>, window_params = [{transform_indices = @transform_0, window_bounds = array<i64: 128, 64>}, {pipeline_mode = #tpu.pipeline_mode<synchronous>, transform_indices = @transform_1, window_bounds = array<i64: 64, 128>}, {transform_indices = @transform_2, window_bounds = array<i64: 128, 128>}, {pipeline_mode = #tpu.pipeline_mode<synchronous>, transform_indices = @transform_3, window_bounds = array<i64: 2, 128>}]} {
    %c0 = arith.constant 0 : index
    %c0_0 = arith.constant 0 : index
    %0 = vector.load %arg1[%c0, %c0_0] : memref<128x64xbf16, #tpu.memory_space<vmem>>, vector<128x64xbf16>
    %c0_1 = arith.constant 0 : index
    %c0_2 = arith.constant 0 : index
    %1 = vector.load %arg2[%c0_1, %c0_2] : memref<64x128xbf16, #tpu.memory_space<vmem>>, vector<64x128xbf16>
    %cst = arith.constant dense<0.000000e+00> : vector<128x128xf32>
    %2 = tpu.matmul %0, %1, %cst {dimension_numbers = #tpu.dot_dimension_numbers<[1], [0], [0], [1], [0, 0, 1, 1], [], []>} : vector<128x64xbf16>, vector<64x128xbf16>, vector<128x128xf32> -> vector<128x128xf32>
    %c0_3 = arith.constant 0 : index
    %c0_4 = arith.constant 0 : index
    %3 = vector.load %arg3[%c0_3, %c0_4] : memref<128x128xf32, #tpu.memory_space<vmem>>, vector<128x128xf32>
    tpu.vector_store %arg3[%c0_3, %c0_4], %2 {strides = array<i32>} : memref<128x128xf32, #tpu.memory_space<vmem>>, vector<128x128xf32>,
    %c0_i32 = arith.constant 0 : i32
    %4 = arith.cmpi eq, %arg0, %c0_i32 : i32
    %5 = arith.extui %4 : i1 to i32
    %c0_i32_5 = arith.constant 0 : i32
    %6 = arith.cmpi ne, %5, %c0_i32_5 : i32
    scf.if %6 {
      %cst_12 = arith.constant 0.000000e+00 : f32
      %16 = vector.broadcast %cst_12 : f32 to vector<2x128xf32>
      %c0_13 = arith.constant 0 : index
      %c0_14 = arith.constant 0 : index
      %17 = vector.load %arg4[%c0_13, %c0_14] : memref<2x128xf32, #tpu.memory_space<vmem>>, vector<2x128xf32>
      tpu.vector_store %arg4[%c0_13, %c0_14], %16 {strides = array<i32>} : memref<2x128xf32, #tpu.memory_space<vmem>>, vector<2x128xf32>,
    } else {
    }
    %c0_6 = arith.constant 0 : index
    %c0_7 = arith.constant 0 : index
    %7 = vector.load %arg4[%c0_6, %c0_7] : memref<2x128xf32, #tpu.memory_space<vmem>>, vector<2x128xf32>
    %cst_8 = arith.constant dense<0.000000e+00> : vector<128xf32>
    %8 = vector.multi_reduction <add>, %2, %cst_8 [0] : vector<128x128xf32> to vector<128xf32>
    %9 = vector.shape_cast %8 : vector<128xf32> to vector<1x128xf32>
    %10 = arith.mulf %2, %2 : vector<128x128xf32>
    %cst_9 = arith.constant dense<0.000000e+00> : vector<128xf32>
    %11 = vector.multi_reduction <add>, %10, %cst_9 [0] : vector<128x128xf32> to vector<128xf32>
    %12 = vector.shape_cast %11 : vector<128xf32> to vector<1x128xf32>
    %13 = tpu.concatenate %9, %12 in 0 : vector<1x128xf32>, vector<1x128xf32> -> vector<2x128xf32>
    %14 = arith.addf %7, %13 : vector<2x128xf32>
    %c0_10 = arith.constant 0 : index
    %c0_11 = arith.constant 0 : index
    %15 = vector.load %arg4[%c0_10, %c0_11] : memref<2x128xf32, #tpu.memory_space<vmem>>, vector<2x128xf32>
    tpu.vector_store %arg4[%c0_10, %c0_11], %14 {strides = array<i32>} : memref<2x128xf32, #tpu.memory_space<vmem>>, vector<2x128xf32>,
    return
  }
  func.func @transform_0(%arg0: i32) -> (i32, i32) {
    %c0_i32 = arith.constant 0 : i32
    %c0_i32_0 = arith.constant 0 : i32
    return %arg0, %c0_i32 : i32, i32
  }
  func.func @transform_1(%arg0: i32) -> (i32, i32) {
    %c0_i32 = arith.constant 0 : i32
    %c0_i32_0 = arith.constant 0 : i32
    %c0_i32_1 = arith.constant 0 : i32
    return %c0_i32, %c0_i32_0 : i32, i32
  }
  func.func @transform_2(%arg0: i32) -> (i32, i32) {
    %c0_i32 = arith.constant 0 : i32
    %c0_i32_0 = arith.constant 0 : i32
    return %arg0, %c0_i32 : i32, i32
  }
  func.func @transform_3(%arg0: i32) -> (i32, i32) {
    %c0_i32 = arith.constant 0 : i32
    %c0_i32_0 = arith.constant 0 : i32
    %c0_i32_1 = arith.constant 0 : i32
    return %c0_i32, %c0_i32_0 : i32, i32
  }
}

module attributes {stable_mosaic.version = 11 : i64} {
  func.func @_bn_relu_kernel(%arg0: i32, %arg1: memref<128x128xf32, #tpu.memory_space<vmem>>, %arg2: memref<1x128xf32, #tpu.memory_space<vmem>>, %arg3: memref<1x128xf32, #tpu.memory_space<vmem>>, %arg4: memref<128x128xbf16, #tpu.memory_space<vmem>>) attributes {dimension_semantics = [#tpu.dimension_semantics<parallel>], iteration_bounds = array<i64: 1>, scalar_prefetch = 0 : i64, scratch_operands = 0 : i64, tpu.core_type = #tpu.core_type<tc>, window_params = [{transform_indices = @transform_0, window_bounds = array<i64: 128, 128>}, {pipeline_mode = #tpu.pipeline_mode<synchronous>, transform_indices = @transform_1, window_bounds = array<i64: 1, 128>}, {pipeline_mode = #tpu.pipeline_mode<synchronous>, transform_indices = @transform_2, window_bounds = array<i64: 1, 128>}, {transform_indices = @transform_3, window_bounds = array<i64: 128, 128>}]} {
    %c0 = arith.constant 0 : index
    %c0_0 = arith.constant 0 : index
    %0 = vector.load %arg1[%c0, %c0_0] : memref<128x128xf32, #tpu.memory_space<vmem>>, vector<128x128xf32>
    %c0_1 = arith.constant 0 : index
    %c0_2 = arith.constant 0 : index
    %1 = vector.load %arg2[%c0_1, %c0_2] : memref<1x128xf32, #tpu.memory_space<vmem>>, vector<1x128xf32>
    %2 = vector.broadcast %1 : vector<1x128xf32> to vector<128x128xf32>
    %3 = arith.mulf %0, %2 : vector<128x128xf32>
    %c0_3 = arith.constant 0 : index
    %c0_4 = arith.constant 0 : index
    %4 = vector.load %arg3[%c0_3, %c0_4] : memref<1x128xf32, #tpu.memory_space<vmem>>, vector<1x128xf32>
    %5 = vector.broadcast %4 : vector<1x128xf32> to vector<128x128xf32>
    %6 = arith.addf %3, %5 : vector<128x128xf32>
    %cst = arith.constant 0.000000e+00 : f32
    %7 = vector.broadcast %cst : f32 to vector<128x128xf32>
    %8 = arith.maximumf %6, %7 : vector<128x128xf32>
    %9 = arith.truncf %8 : vector<128x128xf32> to vector<128x128xbf16>
    %c0_5 = arith.constant 0 : index
    %c0_6 = arith.constant 0 : index
    %10 = vector.load %arg4[%c0_5, %c0_6] : memref<128x128xbf16, #tpu.memory_space<vmem>>, vector<128x128xbf16>
    tpu.vector_store %arg4[%c0_5, %c0_6], %9 {strides = array<i32>} : memref<128x128xbf16, #tpu.memory_space<vmem>>, vector<128x128xbf16>,
    return
  }
  func.func @transform_0(%arg0: i32) -> (i32, i32) {
    %c0_i32 = arith.constant 0 : i32
    %c0_i32_0 = arith.constant 0 : i32
    return %arg0, %c0_i32 : i32, i32
  }
  func.func @transform_1(%arg0: i32) -> (i32, i32) {
    %c0_i32 = arith.constant 0 : i32
    %c0_i32_0 = arith.constant 0 : i32
    %c0_i32_1 = arith.constant 0 : i32
    return %c0_i32, %c0_i32_0 : i32, i32
  }
  func.func @transform_2(%arg0: i32) -> (i32, i32) {
    %c0_i32 = arith.constant 0 : i32
    %c0_i32_0 = arith.constant 0 : i32
    %c0_i32_1 = arith.constant 0 : i32
    return %c0_i32, %c0_i32_0 : i32, i32
  }
  func.func @transform_3(%arg0: i32) -> (i32, i32) {
    %c0_i32 = arith.constant 0 : i32
    %c0_i32_0 = arith.constant 0 : i32
    return %arg0, %c0_i32 : i32, i32
  }
}

module attributes {stable_mosaic.version = 11 : i64} {
  func.func @_conv_stats_kernel(%arg0: i32, %arg1: memref<80x720xbf16, #tpu.memory_space<vmem>>, %arg2: memref<720x256xbf16, #tpu.memory_space<vmem>>, %arg3: memref<80x256xf32, #tpu.memory_space<vmem>>, %arg4: memref<2x256xf32, #tpu.memory_space<vmem>>) attributes {dimension_semantics = [#tpu.dimension_semantics<arbitrary>], iteration_bounds = array<i64: 1>, scalar_prefetch = 0 : i64, scratch_operands = 0 : i64, tpu.core_type = #tpu.core_type<tc>, window_params = [{transform_indices = @transform_0, window_bounds = array<i64: 80, 720>}, {pipeline_mode = #tpu.pipeline_mode<synchronous>, transform_indices = @transform_1, window_bounds = array<i64: 720, 256>}, {transform_indices = @transform_2, window_bounds = array<i64: 80, 256>}, {pipeline_mode = #tpu.pipeline_mode<synchronous>, transform_indices = @transform_3, window_bounds = array<i64: 2, 256>}]} {
    %c0 = arith.constant 0 : index
    %c0_0 = arith.constant 0 : index
    %0 = vector.load %arg1[%c0, %c0_0] : memref<80x720xbf16, #tpu.memory_space<vmem>>, vector<80x720xbf16>
    %c0_1 = arith.constant 0 : index
    %c0_2 = arith.constant 0 : index
    %1 = vector.load %arg2[%c0_1, %c0_2] : memref<720x256xbf16, #tpu.memory_space<vmem>>, vector<720x256xbf16>
    %cst = arith.constant dense<0.000000e+00> : vector<80x256xf32>
    %2 = tpu.matmul %0, %1, %cst {dimension_numbers = #tpu.dot_dimension_numbers<[1], [0], [0], [1], [0, 0, 1, 1], [], []>} : vector<80x720xbf16>, vector<720x256xbf16>, vector<80x256xf32> -> vector<80x256xf32>
    %c0_3 = arith.constant 0 : index
    %c0_4 = arith.constant 0 : index
    %3 = vector.load %arg3[%c0_3, %c0_4] : memref<80x256xf32, #tpu.memory_space<vmem>>, vector<80x256xf32>
    tpu.vector_store %arg3[%c0_3, %c0_4], %2 {strides = array<i32>} : memref<80x256xf32, #tpu.memory_space<vmem>>, vector<80x256xf32>,
    %c0_i32 = arith.constant 0 : i32
    %4 = arith.cmpi eq, %arg0, %c0_i32 : i32
    %5 = arith.extui %4 : i1 to i32
    %c0_i32_5 = arith.constant 0 : i32
    %6 = arith.cmpi ne, %5, %c0_i32_5 : i32
    scf.if %6 {
      %cst_12 = arith.constant 0.000000e+00 : f32
      %16 = vector.broadcast %cst_12 : f32 to vector<2x256xf32>
      %c0_13 = arith.constant 0 : index
      %c0_14 = arith.constant 0 : index
      %17 = vector.load %arg4[%c0_13, %c0_14] : memref<2x256xf32, #tpu.memory_space<vmem>>, vector<2x256xf32>
      tpu.vector_store %arg4[%c0_13, %c0_14], %16 {strides = array<i32>} : memref<2x256xf32, #tpu.memory_space<vmem>>, vector<2x256xf32>,
    } else {
    }
    %c0_6 = arith.constant 0 : index
    %c0_7 = arith.constant 0 : index
    %7 = vector.load %arg4[%c0_6, %c0_7] : memref<2x256xf32, #tpu.memory_space<vmem>>, vector<2x256xf32>
    %cst_8 = arith.constant dense<0.000000e+00> : vector<256xf32>
    %8 = vector.multi_reduction <add>, %2, %cst_8 [0] : vector<80x256xf32> to vector<256xf32>
    %9 = vector.shape_cast %8 : vector<256xf32> to vector<1x256xf32>
    %10 = arith.mulf %2, %2 : vector<80x256xf32>
    %cst_9 = arith.constant dense<0.000000e+00> : vector<256xf32>
    %11 = vector.multi_reduction <add>, %10, %cst_9 [0] : vector<80x256xf32> to vector<256xf32>
    %12 = vector.shape_cast %11 : vector<256xf32> to vector<1x256xf32>
    %13 = tpu.concatenate %9, %12 in 0 : vector<1x256xf32>, vector<1x256xf32> -> vector<2x256xf32>
    %14 = arith.addf %7, %13 : vector<2x256xf32>
    %c0_10 = arith.constant 0 : index
    %c0_11 = arith.constant 0 : index
    %15 = vector.load %arg4[%c0_10, %c0_11] : memref<2x256xf32, #tpu.memory_space<vmem>>, vector<2x256xf32>
    tpu.vector_store %arg4[%c0_10, %c0_11], %14 {strides = array<i32>} : memref<2x256xf32, #tpu.memory_space<vmem>>, vector<2x256xf32>,
    return
  }
  func.func @transform_0(%arg0: i32) -> (i32, i32) {
    %c0_i32 = arith.constant 0 : i32
    %c0_i32_0 = arith.constant 0 : i32
    return %arg0, %c0_i32 : i32, i32
  }
  func.func @transform_1(%arg0: i32) -> (i32, i32) {
    %c0_i32 = arith.constant 0 : i32
    %c0_i32_0 = arith.constant 0 : i32
    %c0_i32_1 = arith.constant 0 : i32
    return %c0_i32, %c0_i32_0 : i32, i32
  }
  func.func @transform_2(%arg0: i32) -> (i32, i32) {
    %c0_i32 = arith.constant 0 : i32
    %c0_i32_0 = arith.constant 0 : i32
    return %arg0, %c0_i32 : i32, i32
  }
  func.func @transform_3(%arg0: i32) -> (i32, i32) {
    %c0_i32 = arith.constant 0 : i32
    %c0_i32_0 = arith.constant 0 : i32
    %c0_i32_1 = arith.constant 0 : i32
    return %c0_i32, %c0_i32_0 : i32, i32
  }
}

module attributes {stable_mosaic.version = 11 : i64} {
  func.func @_bn_relu_kernel(%arg0: i32, %arg1: memref<80x256xf32, #tpu.memory_space<vmem>>, %arg2: memref<1x256xf32, #tpu.memory_space<vmem>>, %arg3: memref<1x256xf32, #tpu.memory_space<vmem>>, %arg4: memref<80x256xbf16, #tpu.memory_space<vmem>>) attributes {dimension_semantics = [#tpu.dimension_semantics<parallel>], iteration_bounds = array<i64: 1>, scalar_prefetch = 0 : i64, scratch_operands = 0 : i64, tpu.core_type = #tpu.core_type<tc>, window_params = [{transform_indices = @transform_0, window_bounds = array<i64: 80, 256>}, {pipeline_mode = #tpu.pipeline_mode<synchronous>, transform_indices = @transform_1, window_bounds = array<i64: 1, 256>}, {pipeline_mode = #tpu.pipeline_mode<synchronous>, transform_indices = @transform_2, window_bounds = array<i64: 1, 256>}, {transform_indices = @transform_3, window_bounds = array<i64: 80, 256>}]} {
    %c0 = arith.constant 0 : index
    %c0_0 = arith.constant 0 : index
    %0 = vector.load %arg1[%c0, %c0_0] : memref<80x256xf32, #tpu.memory_space<vmem>>, vector<80x256xf32>
    %c0_1 = arith.constant 0 : index
    %c0_2 = arith.constant 0 : index
    %1 = vector.load %arg2[%c0_1, %c0_2] : memref<1x256xf32, #tpu.memory_space<vmem>>, vector<1x256xf32>
    %2 = vector.broadcast %1 : vector<1x256xf32> to vector<80x256xf32>
    %3 = arith.mulf %0, %2 : vector<80x256xf32>
    %c0_3 = arith.constant 0 : index
    %c0_4 = arith.constant 0 : index
    %4 = vector.load %arg3[%c0_3, %c0_4] : memref<1x256xf32, #tpu.memory_space<vmem>>, vector<1x256xf32>
    %5 = vector.broadcast %4 : vector<1x256xf32> to vector<80x256xf32>
    %6 = arith.addf %3, %5 : vector<80x256xf32>
    %cst = arith.constant 0.000000e+00 : f32
    %7 = vector.broadcast %cst : f32 to vector<80x256xf32>
    %8 = arith.maximumf %6, %7 : vector<80x256xf32>
    %9 = arith.truncf %8 : vector<80x256xf32> to vector<80x256xbf16>
    %c0_5 = arith.constant 0 : index
    %c0_6 = arith.constant 0 : index
    %10 = vector.load %arg4[%c0_5, %c0_6] : memref<80x256xbf16, #tpu.memory_space<vmem>>, vector<80x256xbf16>
    tpu.vector_store %arg4[%c0_5, %c0_6], %9 {strides = array<i32>} : memref<80x256xbf16, #tpu.memory_space<vmem>>, vector<80x256xbf16>,
    return
  }
  func.func @transform_0(%arg0: i32) -> (i32, i32) {
    %c0_i32 = arith.constant 0 : i32
    %c0_i32_0 = arith.constant 0 : i32
    return %arg0, %c0_i32 : i32, i32
  }
  func.func @transform_1(%arg0: i32) -> (i32, i32) {
    %c0_i32 = arith.constant 0 : i32
    %c0_i32_0 = arith.constant 0 : i32
    %c0_i32_1 = arith.constant 0 : i32
    return %c0_i32, %c0_i32_0 : i32, i32
  }
  func.func @transform_2(%arg0: i32) -> (i32, i32) {
    %c0_i32 = arith.constant 0 : i32
    %c0_i32_0 = arith.constant 0 : i32
    %c0_i32_1 = arith.constant 0 : i32
    return %c0_i32, %c0_i32_0 : i32, i32
  }
  func.func @transform_3(%arg0: i32) -> (i32, i32) {
    %c0_i32 = arith.constant 0 : i32
    %c0_i32_0 = arith.constant 0 : i32
    return %arg0, %c0_i32 : i32, i32
  }
}

module attributes {stable_mosaic.version = 11 : i64} {
  func.func @_conv_stats_kernel(%arg0: i32, %arg1: memref<16x1728xbf16, #tpu.memory_space<vmem>>, %arg2: memref<1728x256xbf16, #tpu.memory_space<vmem>>, %arg3: memref<16x256xf32, #tpu.memory_space<vmem>>, %arg4: memref<2x256xf32, #tpu.memory_space<vmem>>) attributes {dimension_semantics = [#tpu.dimension_semantics<arbitrary>], iteration_bounds = array<i64: 1>, scalar_prefetch = 0 : i64, scratch_operands = 0 : i64, tpu.core_type = #tpu.core_type<tc>, window_params = [{transform_indices = @transform_0, window_bounds = array<i64: 16, 1728>}, {pipeline_mode = #tpu.pipeline_mode<synchronous>, transform_indices = @transform_1, window_bounds = array<i64: 1728, 256>}, {transform_indices = @transform_2, window_bounds = array<i64: 16, 256>}, {pipeline_mode = #tpu.pipeline_mode<synchronous>, transform_indices = @transform_3, window_bounds = array<i64: 2, 256>}]} {
    %c0 = arith.constant 0 : index
    %c0_0 = arith.constant 0 : index
    %0 = vector.load %arg1[%c0, %c0_0] : memref<16x1728xbf16, #tpu.memory_space<vmem>>, vector<16x1728xbf16>
    %c0_1 = arith.constant 0 : index
    %c0_2 = arith.constant 0 : index
    %1 = vector.load %arg2[%c0_1, %c0_2] : memref<1728x256xbf16, #tpu.memory_space<vmem>>, vector<1728x256xbf16>
    %cst = arith.constant dense<0.000000e+00> : vector<16x256xf32>
    %2 = tpu.matmul %0, %1, %cst {dimension_numbers = #tpu.dot_dimension_numbers<[1], [0], [0], [1], [0, 0, 1, 1], [], []>} : vector<16x1728xbf16>, vector<1728x256xbf16>, vector<16x256xf32> -> vector<16x256xf32>
    %c0_3 = arith.constant 0 : index
    %c0_4 = arith.constant 0 : index
    %3 = vector.load %arg3[%c0_3, %c0_4] : memref<16x256xf32, #tpu.memory_space<vmem>>, vector<16x256xf32>
    tpu.vector_store %arg3[%c0_3, %c0_4], %2 {strides = array<i32>} : memref<16x256xf32, #tpu.memory_space<vmem>>, vector<16x256xf32>,
    %c0_i32 = arith.constant 0 : i32
    %4 = arith.cmpi eq, %arg0, %c0_i32 : i32
    %5 = arith.extui %4 : i1 to i32
    %c0_i32_5 = arith.constant 0 : i32
    %6 = arith.cmpi ne, %5, %c0_i32_5 : i32
    scf.if %6 {
      %cst_12 = arith.constant 0.000000e+00 : f32
      %16 = vector.broadcast %cst_12 : f32 to vector<2x256xf32>
      %c0_13 = arith.constant 0 : index
      %c0_14 = arith.constant 0 : index
      %17 = vector.load %arg4[%c0_13, %c0_14] : memref<2x256xf32, #tpu.memory_space<vmem>>, vector<2x256xf32>
      tpu.vector_store %arg4[%c0_13, %c0_14], %16 {strides = array<i32>} : memref<2x256xf32, #tpu.memory_space<vmem>>, vector<2x256xf32>,
    } else {
    }
    %c0_6 = arith.constant 0 : index
    %c0_7 = arith.constant 0 : index
    %7 = vector.load %arg4[%c0_6, %c0_7] : memref<2x256xf32, #tpu.memory_space<vmem>>, vector<2x256xf32>
    %cst_8 = arith.constant dense<0.000000e+00> : vector<256xf32>
    %8 = vector.multi_reduction <add>, %2, %cst_8 [0] : vector<16x256xf32> to vector<256xf32>
    %9 = vector.shape_cast %8 : vector<256xf32> to vector<1x256xf32>
    %10 = arith.mulf %2, %2 : vector<16x256xf32>
    %cst_9 = arith.constant dense<0.000000e+00> : vector<256xf32>
    %11 = vector.multi_reduction <add>, %10, %cst_9 [0] : vector<16x256xf32> to vector<256xf32>
    %12 = vector.shape_cast %11 : vector<256xf32> to vector<1x256xf32>
    %13 = tpu.concatenate %9, %12 in 0 : vector<1x256xf32>, vector<1x256xf32> -> vector<2x256xf32>
    %14 = arith.addf %7, %13 : vector<2x256xf32>
    %c0_10 = arith.constant 0 : index
    %c0_11 = arith.constant 0 : index
    %15 = vector.load %arg4[%c0_10, %c0_11] : memref<2x256xf32, #tpu.memory_space<vmem>>, vector<2x256xf32>
    tpu.vector_store %arg4[%c0_10, %c0_11], %14 {strides = array<i32>} : memref<2x256xf32, #tpu.memory_space<vmem>>, vector<2x256xf32>,
    return
  }
  func.func @transform_0(%arg0: i32) -> (i32, i32) {
    %c0_i32 = arith.constant 0 : i32
    %c0_i32_0 = arith.constant 0 : i32
    return %arg0, %c0_i32 : i32, i32
  }
  func.func @transform_1(%arg0: i32) -> (i32, i32) {
    %c0_i32 = arith.constant 0 : i32
    %c0_i32_0 = arith.constant 0 : i32
    %c0_i32_1 = arith.constant 0 : i32
    return %c0_i32, %c0_i32_0 : i32, i32
  }
  func.func @transform_2(%arg0: i32) -> (i32, i32) {
    %c0_i32 = arith.constant 0 : i32
    %c0_i32_0 = arith.constant 0 : i32
    return %arg0, %c0_i32 : i32, i32
  }
  func.func @transform_3(%arg0: i32) -> (i32, i32) {
    %c0_i32 = arith.constant 0 : i32
    %c0_i32_0 = arith.constant 0 : i32
    %c0_i32_1 = arith.constant 0 : i32
    return %c0_i32, %c0_i32_0 : i32, i32
  }
}

module attributes {stable_mosaic.version = 11 : i64} {
  func.func @_bn_relu_kernel(%arg0: i32, %arg1: memref<16x256xf32, #tpu.memory_space<vmem>>, %arg2: memref<1x256xf32, #tpu.memory_space<vmem>>, %arg3: memref<1x256xf32, #tpu.memory_space<vmem>>, %arg4: memref<16x256xf32, #tpu.memory_space<vmem>>) attributes {dimension_semantics = [#tpu.dimension_semantics<parallel>], iteration_bounds = array<i64: 1>, scalar_prefetch = 0 : i64, scratch_operands = 0 : i64, tpu.core_type = #tpu.core_type<tc>, window_params = [{transform_indices = @transform_0, window_bounds = array<i64: 16, 256>}, {pipeline_mode = #tpu.pipeline_mode<synchronous>, transform_indices = @transform_1, window_bounds = array<i64: 1, 256>}, {pipeline_mode = #tpu.pipeline_mode<synchronous>, transform_indices = @transform_2, window_bounds = array<i64: 1, 256>}, {transform_indices = @transform_3, window_bounds = array<i64: 16, 256>}]} {
    %c0 = arith.constant 0 : index
    %c0_0 = arith.constant 0 : index
    %0 = vector.load %arg1[%c0, %c0_0] : memref<16x256xf32, #tpu.memory_space<vmem>>, vector<16x256xf32>
    %c0_1 = arith.constant 0 : index
    %c0_2 = arith.constant 0 : index
    %1 = vector.load %arg2[%c0_1, %c0_2] : memref<1x256xf32, #tpu.memory_space<vmem>>, vector<1x256xf32>
    %2 = vector.broadcast %1 : vector<1x256xf32> to vector<16x256xf32>
    %3 = arith.mulf %0, %2 : vector<16x256xf32>
    %c0_3 = arith.constant 0 : index
    %c0_4 = arith.constant 0 : index
    %4 = vector.load %arg3[%c0_3, %c0_4] : memref<1x256xf32, #tpu.memory_space<vmem>>, vector<1x256xf32>
    %5 = vector.broadcast %4 : vector<1x256xf32> to vector<16x256xf32>
    %6 = arith.addf %3, %5 : vector<16x256xf32>
    %cst = arith.constant 0.000000e+00 : f32
    %7 = vector.broadcast %cst : f32 to vector<16x256xf32>
    %8 = arith.maximumf %6, %7 : vector<16x256xf32>
    %c0_5 = arith.constant 0 : index
    %c0_6 = arith.constant 0 : index
    %9 = vector.load %arg4[%c0_5, %c0_6] : memref<16x256xf32, #tpu.memory_space<vmem>>, vector<16x256xf32>
    tpu.vector_store %arg4[%c0_5, %c0_6], %8 {strides = array<i32>} : memref<16x256xf32, #tpu.memory_space<vmem>>, vector<16x256xf32>,
    return
  }
  func.func @transform_0(%arg0: i32) -> (i32, i32) {
    %c0_i32 = arith.constant 0 : i32
    %c0_i32_0 = arith.constant 0 : i32
    return %arg0, %c0_i32 : i32, i32
  }
  func.func @transform_1(%arg0: i32) -> (i32, i32) {
    %c0_i32 = arith.constant 0 : i32
    %c0_i32_0 = arith.constant 0 : i32
    %c0_i32_1 = arith.constant 0 : i32
    return %c0_i32, %c0_i32_0 : i32, i32
  }
  func.func @transform_2(%arg0: i32) -> (i32, i32) {
    %c0_i32 = arith.constant 0 : i32
    %c0_i32_0 = arith.constant 0 : i32
    %c0_i32_1 = arith.constant 0 : i32
    return %c0_i32, %c0_i32_0 : i32, i32
  }
  func.func @transform_3(%arg0: i32) -> (i32, i32) {
    %c0_i32 = arith.constant 0 : i32
    %c0_i32_0 = arith.constant 0 : i32
    return %arg0, %c0_i32 : i32, i32
  }
}

</mosaic_0001>

<llo_original>
// kernel: stem_v1_forward.14
$region0: #{stem_v1_forward.14}
  #allocation0 [shape = 'u32[]', space=smem, size = 0x4, offset = 0x4, fixed_abs, tag = 'smem constant byte address 0x4 - core index']
  #allocation1 [shape = 'u32[144,128]{1,0:T(1,128)}', space=vmem, size = 0x12000, scoped, tag = 'internal scratch']
  %s0 = inlined_call_operand.vmem [shape: f32[736,128], index: 0, kind: input, shape index: {}]
  %s1 = inlined_call_operand.vmem [shape: f32[1,128], index: 1, kind: input, shape index: {}]
  %s2 = inlined_call_operand.vmem [shape: f32[1,128], index: 2, kind: input, shape index: {}]
  %s3 = inlined_call_operand.vmem [shape: bf16[736,128], index: 3, kind: output, shape index: {}]
  %s4 = sld [smem:[#allocation0]]
  $region45: #{stem_v1_forward.14} parent=0
    _
  %s6 = ssub.s32 1, %s4
  %s7 = scalar_select 0, %s6, %s4
  loop: start=0, step=1, limit=4
  $region2: #{stem_v1_forward.14} parent=0 // loop_pre_header
    _
  $region3: #{stem_v1_forward.14} parent=0 // loop_header
    %s9 = sphi 0, %s13
    %p10 = scmp.ge.s32.totalorder %s9, 4
    %s19 = sphi 0, %s21
    %s22 = sphi 0, %s19
    %s23 = sphi 0, %s22
    %s39 = sphi 0, %s23
    %s43 = sphi 0, %s43
    %s45 = sphi 0, %s43
    %s46 = sphi 0, %s45
    %s60 = sphi 0, %s46
    %s64 = sphi 0, %s64
    %s66 = sphi 0, %s64
    %s67 = sphi 0, %s66
    %s81 = sphi 0, %s67
    %s87 = sphi 0, %s89
    %s90 = sphi 0, %s87
    %s91 = sphi 0, %s90
    %s107 = sphi 0, %s91
  $region4: #{stem_v1_forward.14} parent=0 // loop_header_branch
    %12 = sbr.rel (%p10) target = $region8
  $region5: #{stem_v1_forward.14} parent=0 // loop_body
    %s14 = ssub.s32 %s9, 1
    %s15 = ssub.s32 %s9, 2
    %s16 = sadd.s32 %s9, 1
    %s17 = ssub.s32 %s9, %s16
    %p18 = scmp.eq.s32.totalorder %s17, 0
    %s20 = sadd.s32 %s19, 1
    %s21 = scalar_select %p18, %s19, %s20
    %p24 = pneg %p18
    %p25 = scmp.eq.s32.totalorder %s9, 1
    %p26 = por %p24, %p25
    %p27 = scmp.ne.s32.totalorder %s19, %s22
    %p28 = scmp.eq.s32.totalorder %s9, 0
    %p29 = por %p27, %p28
    %p30 = scmp.ne.s32.totalorder %s19, %s22
    %p31 = scmp.eq.s32.totalorder %s14, 1
    %p32 = por %p30, %p31
    %p33 = scmp.ne.s32.totalorder %s22, %s23
    %p34 = scmp.eq.s32.totalorder %s14, 0
    %p35 = por %p33, %p34
    %p36 = scmp.ne.s32.totalorder %s22, %s23
    %p37 = scmp.eq.s32.totalorder %s15, 1
    %p38 = por %p36, %p37
    %p40 = scmp.ne.s32.totalorder %s23, %s39
    %p41 = scmp.eq.s32.totalorder %s15, 0
    %p42 = por %p40, %p41
    %s44 = sadd.s32 %s43, 1
    %p47 = scmp.eq.s32.totalorder %s9, 1
    %p48 = scmp.ne.s32.totalorder %s43, %s45
    %p49 = scmp.eq.s32.totalorder %s9, 0
    %p50 = por %p48, %p49
    %p51 = scmp.ne.s32.totalorder %s43, %s45
    %p52 = scmp.eq.s32.totalorder %s14, 1
    %p53 = por %p51, %p52
    %p54 = scmp.ne.s32.totalorder %s45, %s46
    %p55 = scmp.eq.s32.totalorder %s14, 0
    %p56 = por %p54, %p55
    %p57 = scmp.ne.s32.totalorder %s45, %s46
    %p58 = scmp.eq.s32.totalorder %s15, 1
    %p59 = por %p57, %p58
    %p61 = scmp.ne.s32.totalorder %s46, %s60
    %p62 = scmp.eq.s32.totalorder %s15, 0
    %p63 = por %p61, %p62
    %s65 = sadd.s32 %s64, 1
    %p68 = scmp.eq.s32.totalorder %s9, 1
    %p69 = scmp.ne.s32.totalorder %s64, %s66
    %p70 = scmp.eq.s32.totalorder %s9, 0
    %p71 = por %p69, %p70
    %p72 = scmp.ne.s32.totalorder %s64, %s66
    %p73 = scmp.eq.s32.totalorder %s14, 1
    %p74 = por %p72, %p73
    %p75 = scmp.ne.s32.totalorder %s66, %s67
    %p76 = scmp.eq.s32.totalorder %s14, 0
    %p77 = por %p75, %p76
    %p78 = scmp.ne.s32.totalorder %s66, %s67
    %p79 = scmp.eq.s32.totalorder %s15, 1
    %p80 = por %p78, %p79
    %p82 = scmp.ne.s32.totalorder %s67, %s81
    %p83 = scmp.eq.s32.totalorder %s15, 0
    %p84 = por %p82, %p83
    %s85 = ssub.s32 %s9, %s16
    %p86 = scmp.eq.s32.totalorder %s85, 0
    %s88 = sadd.s32 %s87, 1
    %s89 = scalar_select %p86, %s87, %s88
    %p92 = pneg %p86
    %p93 = scmp.eq.s32.totalorder %s9, 1
    %p94 = por %p92, %p93
    %p95 = scmp.ne.s32.totalorder %s87, %s90
    %p96 = scmp.eq.s32.totalorder %s9, 0
    %p97 = por %p95, %p96
    %p98 = scmp.ne.s32.totalorder %s87, %s90
    %p99 = scmp.eq.s32.totalorder %s14, 1
    %p100 = por %p98, %p99
    %p101 = scmp.ne.s32.totalorder %s90, %s91
    %p102 = scmp.eq.s32.totalorder %s14, 0
    %p103 = por %p101, %p102
    %p104 = scmp.ne.s32.totalorder %s90, %s91
    %p105 = scmp.eq.s32.totalorder %s15, 1
    %p106 = por %p104, %p105
    %p108 = scmp.ne.s32.totalorder %s91, %s107
    %p109 = scmp.eq.s32.totalorder %s15, 0
    %p110 = por %p108, %p109
    %p111 = scmp.le.s32.totalorder 1, %s9
    %p112 = scmp.lt.s32.totalorder %s9, 3
    %p113 = pnand %p111, %p112
    %p114 = pneg %p113
    // Predicated region
    $region9: #{stem_v1_forward.14} parent=5 // pred_check
      _
    $region10: #{stem_v1_forward.14} parent=5 // pred_check_branch
      %116 = sbr.rel (%p113) target = $region12
    $region11: #{stem_v1_forward.14} parent=5 // pred_region
      %s117 = ssub.s32 %s9, 1
      // Predicated region
      $region13: #{stem_v1_forward.14} parent=11 // pred_check
        %p118 = pneg %p56
      $region14: #{stem_v1_forward.14} parent=11 // pred_check_branch
        %120 = sbr.rel (%p118) target = $region16
      $region15: #{stem_v1_forward.14} parent=11 // pred_region
        _
      $region16: #{stem_v1_forward.14} parent=11 // pred_fallthru
        _
      // Predicated region
      $region17: #{stem_v1_forward.14} parent=11 // pred_check
        %p121 = pneg %p77
      $region18: #{stem_v1_forward.14} parent=11 // pred_check_branch
        %123 = sbr.rel (%p121) target = $region20
      $region19: #{stem_v1_forward.14} parent=11 // pred_region
        _
      $region20: #{stem_v1_forward.14} parent=11 // pred_fallthru
        _
    $region12: #{stem_v1_forward.14} parent=5 // pred_fallthru
      _
    %p124 = scmp.lt.s32.totalorder %s9, 2
    // Predicated region
    $region21: #{stem_v1_forward.14} parent=5 // pred_check
      %p125 = pneg %p124
    $region22: #{stem_v1_forward.14} parent=5 // pred_check_branch
      %127 = sbr.rel (%p125) target = $region24
    $region23: #{stem_v1_forward.14} parent=5 // pred_region
      // Predicated region
      $region25: #{stem_v1_forward.14} parent=23 // pred_check
        %p128 = pneg %p29
      $region26: #{stem_v1_forward.14} parent=23 // pred_check_branch
        %130 = sbr.rel (%p128) target = $region28
      $region27: #{stem_v1_forward.14} parent=23 // pred_region
        %s131 = smul.u32 46, %s9
        %p132 = scmp.lt.s32.totalorder %s131, 91
        %s133 = scalar_select %p132, %s131, 91
        %s134 = smul.addr %s133, 8
        %s135 = scalar_lea.vmem %s0, %s134
        %s136 = smul.u32 46, %s9
      $region28: #{stem_v1_forward.14} parent=23 // pred_fallthru
        _
    $region24: #{stem_v1_forward.14} parent=5 // pred_fallthru
      _
    %p137 = scmp.le.s32.totalorder 1, %s9
    %p138 = scmp.lt.s32.totalorder %s9, 3
    %p139 = pnand %p137, %p138
    %p140 = pneg %p139
    // Predicated region
    $region29: #{stem_v1_forward.14} parent=5 // pred_check
      _
    $region30: #{stem_v1_forward.14} parent=5 // pred_check_branch
      %142 = sbr.rel (%p139) target = $region32
    $region31: #{stem_v1_forward.14} parent=5 // pred_region
      %s143 = ssub.s32 %s9, 1
      %s144 = smul.u32 46, %s14
      %p145 = scmp.lt.s32.totalorder %s144, 91
      %s146 = scalar_select %p145, %s144, 91
      %s147 = smul.addr %s146, 8
      %s148 = scalar_lea.vmem %s0, %s147
      %p149 = pneg %p35
      %p150 = pneg %p32
      %p151 = pneg %p56
      %p152 = pneg %p53
      %p153 = pneg %p77
      %p154 = pneg %p74
      %p155 = pneg %p103
      %p156 = pneg %p100
      %s157 = smul.u32 46, %s14
      %p158 = scmp.lt.s32.totalorder %s157, 91
      %s159 = scalar_select %p158, %s157, 91
      %s160 = smul.addr %s159, 4
      %s161 = scalar_lea.vmem %s3, %s160
      %s162 = smul.u32 46, %s14
      %p163 = scmp.lt.s32.totalorder %s162, 91
      %s164 = scalar_select %p163, %s162, 91
      %s165 = smul.addr %s164, 8
      %s166 = scalar_lea.vmem %s0, %s165
      %s167 = smul.u32 46, %s14
      %s168 = smul.u32 46, %s14
      %p169 = scmp.lt.s32.totalorder %s168, 91
      %s170 = scalar_select %p169, %s168, 91
      %s171 = smul.addr %s170, 4
      %s172 = scalar_lea.vmem %s3, %s171
      %s173 = smul.u32 46, %s14
      %v174 = vld [vmem:[%s166] sm:$0xff]
      %v175 = vld [vmem:[%s166 + $0x8] sm:$0xff]
      %v176 = vld [vmem:[%s166 + $0x10] sm:$0xff]
      %v177 = vld [vmem:[%s166 + $0x18] sm:$0xff]
      %v178 = vld [vmem:[%s166 + $0x20] sm:$0xff]
      %v179 = vld [vmem:[%s166 + $0x28] sm:$0xff]
      %v180 = vld [vmem:[%s166 + $0x30] sm:$0xff]
      %v181 = vld [vmem:[%s166 + $0x38] sm:$0xff]
      %v182 = vld [vmem:[%s166 + $0x40] sm:$0xff]
      %v183 = vld [vmem:[%s166 + $0x48] sm:$0xff]
      %v184 = vld [vmem:[%s166 + $0x50] sm:$0xff]
      %v185 = vld [vmem:[%s166 + $0x58] sm:$0xff]
      %v186 = vld [vmem:[%s166 + $0x60] sm:$0xff]
      %v187 = vld [vmem:[%s166 + $0x68] sm:$0xff]
      %v188 = vld [vmem:[%s166 + $0x70] sm:$0xff]
      %v189 = vld [vmem:[%s166 + $0x78] sm:$0xff]
      %v190 = vld [vmem:[%s166 + $0x80] sm:$0xff]
      %v191 = vld [vmem:[%s166 + $0x88] sm:$0xff]
      %v192 = vld [vmem:[%s166 + $0x90] sm:$0xff]
      %v193 = vld [vmem:[%s166 + $0x98] sm:$0xff]
      %v194 = vld [vmem:[%s166 + $0xa0] sm:$0xff]
      %v195 = vld [vmem:[%s166 + $0xa8] sm:$0xff]
      %v196 = vld [vmem:[%s166 + $0xb0] sm:$0xff]
      %v197 = vld [vmem:[%s166 + $0xb8] sm:$0xff]
      %v198 = vld [vmem:[%s166 + $0xc0] sm:$0xff]
      %v199 = vld [vmem:[%s166 + $0xc8] sm:$0xff]
      %v200 = vld [vmem:[%s166 + $0xd0] sm:$0xff]
      %v201 = vld [vmem:[%s166 + $0xd8] sm:$0xff]
      %v202 = vld [vmem:[%s166 + $0xe0] sm:$0xff]
      %v203 = vld [vmem:[%s166 + $0xe8] sm:$0xff]
      %v204 = vld [vmem:[%s166 + $0xf0] sm:$0xff]
      %v205 = vld [vmem:[%s166 + $0xf8] sm:$0xff]
      %v206 = vld [vmem:[%s166 + $0x100] sm:$0xff]
      %v207 = vld [vmem:[%s166 + $0x108] sm:$0xff]
      %v208 = vld [vmem:[%s166 + $0x110] sm:$0xff]
      %v209 = vld [vmem:[%s166 + $0x118] sm:$0xff]
      %v210 = vld [vmem:[%s166 + $0x120] sm:$0xff]
      %v211 = vld [vmem:[%s166 + $0x128] sm:$0xff]
      %v212 = vld [vmem:[%s166 + $0x130] sm:$0xff]
      %v213 = vld [vmem:[%s166 + $0x138] sm:$0xff]
      %v214 = vld [vmem:[%s166 + $0x140] sm:$0xff]
      %v215 = vld [vmem:[%s166 + $0x148] sm:$0xff]
      %v216 = vld [vmem:[%s166 + $0x150] sm:$0xff]
      %v217 = vld [vmem:[%s166 + $0x158] sm:$0xff]
      %v218 = vld [vmem:[%s166 + $0x160] sm:$0xff]
      %v219 = vld [vmem:[%s166 + $0x168] sm:$0xff]
      %v220 = vld [vmem:[%s1] sm:$0x1]
      %v222 = vlaneseq
      %v223 = vshrl.u32 %v222, 7
      %v224 = vsub.s32 0, %v223
      %v225 = vrot.slane %v220, %v224
      %v227 = vmul.f32 %v174, %v225
      %v228 = vmul.f32 %v175, %v225
      %v229 = vmul.f32 %v176, %v225
      %v230 = vmul.f32 %v177, %v225
      %v231 = vmul.f32 %v178, %v225
      %v232 = vmul.f32 %v179, %v225
      %v233 = vmul.f32 %v180, %v225
      %v234 = vmul.f32 %v181, %v225
      %v235 = vmul.f32 %v182, %v225
      %v236 = vmul.f32 %v183, %v225
      %v237 = vmul.f32 %v184, %v225
      %v238 = vmul.f32 %v185, %v225
      %v239 = vmul.f32 %v186, %v225
      %v240 = vmul.f32 %v187, %v225
      %v241 = vmul.f32 %v188, %v225
      %v242 = vmul.f32 %v189, %v225
      %v243 = vmul.f32 %v190, %v225
      %v244 = vmul.f32 %v191, %v225
      %v245 = vmul.f32 %v192, %v225
      %v246 = vmul.f32 %v193, %v225
      %v247 = vmul.f32 %v194, %v225
      %v248 = vmul.f32 %v195, %v225
      %v249 = vmul.f32 %v196, %v225
      %v250 = vmul.f32 %v197, %v225
      %v251 = vmul.f32 %v198, %v225
      %v252 = vmul.f32 %v199, %v225
      %v253 = vmul.f32 %v200, %v225
      %v254 = vmul.f32 %v201, %v225
      %v255 = vmul.f32 %v202, %v225
      %v256 = vmul.f32 %v203, %v225
      %v257 = vmul.f32 %v204, %v225
      %v258 = vmul.f32 %v205, %v225
      %v259 = vmul.f32 %v206, %v225
      %v260 = vmul.f32 %v207, %v225
      %v261 = vmul.f32 %v208, %v225
      %v262 = vmul.f32 %v209, %v225
      %v263 = vmul.f32 %v210, %v225
      %v264 = vmul.f32 %v211, %v225
      %v265 = vmul.f32 %v212, %v225
      %v266 = vmul.f32 %v213, %v225
      %v267 = vmul.f32 %v214, %v225
      %v268 = vmul.f32 %v215, %v225
      %v269 = vmul.f32 %v216, %v225
      %v270 = vmul.f32 %v217, %v225
      %v271 = vmul.f32 %v218, %v225
      %v272 = vmul.f32 %v219, %v225
      %v273 = vld [vmem:[%s2] sm:$0x1]
      %v275 = vlaneseq
      %v276 = vshrl.u32 %v275, 7
      %v277 = vsub.s32 0, %v276
      %v278 = vrot.slane %v273, %v277
      %v280 = vadd.f32 %v227, %v278
      %v281 = vadd.f32 %v228, %v278
      %v282 = vadd.f32 %v229, %v278
      %v283 = vadd.f32 %v230, %v278
      %v284 = vadd.f32 %v231, %v278
      %v285 = vadd.f32 %v232, %v278
      %v286 = vadd.f32 %v233, %v278
      %v287 = vadd.f32 %v234, %v278
      %v288 = vadd.f32 %v235, %v278
      %v289 = vadd.f32 %v236, %v278
      %v290 = vadd.f32 %v237, %v278
      %v291 = vadd.f32 %v238, %v278
      %v292 = vadd.f32 %v239, %v278
      %v293 = vadd.f32 %v240, %v278
      %v294 = vadd.f32 %v241, %v278
      %v295 = vadd.f32 %v242, %v278
      %v296 = vadd.f32 %v243, %v278
      %v297 = vadd.f32 %v244, %v278
      %v298 = vadd.f32 %v245, %v278
      %v299 = vadd.f32 %v246, %v278
      %v300 = vadd.f32 %v247, %v278
      %v301 = vadd.f32 %v248, %v278
      %v302 = vadd.f32 %v249, %v278
      %v303 = vadd.f32 %v250, %v278
      %v304 = vadd.f32 %v251, %v278
      %v305 = vadd.f32 %v252, %v278
      %v306 = vadd.f32 %v253, %v278
      %v307 = vadd.f32 %v254, %v278
      %v308 = vadd.f32 %v255, %v278
      %v309 = vadd.f32 %v256, %v278
      %v310 = vadd.f32 %v257, %v278
      %v311 = vadd.f32 %v258, %v278
      %v312 = vadd.f32 %v259, %v278
      %v313 = vadd.f32 %v260, %v278
      %v314 = vadd.f32 %v261, %v278
      %v315 = vadd.f32 %v262, %v278
      %v316 = vadd.f32 %v263, %v278
      %v317 = vadd.f32 %v264, %v278
      %v318 = vadd.f32 %v265, %v278
      %v319 = vadd.f32 %v266, %v278
      %v320 = vadd.f32 %v267, %v278
      %v321 = vadd.f32 %v268, %v278
      %v322 = vadd.f32 %v269, %v278
      %v323 = vadd.f32 %v270, %v278
      %v324 = vadd.f32 %v271, %v278
      %v325 = vadd.f32 %v272, %v278
      %v326 = vmax.f32 %v280, 0.0
      %v327 = vmax.f32 %v281, 0.0
      %v328 = vmax.f32 %v282, 0.0
      %v329 = vmax.f32 %v283, 0.0
      %v330 = vmax.f32 %v284, 0.0
      %v331 = vmax.f32 %v285, 0.0
      %v332 = vmax.f32 %v286, 0.0
      %v333 = vmax.f32 %v287, 0.0
      %v334 = vmax.f32 %v288, 0.0
      %v335 = vmax.f32 %v289, 0.0
      %v336 = vmax.f32 %v290, 0.0
      %v337 = vmax.f32 %v291, 0.0
      %v338 = vmax.f32 %v292, 0.0
      %v339 = vmax.f32 %v293, 0.0
      %v340 = vmax.f32 %v294, 0.0
      %v341 = vmax.f32 %v295, 0.0
      %v342 = vmax.f32 %v296, 0.0
      %v343 = vmax.f32 %v297, 0.0
      %v344 = vmax.f32 %v298, 0.0
      %v345 = vmax.f32 %v299, 0.0
      %v346 = vmax.f32 %v300, 0.0
      %v347 = vmax.f32 %v301, 0.0
      %v348 = vmax.f32 %v302, 0.0
      %v349 = vmax.f32 %v303, 0.0
      %v350 = vmax.f32 %v304, 0.0
      %v351 = vmax.f32 %v305, 0.0
      %v352 = vmax.f32 %v306, 0.0
      %v353 = vmax.f32 %v307, 0.0
      %v354 = vmax.f32 %v308, 0.0
      %v355 = vmax.f32 %v309, 0.0
      %v356 = vmax.f32 %v310, 0.0
      %v357 = vmax.f32 %v311, 0.0
      %v358 = vmax.f32 %v312, 0.0
      %v359 = vmax.f32 %v313, 0.0
      %v360 = vmax.f32 %v314, 0.0
      %v361 = vmax.f32 %v315, 0.0
      %v362 = vmax.f32 %v316, 0.0
      %v363 = vmax.f32 %v317, 0.0
      %v364 = vmax.f32 %v318, 0.0
      %v365 = vmax.f32 %v319, 0.0
      %v366 = vmax.f32 %v320, 0.0
      %v367 = vmax.f32 %v321, 0.0
      %v368 = vmax.f32 %v322, 0.0
      %v369 = vmax.f32 %v323, 0.0
      %v370 = vmax.f32 %v324, 0.0
      %v371 = vmax.f32 %v325, 0.0
      %v372 = vpack.c.bf16 %v327, %v326
      %v373 = vpack.c.bf16 %v329, %v328
      %v374 = vpack.c.bf16 %v331, %v330
      %v375 = vpack.c.bf16 %v333, %v332
      %v376 = vpack.c.bf16 %v335, %v334
      %v377 = vpack.c.bf16 %v337, %v336
      %v378 = vpack.c.bf16 %v339, %v338
      %v379 = vpack.c.bf16 %v341, %v340
      %v380 = vpack.c.bf16 %v343, %v342
      %v381 = vpack.c.bf16 %v345, %v344
      %v382 = vpack.c.bf16 %v347, %v346
      %v383 = vpack.c.bf16 %v349, %v348
      %v384 = vpack.c.bf16 %v351, %v350
      %v385 = vpack.c.bf16 %v353, %v352
      %v386 = vpack.c.bf16 %v355, %v354
      %v387 = vpack.c.bf16 %v357, %v356
      %v388 = vpack.c.bf16 %v359, %v358
      %v389 = vpack.c.bf16 %v361, %v360
      %v390 = vpack.c.bf16 %v363, %v362
      %v391 = vpack.c.bf16 %v365, %v364
      %v392 = vpack.c.bf16 %v367, %v366
      %v393 = vpack.c.bf16 %v369, %v368
      %v394 = vpack.c.bf16 %v371, %v370
      %v418 = vunpack.c.l.b16 %v372
      %v419 = vunpack.c.h.b16 %v372
      %v420 = vunpack.c.l.b16 %v373
      %v421 = vunpack.c.h.b16 %v373
      %v422 = vunpack.c.l.b16 %v374
      %v423 = vunpack.c.h.b16 %v374
      %v424 = vunpack.c.l.b16 %v375
      %v425 = vunpack.c.h.b16 %v375
      %v426 = vunpack.c.l.b16 %v376
      %v427 = vunpack.c.h.b16 %v376
      %v428 = vunpack.c.l.b16 %v377
      %v429 = vunpack.c.h.b16 %v377
      %v430 = vunpack.c.l.b16 %v378
      %v431 = vunpack.c.h.b16 %v378
      %v432 = vunpack.c.l.b16 %v379
      %v433 = vunpack.c.h.b16 %v379
      %v434 = vunpack.c.l.b16 %v380
      %v435 = vunpack.c.h.b16 %v380
      %v436 = vunpack.c.l.b16 %v381
      %v437 = vunpack.c.h.b16 %v381
      %v438 = vunpack.c.l.b16 %v382
      %v439 = vunpack.c.h.b16 %v382
      %v440 = vunpack.c.l.b16 %v383
      %v441 = vunpack.c.h.b16 %v383
      %v442 = vunpack.c.l.b16 %v384
      %v443 = vunpack.c.h.b16 %v384
      %v444 = vunpack.c.l.b16 %v385
      %v445 = vunpack.c.h.b16 %v385
      %v446 = vunpack.c.l.b16 %v386
      %v447 = vunpack.c.h.b16 %v386
      %v448 = vunpack.c.l.b16 %v387
      %v449 = vunpack.c.h.b16 %v387
      %v450 = vunpack.c.l.b16 %v388
      %v451 = vunpack.c.h.b16 %v388
      %v452 = vunpack.c.l.b16 %v389
      %v453 = vunpack.c.h.b16 %v389
      %v454 = vunpack.c.l.b16 %v390
      %v455 = vunpack.c.h.b16 %v390
      %v456 = vunpack.c.l.b16 %v391
      %v457 = vunpack.c.h.b16 %v391
      %v458 = vunpack.c.l.b16 %v392
      %v459 = vunpack.c.h.b16 %v392
      %v460 = vunpack.c.l.b16 %v393
      %v461 = vunpack.c.h.b16 %v393
      %v462 = vunpack.c.l.b16 %v394
      %v463 = vunpack.c.h.b16 %v394
      %v464 = vpack.c.b16 %v418, %v418
      %v465 = vpack.c.b16 %v419, %v419
      %v466 = vpack.c.b16 %v420, %v420
      %v467 = vpack.c.b16 %v421, %v421
      %v468 = vpack.c.b16 %v422, %v422
      %v469 = vpack.c.b16 %v423, %v423
      %v470 = vpack.c.b16 %v424, %v424
      %v471 = vpack.c.b16 %v425, %v425
      %v472 = vpack.c.b16 %v426, %v426
      %v473 = vpack.c.b16 %v427, %v427
      %v474 = vpack.c.b16 %v428, %v428
      %v475 = vpack.c.b16 %v429, %v429
      %v476 = vpack.c.b16 %v430, %v430
      %v477 = vpack.c.b16 %v431, %v431
      %v478 = vpack.c.b16 %v432, %v432
      %v479 = vpack.c.b16 %v433, %v433
      %v480 = vpack.c.b16 %v434, %v434
      %v481 = vpack.c.b16 %v435, %v435
      %v482 = vpack.c.b16 %v436, %v436
      %v483 = vpack.c.b16 %v437, %v437
      %v484 = vpack.c.b16 %v438, %v438
      %v485 = vpack.c.b16 %v439, %v439
      %v486 = vpack.c.b16 %v440, %v440
      %v487 = vpack.c.b16 %v441, %v441
      %v488 = vpack.c.b16 %v442, %v442
      %v489 = vpack.c.b16 %v443, %v443
      %v490 = vpack.c.b16 %v444, %v444
      %v491 = vpack.c.b16 %v445, %v445
      %v492 = vpack.c.b16 %v446, %v446
      %v493 = vpack.c.b16 %v447, %v447
      %v494 = vpack.c.b16 %v448, %v448
      %v495 = vpack.c.b16 %v449, %v449
      %v496 = vpack.c.b16 %v450, %v450
      %v497 = vpack.c.b16 %v451, %v451
      %v498 = vpack.c.b16 %v452, %v452
      %v499 = vpack.c.b16 %v453, %v453
      %v500 = vpack.c.b16 %v454, %v454
      %v501 = vpack.c.b16 %v455, %v455
      %v502 = vpack.c.b16 %v456, %v456
      %v503 = vpack.c.b16 %v457, %v457
      %v504 = vpack.c.b16 %v458, %v458
      %v505 = vpack.c.b16 %v459, %v459
      %v506 = vpack.c.b16 %v460, %v460
      %v507 = vpack.c.b16 %v461, %v461
      %v508 = vpack.c.b16 %v462, %v462
      %v509 = vpack.c.b16 %v463, %v463
      %556 = vst [vmem:[%s172] sm:$0xf] %v464
      %557 = vst [vmem:[%s172 + $0x4] sm:$0xf] %v465
      %558 = vst [vmem:[%s172 + $0x8] sm:$0xf] %v466
      %559 = vst [vmem:[%s172 + $0xc] sm:$0xf] %v467
      %560 = vst [vmem:[%s172 + $0x10] sm:$0xf] %v468
      %561 = vst [vmem:[%s172 + $0x14] sm:$0xf] %v469
      %562 = vst [vmem:[%s172 + $0x18] sm:$0xf] %v470
      %563 = vst [vmem:[%s172 + $0x1c] sm:$0xf] %v471
      %564 = vst [vmem:[%s172 + $0x20] sm:$0xf] %v472
      %565 = vst [vmem:[%s172 + $0x24] sm:$0xf] %v473
      %566 = vst [vmem:[%s172 + $0x28] sm:$0xf] %v474
      %567 = vst [vmem:[%s172 + $0x2c] sm:$0xf] %v475
      %568 = vst [vmem:[%s172 + $0x30] sm:$0xf] %v476
      %569 = vst [vmem:[%s172 + $0x34] sm:$0xf] %v477
      %570 = vst [vmem:[%s172 + $0x38] sm:$0xf] %v478
      %571 = vst [vmem:[%s172 + $0x3c] sm:$0xf] %v479
      %572 = vst [vmem:[%s172 + $0x40] sm:$0xf] %v480
      %573 = vst [vmem:[%s172 + $0x44] sm:$0xf] %v481
      %574 = vst [vmem:[%s172 + $0x48] sm:$0xf] %v482
      %575 = vst [vmem:[%s172 + $0x4c] sm:$0xf] %v483
      %576 = vst [vmem:[%s172 + $0x50] sm:$0xf] %v484
      %577 = vst [vmem:[%s172 + $0x54] sm:$0xf] %v485
      %578 = vst [vmem:[%s172 + $0x58] sm:$0xf] %v486
      %579 = vst [vmem:[%s172 + $0x5c] sm:$0xf] %v487
      %580 = vst [vmem:[%s172 + $0x60] sm:$0xf] %v488
      %581 = vst [vmem:[%s172 + $0x64] sm:$0xf] %v489
      %582 = vst [vmem:[%s172 + $0x68] sm:$0xf] %v490
      %583 = vst [vmem:[%s172 + $0x6c] sm:$0xf] %v491
      %584 = vst [vmem:[%s172 + $0x70] sm:$0xf] %v492
      %585 = vst [vmem:[%s172 + $0x74] sm:$0xf] %v493
      %586 = vst [vmem:[%s172 + $0x78] sm:$0xf] %v494
      %587 = vst [vmem:[%s172 + $0x7c] sm:$0xf] %v495
      %588 = vst [vmem:[%s172 + $0x80] sm:$0xf] %v496
      %589 = vst [vmem:[%s172 + $0x84] sm:$0xf] %v497
      %590 = vst [vmem:[%s172 + $0x88] sm:$0xf] %v498
      %591 = vst [vmem:[%s172 + $0x8c] sm:$0xf] %v499
      %592 = vst [vmem:[%s172 + $0x90] sm:$0xf] %v500
      %593 = vst [vmem:[%s172 + $0x94] sm:$0xf] %v501
      %594 = vst [vmem:[%s172 + $0x98] sm:$0xf] %v502
      %595 = vst [vmem:[%s172 + $0x9c] sm:$0xf] %v503
      %596 = vst [vmem:[%s172 + $0xa0] sm:$0xf] %v504
      %597 = vst [vmem:[%s172 + $0xa4] sm:$0xf] %v505
      %598 = vst [vmem:[%s172 + $0xa8] sm:$0xf] %v506
      %599 = vst [vmem:[%s172 + $0xac] sm:$0xf] %v507
      %600 = vst [vmem:[%s172 + $0xb0] sm:$0xf] %v508
      %601 = vst [vmem:[%s172 + $0xb4] sm:$0xf] %v509
      %s602 = smul.u32 46, %s14
      %p603 = scmp.lt.s32.totalorder %s602, 91
      %s604 = scalar_select %p603, %s602, 91
      %s605 = smul.addr %s604, 4
      %s606 = scalar_lea.vmem %s3, %s605
      // Predicated region
      $region33: #{stem_v1_forward.14} parent=31 // pred_check
        %p607 = pneg %p100
      $region34: #{stem_v1_forward.14} parent=31 // pred_check_branch
        %609 = sbr.rel (%p607) target = $region36
      $region35: #{stem_v1_forward.14} parent=31 // pred_region
        %s610 = smul.u32 46, %s14
      $region36: #{stem_v1_forward.14} parent=31 // pred_fallthru
        _
    $region32: #{stem_v1_forward.14} parent=5 // pred_fallthru
      _
    %p611 = scmp.le.s32.totalorder 2, %s9
    // Predicated region
    $region37: #{stem_v1_forward.14} parent=5 // pred_check
      %p612 = pneg %p611
    $region38: #{stem_v1_forward.14} parent=5 // pred_check_branch
      %614 = sbr.rel (%p612) target = $region40
    $region39: #{stem_v1_forward.14} parent=5 // pred_region
      %s615 = ssub.s32 %s9, 2
      // Predicated region
      $region41: #{stem_v1_forward.14} parent=39 // pred_check
        %p616 = pneg %p106
      $region42: #{stem_v1_forward.14} parent=39 // pred_check_branch
        %618 = sbr.rel (%p616) target = $region44
      $region43: #{stem_v1_forward.14} parent=39 // pred_region
        %s619 = smul.u32 46, %s15
        %p620 = scmp.lt.s32.totalorder %s619, 91
        %s621 = scalar_select %p620, %s619, 91
        %s622 = smul.addr %s621, 4
        %s623 = scalar_lea.vmem %s3, %s622
      $region44: #{stem_v1_forward.14} parent=39 // pred_fallthru
        _
    $region40: #{stem_v1_forward.14} parent=5 // pred_fallthru
      _
  $region6: #{stem_v1_forward.14} parent=0 // loop_footer
    %s13 = sadd.s32 1, %s9
  $region7: #{stem_v1_forward.14} parent=0 // loop_footer_branch
    %8 = sbr.rel target = $region3
  $region8: #{stem_v1_forward.14} parent=0 // loop_exit
    _

// kernel: stem_v1_forward.13
$region0: #{stem_v1_forward.13}
  #allocation0 [shape = 'u32[]', space=smem, size = 0x4, offset = 0x4, fixed_abs, tag = 'smem constant byte address 0x4 - core index']
  #allocation1 [shape = 'u32[144,128]{1,0:T(1,128)}', space=vmem, size = 0x12000, scoped, tag = 'internal scratch']
  %s0 = inlined_call_operand.vmem [shape: bf16[736,27], index: 0, kind: input, shape index: {}]
  %s1 = inlined_call_operand.vmem [shape: bf16[27,128], index: 1, kind: input, shape index: {}]
  %s2 = inlined_call_operand.vmem [shape: f32[736,128], index: 2, kind: output, shape index: {0}]
  %s3 = inlined_call_operand.vmem [shape: f32[2,128], index: 3, kind: output, shape index: {1}]
  %4 = xla_tuple %s2, %s3
  %s5 = sld [smem:[#allocation0]]
  $region53: #{stem_v1_forward.13} parent=0
    _
  %s7 = ssub.s32 1, %s5
  %s8 = scalar_select 0, %s7, %s5
  loop: start=0, step=1, limit=4
  $region2: #{stem_v1_forward.13} parent=0 // loop_pre_header
    _
  $region3: #{stem_v1_forward.13} parent=0 // loop_header
    %s10 = sphi 0, %s14
    %p11 = scmp.ge.s32.totalorder %s10, 4
    %s20 = sphi 0, %s22
    %s23 = sphi 0, %s20
    %s24 = sphi 0, %s23
    %s40 = sphi 0, %s24
    %s44 = sphi 0, %s44
    %s46 = sphi 0, %s44
    %s47 = sphi 0, %s46
    %s61 = sphi 0, %s47
    %s67 = sphi 0, %s69
    %s70 = sphi 0, %s67
    %s71 = sphi 0, %s70
    %s87 = sphi 0, %s71
    %s91 = sphi 0, %s91
    %s93 = sphi 0, %s91
    %s94 = sphi 0, %s93
    %s108 = sphi 0, %s94
  $region4: #{stem_v1_forward.13} parent=0 // loop_header_branch
    %13 = sbr.rel (%p11) target = $region8
  $region5: #{stem_v1_forward.13} parent=0 // loop_body
    %s15 = ssub.s32 %s10, 1
    %s16 = ssub.s32 %s10, 2
    %s17 = sadd.s32 %s10, 1
    %s18 = ssub.s32 %s10, %s17
    %p19 = scmp.eq.s32.totalorder %s18, 0
    %s21 = sadd.s32 %s20, 1
    %s22 = scalar_select %p19, %s20, %s21
    %p25 = pneg %p19
    %p26 = scmp.eq.s32.totalorder %s10, 1
    %p27 = por %p25, %p26
    %p28 = scmp.ne.s32.totalorder %s20, %s23
    %p29 = scmp.eq.s32.totalorder %s10, 0
    %p30 = por %p28, %p29
    %p31 = scmp.ne.s32.totalorder %s20, %s23
    %p32 = scmp.eq.s32.totalorder %s15, 1
    %p33 = por %p31, %p32
    %p34 = scmp.ne.s32.totalorder %s23, %s24
    %p35 = scmp.eq.s32.totalorder %s15, 0
    %p36 = por %p34, %p35
    %p37 = scmp.ne.s32.totalorder %s23, %s24
    %p38 = scmp.eq.s32.totalorder %s16, 1
    %p39 = por %p37, %p38
    %p41 = scmp.ne.s32.totalorder %s24, %s40
    %p42 = scmp.eq.s32.totalorder %s16, 0
    %p43 = por %p41, %p42
    %s45 = sadd.s32 %s44, 1
    %p48 = scmp.eq.s32.totalorder %s10, 1
    %p49 = scmp.ne.s32.totalorder %s44, %s46
    %p50 = scmp.eq.s32.totalorder %s10, 0
    %p51 = por %p49, %p50
    %p52 = scmp.ne.s32.totalorder %s44, %s46
    %p53 = scmp.eq.s32.totalorder %s15, 1
    %p54 = por %p52, %p53
    %p55 = scmp.ne.s32.totalorder %s46, %s47
    %p56 = scmp.eq.s32.totalorder %s15, 0
    %p57 = por %p55, %p56
    %p58 = scmp.ne.s32.totalorder %s46, %s47
    %p59 = scmp.eq.s32.totalorder %s16, 1
    %p60 = por %p58, %p59
    %p62 = scmp.ne.s32.totalorder %s47, %s61
    %p63 = scmp.eq.s32.totalorder %s16, 0
    %p64 = por %p62, %p63
    %s65 = ssub.s32 %s10, %s17
    %p66 = scmp.eq.s32.totalorder %s65, 0
    %s68 = sadd.s32 %s67, 1
    %s69 = scalar_select %p66, %s67, %s68
    %p72 = pneg %p66
    %p73 = scmp.eq.s32.totalorder %s10, 1
    %p74 = por %p72, %p73
    %p75 = scmp.ne.s32.totalorder %s67, %s70
    %p76 = scmp.eq.s32.totalorder %s10, 0
    %p77 = por %p75, %p76
    %p78 = scmp.ne.s32.totalorder %s67, %s70
    %p79 = scmp.eq.s32.totalorder %s15, 1
    %p80 = por %p78, %p79
    %p81 = scmp.ne.s32.totalorder %s70, %s71
    %p82 = scmp.eq.s32.totalorder %s15, 0
    %p83 = por %p81, %p82
    %p84 = scmp.ne.s32.totalorder %s70, %s71
    %p85 = scmp.eq.s32.totalorder %s16, 1
    %p86 = por %p84, %p85
    %p88 = scmp.ne.s32.totalorder %s71, %s87
    %p89 = scmp.eq.s32.totalorder %s16, 0
    %p90 = por %p88, %p89
    %s92 = sadd.s32 %s91, 1
    %p95 = scmp.eq.s32.totalorder %s10, 1
    %p96 = scmp.ne.s32.totalorder %s91, %s93
    %p97 = scmp.eq.s32.totalorder %s10, 0
    %p98 = por %p96, %p97
    %p99 = scmp.ne.s32.totalorder %s91, %s93
    %p100 = scmp.eq.s32.totalorder %s15, 1
    %p101 = por %p99, %p100
    %p102 = scmp.ne.s32.totalorder %s93, %s94
    %p103 = scmp.eq.s32.totalorder %s15, 0
    %p104 = por %p102, %p103
    %p105 = scmp.ne.s32.totalorder %s93, %s94
    %p106 = scmp.eq.s32.totalorder %s16, 1
    %p107 = por %p105, %p106
    %p109 = scmp.ne.s32.totalorder %s94, %s108
    %p110 = scmp.eq.s32.totalorder %s16, 0
    %p111 = por %p109, %p110
    %p112 = scmp.le.s32.totalorder 1, %s10
    %p113 = scmp.lt.s32.totalorder %s10, 3
    %p114 = pnand %p112, %p113
    %p115 = pneg %p114
    // Predicated region
    $region9: #{stem_v1_forward.13} parent=5 // pred_check
      _
    $region10: #{stem_v1_forward.13} parent=5 // pred_check_branch
      %117 = sbr.rel (%p114) target = $region12
    $region11: #{stem_v1_forward.13} parent=5 // pred_region
      %s118 = ssub.s32 %s10, 1
      // Predicated region
      $region13: #{stem_v1_forward.13} parent=11 // pred_check
        %p119 = pneg %p57
      $region14: #{stem_v1_forward.13} parent=11 // pred_check_branch
        %121 = sbr.rel (%p119) target = $region16
      $region15: #{stem_v1_forward.13} parent=11 // pred_region
        _
      $region16: #{stem_v1_forward.13} parent=11 // pred_fallthru
        _
    $region12: #{stem_v1_forward.13} parent=5 // pred_fallthru
      _
    %p122 = scmp.lt.s32.totalorder %s10, 2
    // Predicated region
    $region17: #{stem_v1_forward.13} parent=5 // pred_check
      %p123 = pneg %p122
    $region18: #{stem_v1_forward.13} parent=5 // pred_check_branch
      %125 = sbr.rel (%p123) target = $region20
    $region19: #{stem_v1_forward.13} parent=5 // pred_region
      // Predicated region
      $region21: #{stem_v1_forward.13} parent=19 // pred_check
        %p126 = pneg %p30
      $region22: #{stem_v1_forward.13} parent=19 // pred_check_branch
        %128 = sbr.rel (%p126) target = $region24
      $region23: #{stem_v1_forward.13} parent=19 // pred_region
        %s129 = smul.u32 46, %s10
        %p130 = scmp.lt.s32.totalorder %s129, 91
        %s131 = scalar_select %p130, %s129, 91
        %s132 = smul.addr %s131, 4
        %s133 = scalar_lea.vmem %s0, %s132
        %s134 = smul.u32 46, %s10
      $region24: #{stem_v1_forward.13} parent=19 // pred_fallthru
        _
    $region20: #{stem_v1_forward.13} parent=5 // pred_fallthru
      _
    %p135 = scmp.le.s32.totalorder 1, %s10
    %p136 = scmp.lt.s32.totalorder %s10, 3
    %p137 = pnand %p135, %p136
    %p138 = pneg %p137
    // Predicated region
    $region25: #{stem_v1_forward.13} parent=5 // pred_check
      _
    $region26: #{stem_v1_forward.13} parent=5 // pred_check_branch
      %140 = sbr.rel (%p137) target = $region28
    $region27: #{stem_v1_forward.13} parent=5 // pred_region
      %s141 = ssub.s32 %s10, 1
      %s142 = smul.u32 46, %s15
      %p143 = scmp.lt.s32.totalorder %s142, 91
      %s144 = scalar_select %p143, %s142, 91
      %s145 = smul.addr %s144, 4
      %s146 = scalar_lea.vmem %s0, %s145
      %p147 = pneg %p36
      %p148 = pneg %p33
      %p149 = pneg %p57
      %p150 = pneg %p54
      %p151 = pneg %p83
      %p152 = pneg %p80
      %s153 = smul.u32 46, %s15
      %p154 = scmp.lt.s32.totalorder %s153, 91
      %s155 = scalar_select %p154, %s153, 91
      %s156 = smul.addr %s155, 8
      %s157 = scalar_lea.vmem %s2, %s156
      %p158 = pneg %p104
      %p159 = pneg %p101
      %s160 = smul.u32 46, %s15
      %p161 = scmp.lt.s32.totalorder %s160, 91
      %s162 = scalar_select %p161, %s160, 91
      %s163 = smul.addr %s162, 4
      %s164 = scalar_lea.vmem %s0, %s163
      %s165 = smul.u32 46, %s15
      %s166 = smul.u32 46, %s15
      %p167 = scmp.lt.s32.totalorder %s166, 91
      %s168 = scalar_select %p167, %s166, 91
      %s169 = smul.addr %s168, 8
      %s170 = scalar_lea.vmem %s2, %s169
      %s171 = smul.u32 46, %s15
      %v173 = vld [vmem:[%s164] sm:$0xf]
      %v174 = vld [vmem:[%s164 + $0x4] sm:$0xf]
      %v175 = vld [vmem:[%s164 + $0x8] sm:$0xf]
      %v176 = vld [vmem:[%s164 + $0xc] sm:$0xf]
      %v177 = vld [vmem:[%s164 + $0x10] sm:$0xf]
      %v178 = vld [vmem:[%s164 + $0x14] sm:$0xf]
      %v179 = vld [vmem:[%s164 + $0x18] sm:$0xf]
      %v180 = vld [vmem:[%s164 + $0x1c] sm:$0xf]
      %v181 = vld [vmem:[%s164 + $0x20] sm:$0xf]
      %v182 = vld [vmem:[%s164 + $0x24] sm:$0xf]
      %v183 = vld [vmem:[%s164 + $0x28] sm:$0xf]
      %v184 = vld [vmem:[%s164 + $0x2c] sm:$0xf]
      %v185 = vld [vmem:[%s164 + $0x30] sm:$0xf]
      %v186 = vld [vmem:[%s164 + $0x34] sm:$0xf]
      %v187 = vld [vmem:[%s164 + $0x38] sm:$0xf]
      %v188 = vld [vmem:[%s164 + $0x3c] sm:$0xf]
      %v189 = vld [vmem:[%s164 + $0x40] sm:$0xf]
      %v190 = vld [vmem:[%s164 + $0x44] sm:$0xf]
      %v191 = vld [vmem:[%s164 + $0x48] sm:$0xf]
      %v192 = vld [vmem:[%s164 + $0x4c] sm:$0xf]
      %v193 = vld [vmem:[%s164 + $0x50] sm:$0xf]
      %v194 = vld [vmem:[%s164 + $0x54] sm:$0xf]
      %v195 = vld [vmem:[%s164 + $0x58] sm:$0xf]
      %v196 = vld [vmem:[%s164 + $0x5c] sm:$0xf]
      %v197 = vld [vmem:[%s164 + $0x60] sm:$0xf]
      %v198 = vld [vmem:[%s164 + $0x64] sm:$0xf]
      %v199 = vld [vmem:[%s164 + $0x68] sm:$0xf]
      %v200 = vld [vmem:[%s164 + $0x6c] sm:$0xf]
      %v201 = vld [vmem:[%s164 + $0x70] sm:$0xf]
      %v202 = vld [vmem:[%s164 + $0x74] sm:$0xf]
      %v203 = vld [vmem:[%s164 + $0x78] sm:$0xf]
      %v204 = vld [vmem:[%s164 + $0x7c] sm:$0xf]
      %v205 = vld [vmem:[%s164 + $0x80] sm:$0xf]
      %v206 = vld [vmem:[%s164 + $0x84] sm:$0xf]
      %v207 = vld [vmem:[%s164 + $0x88] sm:$0xf]
      %v208 = vld [vmem:[%s164 + $0x8c] sm:$0xf]
      %v209 = vld [vmem:[%s164 + $0x90] sm:$0xf]
      %v210 = vld [vmem:[%s164 + $0x94] sm:$0xf]
      %v211 = vld [vmem:[%s164 + $0x98] sm:$0xf]
      %v212 = vld [vmem:[%s164 + $0x9c] sm:$0xf]
      %v213 = vld [vmem:[%s164 + $0xa0] sm:$0xf]
      %v214 = vld [vmem:[%s164 + $0xa4] sm:$0xf]
      %v215 = vld [vmem:[%s164 + $0xa8] sm:$0xf]
      %v216 = vld [vmem:[%s164 + $0xac] sm:$0xf]
      %v217 = vld [vmem:[%s164 + $0xb0] sm:$0xf]
      %v218 = vld [vmem:[%s164 + $0xb4] sm:$0xf]
      %v219 = vld [vmem:[%s1] sm:$0xf]
      %v220 = vld [vmem:[%s1 + $0x4] sm:$0xf]
      %v221 = vld [vmem:[%s1 + $0x8] sm:$0xf]
      %v222 = vld [vmem:[%s1 + $0xc] sm:$0x3]
      %v269 = vunpack.c.l.b16 %v173
      %v270 = vunpack.c.l.b16 %v174
      %v271 = vunpack.c.l.b16 %v175
      %v272 = vunpack.c.l.b16 %v176
      %v273 = vunpack.c.l.b16 %v177
      %v274 = vunpack.c.l.b16 %v178
      %v275 = vunpack.c.l.b16 %v179
      %v276 = vunpack.c.l.b16 %v180
      %v277 = vunpack.c.l.b16 %v181
      %v278 = vunpack.c.l.b16 %v182
      %v279 = vunpack.c.l.b16 %v183
      %v280 = vunpack.c.l.b16 %v184
      %v281 = vunpack.c.l.b16 %v185
      %v282 = vunpack.c.l.b16 %v186
      %v283 = vunpack.c.l.b16 %v187
      %v284 = vunpack.c.l.b16 %v188
      %v285 = vunpack.c.l.b16 %v189
      %v286 = vunpack.c.l.b16 %v190
      %v287 = vunpack.c.l.b16 %v191
      %v288 = vunpack.c.l.b16 %v192
      %v289 = vunpack.c.l.b16 %v193
      %v290 = vunpack.c.l.b16 %v194
      %v291 = vunpack.c.l.b16 %v195
      %v292 = vunpack.c.l.b16 %v196
      %v293 = vunpack.c.l.b16 %v197
      %v294 = vunpack.c.l.b16 %v198
      %v295 = vunpack.c.l.b16 %v199
      %v296 = vunpack.c.l.b16 %v200
      %v297 = vunpack.c.l.b16 %v201
      %v298 = vunpack.c.l.b16 %v202
      %v299 = vunpack.c.l.b16 %v203
      %v300 = vunpack.c.l.b16 %v204
      %v301 = vunpack.c.l.b16 %v205
      %v302 = vunpack.c.l.b16 %v206
      %v303 = vunpack.c.l.b16 %v207
      %v304 = vunpack.c.l.b16 %v208
      %v305 = vunpack.c.l.b16 %v209
      %v306 = vunpack.c.l.b16 %v210
      %v307 = vunpack.c.l.b16 %v211
      %v308 = vunpack.c.l.b16 %v212
      %v309 = vunpack.c.l.b16 %v213
      %v310 = vunpack.c.l.b16 %v214
      %v311 = vunpack.c.l.b16 %v215
      %v312 = vunpack.c.l.b16 %v216
      %v313 = vunpack.c.l.b16 %v217
      %v314 = vunpack.c.l.b16 %v218
      %v315 = vpack.c.b16 %v270, %v269
      %v316 = vpack.c.b16 %v272, %v271
      %v317 = vpack.c.b16 %v274, %v273
      %v318 = vpack.c.b16 %v276, %v275
      %v319 = vpack.c.b16 %v278, %v277
      %v320 = vpack.c.b16 %v280, %v279
      %v321 = vpack.c.b16 %v282, %v281
      %v322 = vpack.c.b16 %v284, %v283
      %v323 = vpack.c.b16 %v286, %v285
      %v324 = vpack.c.b16 %v288, %v287
      %v325 = vpack.c.b16 %v290, %v289
      %v326 = vpack.c.b16 %v292, %v291
      %v327 = vpack.c.b16 %v294, %v293
      %v328 = vpack.c.b16 %v296, %v295
      %v329 = vpack.c.b16 %v298, %v297
      %v330 = vpack.c.b16 %v300, %v299
      %v331 = vpack.c.b16 %v302, %v301
      %v332 = vpack.c.b16 %v304, %v303
      %v333 = vpack.c.b16 %v306, %v305
      %v334 = vpack.c.b16 %v308, %v307
      %v335 = vpack.c.b16 %v310, %v309
      %v336 = vpack.c.b16 %v312, %v311
      %v337 = vpack.c.b16 %v314, %v313
      %v342 = vunpack.c.l.b16 %v219
      %v343 = vunpack.c.l.b16 %v220
      %v344 = vunpack.c.l.b16 %v221
      %v345 = vunpack.c.l.b16 %v222
      %v346 = vpack.c.b16 %v343, %v342
      %v347 = vpack.c.b16 %v345, %v344
      %vm349 = vcmask 220160
      %v351 = vsel %vm349, %v315, 0
      %v354 = vsel %vm349, %v316, 0
      %v357 = vsel %vm349, %v317, 0
      %v360 = vsel %vm349, %v318, 0
      %v363 = vsel %vm349, %v319, 0
      %v366 = vsel %vm349, %v320, 0
      %v369 = vsel %vm349, %v321, 0
      %v372 = vsel %vm349, %v322, 0
      %v375 = vsel %vm349, %v323, 0
      %v378 = vsel %vm349, %v324, 0
      %v381 = vsel %vm349, %v325, 0
      %v384 = vsel %vm349, %v326, 0
      %v387 = vsel %vm349, %v327, 0
      %v390 = vsel %vm349, %v328, 0
      %v393 = vsel %vm349, %v329, 0
      %v396 = vsel %vm349, %v330, 0
      %v399 = vsel %vm349, %v331, 0
      %v402 = vsel %vm349, %v332, 0
      %v405 = vsel %vm349, %v333, 0
      %v408 = vsel %vm349, %v334, 0
      %v411 = vsel %vm349, %v335, 0
      %v414 = vsel %vm349, %v336, 0
      %v417 = vsel %vm349, %v337, 0
      %vm419 = vcmask 1044480
      %vm420 = vcmask 1045504
      %v421 = vsel %vm419, 4294967295, 65535
      %v422 = vsel %vm420, %v421, 0
      %v424 = vand.u32 %v347, %v422
      %426 = vmatprep.subr.bf16.mxu0 0
      %427 = vmatpush1.bf16.msra.mxu0 0
      %428 = vmatprep.subr.bf16.mxu0 0
      %429 = vmatpush1.bf16.msra.mxu0 0
      %430 = vmatprep.subr.bf16.mxu0 0
      %431 = vmatpush1.bf16.msra.mxu0 0
      %432 = vmatprep.subr.bf16.mxu0 0
      %433 = vmatpush1.bf16.msra.mxu0 0
      %434 = vmatprep.subr.bf16.mxu0 0
      %435 = vmatpush1.bf16.msra.mxu0 0
      %436 = vmatprep.subr.bf16.mxu0 0
      %437 = vmatpush1.bf16.msra.mxu0 0
      %438 = vmatprep.subr.bf16.mxu0 0
      %439 = vmatpush1.bf16.msra.mxu0 %v424
      %440 = vmatprep.subr.bf16.mxu0 0
      %441 = vmatpush1.bf16.msra.mxu0 %v346
      %442 = vmatprep.subr.bf16.mxu0 0
      %443 = vmatpush2.bf16.msra.mxu0 0
      %444 = vmatprep.subr.bf16.mxu0 0
      %445 = vmatpush2.bf16.msra.mxu0 0
      %446 = vmatprep.subr.bf16.mxu0 0
      %447 = vmatpush2.bf16.msra.mxu0 0
      %448 = vmatprep.subr.bf16.mxu0 0
      %449 = vmatpush2.bf16.msra.mxu0 0
      %450 = vmatprep.subr.bf16.mxu0 0
      %451 = vmatpush2.bf16.msra.mxu0 0
      %452 = vmatprep.subr.bf16.mxu0 0
      %453 = vmatpush2.bf16.msra.mxu0 0
      %454 = vmatprep.subr.bf16.mxu0 0
      %455 = vmatpush2.bf16.msra.mxu0 0
      %456 = vmatprep.subr.bf16.mxu0 0
      %457 = vmatpush2.bf16.msra.mxu0 0
      %458 = vmatprep.mubr.bf16.mxu0 0
      %459 = vmatmul.mubr.bf16.gmra.mxu0 %v351
      %v460 = vpop.f32.mrf.mxu0
      %v461 = vadd.f32 0.0, %v460
      %v462 = vpop.f32.mrf.mxu0
      %v463 = vpop.f32.mrf.mxu0
      %v464 = vadd.f32 0.0, %v463
      %v465 = vpop.f32.mrf.mxu0
      %466 = vmatprep.mubr.bf16.mxu0 0
      %467 = vmatmul.mubr.bf16.gmra.mxu0 %v354
      %v468 = vpop.f32.mrf.mxu0
      %v469 = vadd.f32 0.0, %v468
      %v470 = vpop.f32.mrf.mxu0
      %v471 = vpop.f32.mrf.mxu0
      %v472 = vadd.f32 0.0, %v471
      %v473 = vpop.f32.mrf.mxu0
      %474 = vmatprep.mubr.bf16.mxu0 0
      %475 = vmatmul.mubr.bf16.gmra.mxu0 %v357
      %v476 = vpop.f32.mrf.mxu0
      %v477 = vadd.f32 0.0, %v476
      %v478 = vpop.f32.mrf.mxu0
      %v479 = vpop.f32.mrf.mxu0
      %v480 = vadd.f32 0.0, %v479
      %v481 = vpop.f32.mrf.mxu0
      %482 = vmatprep.mubr.bf16.mxu0 0
      %483 = vmatmul.mubr.bf16.gmra.mxu0 %v360
      %v484 = vpop.f32.mrf.mxu0
      %v485 = vadd.f32 0.0, %v484
      %v486 = vpop.f32.mrf.mxu0
      %v487 = vpop.f32.mrf.mxu0
      %v488 = vadd.f32 0.0, %v487
      %v489 = vpop.f32.mrf.mxu0
      %490 = vmatprep.mubr.bf16.mxu0 0
      %491 = vmatmul.mubr.bf16.gmra.mxu0 %v363
      %v492 = vpop.f32.mrf.mxu0
      %v493 = vadd.f32 0.0, %v492
      %v494 = vpop.f32.mrf.mxu0
      %v495 = vpop.f32.mrf.mxu0
      %v496 = vadd.f32 0.0, %v495
      %v497 = vpop.f32.mrf.mxu0
      %498 = vmatprep.mubr.bf16.mxu0 0
      %499 = vmatmul.mubr.bf16.gmra.mxu0 %v366
      %v500 = vpop.f32.mrf.mxu0
      %v501 = vadd.f32 0.0, %v500
      %v502 = vpop.f32.mrf.mxu0
      %v503 = vpop.f32.mrf.mxu0
      %v504 = vadd.f32 0.0, %v503
      %v505 = vpop.f32.mrf.mxu0
      %506 = vmatprep.mubr.bf16.mxu0 0
      %507 = vmatmul.mubr.bf16.gmra.mxu0 %v369
      %v508 = vpop.f32.mrf.mxu0
      %v509 = vadd.f32 0.0, %v508
      %v510 = vpop.f32.mrf.mxu0
      %v511 = vpop.f32.mrf.mxu0
      %v512 = vadd.f32 0.0, %v511
      %v513 = vpop.f32.mrf.mxu0
      %514 = vmatprep.mubr.bf16.mxu0 0
      %515 = vmatmul.mubr.bf16.gmra.mxu0 %v372
      %v516 = vpop.f32.mrf.mxu0
      %v517 = vadd.f32 0.0, %v516
      %v518 = vpop.f32.mrf.mxu0
      %v519 = vpop.f32.mrf.mxu0
      %v520 = vadd.f32 0.0, %v519
      %v521 = vpop.f32.mrf.mxu0
      %522 = vmatprep.mubr.bf16.mxu0 0
      %523 = vmatmul.mubr.bf16.gmra.mxu0 %v375
      %v524 = vpop.f32.mrf.mxu0
      %v525 = vadd.f32 0.0, %v524
      %v526 = vpop.f32.mrf.mxu0
      %v527 = vpop.f32.mrf.mxu0
      %v528 = vadd.f32 0.0, %v527
      %v529 = vpop.f32.mrf.mxu0
      %530 = vmatprep.mubr.bf16.mxu0 0
      %531 = vmatmul.mubr.bf16.gmra.mxu0 %v378
      %v532 = vpop.f32.mrf.mxu0
      %v533 = vadd.f32 0.0, %v532
      %v534 = vpop.f32.mrf.mxu0
      %v535 = vpop.f32.mrf.mxu0
      %v536 = vadd.f32 0.0, %v535
      %v537 = vpop.f32.mrf.mxu0
      %538 = vmatprep.mubr.bf16.mxu0 0
      %539 = vmatmul.mubr.bf16.gmra.mxu0 %v381
      %v540 = vpop.f32.mrf.mxu0
      %v541 = vadd.f32 0.0, %v540
      %v542 = vpop.f32.mrf.mxu0
      %v543 = vpop.f32.mrf.mxu0
      %v544 = vadd.f32 0.0, %v543
      %v545 = vpop.f32.mrf.mxu0
      %546 = vmatprep.mubr.bf16.mxu0 0
      %547 = vmatmul.mubr.bf16.gmra.mxu0 %v384
      %v548 = vpop.f32.mrf.mxu0
      %v549 = vadd.f32 0.0, %v548
      %v550 = vpop.f32.mrf.mxu0
      %v551 = vpop.f32.mrf.mxu0
      %v552 = vadd.f32 0.0, %v551
      %v553 = vpop.f32.mrf.mxu0
      %554 = vmatprep.mubr.bf16.mxu0 0
      %555 = vmatmul.mubr.bf16.gmra.mxu0 %v387
      %v556 = vpop.f32.mrf.mxu0
      %v557 = vadd.f32 0.0, %v556
      %v558 = vpop.f32.mrf.mxu0
      %v559 = vpop.f32.mrf.mxu0
      %v560 = vadd.f32 0.0, %v559
      %v561 = vpop.f32.mrf.mxu0
      %562 = vmatprep.mubr.bf16.mxu0 0
      %563 = vmatmul.mubr.bf16.gmra.mxu0 %v390
      %v564 = vpop.f32.mrf.mxu0
      %v565 = vadd.f32 0.0, %v564
      %v566 = vpop.f32.mrf.mxu0
      %v567 = vpop.f32.mrf.mxu0
      %v568 = vadd.f32 0.0, %v567
      %v569 = vpop.f32.mrf.mxu0
      %570 = vmatprep.mubr.bf16.mxu0 0
      %571 = vmatmul.mubr.bf16.gmra.mxu0 %v393
      %v572 = vpop.f32.mrf.mxu0
      %v573 = vadd.f32 0.0, %v572
      %v574 = vpop.f32.mrf.mxu0
      %v575 = vpop.f32.mrf.mxu0
      %v576 = vadd.f32 0.0, %v575
      %v577 = vpop.f32.mrf.mxu0
      %578 = vmatprep.mubr.bf16.mxu0 0
      %579 = vmatmul.mubr.bf16.gmra.mxu0 %v396
      %v580 = vpop.f32.mrf.mxu0
      %v581 = vadd.f32 0.0, %v580
      %v582 = vpop.f32.mrf.mxu0
      %v583 = vpop.f32.mrf.mxu0
      %v584 = vadd.f32 0.0, %v583
      %v585 = vpop.f32.mrf.mxu0
      %586 = vmatprep.mubr.bf16.mxu0 0
      %587 = vmatmul.mubr.bf16.gmra.mxu0 %v399
      %v588 = vpop.f32.mrf.mxu0
      %v589 = vadd.f32 0.0, %v588
      %v590 = vpop.f32.mrf.mxu0
      %v591 = vpop.f32.mrf.mxu0
      %v592 = vadd.f32 0.0, %v591
      %v593 = vpop.f32.mrf.mxu0
      %594 = vmatprep.mubr.bf16.mxu0 0
      %595 = vmatmul.mubr.bf16.gmra.mxu0 %v402
      %v596 = vpop.f32.mrf.mxu0
      %v597 = vadd.f32 0.0, %v596
      %v598 = vpop.f32.mrf.mxu0
      %v599 = vpop.f32.mrf.mxu0
      %v600 = vadd.f32 0.0, %v599
      %v601 = vpop.f32.mrf.mxu0
      %602 = vmatprep.mubr.bf16.mxu0 0
      %603 = vmatmul.mubr.bf16.gmra.mxu0 %v405
      %v604 = vpop.f32.mrf.mxu0
      %v605 = vadd.f32 0.0, %v604
      %v606 = vpop.f32.mrf.mxu0
      %v607 = vpop.f32.mrf.mxu0
      %v608 = vadd.f32 0.0, %v607
      %v609 = vpop.f32.mrf.mxu0
      %610 = vmatprep.mubr.bf16.mxu0 0
      %611 = vmatmul.mubr.bf16.gmra.mxu0 %v408
      %v612 = vpop.f32.mrf.mxu0
      %v613 = vadd.f32 0.0, %v612
      %v614 = vpop.f32.mrf.mxu0
      %v615 = vpop.f32.mrf.mxu0
      %v616 = vadd.f32 0.0, %v615
      %v617 = vpop.f32.mrf.mxu0
      %618 = vmatprep.mubr.bf16.mxu0 0
      %619 = vmatmul.mubr.bf16.gmra.mxu0 %v411
      %v620 = vpop.f32.mrf.mxu0
      %v621 = vadd.f32 0.0, %v620
      %v622 = vpop.f32.mrf.mxu0
      %v623 = vpop.f32.mrf.mxu0
      %v624 = vadd.f32 0.0, %v623
      %v625 = vpop.f32.mrf.mxu0
      %626 = vmatprep.mubr.bf16.mxu0 0
      %627 = vmatmul.mubr.bf16.gmra.mxu0 %v414
      %v628 = vpop.f32.mrf.mxu0
      %v629 = vadd.f32 0.0, %v628
      %v630 = vpop.f32.mrf.mxu0
      %v631 = vpop.f32.mrf.mxu0
      %v632 = vadd.f32 0.0, %v631
      %v633 = vpop.f32.mrf.mxu0
      %634 = vmatprep.mubr.bf16.mxu0 0
      %635 = vmatmul.mubr.bf16.gmra.mxu0 %v417
      %v636 = vpop.f32.mrf.mxu0
      %v637 = vadd.f32 0.0, %v636
      %v638 = vpop.f32.mrf.mxu0
      %v639 = vpop.f32.mrf.mxu0
      %v640 = vadd.f32 0.0, %v639
      %v641 = vpop.f32.mrf.mxu0
      %642 = vdwg.mxu0
      %643 = vst [vmem:[%s170] sm:$0xff] %v461
      %644 = vst [vmem:[%s170 + $0x8] sm:$0xff] %v464
      %645 = vst [vmem:[%s170 + $0x10] sm:$0xff] %v469
      %646 = vst [vmem:[%s170 + $0x18] sm:$0xff] %v472
      %647 = vst [vmem:[%s170 + $0x20] sm:$0xff] %v477
      %648 = vst [vmem:[%s170 + $0x28] sm:$0xff] %v480
      %649 = vst [vmem:[%s170 + $0x30] sm:$0xff] %v485
      %650 = vst [vmem:[%s170 + $0x38] sm:$0xff] %v488
      %651 = vst [vmem:[%s170 + $0x40] sm:$0xff] %v493
      %652 = vst [vmem:[%s170 + $0x48] sm:$0xff] %v496
      %653 = vst [vmem:[%s170 + $0x50] sm:$0xff] %v501
      %654 = vst [vmem:[%s170 + $0x58] sm:$0xff] %v504
      %655 = vst [vmem:[%s170 + $0x60] sm:$0xff] %v509
      %656 = vst [vmem:[%s170 + $0x68] sm:$0xff] %v512
      %657 = vst [vmem:[%s170 + $0x70] sm:$0xff] %v517
      %658 = vst [vmem:[%s170 + $0x78] sm:$0xff] %v520
      %659 = vst [vmem:[%s170 + $0x80] sm:$0xff] %v525
      %660 = vst [vmem:[%s170 + $0x88] sm:$0xff] %v528
      %661 = vst [vmem:[%s170 + $0x90] sm:$0xff] %v533
      %662 = vst [vmem:[%s170 + $0x98] sm:$0xff] %v536
      %663 = vst [vmem:[%s170 + $0xa0] sm:$0xff] %v541
      %664 = vst [vmem:[%s170 + $0xa8] sm:$0xff] %v544
      %665 = vst [vmem:[%s170 + $0xb0] sm:$0xff] %v549
      %666 = vst [vmem:[%s170 + $0xb8] sm:$0xff] %v552
      %667 = vst [vmem:[%s170 + $0xc0] sm:$0xff] %v557
      %668 = vst [vmem:[%s170 + $0xc8] sm:$0xff] %v560
      %669 = vst [vmem:[%s170 + $0xd0] sm:$0xff] %v565
      %670 = vst [vmem:[%s170 + $0xd8] sm:$0xff] %v568
      %671 = vst [vmem:[%s170 + $0xe0] sm:$0xff] %v573
      %672 = vst [vmem:[%s170 + $0xe8] sm:$0xff] %v576
      %673 = vst [vmem:[%s170 + $0xf0] sm:$0xff] %v581
      %674 = vst [vmem:[%s170 + $0xf8] sm:$0xff] %v584
      %675 = vst [vmem:[%s170 + $0x100] sm:$0xff] %v589
      %676 = vst [vmem:[%s170 + $0x108] sm:$0xff] %v592
      %677 = vst [vmem:[%s170 + $0x110] sm:$0xff] %v597
      %678 = vst [vmem:[%s170 + $0x118] sm:$0xff] %v600
      %679 = vst [vmem:[%s170 + $0x120] sm:$0xff] %v605
      %680 = vst [vmem:[%s170 + $0x128] sm:$0xff] %v608
      %681 = vst [vmem:[%s170 + $0x130] sm:$0xff] %v613
      %682 = vst [vmem:[%s170 + $0x138] sm:$0xff] %v616
      %683 = vst [vmem:[%s170 + $0x140] sm:$0xff] %v621
      %684 = vst [vmem:[%s170 + $0x148] sm:$0xff] %v624
      %685 = vst [vmem:[%s170 + $0x150] sm:$0xff] %v629
      %686 = vst [vmem:[%s170 + $0x158] sm:$0xff] %v632
      %687 = vst [vmem:[%s170 + $0x160] sm:$0xff] %v637
      %688 = vst [vmem:[%s170 + $0x168] sm:$0xff] %v640
      %p689 = scmp.eq.s32.totalorder %s15, 0
      // Predicated region
      $region29: #{stem_v1_forward.13} parent=27 // pred_check
        %p690 = pneg %p689
      $region30: #{stem_v1_forward.13} parent=27 // pred_check_branch
        %692 = sbr.rel (%p690) target = $region32
      $region31: #{stem_v1_forward.13} parent=27 // pred_region
        %693 = vst [vmem:[%s3] sm:$0x3] 0.0
      $region32: #{stem_v1_forward.13} parent=27 // pred_fallthru
        _
      %v694 = vld [vmem:[%s3] sm:$0x3]
      %v695 = vadd.f32 %v461, %v464
      %v696 = vadd.f32 %v695, %v469
      %v697 = vadd.f32 %v696, %v472
      %v698 = vadd.f32 %v697, %v477
      %v699 = vadd.f32 %v698, %v480
      %v700 = vadd.f32 %v699, %v485
      %v701 = vadd.f32 %v700, %v488
      %v702 = vadd.f32 %v701, %v493
      %v703 = vadd.f32 %v702, %v496
      %v704 = vadd.f32 %v703, %v501
      %v705 = vadd.f32 %v704, %v504
      %v706 = vadd.f32 %v705, %v509
      %v707 = vadd.f32 %v706, %v512
      %v708 = vadd.f32 %v707, %v517
      %v709 = vadd.f32 %v708, %v520
      %v710 = vadd.f32 %v709, %v525
      %v711 = vadd.f32 %v710, %v528
      %v712 = vadd.f32 %v711, %v533
      %v713 = vadd.f32 %v712, %v536
      %v714 = vadd.f32 %v713, %v541
      %v715 = vadd.f32 %v714, %v544
      %v716 = vadd.f32 %v715, %v549
      %v717 = vadd.f32 %v716, %v552
      %v718 = vadd.f32 %v717, %v557
      %v719 = vadd.f32 %v718, %v560
      %v720 = vadd.f32 %v719, %v565
      %v721 = vadd.f32 %v720, %v568
      %v722 = vadd.f32 %v721, %v573
      %v723 = vadd.f32 %v722, %v576
      %v724 = vadd.f32 %v723, %v581
      %v725 = vadd.f32 %v724, %v584
      %v726 = vadd.f32 %v725, %v589
      %v727 = vadd.f32 %v726, %v592
      %v728 = vadd.f32 %v727, %v597
      %v729 = vadd.f32 %v728, %v600
      %v730 = vadd.f32 %v729, %v605
      %v731 = vadd.f32 %v730, %v608
      %v732 = vadd.f32 %v731, %v613
      %v733 = vadd.f32 %v732, %v616
      %v734 = vadd.f32 %v733, %v621
      %v735 = vadd.f32 %v734, %v624
      %v736 = vadd.f32 %v735, %v629
      %v737 = vadd.f32 %v736, %v632
      %v738 = vadd.f32 %v737, %v637
      %v739 = vadd.f32 %v738, %v640
      %v740 = vrot.slane %v739, 4
      %v741 = vadd.f32 %v739, %v740
      %v742 = vrot.slane %v741, 2
      %v743 = vadd.f32 %v741, %v742
      %v744 = vrot.slane %v743, 1
      %v745 = vadd.f32 %v743, %v744
      %v746 = vmul.f32 %v461, %v461
      %v747 = vmul.f32 %v464, %v464
      %v748 = vmul.f32 %v469, %v469
      %v749 = vmul.f32 %v472, %v472
      %v750 = vmul.f32 %v477, %v477
      %v751 = vmul.f32 %v480, %v480
      %v752 = vmul.f32 %v485, %v485
      %v753 = vmul.f32 %v488, %v488
      %v754 = vmul.f32 %v493, %v493
      %v755 = vmul.f32 %v496, %v496
      %v756 = vmul.f32 %v501, %v501
      %v757 = vmul.f32 %v504, %v504
      %v758 = vmul.f32 %v509, %v509
      %v759 = vmul.f32 %v512, %v512
      %v760 = vmul.f32 %v517, %v517
      %v761 = vmul.f32 %v520, %v520
      %v762 = vmul.f32 %v525, %v525
      %v763 = vmul.f32 %v528, %v528
      %v764 = vmul.f32 %v533, %v533
      %v765 = vmul.f32 %v536, %v536
      %v766 = vmul.f32 %v541, %v541
      %v767 = vmul.f32 %v544, %v544
      %v768 = vmul.f32 %v549, %v549
      %v769 = vmul.f32 %v552, %v552
      %v770 = vmul.f32 %v557, %v557
      %v771 = vmul.f32 %v560, %v560
      %v772 = vmul.f32 %v565, %v565
      %v773 = vmul.f32 %v568, %v568
      %v774 = vmul.f32 %v573, %v573
      %v775 = vmul.f32 %v576, %v576
      %v776 = vmul.f32 %v581, %v581
      %v777 = vmul.f32 %v584, %v584
      %v778 = vmul.f32 %v589, %v589
      %v779 = vmul.f32 %v592, %v592
      %v780 = vmul.f32 %v597, %v597
      %v781 = vmul.f32 %v600, %v600
      %v782 = vmul.f32 %v605, %v605
      %v783 = vmul.f32 %v608, %v608
      %v784 = vmul.f32 %v613, %v613
      %v785 = vmul.f32 %v616, %v616
      %v786 = vmul.f32 %v621, %v621
      %v787 = vmul.f32 %v624, %v624
      %v788 = vmul.f32 %v629, %v629
      %v789 = vmul.f32 %v632, %v632
      %v790 = vmul.f32 %v637, %v637
      %v791 = vmul.f32 %v640, %v640
      %v792 = vadd.f32 %v746, %v747
      %v793 = vadd.f32 %v792, %v748
      %v794 = vadd.f32 %v793, %v749
      %v795 = vadd.f32 %v794, %v750
      %v796 = vadd.f32 %v795, %v751
      %v797 = vadd.f32 %v796, %v752
      %v798 = vadd.f32 %v797, %v753
      %v799 = vadd.f32 %v798, %v754
      %v800 = vadd.f32 %v799, %v755
      %v801 = vadd.f32 %v800, %v756
      %v802 = vadd.f32 %v801, %v757
      %v803 = vadd.f32 %v802, %v758
      %v804 = vadd.f32 %v803, %v759
      %v805 = vadd.f32 %v804, %v760
      %v806 = vadd.f32 %v805, %v761
      %v807 = vadd.f32 %v806, %v762
      %v808 = vadd.f32 %v807, %v763
      %v809 = vadd.f32 %v808, %v764
      %v810 = vadd.f32 %v809, %v765
      %v811 = vadd.f32 %v810, %v766
      %v812 = vadd.f32 %v811, %v767
      %v813 = vadd.f32 %v812, %v768
      %v814 = vadd.f32 %v813, %v769
      %v815 = vadd.f32 %v814, %v770
      %v816 = vadd.f32 %v815, %v771
      %v817 = vadd.f32 %v816, %v772
      %v818 = vadd.f32 %v817, %v773
      %v819 = vadd.f32 %v818, %v774
      %v820 = vadd.f32 %v819, %v775
      %v821 = vadd.f32 %v820, %v776
      %v822 = vadd.f32 %v821, %v777
      %v823 = vadd.f32 %v822, %v778
      %v824 = vadd.f32 %v823, %v779
      %v825 = vadd.f32 %v824, %v780
      %v826 = vadd.f32 %v825, %v781
      %v827 = vadd.f32 %v826, %v782
      %v828 = vadd.f32 %v827, %v783
      %v829 = vadd.f32 %v828, %v784
      %v830 = vadd.f32 %v829, %v785
      %v831 = vadd.f32 %v830, %v786
      %v832 = vadd.f32 %v831, %v787
      %v833 = vadd.f32 %v832, %v788
      %v834 = vadd.f32 %v833, %v789
      %v835 = vadd.f32 %v834, %v790
      %v836 = vadd.f32 %v835, %v791
      %v837 = vrot.slane %v836, 4
      %v838 = vadd.f32 %v836, %v837
      %v839 = vrot.slane %v838, 2
      %v840 = vadd.f32 %v838, %v839
      %v841 = vrot.slane %v840, 1
      %v842 = vadd.f32 %v840, %v841
      %vm843 = vcmask 1040384
      %v844 = vsel %vm843, %v745, %v842
      %v845 = vadd.f32 %v694, %v844
      %846 = vst [vmem:[%s3] sm:$0x3] %v845
      %s847 = smul.u32 46, %s15
      %p848 = scmp.lt.s32.totalorder %s847, 91
      %s849 = scalar_select %p848, %s847, 91
      %s850 = smul.addr %s849, 8
      %s851 = scalar_lea.vmem %s2, %s850
      // Predicated region
      $region33: #{stem_v1_forward.13} parent=27 // pred_check
        %p852 = pneg %p80
      $region34: #{stem_v1_forward.13} parent=27 // pred_check_branch
        %854 = sbr.rel (%p852) target = $region36
      $region35: #{stem_v1_forward.13} parent=27 // pred_region
        %s855 = smul.u32 46, %s15
      $region36: #{stem_v1_forward.13} parent=27 // pred_fallthru
        _
      // Predicated region
      $region37: #{stem_v1_forward.13} parent=27 // pred_check
        %p856 = pneg %p101
      $region38: #{stem_v1_forward.13} parent=27 // pred_check_branch
        %858 = sbr.rel (%p856) target = $region40
      $region39: #{stem_v1_forward.13} parent=27 // pred_region
        _
      $region40: #{stem_v1_forward.13} parent=27 // pred_fallthru
        _
      // Predicated region
      $region41: #{stem_v1_forward.13} parent=27 // pred_check
        %p859 = pneg %p101
      $region42: #{stem_v1_forward.13} parent=27 // pred_check_branch
        %861 = sbr.rel (%p859) target = $region44
      $region43: #{stem_v1_forward.13} parent=27 // pred_region
        _
      $region44: #{stem_v1_forward.13} parent=27 // pred_fallthru
        _
    $region28: #{stem_v1_forward.13} parent=5 // pred_fallthru
      _
    %p862 = scmp.le.s32.totalorder 2, %s10
    // Predicated region
    $region45: #{stem_v1_forward.13} parent=5 // pred_check
      %p863 = pneg %p862
    $region46: #{stem_v1_forward.13} parent=5 // pred_check_branch
      %865 = sbr.rel (%p863) target = $region48
    $region47: #{stem_v1_forward.13} parent=5 // pred_region
      %s866 = ssub.s32 %s10, 2
      // Predicated region
      $region49: #{stem_v1_forward.13} parent=47 // pred_check
        %p867 = pneg %p86
      $region50: #{stem_v1_forward.13} parent=47 // pred_check_branch
        %869 = sbr.rel (%p867) target = $region52
      $region51: #{stem_v1_forward.13} parent=47 // pred_region
        %s870 = smul.u32 46, %s16
        %p871 = scmp.lt.s32.totalorder %s870, 91
        %s872 = scalar_select %p871, %s870, 91
        %s873 = smul.addr %s872, 8
        %s874 = scalar_lea.vmem %s2, %s873
      $region52: #{stem_v1_forward.13} parent=47 // pred_fallthru
        _
    $region48: #{stem_v1_forward.13} parent=5 // pred_fallthru
      _
  $region6: #{stem_v1_forward.13} parent=0 // loop_footer
    %s14 = sadd.s32 1, %s10
  $region7: #{stem_v1_forward.13} parent=0 // loop_footer_branch
    %9 = sbr.rel target = $region3
  $region8: #{stem_v1_forward.13} parent=0 // loop_exit
    _

// kernel: stem_v1_forward.16
$region0: #{stem_v1_forward.16}
  #allocation0 [shape = 'u32[]', space=smem, size = 0x4, offset = 0x4, fixed_abs, tag = 'smem constant byte address 0x4 - core index']
  #allocation1 [shape = 'u32[144,128]{1,0:T(1,128)}', space=vmem, size = 0x12000, scoped, tag = 'internal scratch']
  %s0 = inlined_call_operand.vmem [shape: f32[608,128], index: 0, kind: input, shape index: {}]
  %s1 = inlined_call_operand.vmem [shape: f32[1,128], index: 1, kind: input, shape index: {}]
  %s2 = inlined_call_operand.vmem [shape: f32[1,128], index: 2, kind: input, shape index: {}]
  %s3 = inlined_call_operand.vmem [shape: bf16[608,128], index: 3, kind: output, shape index: {}]
  %s4 = sld [smem:[#allocation0]]
  $region45: #{stem_v1_forward.16} parent=0
    _
  %s6 = ssub.s32 1, %s4
  %s7 = scalar_select 0, %s6, %s4
  loop: start=0, step=1, limit=4
  $region2: #{stem_v1_forward.16} parent=0 // loop_pre_header
    _
  $region3: #{stem_v1_forward.16} parent=0 // loop_header
    %s9 = sphi 0, %s13
    %p10 = scmp.ge.s32.totalorder %s9, 4
    %s19 = sphi 0, %s21
    %s22 = sphi 0, %s19
    %s23 = sphi 0, %s22
    %s39 = sphi 0, %s23
    %s43 = sphi 0, %s43
    %s45 = sphi 0, %s43
    %s46 = sphi 0, %s45
    %s60 = sphi 0, %s46
    %s64 = sphi 0, %s64
    %s66 = sphi 0, %s64
    %s67 = sphi 0, %s66
    %s81 = sphi 0, %s67
    %s87 = sphi 0, %s89
    %s90 = sphi 0, %s87
    %s91 = sphi 0, %s90
    %s107 = sphi 0, %s91
  $region4: #{stem_v1_forward.16} parent=0 // loop_header_branch
    %12 = sbr.rel (%p10) target = $region8
  $region5: #{stem_v1_forward.16} parent=0 // loop_body
    %s14 = ssub.s32 %s9, 1
    %s15 = ssub.s32 %s9, 2
    %s16 = sadd.s32 %s9, 1
    %s17 = ssub.s32 %s9, %s16
    %p18 = scmp.eq.s32.totalorder %s17, 0
    %s20 = sadd.s32 %s19, 1
    %s21 = scalar_select %p18, %s19, %s20
    %p24 = pneg %p18
    %p25 = scmp.eq.s32.totalorder %s9, 1
    %p26 = por %p24, %p25
    %p27 = scmp.ne.s32.totalorder %s19, %s22
    %p28 = scmp.eq.s32.totalorder %s9, 0
    %p29 = por %p27, %p28
    %p30 = scmp.ne.s32.totalorder %s19, %s22
    %p31 = scmp.eq.s32.totalorder %s14, 1
    %p32 = por %p30, %p31
    %p33 = scmp.ne.s32.totalorder %s22, %s23
    %p34 = scmp.eq.s32.totalorder %s14, 0
    %p35 = por %p33, %p34
    %p36 = scmp.ne.s32.totalorder %s22, %s23
    %p37 = scmp.eq.s32.totalorder %s15, 1
    %p38 = por %p36, %p37
    %p40 = scmp.ne.s32.totalorder %s23, %s39
    %p41 = scmp.eq.s32.totalorder %s15, 0
    %p42 = por %p40, %p41
    %s44 = sadd.s32 %s43, 1
    %p47 = scmp.eq.s32.totalorder %s9, 1
    %p48 = scmp.ne.s32.totalorder %s43, %s45
    %p49 = scmp.eq.s32.totalorder %s9, 0
    %p50 = por %p48, %p49
    %p51 = scmp.ne.s32.totalorder %s43, %s45
    %p52 = scmp.eq.s32.totalorder %s14, 1
    %p53 = por %p51, %p52
    %p54 = scmp.ne.s32.totalorder %s45, %s46
    %p55 = scmp.eq.s32.totalorder %s14, 0
    %p56 = por %p54, %p55
    %p57 = scmp.ne.s32.totalorder %s45, %s46
    %p58 = scmp.eq.s32.totalorder %s15, 1
    %p59 = por %p57, %p58
    %p61 = scmp.ne.s32.totalorder %s46, %s60
    %p62 = scmp.eq.s32.totalorder %s15, 0
    %p63 = por %p61, %p62
    %s65 = sadd.s32 %s64, 1
    %p68 = scmp.eq.s32.totalorder %s9, 1
    %p69 = scmp.ne.s32.totalorder %s64, %s66
    %p70 = scmp.eq.s32.totalorder %s9, 0
    %p71 = por %p69, %p70
    %p72 = scmp.ne.s32.totalorder %s64, %s66
    %p73 = scmp.eq.s32.totalorder %s14, 1
    %p74 = por %p72, %p73
    %p75 = scmp.ne.s32.totalorder %s66, %s67
    %p76 = scmp.eq.s32.totalorder %s14, 0
    %p77 = por %p75, %p76
    %p78 = scmp.ne.s32.totalorder %s66, %s67
    %p79 = scmp.eq.s32.totalorder %s15, 1
    %p80 = por %p78, %p79
    %p82 = scmp.ne.s32.totalorder %s67, %s81
    %p83 = scmp.eq.s32.totalorder %s15, 0
    %p84 = por %p82, %p83
    %s85 = ssub.s32 %s9, %s16
    %p86 = scmp.eq.s32.totalorder %s85, 0
    %s88 = sadd.s32 %s87, 1
    %s89 = scalar_select %p86, %s87, %s88
    %p92 = pneg %p86
    %p93 = scmp.eq.s32.totalorder %s9, 1
    %p94 = por %p92, %p93
    %p95 = scmp.ne.s32.totalorder %s87, %s90
    %p96 = scmp.eq.s32.totalorder %s9, 0
    %p97 = por %p95, %p96
    %p98 = scmp.ne.s32.totalorder %s87, %s90
    %p99 = scmp.eq.s32.totalorder %s14, 1
    %p100 = por %p98, %p99
    %p101 = scmp.ne.s32.totalorder %s90, %s91
    %p102 = scmp.eq.s32.totalorder %s14, 0
    %p103 = por %p101, %p102
    %p104 = scmp.ne.s32.totalorder %s90, %s91
    %p105 = scmp.eq.s32.totalorder %s15, 1
    %p106 = por %p104, %p105
    %p108 = scmp.ne.s32.totalorder %s91, %s107
    %p109 = scmp.eq.s32.totalorder %s15, 0
    %p110 = por %p108, %p109
    %p111 = scmp.le.s32.totalorder 1, %s9
    %p112 = scmp.lt.s32.totalorder %s9, 3
    %p113 = pnand %p111, %p112
    %p114 = pneg %p113
    // Predicated region
    $region9: #{stem_v1_forward.16} parent=5 // pred_check
      _
    $region10: #{stem_v1_forward.16} parent=5 // pred_check_branch
      %116 = sbr.rel (%p113) target = $region12
    $region11: #{stem_v1_forward.16} parent=5 // pred_region
      %s117 = ssub.s32 %s9, 1
      // Predicated region
      $region13: #{stem_v1_forward.16} parent=11 // pred_check
        %p118 = pneg %p56
      $region14: #{stem_v1_forward.16} parent=11 // pred_check_branch
        %120 = sbr.rel (%p118) target = $region16
      $region15: #{stem_v1_forward.16} parent=11 // pred_region
        _
      $region16: #{stem_v1_forward.16} parent=11 // pred_fallthru
        _
      // Predicated region
      $region17: #{stem_v1_forward.16} parent=11 // pred_check
        %p121 = pneg %p77
      $region18: #{stem_v1_forward.16} parent=11 // pred_check_branch
        %123 = sbr.rel (%p121) target = $region20
      $region19: #{stem_v1_forward.16} parent=11 // pred_region
        _
      $region20: #{stem_v1_forward.16} parent=11 // pred_fallthru
        _
    $region12: #{stem_v1_forward.16} parent=5 // pred_fallthru
      _
    %p124 = scmp.lt.s32.totalorder %s9, 2
    // Predicated region
    $region21: #{stem_v1_forward.16} parent=5 // pred_check
      %p125 = pneg %p124
    $region22: #{stem_v1_forward.16} parent=5 // pred_check_branch
      %127 = sbr.rel (%p125) target = $region24
    $region23: #{stem_v1_forward.16} parent=5 // pred_region
      // Predicated region
      $region25: #{stem_v1_forward.16} parent=23 // pred_check
        %p128 = pneg %p29
      $region26: #{stem_v1_forward.16} parent=23 // pred_check_branch
        %130 = sbr.rel (%p128) target = $region28
      $region27: #{stem_v1_forward.16} parent=23 // pred_region
        %s131 = smul.u32 38, %s9
        %p132 = scmp.lt.s32.totalorder %s131, 75
        %s133 = scalar_select %p132, %s131, 75
        %s134 = smul.addr %s133, 8
        %s135 = scalar_lea.vmem %s0, %s134
        %s136 = smul.u32 38, %s9
      $region28: #{stem_v1_forward.16} parent=23 // pred_fallthru
        _
    $region24: #{stem_v1_forward.16} parent=5 // pred_fallthru
      _
    %p137 = scmp.le.s32.totalorder 1, %s9
    %p138 = scmp.lt.s32.totalorder %s9, 3
    %p139 = pnand %p137, %p138
    %p140 = pneg %p139
    // Predicated region
    $region29: #{stem_v1_forward.16} parent=5 // pred_check
      _
    $region30: #{stem_v1_forward.16} parent=5 // pred_check_branch
      %142 = sbr.rel (%p139) target = $region32
    $region31: #{stem_v1_forward.16} parent=5 // pred_region
      %s143 = ssub.s32 %s9, 1
      %s144 = smul.u32 38, %s14
      %p145 = scmp.lt.s32.totalorder %s144, 75
      %s146 = scalar_select %p145, %s144, 75
      %s147 = smul.addr %s146, 8
      %s148 = scalar_lea.vmem %s0, %s147
      %p149 = pneg %p35
      %p150 = pneg %p32
      %p151 = pneg %p56
      %p152 = pneg %p53
      %p153 = pneg %p77
      %p154 = pneg %p74
      %p155 = pneg %p103
      %p156 = pneg %p100
      %s157 = smul.u32 38, %s14
      %p158 = scmp.lt.s32.totalorder %s157, 75
      %s159 = scalar_select %p158, %s157, 75
      %s160 = smul.addr %s159, 4
      %s161 = scalar_lea.vmem %s3, %s160
      %s162 = smul.u32 38, %s14
      %p163 = scmp.lt.s32.totalorder %s162, 75
      %s164 = scalar_select %p163, %s162, 75
      %s165 = smul.addr %s164, 8
      %s166 = scalar_lea.vmem %s0, %s165
      %s167 = smul.u32 38, %s14
      %s168 = smul.u32 38, %s14
      %p169 = scmp.lt.s32.totalorder %s168, 75
      %s170 = scalar_select %p169, %s168, 75
      %s171 = smul.addr %s170, 4
      %s172 = scalar_lea.vmem %s3, %s171
      %s173 = smul.u32 38, %s14
      %v174 = vld [vmem:[%s166] sm:$0xff]
      %v175 = vld [vmem:[%s166 + $0x8] sm:$0xff]
      %v176 = vld [vmem:[%s166 + $0x10] sm:$0xff]
      %v177 = vld [vmem:[%s166 + $0x18] sm:$0xff]
      %v178 = vld [vmem:[%s166 + $0x20] sm:$0xff]
      %v179 = vld [vmem:[%s166 + $0x28] sm:$0xff]
      %v180 = vld [vmem:[%s166 + $0x30] sm:$0xff]
      %v181 = vld [vmem:[%s166 + $0x38] sm:$0xff]
      %v182 = vld [vmem:[%s166 + $0x40] sm:$0xff]
      %v183 = vld [vmem:[%s166 + $0x48] sm:$0xff]
      %v184 = vld [vmem:[%s166 + $0x50] sm:$0xff]
      %v185 = vld [vmem:[%s166 + $0x58] sm:$0xff]
      %v186 = vld [vmem:[%s166 + $0x60] sm:$0xff]
      %v187 = vld [vmem:[%s166 + $0x68] sm:$0xff]
      %v188 = vld [vmem:[%s166 + $0x70] sm:$0xff]
      %v189 = vld [vmem:[%s166 + $0x78] sm:$0xff]
      %v190 = vld [vmem:[%s166 + $0x80] sm:$0xff]
      %v191 = vld [vmem:[%s166 + $0x88] sm:$0xff]
      %v192 = vld [vmem:[%s166 + $0x90] sm:$0xff]
      %v193 = vld [vmem:[%s166 + $0x98] sm:$0xff]
      %v194 = vld [vmem:[%s166 + $0xa0] sm:$0xff]
      %v195 = vld [vmem:[%s166 + $0xa8] sm:$0xff]
      %v196 = vld [vmem:[%s166 + $0xb0] sm:$0xff]
      %v197 = vld [vmem:[%s166 + $0xb8] sm:$0xff]
      %v198 = vld [vmem:[%s166 + $0xc0] sm:$0xff]
      %v199 = vld [vmem:[%s166 + $0xc8] sm:$0xff]
      %v200 = vld [vmem:[%s166 + $0xd0] sm:$0xff]
      %v201 = vld [vmem:[%s166 + $0xd8] sm:$0xff]
      %v202 = vld [vmem:[%s166 + $0xe0] sm:$0xff]
      %v203 = vld [vmem:[%s166 + $0xe8] sm:$0xff]
      %v204 = vld [vmem:[%s166 + $0xf0] sm:$0xff]
      %v205 = vld [vmem:[%s166 + $0xf8] sm:$0xff]
      %v206 = vld [vmem:[%s166 + $0x100] sm:$0xff]
      %v207 = vld [vmem:[%s166 + $0x108] sm:$0xff]
      %v208 = vld [vmem:[%s166 + $0x110] sm:$0xff]
      %v209 = vld [vmem:[%s166 + $0x118] sm:$0xff]
      %v210 = vld [vmem:[%s166 + $0x120] sm:$0xff]
      %v211 = vld [vmem:[%s166 + $0x128] sm:$0xff]
      %v212 = vld [vmem:[%s1] sm:$0x1]
      %v214 = vlaneseq
      %v215 = vshrl.u32 %v214, 7
      %v216 = vsub.s32 0, %v215
      %v217 = vrot.slane %v212, %v216
      %v219 = vmul.f32 %v174, %v217
      %v220 = vmul.f32 %v175, %v217
      %v221 = vmul.f32 %v176, %v217
      %v222 = vmul.f32 %v177, %v217
      %v223 = vmul.f32 %v178, %v217
      %v224 = vmul.f32 %v179, %v217
      %v225 = vmul.f32 %v180, %v217
      %v226 = vmul.f32 %v181, %v217
      %v227 = vmul.f32 %v182, %v217
      %v228 = vmul.f32 %v183, %v217
      %v229 = vmul.f32 %v184, %v217
      %v230 = vmul.f32 %v185, %v217
      %v231 = vmul.f32 %v186, %v217
      %v232 = vmul.f32 %v187, %v217
      %v233 = vmul.f32 %v188, %v217
      %v234 = vmul.f32 %v189, %v217
      %v235 = vmul.f32 %v190, %v217
      %v236 = vmul.f32 %v191, %v217
      %v237 = vmul.f32 %v192, %v217
      %v238 = vmul.f32 %v193, %v217
      %v239 = vmul.f32 %v194, %v217
      %v240 = vmul.f32 %v195, %v217
      %v241 = vmul.f32 %v196, %v217
      %v242 = vmul.f32 %v197, %v217
      %v243 = vmul.f32 %v198, %v217
      %v244 = vmul.f32 %v199, %v217
      %v245 = vmul.f32 %v200, %v217
      %v246 = vmul.f32 %v201, %v217
      %v247 = vmul.f32 %v202, %v217
      %v248 = vmul.f32 %v203, %v217
      %v249 = vmul.f32 %v204, %v217
      %v250 = vmul.f32 %v205, %v217
      %v251 = vmul.f32 %v206, %v217
      %v252 = vmul.f32 %v207, %v217
      %v253 = vmul.f32 %v208, %v217
      %v254 = vmul.f32 %v209, %v217
      %v255 = vmul.f32 %v210, %v217
      %v256 = vmul.f32 %v211, %v217
      %v257 = vld [vmem:[%s2] sm:$0x1]
      %v259 = vlaneseq
      %v260 = vshrl.u32 %v259, 7
      %v261 = vsub.s32 0, %v260
      %v262 = vrot.slane %v257, %v261
      %v264 = vadd.f32 %v219, %v262
      %v265 = vadd.f32 %v220, %v262
      %v266 = vadd.f32 %v221, %v262
      %v267 = vadd.f32 %v222, %v262
      %v268 = vadd.f32 %v223, %v262
      %v269 = vadd.f32 %v224, %v262
      %v270 = vadd.f32 %v225, %v262
      %v271 = vadd.f32 %v226, %v262
      %v272 = vadd.f32 %v227, %v262
      %v273 = vadd.f32 %v228, %v262
      %v274 = vadd.f32 %v229, %v262
      %v275 = vadd.f32 %v230, %v262
      %v276 = vadd.f32 %v231, %v262
      %v277 = vadd.f32 %v232, %v262
      %v278 = vadd.f32 %v233, %v262
      %v279 = vadd.f32 %v234, %v262
      %v280 = vadd.f32 %v235, %v262
      %v281 = vadd.f32 %v236, %v262
      %v282 = vadd.f32 %v237, %v262
      %v283 = vadd.f32 %v238, %v262
      %v284 = vadd.f32 %v239, %v262
      %v285 = vadd.f32 %v240, %v262
      %v286 = vadd.f32 %v241, %v262
      %v287 = vadd.f32 %v242, %v262
      %v288 = vadd.f32 %v243, %v262
      %v289 = vadd.f32 %v244, %v262
      %v290 = vadd.f32 %v245, %v262
      %v291 = vadd.f32 %v246, %v262
      %v292 = vadd.f32 %v247, %v262
      %v293 = vadd.f32 %v248, %v262
      %v294 = vadd.f32 %v249, %v262
      %v295 = vadd.f32 %v250, %v262
      %v296 = vadd.f32 %v251, %v262
      %v297 = vadd.f32 %v252, %v262
      %v298 = vadd.f32 %v253, %v262
      %v299 = vadd.f32 %v254, %v262
      %v300 = vadd.f32 %v255, %v262
      %v301 = vadd.f32 %v256, %v262
      %v302 = vmax.f32 %v264, 0.0
      %v303 = vmax.f32 %v265, 0.0
      %v304 = vmax.f32 %v266, 0.0
      %v305 = vmax.f32 %v267, 0.0
      %v306 = vmax.f32 %v268, 0.0
      %v307 = vmax.f32 %v269, 0.0
      %v308 = vmax.f32 %v270, 0.0
      %v309 = vmax.f32 %v271, 0.0
      %v310 = vmax.f32 %v272, 0.0
      %v311 = vmax.f32 %v273, 0.0
      %v312 = vmax.f32 %v274, 0.0
      %v313 = vmax.f32 %v275, 0.0
      %v314 = vmax.f32 %v276, 0.0
      %v315 = vmax.f32 %v277, 0.0
      %v316 = vmax.f32 %v278, 0.0
      %v317 = vmax.f32 %v279, 0.0
      %v318 = vmax.f32 %v280, 0.0
      %v319 = vmax.f32 %v281, 0.0
      %v320 = vmax.f32 %v282, 0.0
      %v321 = vmax.f32 %v283, 0.0
      %v322 = vmax.f32 %v284, 0.0
      %v323 = vmax.f32 %v285, 0.0
      %v324 = vmax.f32 %v286, 0.0
      %v325 = vmax.f32 %v287, 0.0
      %v326 = vmax.f32 %v288, 0.0
      %v327 = vmax.f32 %v289, 0.0
      %v328 = vmax.f32 %v290, 0.0
      %v329 = vmax.f32 %v291, 0.0
      %v330 = vmax.f32 %v292, 0.0
      %v331 = vmax.f32 %v293, 0.0
      %v332 = vmax.f32 %v294, 0.0
      %v333 = vmax.f32 %v295, 0.0
      %v334 = vmax.f32 %v296, 0.0
      %v335 = vmax.f32 %v297, 0.0
      %v336 = vmax.f32 %v298, 0.0
      %v337 = vmax.f32 %v299, 0.0
      %v338 = vmax.f32 %v300, 0.0
      %v339 = vmax.f32 %v301, 0.0
      %v340 = vpack.c.bf16 %v303, %v302
      %v341 = vpack.c.bf16 %v305, %v304
      %v342 = vpack.c.bf16 %v307, %v306
      %v343 = vpack.c.bf16 %v309, %v308
      %v344 = vpack.c.bf16 %v311, %v310
      %v345 = vpack.c.bf16 %v313, %v312
      %v346 = vpack.c.bf16 %v315, %v314
      %v347 = vpack.c.bf16 %v317, %v316
      %v348 = vpack.c.bf16 %v319, %v318
      %v349 = vpack.c.bf16 %v321, %v320
      %v350 = vpack.c.bf16 %v323, %v322
      %v351 = vpack.c.bf16 %v325, %v324
      %v352 = vpack.c.bf16 %v327, %v326
      %v353 = vpack.c.bf16 %v329, %v328
      %v354 = vpack.c.bf16 %v331, %v330
      %v355 = vpack.c.bf16 %v333, %v332
      %v356 = vpack.c.bf16 %v335, %v334
      %v357 = vpack.c.bf16 %v337, %v336
      %v358 = vpack.c.bf16 %v339, %v338
      %v378 = vunpack.c.l.b16 %v340
      %v379 = vunpack.c.h.b16 %v340
      %v380 = vunpack.c.l.b16 %v341
      %v381 = vunpack.c.h.b16 %v341
      %v382 = vunpack.c.l.b16 %v342
      %v383 = vunpack.c.h.b16 %v342
      %v384 = vunpack.c.l.b16 %v343
      %v385 = vunpack.c.h.b16 %v343
      %v386 = vunpack.c.l.b16 %v344
      %v387 = vunpack.c.h.b16 %v344
      %v388 = vunpack.c.l.b16 %v345
      %v389 = vunpack.c.h.b16 %v345
      %v390 = vunpack.c.l.b16 %v346
      %v391 = vunpack.c.h.b16 %v346
      %v392 = vunpack.c.l.b16 %v347
      %v393 = vunpack.c.h.b16 %v347
      %v394 = vunpack.c.l.b16 %v348
      %v395 = vunpack.c.h.b16 %v348
      %v396 = vunpack.c.l.b16 %v349
      %v397 = vunpack.c.h.b16 %v349
      %v398 = vunpack.c.l.b16 %v350
      %v399 = vunpack.c.h.b16 %v350
      %v400 = vunpack.c.l.b16 %v351
      %v401 = vunpack.c.h.b16 %v351
      %v402 = vunpack.c.l.b16 %v352
      %v403 = vunpack.c.h.b16 %v352
      %v404 = vunpack.c.l.b16 %v353
      %v405 = vunpack.c.h.b16 %v353
      %v406 = vunpack.c.l.b16 %v354
      %v407 = vunpack.c.h.b16 %v354
      %v408 = vunpack.c.l.b16 %v355
      %v409 = vunpack.c.h.b16 %v355
      %v410 = vunpack.c.l.b16 %v356
      %v411 = vunpack.c.h.b16 %v356
      %v412 = vunpack.c.l.b16 %v357
      %v413 = vunpack.c.h.b16 %v357
      %v414 = vunpack.c.l.b16 %v358
      %v415 = vunpack.c.h.b16 %v358
      %v416 = vpack.c.b16 %v378, %v378
      %v417 = vpack.c.b16 %v379, %v379
      %v418 = vpack.c.b16 %v380, %v380
      %v419 = vpack.c.b16 %v381, %v381
      %v420 = vpack.c.b16 %v382, %v382
      %v421 = vpack.c.b16 %v383, %v383
      %v422 = vpack.c.b16 %v384, %v384
      %v423 = vpack.c.b16 %v385, %v385
      %v424 = vpack.c.b16 %v386, %v386
      %v425 = vpack.c.b16 %v387, %v387
      %v426 = vpack.c.b16 %v388, %v388
      %v427 = vpack.c.b16 %v389, %v389
      %v428 = vpack.c.b16 %v390, %v390
      %v429 = vpack.c.b16 %v391, %v391
      %v430 = vpack.c.b16 %v392, %v392
      %v431 = vpack.c.b16 %v393, %v393
      %v432 = vpack.c.b16 %v394, %v394
      %v433 = vpack.c.b16 %v395, %v395
      %v434 = vpack.c.b16 %v396, %v396
      %v435 = vpack.c.b16 %v397, %v397
      %v436 = vpack.c.b16 %v398, %v398
      %v437 = vpack.c.b16 %v399, %v399
      %v438 = vpack.c.b16 %v400, %v400
      %v439 = vpack.c.b16 %v401, %v401
      %v440 = vpack.c.b16 %v402, %v402
      %v441 = vpack.c.b16 %v403, %v403
      %v442 = vpack.c.b16 %v404, %v404
      %v443 = vpack.c.b16 %v405, %v405
      %v444 = vpack.c.b16 %v406, %v406
      %v445 = vpack.c.b16 %v407, %v407
      %v446 = vpack.c.b16 %v408, %v408
      %v447 = vpack.c.b16 %v409, %v409
      %v448 = vpack.c.b16 %v410, %v410
      %v449 = vpack.c.b16 %v411, %v411
      %v450 = vpack.c.b16 %v412, %v412
      %v451 = vpack.c.b16 %v413, %v413
      %v452 = vpack.c.b16 %v414, %v414
      %v453 = vpack.c.b16 %v415, %v415
      %492 = vst [vmem:[%s172] sm:$0xf] %v416
      %493 = vst [vmem:[%s172 + $0x4] sm:$0xf] %v417
      %494 = vst [vmem:[%s172 + $0x8] sm:$0xf] %v418
      %495 = vst [vmem:[%s172 + $0xc] sm:$0xf] %v419
      %496 = vst [vmem:[%s172 + $0x10] sm:$0xf] %v420
      %497 = vst [vmem:[%s172 + $0x14] sm:$0xf] %v421
      %498 = vst [vmem:[%s172 + $0x18] sm:$0xf] %v422
      %499 = vst [vmem:[%s172 + $0x1c] sm:$0xf] %v423
      %500 = vst [vmem:[%s172 + $0x20] sm:$0xf] %v424
      %501 = vst [vmem:[%s172 + $0x24] sm:$0xf] %v425
      %502 = vst [vmem:[%s172 + $0x28] sm:$0xf] %v426
      %503 = vst [vmem:[%s172 + $0x2c] sm:$0xf] %v427
      %504 = vst [vmem:[%s172 + $0x30] sm:$0xf] %v428
      %505 = vst [vmem:[%s172 + $0x34] sm:$0xf] %v429
      %506 = vst [vmem:[%s172 + $0x38] sm:$0xf] %v430
      %507 = vst [vmem:[%s172 + $0x3c] sm:$0xf] %v431
      %508 = vst [vmem:[%s172 + $0x40] sm:$0xf] %v432
      %509 = vst [vmem:[%s172 + $0x44] sm:$0xf] %v433
      %510 = vst [vmem:[%s172 + $0x48] sm:$0xf] %v434
      %511 = vst [vmem:[%s172 + $0x4c] sm:$0xf] %v435
      %512 = vst [vmem:[%s172 + $0x50] sm:$0xf] %v436
      %513 = vst [vmem:[%s172 + $0x54] sm:$0xf] %v437
      %514 = vst [vmem:[%s172 + $0x58] sm:$0xf] %v438
      %515 = vst [vmem:[%s172 + $0x5c] sm:$0xf] %v439
      %516 = vst [vmem:[%s172 + $0x60] sm:$0xf] %v440
      %517 = vst [vmem:[%s172 + $0x64] sm:$0xf] %v441
      %518 = vst [vmem:[%s172 + $0x68] sm:$0xf] %v442
      %519 = vst [vmem:[%s172 + $0x6c] sm:$0xf] %v443
      %520 = vst [vmem:[%s172 + $0x70] sm:$0xf] %v444
      %521 = vst [vmem:[%s172 + $0x74] sm:$0xf] %v445
      %522 = vst [vmem:[%s172 + $0x78] sm:$0xf] %v446
      %523 = vst [vmem:[%s172 + $0x7c] sm:$0xf] %v447
      %524 = vst [vmem:[%s172 + $0x80] sm:$0xf] %v448
      %525 = vst [vmem:[%s172 + $0x84] sm:$0xf] %v449
      %526 = vst [vmem:[%s172 + $0x88] sm:$0xf] %v450
      %527 = vst [vmem:[%s172 + $0x8c] sm:$0xf] %v451
      %528 = vst [vmem:[%s172 + $0x90] sm:$0xf] %v452
      %529 = vst [vmem:[%s172 + $0x94] sm:$0xf] %v453
      %s530 = smul.u32 38, %s14
      %p531 = scmp.lt.s32.totalorder %s530, 75
      %s532 = scalar_select %p531, %s530, 75
      %s533 = smul.addr %s532, 4
      %s534 = scalar_lea.vmem %s3, %s533
      // Predicated region
      $region33: #{stem_v1_forward.16} parent=31 // pred_check
        %p535 = pneg %p100
      $region34: #{stem_v1_forward.16} parent=31 // pred_check_branch
        %537 = sbr.rel (%p535) target = $region36
      $region35: #{stem_v1_forward.16} parent=31 // pred_region
        %s538 = smul.u32 38, %s14
      $region36: #{stem_v1_forward.16} parent=31 // pred_fallthru
        _
    $region32: #{stem_v1_forward.16} parent=5 // pred_fallthru
      _
    %p539 = scmp.le.s32.totalorder 2, %s9
    // Predicated region
    $region37: #{stem_v1_forward.16} parent=5 // pred_check
      %p540 = pneg %p539
    $region38: #{stem_v1_forward.16} parent=5 // pred_check_branch
      %542 = sbr.rel (%p540) target = $region40
    $region39: #{stem_v1_forward.16} parent=5 // pred_region
      %s543 = ssub.s32 %s9, 2
      // Predicated region
      $region41: #{stem_v1_forward.16} parent=39 // pred_check
        %p544 = pneg %p106
      $region42: #{stem_v1_forward.16} parent=39 // pred_check_branch
        %546 = sbr.rel (%p544) target = $region44
      $region43: #{stem_v1_forward.16} parent=39 // pred_region
        %s547 = smul.u32 38, %s15
        %p548 = scmp.lt.s32.totalorder %s547, 75
        %s549 = scalar_select %p548, %s547, 75
        %s550 = smul.addr %s549, 4
        %s551 = scalar_lea.vmem %s3, %s550
      $region44: #{stem_v1_forward.16} parent=39 // pred_fallthru
        _
    $region40: #{stem_v1_forward.16} parent=5 // pred_fallthru
      _
  $region6: #{stem_v1_forward.16} parent=0 // loop_footer
    %s13 = sadd.s32 1, %s9
  $region7: #{stem_v1_forward.16} parent=0 // loop_footer_branch
    %8 = sbr.rel target = $region3
  $region8: #{stem_v1_forward.16} parent=0 // loop_exit
    _

// kernel: stem_v1_forward.15
$region0: #{stem_v1_forward.15}
  #allocation0 [shape = 'u32[]', space=smem, size = 0x4, offset = 0x4, fixed_abs, tag = 'smem constant byte address 0x4 - core index']
  #allocation1 [shape = 'u32[144,128]{1,0:T(1,128)}', space=vmem, size = 0x12000, scoped, tag = 'internal scratch']
  %s0 = inlined_call_operand.vmem [shape: bf16[608,288], index: 0, kind: input, shape index: {}]
  %s1 = inlined_call_operand.vmem [shape: bf16[288,128], index: 1, kind: input, shape index: {}]
  %s2 = inlined_call_operand.vmem [shape: f32[608,128], index: 2, kind: output, shape index: {0}]
  %s3 = inlined_call_operand.vmem [shape: f32[2,128], index: 3, kind: output, shape index: {1}]
  %4 = xla_tuple %s2, %s3
  %s5 = sld [smem:[#allocation0]]
  $region53: #{stem_v1_forward.15} parent=0
    _
  %s7 = ssub.s32 1, %s5
  %s8 = scalar_select 0, %s7, %s5
  loop: start=0, step=1, limit=4
  $region2: #{stem_v1_forward.15} parent=0 // loop_pre_header
    _
  $region3: #{stem_v1_forward.15} parent=0 // loop_header
    %s10 = sphi 0, %s14
    %p11 = scmp.ge.s32.totalorder %s10, 4
    %s20 = sphi 0, %s22
    %s23 = sphi 0, %s20
    %s24 = sphi 0, %s23
    %s40 = sphi 0, %s24
    %s44 = sphi 0, %s44
    %s46 = sphi 0, %s44
    %s47 = sphi 0, %s46
    %s61 = sphi 0, %s47
    %s67 = sphi 0, %s69
    %s70 = sphi 0, %s67
    %s71 = sphi 0, %s70
    %s87 = sphi 0, %s71
    %s91 = sphi 0, %s91
    %s93 = sphi 0, %s91
    %s94 = sphi 0, %s93
    %s108 = sphi 0, %s94
  $region4: #{stem_v1_forward.15} parent=0 // loop_header_branch
    %13 = sbr.rel (%p11) target = $region8
  $region5: #{stem_v1_forward.15} parent=0 // loop_body
    %s15 = ssub.s32 %s10, 1
    %s16 = ssub.s32 %s10, 2
    %s17 = sadd.s32 %s10, 1
    %s18 = ssub.s32 %s10, %s17
    %p19 = scmp.eq.s32.totalorder %s18, 0
    %s21 = sadd.s32 %s20, 1
    %s22 = scalar_select %p19, %s20, %s21
    %p25 = pneg %p19
    %p26 = scmp.eq.s32.totalorder %s10, 1
    %p27 = por %p25, %p26
    %p28 = scmp.ne.s32.totalorder %s20, %s23
    %p29 = scmp.eq.s32.totalorder %s10, 0
    %p30 = por %p28, %p29
    %p31 = scmp.ne.s32.totalorder %s20, %s23
    %p32 = scmp.eq.s32.totalorder %s15, 1
    %p33 = por %p31, %p32
    %p34 = scmp.ne.s32.totalorder %s23, %s24
    %p35 = scmp.eq.s32.totalorder %s15, 0
    %p36 = por %p34, %p35
    %p37 = scmp.ne.s32.totalorder %s23, %s24
    %p38 = scmp.eq.s32.totalorder %s16, 1
    %p39 = por %p37, %p38
    %p41 = scmp.ne.s32.totalorder %s24, %s40
    %p42 = scmp.eq.s32.totalorder %s16, 0
    %p43 = por %p41, %p42
    %s45 = sadd.s32 %s44, 1
    %p48 = scmp.eq.s32.totalorder %s10, 1
    %p49 = scmp.ne.s32.totalorder %s44, %s46
    %p50 = scmp.eq.s32.totalorder %s10, 0
    %p51 = por %p49, %p50
    %p52 = scmp.ne.s32.totalorder %s44, %s46
    %p53 = scmp.eq.s32.totalorder %s15, 1
    %p54 = por %p52, %p53
    %p55 = scmp.ne.s32.totalorder %s46, %s47
    %p56 = scmp.eq.s32.totalorder %s15, 0
    %p57 = por %p55, %p56
    %p58 = scmp.ne.s32.totalorder %s46, %s47
    %p59 = scmp.eq.s32.totalorder %s16, 1
    %p60 = por %p58, %p59
    %p62 = scmp.ne.s32.totalorder %s47, %s61
    %p63 = scmp.eq.s32.totalorder %s16, 0
    %p64 = por %p62, %p63
    %s65 = ssub.s32 %s10, %s17
    %p66 = scmp.eq.s32.totalorder %s65, 0
    %s68 = sadd.s32 %s67, 1
    %s69 = scalar_select %p66, %s67, %s68
    %p72 = pneg %p66
    %p73 = scmp.eq.s32.totalorder %s10, 1
    %p74 = por %p72, %p73
    %p75 = scmp.ne.s32.totalorder %s67, %s70
    %p76 = scmp.eq.s32.totalorder %s10, 0
    %p77 = por %p75, %p76
    %p78 = scmp.ne.s32.totalorder %s67, %s70
    %p79 = scmp.eq.s32.totalorder %s15, 1
    %p80 = por %p78, %p79
    %p81 = scmp.ne.s32.totalorder %s70, %s71
    %p82 = scmp.eq.s32.totalorder %s15, 0
    %p83 = por %p81, %p82
    %p84 = scmp.ne.s32.totalorder %s70, %s71
    %p85 = scmp.eq.s32.totalorder %s16, 1
    %p86 = por %p84, %p85
    %p88 = scmp.ne.s32.totalorder %s71, %s87
    %p89 = scmp.eq.s32.totalorder %s16, 0
    %p90 = por %p88, %p89
    %s92 = sadd.s32 %s91, 1
    %p95 = scmp.eq.s32.totalorder %s10, 1
    %p96 = scmp.ne.s32.totalorder %s91, %s93
    %p97 = scmp.eq.s32.totalorder %s10, 0
    %p98 = por %p96, %p97
    %p99 = scmp.ne.s32.totalorder %s91, %s93
    %p100 = scmp.eq.s32.totalorder %s15, 1
    %p101 = por %p99, %p100
    %p102 = scmp.ne.s32.totalorder %s93, %s94
    %p103 = scmp.eq.s32.totalorder %s15, 0
    %p104 = por %p102, %p103
    %p105 = scmp.ne.s32.totalorder %s93, %s94
    %p106 = scmp.eq.s32.totalorder %s16, 1
    %p107 = por %p105, %p106
    %p109 = scmp.ne.s32.totalorder %s94, %s108
    %p110 = scmp.eq.s32.totalorder %s16, 0
    %p111 = por %p109, %p110
    %p112 = scmp.le.s32.totalorder 1, %s10
    %p113 = scmp.lt.s32.totalorder %s10, 3
    %p114 = pnand %p112, %p113
    %p115 = pneg %p114
    // Predicated region
    $region9: #{stem_v1_forward.15} parent=5 // pred_check
      _
    $region10: #{stem_v1_forward.15} parent=5 // pred_check_branch
      %117 = sbr.rel (%p114) target = $region12
    $region11: #{stem_v1_forward.15} parent=5 // pred_region
      %s118 = ssub.s32 %s10, 1
      // Predicated region
      $region13: #{stem_v1_forward.15} parent=11 // pred_check
        %p119 = pneg %p57
      $region14: #{stem_v1_forward.15} parent=11 // pred_check_branch
        %121 = sbr.rel (%p119) target = $region16
      $region15: #{stem_v1_forward.15} parent=11 // pred_region
        _
      $region16: #{stem_v1_forward.15} parent=11 // pred_fallthru
        _
    $region12: #{stem_v1_forward.15} parent=5 // pred_fallthru
      _
    %p122 = scmp.lt.s32.totalorder %s10, 2
    // Predicated region
    $region17: #{stem_v1_forward.15} parent=5 // pred_check
      %p123 = pneg %p122
    $region18: #{stem_v1_forward.15} parent=5 // pred_check_branch
      %125 = sbr.rel (%p123) target = $region20
    $region19: #{stem_v1_forward.15} parent=5 // pred_region
      // Predicated region
      $region21: #{stem_v1_forward.15} parent=19 // pred_check
        %p126 = pneg %p30
      $region22: #{stem_v1_forward.15} parent=19 // pred_check_branch
        %128 = sbr.rel (%p126) target = $region24
      $region23: #{stem_v1_forward.15} parent=19 // pred_region
        %s129 = smul.u32 38, %s10
        %p130 = scmp.lt.s32.totalorder %s129, 75
        %s131 = scalar_select %p130, %s129, 75
        %s132 = smul.addr %s131, 3
        %s133 = smul.addr %s132, 4
        %s134 = scalar_lea.vmem %s0, %s133
        %s135 = smul.u32 38, %s10
      $region24: #{stem_v1_forward.15} parent=19 // pred_fallthru
        _
    $region20: #{stem_v1_forward.15} parent=5 // pred_fallthru
      _
    %p136 = scmp.le.s32.totalorder 1, %s10
    %p137 = scmp.lt.s32.totalorder %s10, 3
    %p138 = pnand %p136, %p137
    %p139 = pneg %p138
    // Predicated region
    $region25: #{stem_v1_forward.15} parent=5 // pred_check
      _
    $region26: #{stem_v1_forward.15} parent=5 // pred_check_branch
      %141 = sbr.rel (%p138) target = $region28
    $region27: #{stem_v1_forward.15} parent=5 // pred_region
      %s142 = ssub.s32 %s10, 1
      %s143 = smul.u32 38, %s15
      %p144 = scmp.lt.s32.totalorder %s143, 75
      %s145 = scalar_select %p144, %s143, 75
      %s146 = smul.addr %s145, 3
      %s147 = smul.addr %s146, 4
      %s148 = scalar_lea.vmem %s0, %s147
      %p149 = pneg %p36
      %p150 = pneg %p33
      %p151 = pneg %p57
      %p152 = pneg %p54
      %p153 = pneg %p83
      %p154 = pneg %p80
      %s155 = smul.u32 38, %s15
      %p156 = scmp.lt.s32.totalorder %s155, 75
      %s157 = scalar_select %p156, %s155, 75
      %s158 = smul.addr %s157, 8
      %s159 = scalar_lea.vmem %s2, %s158
      %p160 = pneg %p104
      %p161 = pneg %p101
      %s162 = smul.u32 38, %s15
      %p163 = scmp.lt.s32.totalorder %s162, 75
      %s164 = scalar_select %p163, %s162, 75
      %s165 = smul.addr %s164, 3
      %s166 = smul.addr %s165, 4
      %s167 = scalar_lea.vmem %s0, %s166
      %s168 = smul.u32 38, %s15
      %s169 = smul.u32 38, %s15
      %p170 = scmp.lt.s32.totalorder %s169, 75
      %s171 = scalar_select %p170, %s169, 75
      %s172 = smul.addr %s171, 8
      %s173 = scalar_lea.vmem %s2, %s172
      %s174 = smul.u32 38, %s15
      %v176 = vld [vmem:[%s167] sm:$0xff]
      %v177 = vld [vmem:[%s167 + $0x8] sm:$0xf]
      %v178 = vld [vmem:[%s167 + $0xc] sm:$0xff]
      %v179 = vld [vmem:[%s167 + $0x14] sm:$0xf]
      %v180 = vld [vmem:[%s167 + $0x18] sm:$0xff]
      %v181 = vld [vmem:[%s167 + $0x20] sm:$0xf]
      %v182 = vld [vmem:[%s167 + $0x24] sm:$0xff]
      %v183 = vld [vmem:[%s167 + $0x2c] sm:$0xf]
      %v184 = vld [vmem:[%s167 + $0x30] sm:$0xff]
      %v185 = vld [vmem:[%s167 + $0x38] sm:$0xf]
      %v186 = vld [vmem:[%s167 + $0x3c] sm:$0xff]
      %v187 = vld [vmem:[%s167 + $0x44] sm:$0xf]
      %v188 = vld [vmem:[%s167 + $0x48] sm:$0xff]
      %v189 = vld [vmem:[%s167 + $0x50] sm:$0xf]
      %v190 = vld [vmem:[%s167 + $0x54] sm:$0xff]
      %v191 = vld [vmem:[%s167 + $0x5c] sm:$0xf]
      %v192 = vld [vmem:[%s167 + $0x60] sm:$0xff]
      %v193 = vld [vmem:[%s167 + $0x68] sm:$0xf]
      %v194 = vld [vmem:[%s167 + $0x6c] sm:$0xff]
      %v195 = vld [vmem:[%s167 + $0x74] sm:$0xf]
      %v196 = vld [vmem:[%s167 + $0x78] sm:$0xff]
      %v197 = vld [vmem:[%s167 + $0x80] sm:$0xf]
      %v198 = vld [vmem:[%s167 + $0x84] sm:$0xff]
      %v199 = vld [vmem:[%s167 + $0x8c] sm:$0xf]
      %v200 = vld [vmem:[%s167 + $0x90] sm:$0xff]
      %v201 = vld [vmem:[%s167 + $0x98] sm:$0xf]
      %v202 = vld [vmem:[%s167 + $0x9c] sm:$0xff]
      %v203 = vld [vmem:[%s167 + $0xa4] sm:$0xf]
      %v204 = vld [vmem:[%s167 + $0xa8] sm:$0xff]
      %v205 = vld [vmem:[%s167 + $0xb0] sm:$0xf]
      %v206 = vld [vmem:[%s167 + $0xb4] sm:$0xff]
      %v207 = vld [vmem:[%s167 + $0xbc] sm:$0xf]
      %v208 = vld [vmem:[%s167 + $0xc0] sm:$0xff]
      %v209 = vld [vmem:[%s167 + $0xc8] sm:$0xf]
      %v210 = vld [vmem:[%s167 + $0xcc] sm:$0xff]
      %v211 = vld [vmem:[%s167 + $0xd4] sm:$0xf]
      %v212 = vld [vmem:[%s167 + $0xd8] sm:$0xff]
      %v213 = vld [vmem:[%s167 + $0xe0] sm:$0xf]
      %v214 = vld [vmem:[%s167 + $0xe4] sm:$0xff]
      %v215 = vld [vmem:[%s167 + $0xec] sm:$0xf]
      %v216 = vld [vmem:[%s167 + $0xf0] sm:$0xff]
      %v217 = vld [vmem:[%s167 + $0xf8] sm:$0xf]
      %v218 = vld [vmem:[%s167 + $0xfc] sm:$0xff]
      %v219 = vld [vmem:[%s167 + $0x104] sm:$0xf]
      %v220 = vld [vmem:[%s167 + $0x108] sm:$0xff]
      %v221 = vld [vmem:[%s167 + $0x110] sm:$0xf]
      %v222 = vld [vmem:[%s167 + $0x114] sm:$0xff]
      %v223 = vld [vmem:[%s167 + $0x11c] sm:$0xf]
      %v224 = vld [vmem:[%s167 + $0x120] sm:$0xff]
      %v225 = vld [vmem:[%s167 + $0x128] sm:$0xf]
      %v226 = vld [vmem:[%s167 + $0x12c] sm:$0xff]
      %v227 = vld [vmem:[%s167 + $0x134] sm:$0xf]
      %v228 = vld [vmem:[%s167 + $0x138] sm:$0xff]
      %v229 = vld [vmem:[%s167 + $0x140] sm:$0xf]
      %v230 = vld [vmem:[%s167 + $0x144] sm:$0xff]
      %v231 = vld [vmem:[%s167 + $0x14c] sm:$0xf]
      %v232 = vld [vmem:[%s167 + $0x150] sm:$0xff]
      %v233 = vld [vmem:[%s167 + $0x158] sm:$0xf]
      %v234 = vld [vmem:[%s167 + $0x15c] sm:$0xff]
      %v235 = vld [vmem:[%s167 + $0x164] sm:$0xf]
      %v236 = vld [vmem:[%s167 + $0x168] sm:$0xff]
      %v237 = vld [vmem:[%s167 + $0x170] sm:$0xf]
      %v238 = vld [vmem:[%s167 + $0x174] sm:$0xff]
      %v239 = vld [vmem:[%s167 + $0x17c] sm:$0xf]
      %v240 = vld [vmem:[%s167 + $0x180] sm:$0xff]
      %v241 = vld [vmem:[%s167 + $0x188] sm:$0xf]
      %v242 = vld [vmem:[%s167 + $0x18c] sm:$0xff]
      %v243 = vld [vmem:[%s167 + $0x194] sm:$0xf]
      %v244 = vld [vmem:[%s167 + $0x198] sm:$0xff]
      %v245 = vld [vmem:[%s167 + $0x1a0] sm:$0xf]
      %v246 = vld [vmem:[%s167 + $0x1a4] sm:$0xff]
      %v247 = vld [vmem:[%s167 + $0x1ac] sm:$0xf]
      %v248 = vld [vmem:[%s167 + $0x1b0] sm:$0xff]
      %v249 = vld [vmem:[%s167 + $0x1b8] sm:$0xf]
      %v250 = vld [vmem:[%s167 + $0x1bc] sm:$0xff]
      %v251 = vld [vmem:[%s167 + $0x1c4] sm:$0xf]
      %v252 = vld [vmem:[%s1] sm:$0xf]
      %v253 = vld [vmem:[%s1 + $0x4] sm:$0xf]
      %v254 = vld [vmem:[%s1 + $0x8] sm:$0xf]
      %v255 = vld [vmem:[%s1 + $0xc] sm:$0xf]
      %v256 = vld [vmem:[%s1 + $0x10] sm:$0xf]
      %v257 = vld [vmem:[%s1 + $0x14] sm:$0xf]
      %v258 = vld [vmem:[%s1 + $0x18] sm:$0xf]
      %v259 = vld [vmem:[%s1 + $0x1c] sm:$0xf]
      %v260 = vld [vmem:[%s1 + $0x20] sm:$0xf]
      %v261 = vld [vmem:[%s1 + $0x24] sm:$0xf]
      %v262 = vld [vmem:[%s1 + $0x28] sm:$0xf]
      %v263 = vld [vmem:[%s1 + $0x2c] sm:$0xf]
      %v264 = vld [vmem:[%s1 + $0x30] sm:$0xf]
      %v265 = vld [vmem:[%s1 + $0x34] sm:$0xf]
      %v266 = vld [vmem:[%s1 + $0x38] sm:$0xf]
      %v267 = vld [vmem:[%s1 + $0x3c] sm:$0xf]
      %v268 = vld [vmem:[%s1 + $0x40] sm:$0xf]
      %v269 = vld [vmem:[%s1 + $0x44] sm:$0xf]
      %v270 = vld [vmem:[%s1 + $0x48] sm:$0xf]
      %v271 = vld [vmem:[%s1 + $0x4c] sm:$0xf]
      %v272 = vld [vmem:[%s1 + $0x50] sm:$0xf]
      %v273 = vld [vmem:[%s1 + $0x54] sm:$0xf]
      %v274 = vld [vmem:[%s1 + $0x58] sm:$0xf]
      %v275 = vld [vmem:[%s1 + $0x5c] sm:$0xf]
      %v276 = vld [vmem:[%s1 + $0x60] sm:$0xf]
      %v277 = vld [vmem:[%s1 + $0x64] sm:$0xf]
      %v278 = vld [vmem:[%s1 + $0x68] sm:$0xf]
      %v279 = vld [vmem:[%s1 + $0x6c] sm:$0xf]
      %v280 = vld [vmem:[%s1 + $0x70] sm:$0xf]
      %v281 = vld [vmem:[%s1 + $0x74] sm:$0xf]
      %v282 = vld [vmem:[%s1 + $0x78] sm:$0xf]
      %v283 = vld [vmem:[%s1 + $0x7c] sm:$0xf]
      %v284 = vld [vmem:[%s1 + $0x80] sm:$0xf]
      %v285 = vld [vmem:[%s1 + $0x84] sm:$0xf]
      %v286 = vld [vmem:[%s1 + $0x88] sm:$0xf]
      %v287 = vld [vmem:[%s1 + $0x8c] sm:$0xf]
      %v364 = vunpack.c.l.b16 %v176
      %v365 = vunpack.c.h.b16 %v176
      %v366 = vunpack.c.l.b16 %v177
      %v367 = vunpack.c.l.b16 %v178
      %v368 = vunpack.c.h.b16 %v178
      %v369 = vunpack.c.l.b16 %v179
      %v370 = vunpack.c.l.b16 %v180
      %v371 = vunpack.c.h.b16 %v180
      %v372 = vunpack.c.l.b16 %v181
      %v373 = vunpack.c.l.b16 %v182
      %v374 = vunpack.c.h.b16 %v182
      %v375 = vunpack.c.l.b16 %v183
      %v376 = vunpack.c.l.b16 %v184
      %v377 = vunpack.c.h.b16 %v184
      %v378 = vunpack.c.l.b16 %v185
      %v379 = vunpack.c.l.b16 %v186
      %v380 = vunpack.c.h.b16 %v186
      %v381 = vunpack.c.l.b16 %v187
      %v382 = vunpack.c.l.b16 %v188
      %v383 = vunpack.c.h.b16 %v188
      %v384 = vunpack.c.l.b16 %v189
      %v385 = vunpack.c.l.b16 %v190
      %v386 = vunpack.c.h.b16 %v190
      %v387 = vunpack.c.l.b16 %v191
      %v388 = vunpack.c.l.b16 %v192
      %v389 = vunpack.c.h.b16 %v192
      %v390 = vunpack.c.l.b16 %v193
      %v391 = vunpack.c.l.b16 %v194
      %v392 = vunpack.c.h.b16 %v194
      %v393 = vunpack.c.l.b16 %v195
      %v394 = vunpack.c.l.b16 %v196
      %v395 = vunpack.c.h.b16 %v196
      %v396 = vunpack.c.l.b16 %v197
      %v397 = vunpack.c.l.b16 %v198
      %v398 = vunpack.c.h.b16 %v198
      %v399 = vunpack.c.l.b16 %v199
      %v400 = vunpack.c.l.b16 %v200
      %v401 = vunpack.c.h.b16 %v200
      %v402 = vunpack.c.l.b16 %v201
      %v403 = vunpack.c.l.b16 %v202
      %v404 = vunpack.c.h.b16 %v202
      %v405 = vunpack.c.l.b16 %v203
      %v406 = vunpack.c.l.b16 %v204
      %v407 = vunpack.c.h.b16 %v204
      %v408 = vunpack.c.l.b16 %v205
      %v409 = vunpack.c.l.b16 %v206
      %v410 = vunpack.c.h.b16 %v206
      %v411 = vunpack.c.l.b16 %v207
      %v412 = vunpack.c.l.b16 %v208
      %v413 = vunpack.c.h.b16 %v208
      %v414 = vunpack.c.l.b16 %v209
      %v415 = vunpack.c.l.b16 %v210
      %v416 = vunpack.c.h.b16 %v210
      %v417 = vunpack.c.l.b16 %v211
      %v418 = vunpack.c.l.b16 %v212
      %v419 = vunpack.c.h.b16 %v212
      %v420 = vunpack.c.l.b16 %v213
      %v421 = vunpack.c.l.b16 %v214
      %v422 = vunpack.c.h.b16 %v214
      %v423 = vunpack.c.l.b16 %v215
      %v424 = vunpack.c.l.b16 %v216
      %v425 = vunpack.c.h.b16 %v216
      %v426 = vunpack.c.l.b16 %v217
      %v427 = vunpack.c.l.b16 %v218
      %v428 = vunpack.c.h.b16 %v218
      %v429 = vunpack.c.l.b16 %v219
      %v430 = vunpack.c.l.b16 %v220
      %v431 = vunpack.c.h.b16 %v220
      %v432 = vunpack.c.l.b16 %v221
      %v433 = vunpack.c.l.b16 %v222
      %v434 = vunpack.c.h.b16 %v222
      %v435 = vunpack.c.l.b16 %v223
      %v436 = vunpack.c.l.b16 %v224
      %v437 = vunpack.c.h.b16 %v224
      %v438 = vunpack.c.l.b16 %v225
      %v439 = vunpack.c.l.b16 %v226
      %v440 = vunpack.c.h.b16 %v226
      %v441 = vunpack.c.l.b16 %v227
      %v442 = vunpack.c.l.b16 %v228
      %v443 = vunpack.c.h.b16 %v228
      %v444 = vunpack.c.l.b16 %v229
      %v445 = vunpack.c.l.b16 %v230
      %v446 = vunpack.c.h.b16 %v230
      %v447 = vunpack.c.l.b16 %v231
      %v448 = vunpack.c.l.b16 %v232
      %v449 = vunpack.c.h.b16 %v232
      %v450 = vunpack.c.l.b16 %v233
      %v451 = vunpack.c.l.b16 %v234
      %v452 = vunpack.c.h.b16 %v234
      %v453 = vunpack.c.l.b16 %v235
      %v454 = vunpack.c.l.b16 %v236
      %v455 = vunpack.c.h.b16 %v236
      %v456 = vunpack.c.l.b16 %v237
      %v457 = vunpack.c.l.b16 %v238
      %v458 = vunpack.c.h.b16 %v238
      %v459 = vunpack.c.l.b16 %v239
      %v460 = vunpack.c.l.b16 %v240
      %v461 = vunpack.c.h.b16 %v240
      %v462 = vunpack.c.l.b16 %v241
      %v463 = vunpack.c.l.b16 %v242
      %v464 = vunpack.c.h.b16 %v242
      %v465 = vunpack.c.l.b16 %v243
      %v466 = vunpack.c.l.b16 %v244
      %v467 = vunpack.c.h.b16 %v244
      %v468 = vunpack.c.l.b16 %v245
      %v469 = vunpack.c.l.b16 %v246
      %v470 = vunpack.c.h.b16 %v246
      %v471 = vunpack.c.l.b16 %v247
      %v472 = vunpack.c.l.b16 %v248
      %v473 = vunpack.c.h.b16 %v248
      %v474 = vunpack.c.l.b16 %v249
      %v475 = vunpack.c.l.b16 %v250
      %v476 = vunpack.c.h.b16 %v250
      %v477 = vunpack.c.l.b16 %v251
      %v478 = vpack.c.b16 %v367, %v364
      %v479 = vpack.c.b16 %v368, %v365
      %v480 = vpack.c.b16 %v369, %v366
      %v481 = vpack.c.b16 %v373, %v370
      %v482 = vpack.c.b16 %v374, %v371
      %v483 = vpack.c.b16 %v375, %v372
      %v484 = vpack.c.b16 %v379, %v376
      %v485 = vpack.c.b16 %v380, %v377
      %v486 = vpack.c.b16 %v381, %v378
      %v487 = vpack.c.b16 %v385, %v382
      %v488 = vpack.c.b16 %v386, %v383
      %v489 = vpack.c.b16 %v387, %v384
      %v490 = vpack.c.b16 %v391, %v388
      %v491 = vpack.c.b16 %v392, %v389
      %v492 = vpack.c.b16 %v393, %v390
      %v493 = vpack.c.b16 %v397, %v394
      %v494 = vpack.c.b16 %v398, %v395
      %v495 = vpack.c.b16 %v399, %v396
      %v496 = vpack.c.b16 %v403, %v400
      %v497 = vpack.c.b16 %v404, %v401
      %v498 = vpack.c.b16 %v405, %v402
      %v499 = vpack.c.b16 %v409, %v406
      %v500 = vpack.c.b16 %v410, %v407
      %v501 = vpack.c.b16 %v411, %v408
      %v502 = vpack.c.b16 %v415, %v412
      %v503 = vpack.c.b16 %v416, %v413
      %v504 = vpack.c.b16 %v417, %v414
      %v505 = vpack.c.b16 %v421, %v418
      %v506 = vpack.c.b16 %v422, %v419
      %v507 = vpack.c.b16 %v423, %v420
      %v508 = vpack.c.b16 %v427, %v424
      %v509 = vpack.c.b16 %v428, %v425
      %v510 = vpack.c.b16 %v429, %v426
      %v511 = vpack.c.b16 %v433, %v430
      %v512 = vpack.c.b16 %v434, %v431
      %v513 = vpack.c.b16 %v435, %v432
      %v514 = vpack.c.b16 %v439, %v436
      %v515 = vpack.c.b16 %v440, %v437
      %v516 = vpack.c.b16 %v441, %v438
      %v517 = vpack.c.b16 %v445, %v442
      %v518 = vpack.c.b16 %v446, %v443
      %v519 = vpack.c.b16 %v447, %v444
      %v520 = vpack.c.b16 %v451, %v448
      %v521 = vpack.c.b16 %v452, %v449
      %v522 = vpack.c.b16 %v453, %v450
      %v523 = vpack.c.b16 %v457, %v454
      %v524 = vpack.c.b16 %v458, %v455
      %v525 = vpack.c.b16 %v459, %v456
      %v526 = vpack.c.b16 %v463, %v460
      %v527 = vpack.c.b16 %v464, %v461
      %v528 = vpack.c.b16 %v465, %v462
      %v529 = vpack.c.b16 %v469, %v466
      %v530 = vpack.c.b16 %v470, %v467
      %v531 = vpack.c.b16 %v471, %v468
      %v532 = vpack.c.b16 %v475, %v472
      %v533 = vpack.c.b16 %v476, %v473
      %v534 = vpack.c.b16 %v477, %v474
      %v609 = vunpack.c.l.b16 %v252
      %v610 = vunpack.c.l.b16 %v253
      %v611 = vunpack.c.l.b16 %v254
      %v612 = vunpack.c.l.b16 %v255
      %v613 = vunpack.c.l.b16 %v256
      %v614 = vunpack.c.l.b16 %v257
      %v615 = vunpack.c.l.b16 %v258
      %v616 = vunpack.c.l.b16 %v259
      %v617 = vunpack.c.l.b16 %v260
      %v618 = vunpack.c.l.b16 %v261
      %v619 = vunpack.c.l.b16 %v262
      %v620 = vunpack.c.l.b16 %v263
      %v621 = vunpack.c.l.b16 %v264
      %v622 = vunpack.c.l.b16 %v265
      %v623 = vunpack.c.l.b16 %v266
      %v624 = vunpack.c.l.b16 %v267
      %v625 = vunpack.c.l.b16 %v268
      %v626 = vunpack.c.l.b16 %v269
      %v627 = vunpack.c.l.b16 %v270
      %v628 = vunpack.c.l.b16 %v271
      %v629 = vunpack.c.l.b16 %v272
      %v630 = vunpack.c.l.b16 %v273
      %v631 = vunpack.c.l.b16 %v274
      %v632 = vunpack.c.l.b16 %v275
      %v633 = vunpack.c.l.b16 %v276
      %v634 = vunpack.c.l.b16 %v277
      %v635 = vunpack.c.l.b16 %v278
      %v636 = vunpack.c.l.b16 %v279
      %v637 = vunpack.c.l.b16 %v280
      %v638 = vunpack.c.l.b16 %v281
      %v639 = vunpack.c.l.b16 %v282
      %v640 = vunpack.c.l.b16 %v283
      %v641 = vunpack.c.l.b16 %v284
      %v642 = vunpack.c.l.b16 %v285
      %v643 = vunpack.c.l.b16 %v286
      %v644 = vunpack.c.l.b16 %v287
      %v645 = vpack.c.b16 %v610, %v609
      %v646 = vpack.c.b16 %v612, %v611
      %v647 = vpack.c.b16 %v614, %v613
      %v648 = vpack.c.b16 %v616, %v615
      %v649 = vpack.c.b16 %v618, %v617
      %v650 = vpack.c.b16 %v620, %v619
      %v651 = vpack.c.b16 %v622, %v621
      %v652 = vpack.c.b16 %v624, %v623
      %v653 = vpack.c.b16 %v626, %v625
      %v654 = vpack.c.b16 %v628, %v627
      %v655 = vpack.c.b16 %v630, %v629
      %v656 = vpack.c.b16 %v632, %v631
      %v657 = vpack.c.b16 %v634, %v633
      %v658 = vpack.c.b16 %v636, %v635
      %v659 = vpack.c.b16 %v638, %v637
      %v660 = vpack.c.b16 %v640, %v639
      %v661 = vpack.c.b16 %v642, %v641
      %v662 = vpack.c.b16 %v644, %v643
      %vm681 = vcmask 261120
      %v683 = vsel %vm681, %v480, 0
      %v686 = vsel %vm681, %v483, 0
      %v689 = vsel %vm681, %v486, 0
      %v692 = vsel %vm681, %v489, 0
      %v695 = vsel %vm681, %v492, 0
      %v698 = vsel %vm681, %v495, 0
      %v701 = vsel %vm681, %v498, 0
      %v704 = vsel %vm681, %v501, 0
      %v707 = vsel %vm681, %v504, 0
      %v710 = vsel %vm681, %v507, 0
      %v713 = vsel %vm681, %v510, 0
      %v716 = vsel %vm681, %v513, 0
      %v719 = vsel %vm681, %v516, 0
      %v722 = vsel %vm681, %v519, 0
      %v725 = vsel %vm681, %v522, 0
      %v728 = vsel %vm681, %v525, 0
      %v731 = vsel %vm681, %v528, 0
      %v734 = vsel %vm681, %v531, 0
      %v737 = vsel %vm681, %v534, 0
      %739 = vmatprep.subr.bf16.mxu0 0
      %740 = vmatpush1.bf16.msra.mxu0 %v652
      %741 = vmatprep.subr.bf16.mxu0 0
      %742 = vmatpush1.bf16.msra.mxu0 %v651
      %743 = vmatprep.subr.bf16.mxu0 0
      %744 = vmatpush1.bf16.msra.mxu0 %v650
      %745 = vmatprep.subr.bf16.mxu0 0
      %746 = vmatpush1.bf16.msra.mxu0 %v649
      %747 = vmatprep.subr.bf16.mxu0 0
      %748 = vmatpush1.bf16.msra.mxu0 %v648
      %749 = vmatprep.subr.bf16.mxu0 0
      %750 = vmatpush1.bf16.msra.mxu0 %v647
      %751 = vmatprep.subr.bf16.mxu0 0
      %752 = vmatpush1.bf16.msra.mxu0 %v646
      %753 = vmatprep.subr.bf16.mxu0 0
      %754 = vmatpush1.bf16.msra.mxu0 %v645
      %755 = vmatprep.subr.bf16.mxu0 0
      %756 = vmatpush2.bf16.msra.mxu0 %v660
      %757 = vmatprep.subr.bf16.mxu0 0
      %758 = vmatpush2.bf16.msra.mxu0 %v659
      %759 = vmatprep.subr.bf16.mxu0 0
      %760 = vmatpush2.bf16.msra.mxu0 %v658
      %761 = vmatprep.subr.bf16.mxu0 0
      %762 = vmatpush2.bf16.msra.mxu0 %v657
      %763 = vmatprep.subr.bf16.mxu0 0
      %764 = vmatpush2.bf16.msra.mxu0 %v656
      %765 = vmatprep.subr.bf16.mxu0 0
      %766 = vmatpush2.bf16.msra.mxu0 %v655
      %767 = vmatprep.subr.bf16.mxu0 0
      %768 = vmatpush2.bf16.msra.mxu0 %v654
      %769 = vmatprep.subr.bf16.mxu0 0
      %770 = vmatpush2.bf16.msra.mxu0 %v653
      %771 = vmatprep.mubr.bf16.mxu0 %v479
      %772 = vmatmul.mubr.bf16.gmra.mxu0 %v478
      %v773 = vpop.f32.mrf.mxu0
      %v774 = vadd.f32 0.0, %v773
      %v775 = vpop.f32.mrf.mxu0
      %v776 = vpop.f32.mrf.mxu0
      %v777 = vadd.f32 0.0, %v776
      %v778 = vpop.f32.mrf.mxu0
      %779 = vmatprep.mubr.bf16.mxu0 %v482
      %780 = vmatmul.mubr.bf16.gmra.mxu0 %v481
      %v781 = vpop.f32.mrf.mxu0
      %v782 = vadd.f32 0.0, %v781
      %v783 = vpop.f32.mrf.mxu0
      %v784 = vpop.f32.mrf.mxu0
      %v785 = vadd.f32 0.0, %v784
      %v786 = vpop.f32.mrf.mxu0
      %787 = vmatprep.mubr.bf16.mxu0 %v485
      %788 = vmatmul.mubr.bf16.gmra.mxu0 %v484
      %v789 = vpop.f32.mrf.mxu0
      %v790 = vadd.f32 0.0, %v789
      %v791 = vpop.f32.mrf.mxu0
      %v792 = vpop.f32.mrf.mxu0
      %v793 = vadd.f32 0.0, %v792
      %v794 = vpop.f32.mrf.mxu0
      %795 = vmatprep.mubr.bf16.mxu0 %v488
      %796 = vmatmul.mubr.bf16.gmra.mxu0 %v487
      %v797 = vpop.f32.mrf.mxu0
      %v798 = vadd.f32 0.0, %v797
      %v799 = vpop.f32.mrf.mxu0
      %v800 = vpop.f32.mrf.mxu0
      %v801 = vadd.f32 0.0, %v800
      %v802 = vpop.f32.mrf.mxu0
      %803 = vmatprep.mubr.bf16.mxu0 %v491
      %804 = vmatmul.mubr.bf16.gmra.mxu0 %v490
      %v805 = vpop.f32.mrf.mxu0
      %v806 = vadd.f32 0.0, %v805
      %v807 = vpop.f32.mrf.mxu0
      %v808 = vpop.f32.mrf.mxu0
      %v809 = vadd.f32 0.0, %v808
      %v810 = vpop.f32.mrf.mxu0
      %811 = vmatprep.mubr.bf16.mxu0 %v494
      %812 = vmatmul.mubr.bf16.gmra.mxu0 %v493
      %v813 = vpop.f32.mrf.mxu0
      %v814 = vadd.f32 0.0, %v813
      %v815 = vpop.f32.mrf.mxu0
      %v816 = vpop.f32.mrf.mxu0
      %v817 = vadd.f32 0.0, %v816
      %v818 = vpop.f32.mrf.mxu0
      %819 = vmatprep.mubr.bf16.mxu0 %v497
      %820 = vmatmul.mubr.bf16.gmra.mxu0 %v496
      %v821 = vpop.f32.mrf.mxu0
      %v822 = vadd.f32 0.0, %v821
      %v823 = vpop.f32.mrf.mxu0
      %v824 = vpop.f32.mrf.mxu0
      %v825 = vadd.f32 0.0, %v824
      %v826 = vpop.f32.mrf.mxu0
      %827 = vmatprep.mubr.bf16.mxu0 %v500
      %828 = vmatmul.mubr.bf16.gmra.mxu0 %v499
      %v829 = vpop.f32.mrf.mxu0
      %v830 = vadd.f32 0.0, %v829
      %v831 = vpop.f32.mrf.mxu0
      %v832 = vpop.f32.mrf.mxu0
      %v833 = vadd.f32 0.0, %v832
      %v834 = vpop.f32.mrf.mxu0
      %835 = vmatprep.mubr.bf16.mxu0 %v503
      %836 = vmatmul.mubr.bf16.gmra.mxu0 %v502
      %v837 = vpop.f32.mrf.mxu0
      %v838 = vadd.f32 0.0, %v837
      %v839 = vpop.f32.mrf.mxu0
      %v840 = vpop.f32.mrf.mxu0
      %v841 = vadd.f32 0.0, %v840
      %v842 = vpop.f32.mrf.mxu0
      %843 = vmatprep.mubr.bf16.mxu0 %v506
      %844 = vmatmul.mubr.bf16.gmra.mxu0 %v505
      %v845 = vpop.f32.mrf.mxu0
      %v846 = vadd.f32 0.0, %v845
      %v847 = vpop.f32.mrf.mxu0
      %v848 = vpop.f32.mrf.mxu0
      %v849 = vadd.f32 0.0, %v848
      %v850 = vpop.f32.mrf.mxu0
      %851 = vmatprep.mubr.bf16.mxu0 %v509
      %852 = vmatmul.mubr.bf16.gmra.mxu0 %v508
      %v853 = vpop.f32.mrf.mxu0
      %v854 = vadd.f32 0.0, %v853
      %v855 = vpop.f32.mrf.mxu0
      %v856 = vpop.f32.mrf.mxu0
      %v857 = vadd.f32 0.0, %v856
      %v858 = vpop.f32.mrf.mxu0
      %859 = vmatprep.mubr.bf16.mxu0 %v512
      %860 = vmatmul.mubr.bf16.gmra.mxu0 %v511
      %v861 = vpop.f32.mrf.mxu0
      %v862 = vadd.f32 0.0, %v861
      %v863 = vpop.f32.mrf.mxu0
      %v864 = vpop.f32.mrf.mxu0
      %v865 = vadd.f32 0.0, %v864
      %v866 = vpop.f32.mrf.mxu0
      %867 = vmatprep.mubr.bf16.mxu0 %v515
      %868 = vmatmul.mubr.bf16.gmra.mxu0 %v514
      %v869 = vpop.f32.mrf.mxu0
      %v870 = vadd.f32 0.0, %v869
      %v871 = vpop.f32.mrf.mxu0
      %v872 = vpop.f32.mrf.mxu0
      %v873 = vadd.f32 0.0, %v872
      %v874 = vpop.f32.mrf.mxu0
      %875 = vmatprep.mubr.bf16.mxu0 %v518
      %876 = vmatmul.mubr.bf16.gmra.mxu0 %v517
      %v877 = vpop.f32.mrf.mxu0
      %v878 = vadd.f32 0.0, %v877
      %v879 = vpop.f32.mrf.mxu0
      %v880 = vpop.f32.mrf.mxu0
      %v881 = vadd.f32 0.0, %v880
      %v882 = vpop.f32.mrf.mxu0
      %883 = vmatprep.mubr.bf16.mxu0 %v521
      %884 = vmatmul.mubr.bf16.gmra.mxu0 %v520
      %v885 = vpop.f32.mrf.mxu0
      %v886 = vadd.f32 0.0, %v885
      %v887 = vpop.f32.mrf.mxu0
      %v888 = vpop.f32.mrf.mxu0
      %v889 = vadd.f32 0.0, %v888
      %v890 = vpop.f32.mrf.mxu0
      %891 = vmatprep.mubr.bf16.mxu0 %v524
      %892 = vmatmul.mubr.bf16.gmra.mxu0 %v523
      %v893 = vpop.f32.mrf.mxu0
      %v894 = vadd.f32 0.0, %v893
      %v895 = vpop.f32.mrf.mxu0
      %v896 = vpop.f32.mrf.mxu0
      %v897 = vadd.f32 0.0, %v896
      %v898 = vpop.f32.mrf.mxu0
      %899 = vmatprep.mubr.bf16.mxu0 %v527
      %900 = vmatmul.mubr.bf16.gmra.mxu0 %v526
      %v901 = vpop.f32.mrf.mxu0
      %v902 = vadd.f32 0.0, %v901
      %v903 = vpop.f32.mrf.mxu0
      %v904 = vpop.f32.mrf.mxu0
      %v905 = vadd.f32 0.0, %v904
      %v906 = vpop.f32.mrf.mxu0
      %907 = vmatprep.mubr.bf16.mxu0 %v530
      %908 = vmatmul.mubr.bf16.gmra.mxu0 %v529
      %v909 = vpop.f32.mrf.mxu0
      %v910 = vadd.f32 0.0, %v909
      %v911 = vpop.f32.mrf.mxu0
      %v912 = vpop.f32.mrf.mxu0
      %v913 = vadd.f32 0.0, %v912
      %v914 = vpop.f32.mrf.mxu0
      %915 = vmatprep.mubr.bf16.mxu0 %v533
      %916 = vmatmul.mubr.bf16.gmra.mxu0 %v532
      %v917 = vpop.f32.mrf.mxu0
      %v918 = vadd.f32 0.0, %v917
      %v919 = vpop.f32.mrf.mxu0
      %v920 = vpop.f32.mrf.mxu0
      %v921 = vadd.f32 0.0, %v920
      %v922 = vpop.f32.mrf.mxu0
      %923 = vdwg.mxu0
      %924 = vmatprep.subr.bf16.mxu0 0
      %925 = vmatpush1.bf16.msra.mxu0 0
      %926 = vmatprep.subr.bf16.mxu0 0
      %927 = vmatpush1.bf16.msra.mxu0 0
      %928 = vmatprep.subr.bf16.mxu0 0
      %929 = vmatpush1.bf16.msra.mxu0 0
      %930 = vmatprep.subr.bf16.mxu0 0
      %931 = vmatpush1.bf16.msra.mxu0 0
      %932 = vmatprep.subr.bf16.mxu0 0
      %933 = vmatpush1.bf16.msra.mxu0 0
      %934 = vmatprep.subr.bf16.mxu0 0
      %935 = vmatpush1.bf16.msra.mxu0 0
      %936 = vmatprep.subr.bf16.mxu0 0
      %937 = vmatpush1.bf16.msra.mxu0 %v662
      %938 = vmatprep.subr.bf16.mxu0 0
      %939 = vmatpush1.bf16.msra.mxu0 %v661
      %940 = vmatprep.subr.bf16.mxu0 0
      %941 = vmatpush2.bf16.msra.mxu0 0
      %942 = vmatprep.subr.bf16.mxu0 0
      %943 = vmatpush2.bf16.msra.mxu0 0
      %944 = vmatprep.subr.bf16.mxu0 0
      %945 = vmatpush2.bf16.msra.mxu0 0
      %946 = vmatprep.subr.bf16.mxu0 0
      %947 = vmatpush2.bf16.msra.mxu0 0
      %948 = vmatprep.subr.bf16.mxu0 0
      %949 = vmatpush2.bf16.msra.mxu0 0
      %950 = vmatprep.subr.bf16.mxu0 0
      %951 = vmatpush2.bf16.msra.mxu0 0
      %952 = vmatprep.subr.bf16.mxu0 0
      %953 = vmatpush2.bf16.msra.mxu0 0
      %954 = vmatprep.subr.bf16.mxu0 0
      %955 = vmatpush2.bf16.msra.mxu0 0
      %956 = vmatprep.mubr.bf16.mxu0 0
      %957 = vmatmul.mubr.bf16.gmra.mxu0 %v683
      %v958 = vpop.f32.mrf.mxu0
      %v959 = vadd.f32 %v774, %v958
      %v960 = vpop.f32.mrf.mxu0
      %v961 = vpop.f32.mrf.mxu0
      %v962 = vadd.f32 %v777, %v961
      %v963 = vpop.f32.mrf.mxu0
      %964 = vmatprep.mubr.bf16.mxu0 0
      %965 = vmatmul.mubr.bf16.gmra.mxu0 %v686
      %v966 = vpop.f32.mrf.mxu0
      %v967 = vadd.f32 %v782, %v966
      %v968 = vpop.f32.mrf.mxu0
      %v969 = vpop.f32.mrf.mxu0
      %v970 = vadd.f32 %v785, %v969
      %v971 = vpop.f32.mrf.mxu0
      %972 = vmatprep.mubr.bf16.mxu0 0
      %973 = vmatmul.mubr.bf16.gmra.mxu0 %v689
      %v974 = vpop.f32.mrf.mxu0
      %v975 = vadd.f32 %v790, %v974
      %v976 = vpop.f32.mrf.mxu0
      %v977 = vpop.f32.mrf.mxu0
      %v978 = vadd.f32 %v793, %v977
      %v979 = vpop.f32.mrf.mxu0
      %980 = vmatprep.mubr.bf16.mxu0 0
      %981 = vmatmul.mubr.bf16.gmra.mxu0 %v692
      %v982 = vpop.f32.mrf.mxu0
      %v983 = vadd.f32 %v798, %v982
      %v984 = vpop.f32.mrf.mxu0
      %v985 = vpop.f32.mrf.mxu0
      %v986 = vadd.f32 %v801, %v985
      %v987 = vpop.f32.mrf.mxu0
      %988 = vmatprep.mubr.bf16.mxu0 0
      %989 = vmatmul.mubr.bf16.gmra.mxu0 %v695
      %v990 = vpop.f32.mrf.mxu0
      %v991 = vadd.f32 %v806, %v990
      %v992 = vpop.f32.mrf.mxu0
      %v993 = vpop.f32.mrf.mxu0
      %v994 = vadd.f32 %v809, %v993
      %v995 = vpop.f32.mrf.mxu0
      %996 = vmatprep.mubr.bf16.mxu0 0
      %997 = vmatmul.mubr.bf16.gmra.mxu0 %v698
      %v998 = vpop.f32.mrf.mxu0
      %v999 = vadd.f32 %v814, %v998
      %v1000 = vpop.f32.mrf.mxu0
      %v1001 = vpop.f32.mrf.mxu0
      %v1002 = vadd.f32 %v817, %v1001
      %v1003 = vpop.f32.mrf.mxu0
      %1004 = vmatprep.mubr.bf16.mxu0 0
      %1005 = vmatmul.mubr.bf16.gmra.mxu0 %v701
      %v1006 = vpop.f32.mrf.mxu0
      %v1007 = vadd.f32 %v822, %v1006
      %v1008 = vpop.f32.mrf.mxu0
      %v1009 = vpop.f32.mrf.mxu0
      %v1010 = vadd.f32 %v825, %v1009
      %v1011 = vpop.f32.mrf.mxu0
      %1012 = vmatprep.mubr.bf16.mxu0 0
      %1013 = vmatmul.mubr.bf16.gmra.mxu0 %v704
      %v1014 = vpop.f32.mrf.mxu0
      %v1015 = vadd.f32 %v830, %v1014
      %v1016 = vpop.f32.mrf.mxu0
      %v1017 = vpop.f32.mrf.mxu0
      %v1018 = vadd.f32 %v833, %v1017
      %v1019 = vpop.f32.mrf.mxu0
      %1020 = vmatprep.mubr.bf16.mxu0 0
      %1021 = vmatmul.mubr.bf16.gmra.mxu0 %v707
      %v1022 = vpop.f32.mrf.mxu0
      %v1023 = vadd.f32 %v838, %v1022
      %v1024 = vpop.f32.mrf.mxu0
      %v1025 = vpop.f32.mrf.mxu0
      %v1026 = vadd.f32 %v841, %v1025
      %v1027 = vpop.f32.mrf.mxu0
      %1028 = vmatprep.mubr.bf16.mxu0 0
      %1029 = vmatmul.mubr.bf16.gmra.mxu0 %v710
      %v1030 = vpop.f32.mrf.mxu0
      %v1031 = vadd.f32 %v846, %v1030
      %v1032 = vpop.f32.mrf.mxu0
      %v1033 = vpop.f32.mrf.mxu0
      %v1034 = vadd.f32 %v849, %v1033
      %v1035 = vpop.f32.mrf.mxu0
      %1036 = vmatprep.mubr.bf16.mxu0 0
      %1037 = vmatmul.mubr.bf16.gmra.mxu0 %v713
      %v1038 = vpop.f32.mrf.mxu0
      %v1039 = vadd.f32 %v854, %v1038
      %v1040 = vpop.f32.mrf.mxu0
      %v1041 = vpop.f32.mrf.mxu0
      %v1042 = vadd.f32 %v857, %v1041
      %v1043 = vpop.f32.mrf.mxu0
      %1044 = vmatprep.mubr.bf16.mxu0 0
      %1045 = vmatmul.mubr.bf16.gmra.mxu0 %v716
      %v1046 = vpop.f32.mrf.mxu0
      %v1047 = vadd.f32 %v862, %v1046
      %v1048 = vpop.f32.mrf.mxu0
      %v1049 = vpop.f32.mrf.mxu0
      %v1050 = vadd.f32 %v865, %v1049
      %v1051 = vpop.f32.mrf.mxu0
      %1052 = vmatprep.mubr.bf16.mxu0 0
      %1053 = vmatmul.mubr.bf16.gmra.mxu0 %v719
      %v1054 = vpop.f32.mrf.mxu0
      %v1055 = vadd.f32 %v870, %v1054
      %v1056 = vpop.f32.mrf.mxu0
      %v1057 = vpop.f32.mrf.mxu0
      %v1058 = vadd.f32 %v873, %v1057
      %v1059 = vpop.f32.mrf.mxu0
      %1060 = vmatprep.mubr.bf16.mxu0 0
      %1061 = vmatmul.mubr.bf16.gmra.mxu0 %v722
      %v1062 = vpop.f32.mrf.mxu0
      %v1063 = vadd.f32 %v878, %v1062
      %v1064 = vpop.f32.mrf.mxu0
      %v1065 = vpop.f32.mrf.mxu0
      %v1066 = vadd.f32 %v881, %v1065
      %v1067 = vpop.f32.mrf.mxu0
      %1068 = vmatprep.mubr.bf16.mxu0 0
      %1069 = vmatmul.mubr.bf16.gmra.mxu0 %v725
      %v1070 = vpop.f32.mrf.mxu0
      %v1071 = vadd.f32 %v886, %v1070
      %v1072 = vpop.f32.mrf.mxu0
      %v1073 = vpop.f32.mrf.mxu0
      %v1074 = vadd.f32 %v889, %v1073
      %v1075 = vpop.f32.mrf.mxu0
      %1076 = vmatprep.mubr.bf16.mxu0 0
      %1077 = vmatmul.mubr.bf16.gmra.mxu0 %v728
      %v1078 = vpop.f32.mrf.mxu0
      %v1079 = vadd.f32 %v894, %v1078
      %v1080 = vpop.f32.mrf.mxu0
      %v1081 = vpop.f32.mrf.mxu0
      %v1082 = vadd.f32 %v897, %v1081
      %v1083 = vpop.f32.mrf.mxu0
      %1084 = vmatprep.mubr.bf16.mxu0 0
      %1085 = vmatmul.mubr.bf16.gmra.mxu0 %v731
      %v1086 = vpop.f32.mrf.mxu0
      %v1087 = vadd.f32 %v902, %v1086
      %v1088 = vpop.f32.mrf.mxu0
      %v1089 = vpop.f32.mrf.mxu0
      %v1090 = vadd.f32 %v905, %v1089
      %v1091 = vpop.f32.mrf.mxu0
      %1092 = vmatprep.mubr.bf16.mxu0 0
      %1093 = vmatmul.mubr.bf16.gmra.mxu0 %v734
      %v1094 = vpop.f32.mrf.mxu0
      %v1095 = vadd.f32 %v910, %v1094
      %v1096 = vpop.f32.mrf.mxu0
      %v1097 = vpop.f32.mrf.mxu0
      %v1098 = vadd.f32 %v913, %v1097
      %v1099 = vpop.f32.mrf.mxu0
      %1100 = vmatprep.mubr.bf16.mxu0 0
      %1101 = vmatmul.mubr.bf16.gmra.mxu0 %v737
      %v1102 = vpop.f32.mrf.mxu0
      %v1103 = vadd.f32 %v918, %v1102
      %v1104 = vpop.f32.mrf.mxu0
      %v1105 = vpop.f32.mrf.mxu0
      %v1106 = vadd.f32 %v921, %v1105
      %v1107 = vpop.f32.mrf.mxu0
      %1108 = vdwg.mxu0
      %1109 = vst [vmem:[%s173] sm:$0xff] %v959
      %1110 = vst [vmem:[%s173 + $0x8] sm:$0xff] %v962
      %1111 = vst [vmem:[%s173 + $0x10] sm:$0xff] %v967
      %1112 = vst [vmem:[%s173 + $0x18] sm:$0xff] %v970
      %1113 = vst [vmem:[%s173 + $0x20] sm:$0xff] %v975
      %1114 = vst [vmem:[%s173 + $0x28] sm:$0xff] %v978
      %1115 = vst [vmem:[%s173 + $0x30] sm:$0xff] %v983
      %1116 = vst [vmem:[%s173 + $0x38] sm:$0xff] %v986
      %1117 = vst [vmem:[%s173 + $0x40] sm:$0xff] %v991
      %1118 = vst [vmem:[%s173 + $0x48] sm:$0xff] %v994
      %1119 = vst [vmem:[%s173 + $0x50] sm:$0xff] %v999
      %1120 = vst [vmem:[%s173 + $0x58] sm:$0xff] %v1002
      %1121 = vst [vmem:[%s173 + $0x60] sm:$0xff] %v1007
      %1122 = vst [vmem:[%s173 + $0x68] sm:$0xff] %v1010
      %1123 = vst [vmem:[%s173 + $0x70] sm:$0xff] %v1015
      %1124 = vst [vmem:[%s173 + $0x78] sm:$0xff] %v1018
      %1125 = vst [vmem:[%s173 + $0x80] sm:$0xff] %v1023
      %1126 = vst [vmem:[%s173 + $0x88] sm:$0xff] %v1026
      %1127 = vst [vmem:[%s173 + $0x90] sm:$0xff] %v1031
      %1128 = vst [vmem:[%s173 + $0x98] sm:$0xff] %v1034
      %1129 = vst [vmem:[%s173 + $0xa0] sm:$0xff] %v1039
      %1130 = vst [vmem:[%s173 + $0xa8] sm:$0xff] %v1042
      %1131 = vst [vmem:[%s173 + $0xb0] sm:$0xff] %v1047
      %1132 = vst [vmem:[%s173 + $0xb8] sm:$0xff] %v1050
      %1133 = vst [vmem:[%s173 + $0xc0] sm:$0xff] %v1055
      %1134 = vst [vmem:[%s173 + $0xc8] sm:$0xff] %v1058
      %1135 = vst [vmem:[%s173 + $0xd0] sm:$0xff] %v1063
      %1136 = vst [vmem:[%s173 + $0xd8] sm:$0xff] %v1066
      %1137 = vst [vmem:[%s173 + $0xe0] sm:$0xff] %v1071
      %1138 = vst [vmem:[%s173 + $0xe8] sm:$0xff] %v1074
      %1139 = vst [vmem:[%s173 + $0xf0] sm:$0xff] %v1079
      %1140 = vst [vmem:[%s173 + $0xf8] sm:$0xff] %v1082
      %1141 = vst [vmem:[%s173 + $0x100] sm:$0xff] %v1087
      %1142 = vst [vmem:[%s173 + $0x108] sm:$0xff] %v1090
      %1143 = vst [vmem:[%s173 + $0x110] sm:$0xff] %v1095
      %1144 = vst [vmem:[%s173 + $0x118] sm:$0xff] %v1098
      %1145 = vst [vmem:[%s173 + $0x120] sm:$0xff] %v1103
      %1146 = vst [vmem:[%s173 + $0x128] sm:$0xff] %v1106
      %p1147 = scmp.eq.s32.totalorder %s15, 0
      // Predicated region
      $region29: #{stem_v1_forward.15} parent=27 // pred_check
        %p1148 = pneg %p1147
      $region30: #{stem_v1_forward.15} parent=27 // pred_check_branch
        %1150 = sbr.rel (%p1148) target = $region32
      $region31: #{stem_v1_forward.15} parent=27 // pred_region
        %1151 = vst [vmem:[%s3] sm:$0x3] 0.0
      $region32: #{stem_v1_forward.15} parent=27 // pred_fallthru
        _
      %v1152 = vld [vmem:[%s3] sm:$0x3]
      %v1153 = vadd.f32 %v959, %v962
      %v1154 = vadd.f32 %v1153, %v967
      %v1155 = vadd.f32 %v1154, %v970
      %v1156 = vadd.f32 %v1155, %v975
      %v1157 = vadd.f32 %v1156, %v978
      %v1158 = vadd.f32 %v1157, %v983
      %v1159 = vadd.f32 %v1158, %v986
      %v1160 = vadd.f32 %v1159, %v991
      %v1161 = vadd.f32 %v1160, %v994
      %v1162 = vadd.f32 %v1161, %v999
      %v1163 = vadd.f32 %v1162, %v1002
      %v1164 = vadd.f32 %v1163, %v1007
      %v1165 = vadd.f32 %v1164, %v1010
      %v1166 = vadd.f32 %v1165, %v1015
      %v1167 = vadd.f32 %v1166, %v1018
      %v1168 = vadd.f32 %v1167, %v1023
      %v1169 = vadd.f32 %v1168, %v1026
      %v1170 = vadd.f32 %v1169, %v1031
      %v1171 = vadd.f32 %v1170, %v1034
      %v1172 = vadd.f32 %v1171, %v1039
      %v1173 = vadd.f32 %v1172, %v1042
      %v1174 = vadd.f32 %v1173, %v1047
      %v1175 = vadd.f32 %v1174, %v1050
      %v1176 = vadd.f32 %v1175, %v1055
      %v1177 = vadd.f32 %v1176, %v1058
      %v1178 = vadd.f32 %v1177, %v1063
      %v1179 = vadd.f32 %v1178, %v1066
      %v1180 = vadd.f32 %v1179, %v1071
      %v1181 = vadd.f32 %v1180, %v1074
      %v1182 = vadd.f32 %v1181, %v1079
      %v1183 = vadd.f32 %v1182, %v1082
      %v1184 = vadd.f32 %v1183, %v1087
      %v1185 = vadd.f32 %v1184, %v1090
      %v1186 = vadd.f32 %v1185, %v1095
      %v1187 = vadd.f32 %v1186, %v1098
      %v1188 = vadd.f32 %v1187, %v1103
      %v1189 = vadd.f32 %v1188, %v1106
      %v1190 = vrot.slane %v1189, 4
      %v1191 = vadd.f32 %v1189, %v1190
      %v1192 = vrot.slane %v1191, 2
      %v1193 = vadd.f32 %v1191, %v1192
      %v1194 = vrot.slane %v1193, 1
      %v1195 = vadd.f32 %v1193, %v1194
      %v1196 = vmul.f32 %v959, %v959
      %v1197 = vmul.f32 %v962, %v962
      %v1198 = vmul.f32 %v967, %v967
      %v1199 = vmul.f32 %v970, %v970
      %v1200 = vmul.f32 %v975, %v975
      %v1201 = vmul.f32 %v978, %v978
      %v1202 = vmul.f32 %v983, %v983
      %v1203 = vmul.f32 %v986, %v986
      %v1204 = vmul.f32 %v991, %v991
      %v1205 = vmul.f32 %v994, %v994
      %v1206 = vmul.f32 %v999, %v999
      %v1207 = vmul.f32 %v1002, %v1002
      %v1208 = vmul.f32 %v1007, %v1007
      %v1209 = vmul.f32 %v1010, %v1010
      %v1210 = vmul.f32 %v1015, %v1015
      %v1211 = vmul.f32 %v1018, %v1018
      %v1212 = vmul.f32 %v1023, %v1023
      %v1213 = vmul.f32 %v1026, %v1026
      %v1214 = vmul.f32 %v1031, %v1031
      %v1215 = vmul.f32 %v1034, %v1034
      %v1216 = vmul.f32 %v1039, %v1039
      %v1217 = vmul.f32 %v1042, %v1042
      %v1218 = vmul.f32 %v1047, %v1047
      %v1219 = vmul.f32 %v1050, %v1050
      %v1220 = vmul.f32 %v1055, %v1055
      %v1221 = vmul.f32 %v1058, %v1058
      %v1222 = vmul.f32 %v1063, %v1063
      %v1223 = vmul.f32 %v1066, %v1066
      %v1224 = vmul.f32 %v1071, %v1071
      %v1225 = vmul.f32 %v1074, %v1074
      %v1226 = vmul.f32 %v1079, %v1079
      %v1227 = vmul.f32 %v1082, %v1082
      %v1228 = vmul.f32 %v1087, %v1087
      %v1229 = vmul.f32 %v1090, %v1090
      %v1230 = vmul.f32 %v1095, %v1095
      %v1231 = vmul.f32 %v1098, %v1098
      %v1232 = vmul.f32 %v1103, %v1103
      %v1233 = vmul.f32 %v1106, %v1106
      %v1234 = vadd.f32 %v1196, %v1197
      %v1235 = vadd.f32 %v1234, %v1198
      %v1236 = vadd.f32 %v1235, %v1199
      %v1237 = vadd.f32 %v1236, %v1200
      %v1238 = vadd.f32 %v1237, %v1201
      %v1239 = vadd.f32 %v1238, %v1202
      %v1240 = vadd.f32 %v1239, %v1203
      %v1241 = vadd.f32 %v1240, %v1204
      %v1242 = vadd.f32 %v1241, %v1205
      %v1243 = vadd.f32 %v1242, %v1206
      %v1244 = vadd.f32 %v1243, %v1207
      %v1245 = vadd.f32 %v1244, %v1208
      %v1246 = vadd.f32 %v1245, %v1209
      %v1247 = vadd.f32 %v1246, %v1210
      %v1248 = vadd.f32 %v1247, %v1211
      %v1249 = vadd.f32 %v1248, %v1212
      %v1250 = vadd.f32 %v1249, %v1213
      %v1251 = vadd.f32 %v1250, %v1214
      %v1252 = vadd.f32 %v1251, %v1215
      %v1253 = vadd.f32 %v1252, %v1216
      %v1254 = vadd.f32 %v1253, %v1217
      %v1255 = vadd.f32 %v1254, %v1218
      %v1256 = vadd.f32 %v1255, %v1219
      %v1257 = vadd.f32 %v1256, %v1220
      %v1258 = vadd.f32 %v1257, %v1221
      %v1259 = vadd.f32 %v1258, %v1222
      %v1260 = vadd.f32 %v1259, %v1223
      %v1261 = vadd.f32 %v1260, %v1224
      %v1262 = vadd.f32 %v1261, %v1225
      %v1263 = vadd.f32 %v1262, %v1226
      %v1264 = vadd.f32 %v1263, %v1227
      %v1265 = vadd.f32 %v1264, %v1228
      %v1266 = vadd.f32 %v1265, %v1229
      %v1267 = vadd.f32 %v1266, %v1230
      %v1268 = vadd.f32 %v1267, %v1231
      %v1269 = vadd.f32 %v1268, %v1232
      %v1270 = vadd.f32 %v1269, %v1233
      %v1271 = vrot.slane %v1270, 4
      %v1272 = vadd.f32 %v1270, %v1271
      %v1273 = vrot.slane %v1272, 2
      %v1274 = vadd.f32 %v1272, %v1273
      %v1275 = vrot.slane %v1274, 1
      %v1276 = vadd.f32 %v1274, %v1275
      %vm1277 = vcmask 1040384
      %v1278 = vsel %vm1277, %v1195, %v1276
      %v1279 = vadd.f32 %v1152, %v1278
      %1280 = vst [vmem:[%s3] sm:$0x3] %v1279
      %s1281 = smul.u32 38, %s15
      %p1282 = scmp.lt.s32.totalorder %s1281, 75
      %s1283 = scalar_select %p1282, %s1281, 75
      %s1284 = smul.addr %s1283, 8
      %s1285 = scalar_lea.vmem %s2, %s1284
      // Predicated region
      $region33: #{stem_v1_forward.15} parent=27 // pred_check
        %p1286 = pneg %p80
      $region34: #{stem_v1_forward.15} parent=27 // pred_check_branch
        %1288 = sbr.rel (%p1286) target = $region36
      $region35: #{stem_v1_forward.15} parent=27 // pred_region
        %s1289 = smul.u32 38, %s15
      $region36: #{stem_v1_forward.15} parent=27 // pred_fallthru
        _
      // Predicated region
      $region37: #{stem_v1_forward.15} parent=27 // pred_check
        %p1290 = pneg %p101
      $region38: #{stem_v1_forward.15} parent=27 // pred_check_branch
        %1292 = sbr.rel (%p1290) target = $region40
      $region39: #{stem_v1_forward.15} parent=27 // pred_region
        _
      $region40: #{stem_v1_forward.15} parent=27 // pred_fallthru
        _
      // Predicated region
      $region41: #{stem_v1_forward.15} parent=27 // pred_check
        %p1293 = pneg %p101
      $region42: #{stem_v1_forward.15} parent=27 // pred_check_branch
        %1295 = sbr.rel (%p1293) target = $region44
      $region43: #{stem_v1_forward.15} parent=27 // pred_region
        _
      $region44: #{stem_v1_forward.15} parent=27 // pred_fallthru
        _
    $region28: #{stem_v1_forward.15} parent=5 // pred_fallthru
      _
    %p1296 = scmp.le.s32.totalorder 2, %s10
    // Predicated region
    $region45: #{stem_v1_forward.15} parent=5 // pred_check
      %p1297 = pneg %p1296
    $region46: #{stem_v1_forward.15} parent=5 // pred_check_branch
      %1299 = sbr.rel (%p1297) target = $region48
    $region47: #{stem_v1_forward.15} parent=5 // pred_region
      %s1300 = ssub.s32 %s10, 2
      // Predicated region
      $region49: #{stem_v1_forward.15} parent=47 // pred_check
        %p1301 = pneg %p86
      $region50: #{stem_v1_forward.15} parent=47 // pred_check_branch
        %1303 = sbr.rel (%p1301) target = $region52
      $region51: #{stem_v1_forward.15} parent=47 // pred_region
        %s1304 = smul.u32 38, %s16
        %p1305 = scmp.lt.s32.totalorder %s1304, 75
        %s1306 = scalar_select %p1305, %s1304, 75
        %s1307 = smul.addr %s1306, 8
        %s1308 = scalar_lea.vmem %s2, %s1307
      $region52: #{stem_v1_forward.15} parent=47 // pred_fallthru
        _
    $region48: #{stem_v1_forward.15} parent=5 // pred_fallthru
      _
  $region6: #{stem_v1_forward.15} parent=0 // loop_footer
    %s14 = sadd.s32 1, %s10
  $region7: #{stem_v1_forward.15} parent=0 // loop_footer_branch
    %9 = sbr.rel target = $region3
  $region8: #{stem_v1_forward.15} parent=0 // loop_exit
    _

// kernel: stem_v1_forward.20
$region0: #{stem_v1_forward.20}
  #allocation0 [shape = 'u32[]', space=smem, size = 0x4, offset = 0x4, fixed_abs, tag = 'smem constant byte address 0x4 - core index']
  #allocation1 [shape = 'u32[144,128]{1,0:T(1,128)}', space=vmem, size = 0x12000, scoped, tag = 'internal scratch']
  %s0 = inlined_call_operand.vmem [shape: bf16[128,64], index: 0, kind: input, shape index: {}]
  %s1 = inlined_call_operand.vmem [shape: bf16[64,128], index: 1, kind: input, shape index: {}]
  %s2 = inlined_call_operand.vmem [shape: f32[128,128], index: 2, kind: output, shape index: {0}]
  %s3 = inlined_call_operand.vmem [shape: f32[2,128], index: 3, kind: output, shape index: {1}]
  %4 = xla_tuple %s2, %s3
  %s5 = sld [smem:[#allocation0]]
  $region30: #{stem_v1_forward.20} parent=0
    _
  %s7 = ssub.s32 1, %s5
  %s8 = scalar_select 0, %s7, %s5
  // Predicated region
  $region2: #{stem_v1_forward.20} parent=0 // pred_check
    _
  $region3: #{stem_v1_forward.20} parent=0 // pred_check_branch
    %10 = sbr.rel (0) target = $region5
  $region4: #{stem_v1_forward.20} parent=0 // pred_region
    _
  $region5: #{stem_v1_forward.20} parent=0 // pred_fallthru
    _
  // Predicated region
  $region6: #{stem_v1_forward.20} parent=0 // pred_check
    _
  $region7: #{stem_v1_forward.20} parent=0 // pred_check_branch
    %12 = sbr.rel (0) target = $region9
  $region8: #{stem_v1_forward.20} parent=0 // pred_region
    _
  $region9: #{stem_v1_forward.20} parent=0 // pred_fallthru
    _
  %v14 = vld [vmem:[%s0] sm:$0xf]
  %v15 = vld [vmem:[%s0 + $0x4] sm:$0xf]
  %v16 = vld [vmem:[%s0 + $0x8] sm:$0xf]
  %v17 = vld [vmem:[%s0 + $0xc] sm:$0xf]
  %v18 = vld [vmem:[%s0 + $0x10] sm:$0xf]
  %v19 = vld [vmem:[%s0 + $0x14] sm:$0xf]
  %v20 = vld [vmem:[%s0 + $0x18] sm:$0xf]
  %v21 = vld [vmem:[%s0 + $0x1c] sm:$0xf]
  %v22 = vld [vmem:[%s0 + $0x20] sm:$0xf]
  %v23 = vld [vmem:[%s0 + $0x24] sm:$0xf]
  %v24 = vld [vmem:[%s0 + $0x28] sm:$0xf]
  %v25 = vld [vmem:[%s0 + $0x2c] sm:$0xf]
  %v26 = vld [vmem:[%s0 + $0x30] sm:$0xf]
  %v27 = vld [vmem:[%s0 + $0x34] sm:$0xf]
  %v28 = vld [vmem:[%s0 + $0x38] sm:$0xf]
  %v29 = vld [vmem:[%s0 + $0x3c] sm:$0xf]
  %v30 = vld [vmem:[%s1] sm:$0xf]
  %v31 = vld [vmem:[%s1 + $0x4] sm:$0xf]
  %v32 = vld [vmem:[%s1 + $0x8] sm:$0xf]
  %v33 = vld [vmem:[%s1 + $0xc] sm:$0xf]
  %v34 = vld [vmem:[%s1 + $0x10] sm:$0xf]
  %v35 = vld [vmem:[%s1 + $0x14] sm:$0xf]
  %v36 = vld [vmem:[%s1 + $0x18] sm:$0xf]
  %v37 = vld [vmem:[%s1 + $0x1c] sm:$0xf]
  %v54 = vunpack.c.l.b16 %v14
  %v55 = vunpack.c.l.b16 %v15
  %v56 = vunpack.c.l.b16 %v16
  %v57 = vunpack.c.l.b16 %v17
  %v58 = vunpack.c.l.b16 %v18
  %v59 = vunpack.c.l.b16 %v19
  %v60 = vunpack.c.l.b16 %v20
  %v61 = vunpack.c.l.b16 %v21
  %v62 = vunpack.c.l.b16 %v22
  %v63 = vunpack.c.l.b16 %v23
  %v64 = vunpack.c.l.b16 %v24
  %v65 = vunpack.c.l.b16 %v25
  %v66 = vunpack.c.l.b16 %v26
  %v67 = vunpack.c.l.b16 %v27
  %v68 = vunpack.c.l.b16 %v28
  %v69 = vunpack.c.l.b16 %v29
  %v70 = vpack.c.b16 %v55, %v54
  %v71 = vpack.c.b16 %v57, %v56
  %v72 = vpack.c.b16 %v59, %v58
  %v73 = vpack.c.b16 %v61, %v60
  %v74 = vpack.c.b16 %v63, %v62
  %v75 = vpack.c.b16 %v65, %v64
  %v76 = vpack.c.b16 %v67, %v66
  %v77 = vpack.c.b16 %v69, %v68
  %v86 = vunpack.c.l.b16 %v30
  %v87 = vunpack.c.l.b16 %v31
  %v88 = vunpack.c.l.b16 %v32
  %v89 = vunpack.c.l.b16 %v33
  %v90 = vunpack.c.l.b16 %v34
  %v91 = vunpack.c.l.b16 %v35
  %v92 = vunpack.c.l.b16 %v36
  %v93 = vunpack.c.l.b16 %v37
  %v94 = vpack.c.b16 %v87, %v86
  %v95 = vpack.c.b16 %v89, %v88
  %v96 = vpack.c.b16 %v91, %v90
  %v97 = vpack.c.b16 %v93, %v92
  %vm102 = vcmask 523264
  %v104 = vsel %vm102, %v70, 0
  %v107 = vsel %vm102, %v71, 0
  %v110 = vsel %vm102, %v72, 0
  %v113 = vsel %vm102, %v73, 0
  %v116 = vsel %vm102, %v74, 0
  %v119 = vsel %vm102, %v75, 0
  %v122 = vsel %vm102, %v76, 0
  %v125 = vsel %vm102, %v77, 0
  %127 = vmatprep.subr.bf16.mxu0 0
  %128 = vmatpush1.bf16.msra.mxu0 0
  %129 = vmatprep.subr.bf16.mxu0 0
  %130 = vmatpush1.bf16.msra.mxu0 0
  %131 = vmatprep.subr.bf16.mxu0 0
  %132 = vmatpush1.bf16.msra.mxu0 0
  %133 = vmatprep.subr.bf16.mxu0 0
  %134 = vmatpush1.bf16.msra.mxu0 0
  %135 = vmatprep.subr.bf16.mxu0 0
  %136 = vmatpush1.bf16.msra.mxu0 %v97
  %137 = vmatprep.subr.bf16.mxu0 0
  %138 = vmatpush1.bf16.msra.mxu0 %v96
  %139 = vmatprep.subr.bf16.mxu0 0
  %140 = vmatpush1.bf16.msra.mxu0 %v95
  %141 = vmatprep.subr.bf16.mxu0 0
  %142 = vmatpush1.bf16.msra.mxu0 %v94
  %143 = vmatprep.subr.bf16.mxu0 0
  %144 = vmatpush2.bf16.msra.mxu0 0
  %145 = vmatprep.subr.bf16.mxu0 0
  %146 = vmatpush2.bf16.msra.mxu0 0
  %147 = vmatprep.subr.bf16.mxu0 0
  %148 = vmatpush2.bf16.msra.mxu0 0
  %149 = vmatprep.subr.bf16.mxu0 0
  %150 = vmatpush2.bf16.msra.mxu0 0
  %151 = vmatprep.subr.bf16.mxu0 0
  %152 = vmatpush2.bf16.msra.mxu0 0
  %153 = vmatprep.subr.bf16.mxu0 0
  %154 = vmatpush2.bf16.msra.mxu0 0
  %155 = vmatprep.subr.bf16.mxu0 0
  %156 = vmatpush2.bf16.msra.mxu0 0
  %157 = vmatprep.subr.bf16.mxu0 0
  %158 = vmatpush2.bf16.msra.mxu0 0
  %159 = vmatprep.mubr.bf16.mxu0 0
  %160 = vmatmul.mubr.bf16.gmra.mxu0 %v104
  %v161 = vpop.f32.mrf.mxu0
  %v162 = vadd.f32 0.0, %v161
  %v163 = vpop.f32.mrf.mxu0
  %v164 = vpop.f32.mrf.mxu0
  %v165 = vadd.f32 0.0, %v164
  %v166 = vpop.f32.mrf.mxu0
  %167 = vmatprep.mubr.bf16.mxu0 0
  %168 = vmatmul.mubr.bf16.gmra.mxu0 %v107
  %v169 = vpop.f32.mrf.mxu0
  %v170 = vadd.f32 0.0, %v169
  %v171 = vpop.f32.mrf.mxu0
  %v172 = vpop.f32.mrf.mxu0
  %v173 = vadd.f32 0.0, %v172
  %v174 = vpop.f32.mrf.mxu0
  %175 = vmatprep.mubr.bf16.mxu0 0
  %176 = vmatmul.mubr.bf16.gmra.mxu0 %v110
  %v177 = vpop.f32.mrf.mxu0
  %v178 = vadd.f32 0.0, %v177
  %v179 = vpop.f32.mrf.mxu0
  %v180 = vpop.f32.mrf.mxu0
  %v181 = vadd.f32 0.0, %v180
  %v182 = vpop.f32.mrf.mxu0
  %183 = vmatprep.mubr.bf16.mxu0 0
  %184 = vmatmul.mubr.bf16.gmra.mxu0 %v113
  %v185 = vpop.f32.mrf.mxu0
  %v186 = vadd.f32 0.0, %v185
  %v187 = vpop.f32.mrf.mxu0
  %v188 = vpop.f32.mrf.mxu0
  %v189 = vadd.f32 0.0, %v188
  %v190 = vpop.f32.mrf.mxu0
  %191 = vmatprep.mubr.bf16.mxu0 0
  %192 = vmatmul.mubr.bf16.gmra.mxu0 %v116
  %v193 = vpop.f32.mrf.mxu0
  %v194 = vadd.f32 0.0, %v193
  %v195 = vpop.f32.mrf.mxu0
  %v196 = vpop.f32.mrf.mxu0
  %v197 = vadd.f32 0.0, %v196
  %v198 = vpop.f32.mrf.mxu0
  %199 = vmatprep.mubr.bf16.mxu0 0
  %200 = vmatmul.mubr.bf16.gmra.mxu0 %v119
  %v201 = vpop.f32.mrf.mxu0
  %v202 = vadd.f32 0.0, %v201
  %v203 = vpop.f32.mrf.mxu0
  %v204 = vpop.f32.mrf.mxu0
  %v205 = vadd.f32 0.0, %v204
  %v206 = vpop.f32.mrf.mxu0
  %207 = vmatprep.mubr.bf16.mxu0 0
  %208 = vmatmul.mubr.bf16.gmra.mxu0 %v122
  %v209 = vpop.f32.mrf.mxu0
  %v210 = vadd.f32 0.0, %v209
  %v211 = vpop.f32.mrf.mxu0
  %v212 = vpop.f32.mrf.mxu0
  %v213 = vadd.f32 0.0, %v212
  %v214 = vpop.f32.mrf.mxu0
  %215 = vmatprep.mubr.bf16.mxu0 0
  %216 = vmatmul.mubr.bf16.gmra.mxu0 %v125
  %v217 = vpop.f32.mrf.mxu0
  %v218 = vadd.f32 0.0, %v217
  %v219 = vpop.f32.mrf.mxu0
  %v220 = vpop.f32.mrf.mxu0
  %v221 = vadd.f32 0.0, %v220
  %v222 = vpop.f32.mrf.mxu0
  %223 = vdwg.mxu0
  %224 = vst [vmem:[%s2] sm:$0xff] %v162
  %225 = vst [vmem:[%s2 + $0x8] sm:$0xff] %v165
  %226 = vst [vmem:[%s2 + $0x10] sm:$0xff] %v170
  %227 = vst [vmem:[%s2 + $0x18] sm:$0xff] %v173
  %228 = vst [vmem:[%s2 + $0x20] sm:$0xff] %v178
  %229 = vst [vmem:[%s2 + $0x28] sm:$0xff] %v181
  %230 = vst [vmem:[%s2 + $0x30] sm:$0xff] %v186
  %231 = vst [vmem:[%s2 + $0x38] sm:$0xff] %v189
  %232 = vst [vmem:[%s2 + $0x40] sm:$0xff] %v194
  %233 = vst [vmem:[%s2 + $0x48] sm:$0xff] %v197
  %234 = vst [vmem:[%s2 + $0x50] sm:$0xff] %v202
  %235 = vst [vmem:[%s2 + $0x58] sm:$0xff] %v205
  %236 = vst [vmem:[%s2 + $0x60] sm:$0xff] %v210
  %237 = vst [vmem:[%s2 + $0x68] sm:$0xff] %v213
  %238 = vst [vmem:[%s2 + $0x70] sm:$0xff] %v218
  %239 = vst [vmem:[%s2 + $0x78] sm:$0xff] %v221
  %p240 = scmp.eq.s32.totalorder 0, 0
  // Predicated region
  $region10: #{stem_v1_forward.20} parent=0 // pred_check
    %p241 = pneg %p240
  $region11: #{stem_v1_forward.20} parent=0 // pred_check_branch
    %243 = sbr.rel (%p241) target = $region13
  $region12: #{stem_v1_forward.20} parent=0 // pred_region
    %244 = vst [vmem:[%s3] sm:$0x3] 0.0
  $region13: #{stem_v1_forward.20} parent=0 // pred_fallthru
    _
  %v245 = vld [vmem:[%s3] sm:$0x3]
  %v246 = vadd.f32 %v162, %v165
  %v247 = vadd.f32 %v246, %v170
  %v248 = vadd.f32 %v247, %v173
  %v249 = vadd.f32 %v248, %v178
  %v250 = vadd.f32 %v249, %v181
  %v251 = vadd.f32 %v250, %v186
  %v252 = vadd.f32 %v251, %v189
  %v253 = vadd.f32 %v252, %v194
  %v254 = vadd.f32 %v253, %v197
  %v255 = vadd.f32 %v254, %v202
  %v256 = vadd.f32 %v255, %v205
  %v257 = vadd.f32 %v256, %v210
  %v258 = vadd.f32 %v257, %v213
  %v259 = vadd.f32 %v258, %v218
  %v260 = vadd.f32 %v259, %v221
  %v261 = vrot.slane %v260, 4
  %v262 = vadd.f32 %v260, %v261
  %v263 = vrot.slane %v262, 2
  %v264 = vadd.f32 %v262, %v263
  %v265 = vrot.slane %v264, 1
  %v266 = vadd.f32 %v264, %v265
  %v267 = vmul.f32 %v162, %v162
  %v268 = vmul.f32 %v165, %v165
  %v269 = vmul.f32 %v170, %v170
  %v270 = vmul.f32 %v173, %v173
  %v271 = vmul.f32 %v178, %v178
  %v272 = vmul.f32 %v181, %v181
  %v273 = vmul.f32 %v186, %v186
  %v274 = vmul.f32 %v189, %v189
  %v275 = vmul.f32 %v194, %v194
  %v276 = vmul.f32 %v197, %v197
  %v277 = vmul.f32 %v202, %v202
  %v278 = vmul.f32 %v205, %v205
  %v279 = vmul.f32 %v210, %v210
  %v280 = vmul.f32 %v213, %v213
  %v281 = vmul.f32 %v218, %v218
  %v282 = vmul.f32 %v221, %v221
  %v283 = vadd.f32 %v267, %v268
  %v284 = vadd.f32 %v283, %v269
  %v285 = vadd.f32 %v284, %v270
  %v286 = vadd.f32 %v285, %v271
  %v287 = vadd.f32 %v286, %v272
  %v288 = vadd.f32 %v287, %v273
  %v289 = vadd.f32 %v288, %v274
  %v290 = vadd.f32 %v289, %v275
  %v291 = vadd.f32 %v290, %v276
  %v292 = vadd.f32 %v291, %v277
  %v293 = vadd.f32 %v292, %v278
  %v294 = vadd.f32 %v293, %v279
  %v295 = vadd.f32 %v294, %v280
  %v296 = vadd.f32 %v295, %v281
  %v297 = vadd.f32 %v296, %v282
  %v298 = vrot.slane %v297, 4
  %v299 = vadd.f32 %v297, %v298
  %v300 = vrot.slane %v299, 2
  %v301 = vadd.f32 %v299, %v300
  %v302 = vrot.slane %v301, 1
  %v303 = vadd.f32 %v301, %v302
  %vm304 = vcmask 1040384
  %v305 = vsel %vm304, %v266, %v303
  %v306 = vadd.f32 %v245, %v305
  %307 = vst [vmem:[%s3] sm:$0x3] %v306
  // Predicated region
  $region14: #{stem_v1_forward.20} parent=0 // pred_check
    _
  $region15: #{stem_v1_forward.20} parent=0 // pred_check_branch
    %309 = sbr.rel (0) target = $region17
  $region16: #{stem_v1_forward.20} parent=0 // pred_region
    _
  $region17: #{stem_v1_forward.20} parent=0 // pred_fallthru
    _
  // Predicated region
  $region18: #{stem_v1_forward.20} parent=0 // pred_check
    _
  $region19: #{stem_v1_forward.20} parent=0 // pred_check_branch
    %311 = sbr.rel (0) target = $region21
  $region20: #{stem_v1_forward.20} parent=0 // pred_region
    _
  $region21: #{stem_v1_forward.20} parent=0 // pred_fallthru
    _
  // Predicated region
  $region22: #{stem_v1_forward.20} parent=0 // pred_check
    _
  $region23: #{stem_v1_forward.20} parent=0 // pred_check_branch
    %313 = sbr.rel (0) target = $region25
  $region24: #{stem_v1_forward.20} parent=0 // pred_region
    _
  $region25: #{stem_v1_forward.20} parent=0 // pred_fallthru
    _
  // Predicated region
  $region26: #{stem_v1_forward.20} parent=0 // pred_check
    _
  $region27: #{stem_v1_forward.20} parent=0 // pred_check_branch
    %315 = sbr.rel (0) target = $region29
  $region28: #{stem_v1_forward.20} parent=0 // pred_region
    _
  $region29: #{stem_v1_forward.20} parent=0 // pred_fallthru
    _

// kernel: stem_v1_forward.21
$region0: #{stem_v1_forward.21}
  #allocation0 [shape = 'u32[]', space=smem, size = 0x4, offset = 0x4, fixed_abs, tag = 'smem constant byte address 0x4 - core index']
  #allocation1 [shape = 'u32[144,128]{1,0:T(1,128)}', space=vmem, size = 0x12000, scoped, tag = 'internal scratch']
  %s0 = inlined_call_operand.vmem [shape: f32[128,128], index: 0, kind: input, shape index: {}]
  %s1 = inlined_call_operand.vmem [shape: f32[1,128], index: 1, kind: input, shape index: {}]
  %s2 = inlined_call_operand.vmem [shape: f32[1,128], index: 2, kind: input, shape index: {}]
  %s3 = inlined_call_operand.vmem [shape: bf16[128,128], index: 3, kind: output, shape index: {}]
  %s4 = sld [smem:[#allocation0]]
  $region22: #{stem_v1_forward.21} parent=0
    _
  %s6 = ssub.s32 1, %s4
  %s7 = scalar_select 0, %s6, %s4
  // Predicated region
  $region2: #{stem_v1_forward.21} parent=0 // pred_check
    _
  $region3: #{stem_v1_forward.21} parent=0 // pred_check_branch
    %9 = sbr.rel (0) target = $region5
  $region4: #{stem_v1_forward.21} parent=0 // pred_region
    _
  $region5: #{stem_v1_forward.21} parent=0 // pred_fallthru
    _
  // Predicated region
  $region6: #{stem_v1_forward.21} parent=0 // pred_check
    _
  $region7: #{stem_v1_forward.21} parent=0 // pred_check_branch
    %11 = sbr.rel (0) target = $region9
  $region8: #{stem_v1_forward.21} parent=0 // pred_region
    _
  $region9: #{stem_v1_forward.21} parent=0 // pred_fallthru
    _
  // Predicated region
  $region10: #{stem_v1_forward.21} parent=0 // pred_check
    _
  $region11: #{stem_v1_forward.21} parent=0 // pred_check_branch
    %13 = sbr.rel (0) target = $region13
  $region12: #{stem_v1_forward.21} parent=0 // pred_region
    _
  $region13: #{stem_v1_forward.21} parent=0 // pred_fallthru
    _
  %v14 = vld [vmem:[%s0] sm:$0xff]
  %v15 = vld [vmem:[%s0 + $0x8] sm:$0xff]
  %v16 = vld [vmem:[%s0 + $0x10] sm:$0xff]
  %v17 = vld [vmem:[%s0 + $0x18] sm:$0xff]
  %v18 = vld [vmem:[%s0 + $0x20] sm:$0xff]
  %v19 = vld [vmem:[%s0 + $0x28] sm:$0xff]
  %v20 = vld [vmem:[%s0 + $0x30] sm:$0xff]
  %v21 = vld [vmem:[%s0 + $0x38] sm:$0xff]
  %v22 = vld [vmem:[%s0 + $0x40] sm:$0xff]
  %v23 = vld [vmem:[%s0 + $0x48] sm:$0xff]
  %v24 = vld [vmem:[%s0 + $0x50] sm:$0xff]
  %v25 = vld [vmem:[%s0 + $0x58] sm:$0xff]
  %v26 = vld [vmem:[%s0 + $0x60] sm:$0xff]
  %v27 = vld [vmem:[%s0 + $0x68] sm:$0xff]
  %v28 = vld [vmem:[%s0 + $0x70] sm:$0xff]
  %v29 = vld [vmem:[%s0 + $0x78] sm:$0xff]
  %v30 = vld [vmem:[%s1] sm:$0x1]
  %v32 = vlaneseq
  %v33 = vshrl.u32 %v32, 7
  %v34 = vsub.s32 0, %v33
  %v35 = vrot.slane %v30, %v34
  %v37 = vmul.f32 %v14, %v35
  %v38 = vmul.f32 %v15, %v35
  %v39 = vmul.f32 %v16, %v35
  %v40 = vmul.f32 %v17, %v35
  %v41 = vmul.f32 %v18, %v35
  %v42 = vmul.f32 %v19, %v35
  %v43 = vmul.f32 %v20, %v35
  %v44 = vmul.f32 %v21, %v35
  %v45 = vmul.f32 %v22, %v35
  %v46 = vmul.f32 %v23, %v35
  %v47 = vmul.f32 %v24, %v35
  %v48 = vmul.f32 %v25, %v35
  %v49 = vmul.f32 %v26, %v35
  %v50 = vmul.f32 %v27, %v35
  %v51 = vmul.f32 %v28, %v35
  %v52 = vmul.f32 %v29, %v35
  %v53 = vld [vmem:[%s2] sm:$0x1]
  %v55 = vlaneseq
  %v56 = vshrl.u32 %v55, 7
  %v57 = vsub.s32 0, %v56
  %v58 = vrot.slane %v53, %v57
  %v60 = vadd.f32 %v37, %v58
  %v61 = vadd.f32 %v38, %v58
  %v62 = vadd.f32 %v39, %v58
  %v63 = vadd.f32 %v40, %v58
  %v64 = vadd.f32 %v41, %v58
  %v65 = vadd.f32 %v42, %v58
  %v66 = vadd.f32 %v43, %v58
  %v67 = vadd.f32 %v44, %v58
  %v68 = vadd.f32 %v45, %v58
  %v69 = vadd.f32 %v46, %v58
  %v70 = vadd.f32 %v47, %v58
  %v71 = vadd.f32 %v48, %v58
  %v72 = vadd.f32 %v49, %v58
  %v73 = vadd.f32 %v50, %v58
  %v74 = vadd.f32 %v51, %v58
  %v75 = vadd.f32 %v52, %v58
  %v76 = vmax.f32 %v60, 0.0
  %v77 = vmax.f32 %v61, 0.0
  %v78 = vmax.f32 %v62, 0.0
  %v79 = vmax.f32 %v63, 0.0
  %v80 = vmax.f32 %v64, 0.0
  %v81 = vmax.f32 %v65, 0.0
  %v82 = vmax.f32 %v66, 0.0
  %v83 = vmax.f32 %v67, 0.0
  %v84 = vmax.f32 %v68, 0.0
  %v85 = vmax.f32 %v69, 0.0
  %v86 = vmax.f32 %v70, 0.0
  %v87 = vmax.f32 %v71, 0.0
  %v88 = vmax.f32 %v72, 0.0
  %v89 = vmax.f32 %v73, 0.0
  %v90 = vmax.f32 %v74, 0.0
  %v91 = vmax.f32 %v75, 0.0
  %v92 = vpack.c.bf16 %v77, %v76
  %v93 = vpack.c.bf16 %v79, %v78
  %v94 = vpack.c.bf16 %v81, %v80
  %v95 = vpack.c.bf16 %v83, %v82
  %v96 = vpack.c.bf16 %v85, %v84
  %v97 = vpack.c.bf16 %v87, %v86
  %v98 = vpack.c.bf16 %v89, %v88
  %v99 = vpack.c.bf16 %v91, %v90
  %v108 = vunpack.c.l.b16 %v92
  %v109 = vunpack.c.h.b16 %v92
  %v110 = vunpack.c.l.b16 %v93
  %v111 = vunpack.c.h.b16 %v93
  %v112 = vunpack.c.l.b16 %v94
  %v113 = vunpack.c.h.b16 %v94
  %v114 = vunpack.c.l.b16 %v95
  %v115 = vunpack.c.h.b16 %v95
  %v116 = vunpack.c.l.b16 %v96
  %v117 = vunpack.c.h.b16 %v96
  %v118 = vunpack.c.l.b16 %v97
  %v119 = vunpack.c.h.b16 %v97
  %v120 = vunpack.c.l.b16 %v98
  %v121 = vunpack.c.h.b16 %v98
  %v122 = vunpack.c.l.b16 %v99
  %v123 = vunpack.c.h.b16 %v99
  %v124 = vpack.c.b16 %v108, %v108
  %v125 = vpack.c.b16 %v109, %v109
  %v126 = vpack.c.b16 %v110, %v110
  %v127 = vpack.c.b16 %v111, %v111
  %v128 = vpack.c.b16 %v112, %v112
  %v129 = vpack.c.b16 %v113, %v113
  %v130 = vpack.c.b16 %v114, %v114
  %v131 = vpack.c.b16 %v115, %v115
  %v132 = vpack.c.b16 %v116, %v116
  %v133 = vpack.c.b16 %v117, %v117
  %v134 = vpack.c.b16 %v118, %v118
  %v135 = vpack.c.b16 %v119, %v119
  %v136 = vpack.c.b16 %v120, %v120
  %v137 = vpack.c.b16 %v121, %v121
  %v138 = vpack.c.b16 %v122, %v122
  %v139 = vpack.c.b16 %v123, %v123
  %156 = vst [vmem:[%s3] sm:$0xf] %v124
  %157 = vst [vmem:[%s3 + $0x4] sm:$0xf] %v125
  %158 = vst [vmem:[%s3 + $0x8] sm:$0xf] %v126
  %159 = vst [vmem:[%s3 + $0xc] sm:$0xf] %v127
  %160 = vst [vmem:[%s3 + $0x10] sm:$0xf] %v128
  %161 = vst [vmem:[%s3 + $0x14] sm:$0xf] %v129
  %162 = vst [vmem:[%s3 + $0x18] sm:$0xf] %v130
  %163 = vst [vmem:[%s3 + $0x1c] sm:$0xf] %v131
  %164 = vst [vmem:[%s3 + $0x20] sm:$0xf] %v132
  %165 = vst [vmem:[%s3 + $0x24] sm:$0xf] %v133
  %166 = vst [vmem:[%s3 + $0x28] sm:$0xf] %v134
  %167 = vst [vmem:[%s3 + $0x2c] sm:$0xf] %v135
  %168 = vst [vmem:[%s3 + $0x30] sm:$0xf] %v136
  %169 = vst [vmem:[%s3 + $0x34] sm:$0xf] %v137
  %170 = vst [vmem:[%s3 + $0x38] sm:$0xf] %v138
  %171 = vst [vmem:[%s3 + $0x3c] sm:$0xf] %v139
  // Predicated region
  $region14: #{stem_v1_forward.21} parent=0 // pred_check
    _
  $region15: #{stem_v1_forward.21} parent=0 // pred_check_branch
    %173 = sbr.rel (0) target = $region17
  $region16: #{stem_v1_forward.21} parent=0 // pred_region
    _
  $region17: #{stem_v1_forward.21} parent=0 // pred_fallthru
    _
  // Predicated region
  $region18: #{stem_v1_forward.21} parent=0 // pred_check
    _
  $region19: #{stem_v1_forward.21} parent=0 // pred_check_branch
    %175 = sbr.rel (0) target = $region21
  $region20: #{stem_v1_forward.21} parent=0 // pred_region
    _
  $region21: #{stem_v1_forward.21} parent=0 // pred_fallthru
    _

// kernel: stem_v1_forward.19
$region0: #{stem_v1_forward.19}
  #allocation0 [shape = 'u32[]', space=smem, size = 0x4, offset = 0x4, fixed_abs, tag = 'smem constant byte address 0x4 - core index']
  #allocation1 [shape = 'u32[144,128]{1,0:T(1,128)}', space=vmem, size = 0x12000, scoped, tag = 'internal scratch']
  %s0 = inlined_call_operand.vmem [shape: bf16[2,17,17,128], index: 0, kind: input, shape index: {}]
  %s1 = inlined_call_operand.vmem [shape: bf16[2,8,8,128], index: 1, kind: output, shape index: {}]
  %s2 = sld [smem:[#allocation0]]
  $region37: #{stem_v1_forward.19} parent=0
    _
  %s4 = ssub.s32 1, %s2
  %s5 = scalar_select 0, %s4, %s2
  loop: start=0, step=1, limit=4
  $region2: #{stem_v1_forward.19} parent=0 // loop_pre_header
    _
  $region3: #{stem_v1_forward.19} parent=0 // loop_header
    %s7 = sphi 0, %s11
    %p8 = scmp.ge.s32.totalorder %s7, 4
    %s17 = sphi 0, %s19
    %s20 = sphi 0, %s17
    %s21 = sphi 0, %s20
    %s37 = sphi 0, %s21
    %s43 = sphi 0, %s45
    %s46 = sphi 0, %s43
    %s47 = sphi 0, %s46
    %s63 = sphi 0, %s47
  $region4: #{stem_v1_forward.19} parent=0 // loop_header_branch
    %10 = sbr.rel (%p8) target = $region8
  $region5: #{stem_v1_forward.19} parent=0 // loop_body
    %s12 = ssub.s32 %s7, 1
    %s13 = ssub.s32 %s7, 2
    %s14 = sadd.s32 %s7, 1
    %s15 = ssub.s32 %s7, %s14
    %p16 = scmp.eq.s32.totalorder %s15, 0
    %s18 = sadd.s32 %s17, 1
    %s19 = scalar_select %p16, %s17, %s18
    %p22 = pneg %p16
    %p23 = scmp.eq.s32.totalorder %s7, 1
    %p24 = por %p22, %p23
    %p25 = scmp.ne.s32.totalorder %s17, %s20
    %p26 = scmp.eq.s32.totalorder %s7, 0
    %p27 = por %p25, %p26
    %p28 = scmp.ne.s32.totalorder %s17, %s20
    %p29 = scmp.eq.s32.totalorder %s12, 1
    %p30 = por %p28, %p29
    %p31 = scmp.ne.s32.totalorder %s20, %s21
    %p32 = scmp.eq.s32.totalorder %s12, 0
    %p33 = por %p31, %p32
    %p34 = scmp.ne.s32.totalorder %s20, %s21
    %p35 = scmp.eq.s32.totalorder %s13, 1
    %p36 = por %p34, %p35
    %p38 = scmp.ne.s32.totalorder %s21, %s37
    %p39 = scmp.eq.s32.totalorder %s13, 0
    %p40 = por %p38, %p39
    %s41 = ssub.s32 %s7, %s14
    %p42 = scmp.eq.s32.totalorder %s41, 0
    %s44 = sadd.s32 %s43, 1
    %s45 = scalar_select %p42, %s43, %s44
    %p48 = pneg %p42
    %p49 = scmp.eq.s32.totalorder %s7, 1
    %p50 = por %p48, %p49
    %p51 = scmp.ne.s32.totalorder %s43, %s46
    %p52 = scmp.eq.s32.totalorder %s7, 0
    %p53 = por %p51, %p52
    %p54 = scmp.ne.s32.totalorder %s43, %s46
    %p55 = scmp.eq.s32.totalorder %s12, 1
    %p56 = por %p54, %p55
    %p57 = scmp.ne.s32.totalorder %s46, %s47
    %p58 = scmp.eq.s32.totalorder %s12, 0
    %p59 = por %p57, %p58
    %p60 = scmp.ne.s32.totalorder %s46, %s47
    %p61 = scmp.eq.s32.totalorder %s13, 1
    %p62 = por %p60, %p61
    %p64 = scmp.ne.s32.totalorder %s47, %s63
    %p65 = scmp.eq.s32.totalorder %s13, 0
    %p66 = por %p64, %p65
    %p67 = scmp.le.s32.totalorder 1, %s7
    %p68 = scmp.lt.s32.totalorder %s7, 3
    %p69 = pnand %p67, %p68
    %p70 = pneg %p69
    // Predicated region
    $region9: #{stem_v1_forward.19} parent=5 // pred_check
      _
    $region10: #{stem_v1_forward.19} parent=5 // pred_check_branch
      %72 = sbr.rel (%p69) target = $region12
    $region11: #{stem_v1_forward.19} parent=5 // pred_region
      %s73 = ssub.s32 %s7, 1
    $region12: #{stem_v1_forward.19} parent=5 // pred_fallthru
      _
    %p74 = scmp.lt.s32.totalorder %s7, 2
    // Predicated region
    $region13: #{stem_v1_forward.19} parent=5 // pred_check
      %p75 = pneg %p74
    $region14: #{stem_v1_forward.19} parent=5 // pred_check_branch
      %77 = sbr.rel (%p75) target = $region16
    $region15: #{stem_v1_forward.19} parent=5 // pred_region
      // Predicated region
      $region17: #{stem_v1_forward.19} parent=15 // pred_check
        %p78 = pneg %p27
      $region18: #{stem_v1_forward.19} parent=15 // pred_check_branch
        %80 = sbr.rel (%p78) target = $region20
      $region19: #{stem_v1_forward.19} parent=15 // pred_region
        %p81 = scmp.lt.s32.totalorder %s7, 1
        %s82 = scalar_select %p81, %s7, 1
        %s83 = smul.addr %s82, 51
        %s84 = smul.addr %s83, 4
        %s85 = scalar_lea.vmem %s0, %s84
      $region20: #{stem_v1_forward.19} parent=15 // pred_fallthru
        _
    $region16: #{stem_v1_forward.19} parent=5 // pred_fallthru
      _
    %p86 = scmp.le.s32.totalorder 1, %s7
    %p87 = scmp.lt.s32.totalorder %s7, 3
    %p88 = pnand %p86, %p87
    %p89 = pneg %p88
    // Predicated region
    $region21: #{stem_v1_forward.19} parent=5 // pred_check
      _
    $region22: #{stem_v1_forward.19} parent=5 // pred_check_branch
      %91 = sbr.rel (%p88) target = $region24
    $region23: #{stem_v1_forward.19} parent=5 // pred_region
      %s92 = ssub.s32 %s7, 1
      %p93 = scmp.lt.s32.totalorder %s12, 1
      %s94 = scalar_select %p93, %s12, 1
      %s95 = smul.addr %s94, 51
      %s96 = smul.addr %s95, 4
      %s97 = scalar_lea.vmem %s0, %s96
      %p98 = pneg %p33
      %p99 = pneg %p30
      %p100 = pneg %p59
      %p101 = pneg %p56
      %p102 = scmp.lt.s32.totalorder %s12, 1
      %s103 = scalar_select %p102, %s12, 1
      %s104 = smul.addr %s103, 8
      %s105 = smul.addr %s104, 4
      %s106 = scalar_lea.vmem %s1, %s105
      %p107 = scmp.lt.s32.totalorder %s12, 1
      %s108 = scalar_select %p107, %s12, 1
      %s109 = smul.addr %s108, 51
      %s110 = smul.addr %s109, 4
      %s111 = scalar_lea.vmem %s0, %s110
      %p112 = scmp.lt.s32.totalorder %s12, 1
      %s113 = scalar_select %p112, %s12, 1
      %s114 = smul.addr %s113, 8
      %s115 = smul.addr %s114, 4
      %s116 = scalar_lea.vmem %s1, %s115
      %v118 = vld [vmem:[%s111] sm:$0xf]
      %v119 = vld [vmem:[%s111 + $0x4] sm:$0xf]
      %v120 = vld [vmem:[%s111 + $0x8] sm:$0x1]
      %v121 = vld [vmem:[%s111 + $0xc] sm:$0xf]
      %v122 = vld [vmem:[%s111 + $0x10] sm:$0xf]
      %v123 = vld [vmem:[%s111 + $0x14] sm:$0x1]
      %v124 = vld [vmem:[%s111 + $0x18] sm:$0xf]
      %v125 = vld [vmem:[%s111 + $0x1c] sm:$0xf]
      %v126 = vld [vmem:[%s111 + $0x20] sm:$0x1]
      %v127 = vld [vmem:[%s111 + $0x24] sm:$0xf]
      %v128 = vld [vmem:[%s111 + $0x28] sm:$0xf]
      %v129 = vld [vmem:[%s111 + $0x2c] sm:$0x1]
      %v130 = vld [vmem:[%s111 + $0x30] sm:$0xf]
      %v131 = vld [vmem:[%s111 + $0x34] sm:$0xf]
      %v132 = vld [vmem:[%s111 + $0x38] sm:$0x1]
      %v133 = vld [vmem:[%s111 + $0x3c] sm:$0xf]
      %v134 = vld [vmem:[%s111 + $0x40] sm:$0xf]
      %v135 = vld [vmem:[%s111 + $0x44] sm:$0x1]
      %v136 = vld [vmem:[%s111 + $0x48] sm:$0xf]
      %v137 = vld [vmem:[%s111 + $0x4c] sm:$0xf]
      %v138 = vld [vmem:[%s111 + $0x50] sm:$0x1]
      %v139 = vld [vmem:[%s111 + $0x54] sm:$0xf]
      %v140 = vld [vmem:[%s111 + $0x58] sm:$0xf]
      %v141 = vld [vmem:[%s111 + $0x5c] sm:$0x1]
      %v142 = vld [vmem:[%s111 + $0x60] sm:$0xf]
      %v143 = vld [vmem:[%s111 + $0x64] sm:$0xf]
      %v144 = vld [vmem:[%s111 + $0x68] sm:$0x1]
      %v145 = vld [vmem:[%s111 + $0x6c] sm:$0xf]
      %v146 = vld [vmem:[%s111 + $0x70] sm:$0xf]
      %v147 = vld [vmem:[%s111 + $0x74] sm:$0x1]
      %v148 = vld [vmem:[%s111 + $0x78] sm:$0xf]
      %v149 = vld [vmem:[%s111 + $0x7c] sm:$0xf]
      %v150 = vld [vmem:[%s111 + $0x80] sm:$0x1]
      %v151 = vld [vmem:[%s111 + $0x84] sm:$0xf]
      %v152 = vld [vmem:[%s111 + $0x88] sm:$0xf]
      %v153 = vld [vmem:[%s111 + $0x8c] sm:$0x1]
      %v154 = vld [vmem:[%s111 + $0x90] sm:$0xf]
      %v155 = vld [vmem:[%s111 + $0x94] sm:$0xf]
      %v156 = vld [vmem:[%s111 + $0x98] sm:$0x1]
      %v157 = vld [vmem:[%s111 + $0x9c] sm:$0xf]
      %v158 = vld [vmem:[%s111 + $0xa0] sm:$0xf]
      %v159 = vld [vmem:[%s111 + $0xa4] sm:$0x1]
      %v160 = vld [vmem:[%s111 + $0xa8] sm:$0xf]
      %v161 = vld [vmem:[%s111 + $0xac] sm:$0xf]
      %v162 = vld [vmem:[%s111 + $0xb0] sm:$0x1]
      %v163 = vld [vmem:[%s111 + $0xb4] sm:$0xf]
      %v164 = vld [vmem:[%s111 + $0xb8] sm:$0xf]
      %v165 = vld [vmem:[%s111 + $0xbc] sm:$0x1]
      %v166 = vld [vmem:[%s111 + $0xc0] sm:$0xf]
      %v167 = vld [vmem:[%s111 + $0xc4] sm:$0xf]
      %v168 = vld [vmem:[%s111 + $0xc8] sm:$0x1]
      %vm169 = vcmask 1043456
      %v172 = vsel %vm169, %v118, 4286644096
      %v175 = vsel %vm169, %v121, 4286644096
      %v177 = vmax.bf16 %v172, %v175
      %v179 = vsel %vm169, %v119, 4286644096
      %v182 = vsel %vm169, %v122, 4286644096
      %v184 = vmax.bf16 %v179, %v182
      %vm185 = vcmask 1040384
      %vm186 = vsmask.f32 256
      %vm187 = vmand %vm185, %vm186
      %v188 = vsel %vm187, %v120, 4286644096
      %v189 = vsel %vm187, %v123, 4286644096
      %v190 = vmax.bf16 %v188, %v189
      %v192 = vsel %vm169, %v124, 4286644096
      %v195 = vsel %vm169, %v127, 4286644096
      %v197 = vmax.bf16 %v192, %v195
      %v199 = vsel %vm169, %v125, 4286644096
      %v202 = vsel %vm169, %v128, 4286644096
      %v204 = vmax.bf16 %v199, %v202
      %v205 = vsel %vm187, %v126, 4286644096
      %v206 = vsel %vm187, %v129, 4286644096
      %v207 = vmax.bf16 %v205, %v206
      %v209 = vsel %vm169, %v130, 4286644096
      %v212 = vsel %vm169, %v133, 4286644096
      %v214 = vmax.bf16 %v209, %v212
      %v216 = vsel %vm169, %v131, 4286644096
      %v219 = vsel %vm169, %v134, 4286644096
      %v221 = vmax.bf16 %v216, %v219
      %v222 = vsel %vm187, %v132, 4286644096
      %v223 = vsel %vm187, %v135, 4286644096
      %v224 = vmax.bf16 %v222, %v223
      %v226 = vsel %vm169, %v136, 4286644096
      %v229 = vsel %vm169, %v139, 4286644096
      %v231 = vmax.bf16 %v226, %v229
      %v233 = vsel %vm169, %v137, 4286644096
      %v236 = vsel %vm169, %v140, 4286644096
      %v238 = vmax.bf16 %v233, %v236
      %v239 = vsel %vm187, %v138, 4286644096
      %v240 = vsel %vm187, %v141, 4286644096
      %v241 = vmax.bf16 %v239, %v240
      %v243 = vsel %vm169, %v142, 4286644096
      %v246 = vsel %vm169, %v145, 4286644096
      %v248 = vmax.bf16 %v243, %v246
      %v250 = vsel %vm169, %v143, 4286644096
      %v253 = vsel %vm169, %v146, 4286644096
      %v255 = vmax.bf16 %v250, %v253
      %v256 = vsel %vm187, %v144, 4286644096
      %v257 = vsel %vm187, %v147, 4286644096
      %v258 = vmax.bf16 %v256, %v257
      %v260 = vsel %vm169, %v148, 4286644096
      %v263 = vsel %vm169, %v151, 4286644096
      %v265 = vmax.bf16 %v260, %v263
      %v267 = vsel %vm169, %v149, 4286644096
      %v270 = vsel %vm169, %v152, 4286644096
      %v272 = vmax.bf16 %v267, %v270
      %v273 = vsel %vm187, %v150, 4286644096
      %v274 = vsel %vm187, %v153, 4286644096
      %v275 = vmax.bf16 %v273, %v274
      %v277 = vsel %vm169, %v154, 4286644096
      %v280 = vsel %vm169, %v157, 4286644096
      %v282 = vmax.bf16 %v277, %v280
      %v284 = vsel %vm169, %v155, 4286644096
      %v287 = vsel %vm169, %v158, 4286644096
      %v289 = vmax.bf16 %v284, %v287
      %v290 = vsel %vm187, %v156, 4286644096
      %v291 = vsel %vm187, %v159, 4286644096
      %v292 = vmax.bf16 %v290, %v291
      %v294 = vsel %vm169, %v160, 4286644096
      %v297 = vsel %vm169, %v163, 4286644096
      %v299 = vmax.bf16 %v294, %v297
      %v301 = vsel %vm169, %v161, 4286644096
      %v304 = vsel %vm169, %v164, 4286644096
      %v306 = vmax.bf16 %v301, %v304
      %v307 = vsel %vm187, %v162, 4286644096
      %v308 = vsel %vm187, %v165, 4286644096
      %v309 = vmax.bf16 %v307, %v308
      %v310 = vmax.bf16 %v175, %v192
      %v311 = vmax.bf16 %v182, %v199
      %v312 = vmax.bf16 %v189, %v205
      %v313 = vmax.bf16 %v195, %v209
      %v314 = vmax.bf16 %v202, %v216
      %v315 = vmax.bf16 %v206, %v222
      %v316 = vmax.bf16 %v212, %v226
      %v317 = vmax.bf16 %v219, %v233
      %v318 = vmax.bf16 %v223, %v239
      %v319 = vmax.bf16 %v229, %v243
      %v320 = vmax.bf16 %v236, %v250
      %v321 = vmax.bf16 %v240, %v256
      %v322 = vmax.bf16 %v246, %v260
      %v323 = vmax.bf16 %v253, %v267
      %v324 = vmax.bf16 %v257, %v273
      %v325 = vmax.bf16 %v263, %v277
      %v326 = vmax.bf16 %v270, %v284
      %v327 = vmax.bf16 %v274, %v290
      %v328 = vmax.bf16 %v280, %v294
      %v329 = vmax.bf16 %v287, %v301
      %v330 = vmax.bf16 %v291, %v307
      %v332 = vsel %vm169, %v166, 4286644096
      %v334 = vmax.bf16 %v297, %v332
      %v336 = vsel %vm169, %v167, 4286644096
      %v338 = vmax.bf16 %v304, %v336
      %v339 = vsel %vm187, %v168, 4286644096
      %v340 = vmax.bf16 %v308, %v339
      %v341 = vmax.bf16 %v177, %v310
      %v342 = vmax.bf16 %v184, %v311
      %v343 = vmax.bf16 %v190, %v312
      %v344 = vmax.bf16 %v197, %v313
      %v345 = vmax.bf16 %v204, %v314
      %v346 = vmax.bf16 %v207, %v315
      %v347 = vmax.bf16 %v214, %v316
      %v348 = vmax.bf16 %v221, %v317
      %v349 = vmax.bf16 %v224, %v318
      %v350 = vmax.bf16 %v231, %v319
      %v351 = vmax.bf16 %v238, %v320
      %v352 = vmax.bf16 %v241, %v321
      %v353 = vmax.bf16 %v248, %v322
      %v354 = vmax.bf16 %v255, %v323
      %v355 = vmax.bf16 %v258, %v324
      %v356 = vmax.bf16 %v265, %v325
      %v357 = vmax.bf16 %v272, %v326
      %v358 = vmax.bf16 %v275, %v327
      %v359 = vmax.bf16 %v282, %v328
      %v360 = vmax.bf16 %v289, %v329
      %v361 = vmax.bf16 %v292, %v330
      %v362 = vmax.bf16 %v299, %v334
      %v363 = vmax.bf16 %v306, %v338
      %v364 = vmax.bf16 %v309, %v340
      %v382 = vunpack.c.l.s4 1966171168
      %v383 = vunpack.c.0.s8 %v382
      %v384 = vlaneseq
      %v385 = vshrl.u32 %v384, 7
      %v386 = vsub.s32 %v383, %v385
      %v387 = vrot.slane %v341, %v386
      %v388 = vcombine.high %v387, %v387
      %v390 = vunpack.c.l.s4 1966171168
      %v391 = vunpack.c.0.s8 %v390
      %v392 = vlaneseq
      %v393 = vshrl.u32 %v392, 7
      %v394 = vsub.s32 %v391, %v393
      %v395 = vrot.slane %v387, %v394
      %v397 = vunpack.c.l.s4 1966171168
      %v398 = vunpack.c.0.s8 %v397
      %v399 = vlaneseq
      %v400 = vshrl.u32 %v399, 7
      %v401 = vsub.s32 %v398, %v400
      %v402 = vrot.slane %v388, %v401
      %v403 = vcombine.high %v395, %v395
      %v404 = vcombine.high %v402, %v402
      %v406 = vunpack.c.l.s4 1966171168
      %v407 = vunpack.c.0.s8 %v406
      %v408 = vlaneseq
      %v409 = vshrl.u32 %v408, 7
      %v410 = vsub.s32 %v407, %v409
      %v411 = vrot.slane %v342, %v410
      %v412 = vcombine.high %v411, %v411
      %v414 = vunpack.c.l.s4 1966171168
      %v415 = vunpack.c.0.s8 %v414
      %v416 = vlaneseq
      %v417 = vshrl.u32 %v416, 7
      %v418 = vsub.s32 %v415, %v417
      %v419 = vrot.slane %v411, %v418
      %v421 = vunpack.c.l.s4 1966171168
      %v422 = vunpack.c.0.s8 %v421
      %v423 = vlaneseq
      %v424 = vshrl.u32 %v423, 7
      %v425 = vsub.s32 %v422, %v424
      %v426 = vrot.slane %v412, %v425
      %v427 = vcombine.high %v419, %v419
      %v428 = vcombine.high %v426, %v426
      %v430 = vunpack.c.l.s4 1966171168
      %v431 = vunpack.c.0.s8 %v430
      %v432 = vlaneseq
      %v433 = vshrl.u32 %v432, 7
      %v434 = vsub.s32 %v431, %v433
      %v435 = vrot.slane %v344, %v434
      %v436 = vcombine.high %v435, %v435
      %v438 = vunpack.c.l.s4 1966171168
      %v439 = vunpack.c.0.s8 %v438
      %v440 = vlaneseq
      %v441 = vshrl.u32 %v440, 7
      %v442 = vsub.s32 %v439, %v441
      %v443 = vrot.slane %v435, %v442
      %v445 = vunpack.c.l.s4 1966171168
      %v446 = vunpack.c.0.s8 %v445
      %v447 = vlaneseq
      %v448 = vshrl.u32 %v447, 7
      %v449 = vsub.s32 %v446, %v448
      %v450 = vrot.slane %v436, %v449
      %v451 = vcombine.high %v443, %v443
      %v452 = vcombine.high %v450, %v450
      %v454 = vunpack.c.l.s4 1966171168
      %v455 = vunpack.c.0.s8 %v454
      %v456 = vlaneseq
      %v457 = vshrl.u32 %v456, 7
      %v458 = vsub.s32 %v455, %v457
      %v459 = vrot.slane %v345, %v458
      %v460 = vcombine.high %v459, %v459
      %v462 = vunpack.c.l.s4 1966171168
      %v463 = vunpack.c.0.s8 %v462
      %v464 = vlaneseq
      %v465 = vshrl.u32 %v464, 7
      %v466 = vsub.s32 %v463, %v465
      %v467 = vrot.slane %v459, %v466
      %v469 = vunpack.c.l.s4 1966171168
      %v470 = vunpack.c.0.s8 %v469
      %v471 = vlaneseq
      %v472 = vshrl.u32 %v471, 7
      %v473 = vsub.s32 %v470, %v472
      %v474 = vrot.slane %v460, %v473
      %v475 = vcombine.high %v467, %v467
      %v476 = vcombine.high %v474, %v474
      %v478 = vunpack.c.l.s4 1966171168
      %v479 = vunpack.c.0.s8 %v478
      %v480 = vlaneseq
      %v481 = vshrl.u32 %v480, 7
      %v482 = vsub.s32 %v479, %v481
      %v483 = vrot.slane %v347, %v482
      %v484 = vcombine.high %v483, %v483
      %v486 = vunpack.c.l.s4 1966171168
      %v487 = vunpack.c.0.s8 %v486
      %v488 = vlaneseq
      %v489 = vshrl.u32 %v488, 7
      %v490 = vsub.s32 %v487, %v489
      %v491 = vrot.slane %v483, %v490
      %v493 = vunpack.c.l.s4 1966171168
      %v494 = vunpack.c.0.s8 %v493
      %v495 = vlaneseq
      %v496 = vshrl.u32 %v495, 7
      %v497 = vsub.s32 %v494, %v496
      %v498 = vrot.slane %v484, %v497
      %v499 = vcombine.high %v491, %v491
      %v500 = vcombine.high %v498, %v498
      %v502 = vunpack.c.l.s4 1966171168
      %v503 = vunpack.c.0.s8 %v502
      %v504 = vlaneseq
      %v505 = vshrl.u32 %v504, 7
      %v506 = vsub.s32 %v503, %v505
      %v507 = vrot.slane %v348, %v506
      %v508 = vcombine.high %v507, %v507
      %v510 = vunpack.c.l.s4 1966171168
      %v511 = vunpack.c.0.s8 %v510
      %v512 = vlaneseq
      %v513 = vshrl.u32 %v512, 7
      %v514 = vsub.s32 %v511, %v513
      %v515 = vrot.slane %v507, %v514
      %v517 = vunpack.c.l.s4 1966171168
      %v518 = vunpack.c.0.s8 %v517
      %v519 = vlaneseq
      %v520 = vshrl.u32 %v519, 7
      %v521 = vsub.s32 %v518, %v520
      %v522 = vrot.slane %v508, %v521
      %v523 = vcombine.high %v515, %v515
      %v524 = vcombine.high %v522, %v522
      %v526 = vunpack.c.l.s4 1966171168
      %v527 = vunpack.c.0.s8 %v526
      %v528 = vlaneseq
      %v529 = vshrl.u32 %v528, 7
      %v530 = vsub.s32 %v527, %v529
      %v531 = vrot.slane %v350, %v530
      %v532 = vcombine.high %v531, %v531
      %v534 = vunpack.c.l.s4 1966171168
      %v535 = vunpack.c.0.s8 %v534
      %v536 = vlaneseq
      %v537 = vshrl.u32 %v536, 7
      %v538 = vsub.s32 %v535, %v537
      %v539 = vrot.slane %v531, %v538
      %v541 = vunpack.c.l.s4 1966171168
      %v542 = vunpack.c.0.s8 %v541
      %v543 = vlaneseq
      %v544 = vshrl.u32 %v543, 7
      %v545 = vsub.s32 %v542, %v544
      %v546 = vrot.slane %v532, %v545
      %v547 = vcombine.high %v539, %v539
      %v548 = vcombine.high %v546, %v546
      %v550 = vunpack.c.l.s4 1966171168
      %v551 = vunpack.c.0.s8 %v550
      %v552 = vlaneseq
      %v553 = vshrl.u32 %v552, 7
      %v554 = vsub.s32 %v551, %v553
      %v555 = vrot.slane %v351, %v554
      %v556 = vcombine.high %v555, %v555
      %v558 = vunpack.c.l.s4 1966171168
      %v559 = vunpack.c.0.s8 %v558
      %v560 = vlaneseq
      %v561 = vshrl.u32 %v560, 7
      %v562 = vsub.s32 %v559, %v561
      %v563 = vrot.slane %v555, %v562
      %v565 = vunpack.c.l.s4 1966171168
      %v566 = vunpack.c.0.s8 %v565
      %v567 = vlaneseq
      %v568 = vshrl.u32 %v567, 7
      %v569 = vsub.s32 %v566, %v568
      %v570 = vrot.slane %v556, %v569
      %v571 = vcombine.high %v563, %v563
      %v572 = vcombine.high %v570, %v570
      %v574 = vunpack.c.l.s4 1966171168
      %v575 = vunpack.c.0.s8 %v574
      %v576 = vlaneseq
      %v577 = vshrl.u32 %v576, 7
      %v578 = vsub.s32 %v575, %v577
      %v579 = vrot.slane %v353, %v578
      %v580 = vcombine.high %v579, %v579
      %v582 = vunpack.c.l.s4 1966171168
      %v583 = vunpack.c.0.s8 %v582
      %v584 = vlaneseq
      %v585 = vshrl.u32 %v584, 7
      %v586 = vsub.s32 %v583, %v585
      %v587 = vrot.slane %v579, %v586
      %v589 = vunpack.c.l.s4 1966171168
      %v590 = vunpack.c.0.s8 %v589
      %v591 = vlaneseq
      %v592 = vshrl.u32 %v591, 7
      %v593 = vsub.s32 %v590, %v592
      %v594 = vrot.slane %v580, %v593
      %v595 = vcombine.high %v587, %v587
      %v596 = vcombine.high %v594, %v594
      %v598 = vunpack.c.l.s4 1966171168
      %v599 = vunpack.c.0.s8 %v598
      %v600 = vlaneseq
      %v601 = vshrl.u32 %v600, 7
      %v602 = vsub.s32 %v599, %v601
      %v603 = vrot.slane %v354, %v602
      %v604 = vcombine.high %v603, %v603
      %v606 = vunpack.c.l.s4 1966171168
      %v607 = vunpack.c.0.s8 %v606
      %v608 = vlaneseq
      %v609 = vshrl.u32 %v608, 7
      %v610 = vsub.s32 %v607, %v609
      %v611 = vrot.slane %v603, %v610
      %v613 = vunpack.c.l.s4 1966171168
      %v614 = vunpack.c.0.s8 %v613
      %v615 = vlaneseq
      %v616 = vshrl.u32 %v615, 7
      %v617 = vsub.s32 %v614, %v616
      %v618 = vrot.slane %v604, %v617
      %v619 = vcombine.high %v611, %v611
      %v620 = vcombine.high %v618, %v618
      %v622 = vunpack.c.l.s4 1966171168
      %v623 = vunpack.c.0.s8 %v622
      %v624 = vlaneseq
      %v625 = vshrl.u32 %v624, 7
      %v626 = vsub.s32 %v623, %v625
      %v627 = vrot.slane %v356, %v626
      %v628 = vcombine.high %v627, %v627
      %v630 = vunpack.c.l.s4 1966171168
      %v631 = vunpack.c.0.s8 %v630
      %v632 = vlaneseq
      %v633 = vshrl.u32 %v632, 7
      %v634 = vsub.s32 %v631, %v633
      %v635 = vrot.slane %v627, %v634
      %v637 = vunpack.c.l.s4 1966171168
      %v638 = vunpack.c.0.s8 %v637
      %v639 = vlaneseq
      %v640 = vshrl.u32 %v639, 7
      %v641 = vsub.s32 %v638, %v640
      %v642 = vrot.slane %v628, %v641
      %v643 = vcombine.high %v635, %v635
      %v644 = vcombine.high %v642, %v642
      %v646 = vunpack.c.l.s4 1966171168
      %v647 = vunpack.c.0.s8 %v646
      %v648 = vlaneseq
      %v649 = vshrl.u32 %v648, 7
      %v650 = vsub.s32 %v647, %v649
      %v651 = vrot.slane %v357, %v650
      %v652 = vcombine.high %v651, %v651
      %v654 = vunpack.c.l.s4 1966171168
      %v655 = vunpack.c.0.s8 %v654
      %v656 = vlaneseq
      %v657 = vshrl.u32 %v656, 7
      %v658 = vsub.s32 %v655, %v657
      %v659 = vrot.slane %v651, %v658
      %v661 = vunpack.c.l.s4 1966171168
      %v662 = vunpack.c.0.s8 %v661
      %v663 = vlaneseq
      %v664 = vshrl.u32 %v663, 7
      %v665 = vsub.s32 %v662, %v664
      %v666 = vrot.slane %v652, %v665
      %v667 = vcombine.high %v659, %v659
      %v668 = vcombine.high %v666, %v666
      %v670 = vunpack.c.l.s4 1966171168
      %v671 = vunpack.c.0.s8 %v670
      %v672 = vlaneseq
      %v673 = vshrl.u32 %v672, 7
      %v674 = vsub.s32 %v671, %v673
      %v675 = vrot.slane %v359, %v674
      %v676 = vcombine.high %v675, %v675
      %v678 = vunpack.c.l.s4 1966171168
      %v679 = vunpack.c.0.s8 %v678
      %v680 = vlaneseq
      %v681 = vshrl.u32 %v680, 7
      %v682 = vsub.s32 %v679, %v681
      %v683 = vrot.slane %v675, %v682
      %v685 = vunpack.c.l.s4 1966171168
      %v686 = vunpack.c.0.s8 %v685
      %v687 = vlaneseq
      %v688 = vshrl.u32 %v687, 7
      %v689 = vsub.s32 %v686, %v688
      %v690 = vrot.slane %v676, %v689
      %v691 = vcombine.high %v683, %v683
      %v692 = vcombine.high %v690, %v690
      %v694 = vunpack.c.l.s4 1966171168
      %v695 = vunpack.c.0.s8 %v694
      %v696 = vlaneseq
      %v697 = vshrl.u32 %v696, 7
      %v698 = vsub.s32 %v695, %v697
      %v699 = vrot.slane %v360, %v698
      %v700 = vcombine.high %v699, %v699
      %v702 = vunpack.c.l.s4 1966171168
      %v703 = vunpack.c.0.s8 %v702
      %v704 = vlaneseq
      %v705 = vshrl.u32 %v704, 7
      %v706 = vsub.s32 %v703, %v705
      %v707 = vrot.slane %v699, %v706
      %v709 = vunpack.c.l.s4 1966171168
      %v710 = vunpack.c.0.s8 %v709
      %v711 = vlaneseq
      %v712 = vshrl.u32 %v711, 7
      %v713 = vsub.s32 %v710, %v712
      %v714 = vrot.slane %v700, %v713
      %v715 = vcombine.high %v707, %v707
      %v716 = vcombine.high %v714, %v714
      %v718 = vunpack.c.l.s4 1966171168
      %v719 = vunpack.c.0.s8 %v718
      %v720 = vlaneseq
      %v721 = vshrl.u32 %v720, 7
      %v722 = vsub.s32 %v719, %v721
      %v723 = vrot.slane %v362, %v722
      %v724 = vcombine.high %v723, %v723
      %v726 = vunpack.c.l.s4 1966171168
      %v727 = vunpack.c.0.s8 %v726
      %v728 = vlaneseq
      %v729 = vshrl.u32 %v728, 7
      %v730 = vsub.s32 %v727, %v729
      %v731 = vrot.slane %v723, %v730
      %v733 = vunpack.c.l.s4 1966171168
      %v734 = vunpack.c.0.s8 %v733
      %v735 = vlaneseq
      %v736 = vshrl.u32 %v735, 7
      %v737 = vsub.s32 %v734, %v736
      %v738 = vrot.slane %v724, %v737
      %v739 = vcombine.high %v731, %v731
      %v740 = vcombine.high %v738, %v738
      %v742 = vunpack.c.l.s4 1966171168
      %v743 = vunpack.c.0.s8 %v742
      %v744 = vlaneseq
      %v745 = vshrl.u32 %v744, 7
      %v746 = vsub.s32 %v743, %v745
      %v747 = vrot.slane %v363, %v746
      %v748 = vcombine.high %v747, %v747
      %v750 = vunpack.c.l.s4 1966171168
      %v751 = vunpack.c.0.s8 %v750
      %v752 = vlaneseq
      %v753 = vshrl.u32 %v752, 7
      %v754 = vsub.s32 %v751, %v753
      %v755 = vrot.slane %v747, %v754
      %v757 = vunpack.c.l.s4 1966171168
      %v758 = vunpack.c.0.s8 %v757
      %v759 = vlaneseq
      %v760 = vshrl.u32 %v759, 7
      %v761 = vsub.s32 %v758, %v760
      %v762 = vrot.slane %v748, %v761
      %v763 = vcombine.high %v755, %v755
      %v764 = vcombine.high %v762, %v762
      %vm765 = vcmask 1040384
      %v767 = vsel %vm765, %v395, 4286644096
      %v769 = vunpack.i.l.bf16 %v767
      %v770 = vunpack.i.h.bf16 %v767
      %v771 = vmax.f32 %v769, %v770
      %v772 = vrot.slane %v771, 4
      %v773 = vmax.f32 %v771, %v772
      %v774 = vrot.slane %v773, 2
      %v775 = vmax.f32 %v773, %v774
      %v776 = vrot.slane %v775, 1
      %v777 = vmax.f32 %v775, %v776
      %v778 = vpack.i.bf16 %v777, %v777
      %v780 = vsel %vm765, %v402, 4286644096
      %v782 = vunpack.i.l.bf16 %v780
      %v783 = vunpack.i.h.bf16 %v780
      %v784 = vmax.f32 %v782, %v783
      %v785 = vrot.slane %v784, 4
      %v786 = vmax.f32 %v784, %v785
      %v787 = vrot.slane %v786, 2
      %v788 = vmax.f32 %v786, %v787
      %v789 = vrot.slane %v788, 1
      %v790 = vmax.f32 %v788, %v789
      %v791 = vpack.i.bf16 %v790, %v790
      %v793 = vsel %vm765, %v403, 4286644096
      %v795 = vunpack.i.l.bf16 %v793
      %v796 = vunpack.i.h.bf16 %v793
      %v797 = vmax.f32 %v795, %v796
      %v798 = vrot.slane %v797, 4
      %v799 = vmax.f32 %v797, %v798
      %v800 = vrot.slane %v799, 2
      %v801 = vmax.f32 %v799, %v800
      %v802 = vrot.slane %v801, 1
      %v803 = vmax.f32 %v801, %v802
      %v804 = vpack.i.bf16 %v803, %v803
      %v806 = vsel %vm765, %v404, 4286644096
      %v808 = vunpack.i.l.bf16 %v806
      %v809 = vunpack.i.h.bf16 %v806
      %v810 = vmax.f32 %v808, %v809
      %v811 = vrot.slane %v810, 4
      %v812 = vmax.f32 %v810, %v811
      %v813 = vrot.slane %v812, 2
      %v814 = vmax.f32 %v812, %v813
      %v815 = vrot.slane %v814, 1
      %v816 = vmax.f32 %v814, %v815
      %v817 = vpack.i.bf16 %v816, %v816
      %v819 = vsel %vm765, %v419, 4286644096
      %v821 = vunpack.i.l.bf16 %v819
      %v822 = vunpack.i.h.bf16 %v819
      %v823 = vmax.f32 %v821, %v822
      %v824 = vrot.slane %v823, 4
      %v825 = vmax.f32 %v823, %v824
      %v826 = vrot.slane %v825, 2
      %v827 = vmax.f32 %v825, %v826
      %v828 = vrot.slane %v827, 1
      %v829 = vmax.f32 %v827, %v828
      %v830 = vpack.i.bf16 %v829, %v829
      %v832 = vsel %vm765, %v426, 4286644096
      %v834 = vunpack.i.l.bf16 %v832
      %v835 = vunpack.i.h.bf16 %v832
      %v836 = vmax.f32 %v834, %v835
      %v837 = vrot.slane %v836, 4
      %v838 = vmax.f32 %v836, %v837
      %v839 = vrot.slane %v838, 2
      %v840 = vmax.f32 %v838, %v839
      %v841 = vrot.slane %v840, 1
      %v842 = vmax.f32 %v840, %v841
      %v843 = vpack.i.bf16 %v842, %v842
      %v845 = vsel %vm765, %v427, 4286644096
      %v847 = vunpack.i.l.bf16 %v845
      %v848 = vunpack.i.h.bf16 %v845
      %v849 = vmax.f32 %v847, %v848
      %v850 = vrot.slane %v849, 4
      %v851 = vmax.f32 %v849, %v850
      %v852 = vrot.slane %v851, 2
      %v853 = vmax.f32 %v851, %v852
      %v854 = vrot.slane %v853, 1
      %v855 = vmax.f32 %v853, %v854
      %v856 = vpack.i.bf16 %v855, %v855
      %v858 = vsel %vm765, %v428, 4286644096
      %v860 = vunpack.i.l.bf16 %v858
      %v861 = vunpack.i.h.bf16 %v858
      %v862 = vmax.f32 %v860, %v861
      %v863 = vrot.slane %v862, 4
      %v864 = vmax.f32 %v862, %v863
      %v865 = vrot.slane %v864, 2
      %v866 = vmax.f32 %v864, %v865
      %v867 = vrot.slane %v866, 1
      %v868 = vmax.f32 %v866, %v867
      %v869 = vpack.i.bf16 %v868, %v868
      %v871 = vsel %vm765, %v443, 4286644096
      %v873 = vunpack.i.l.bf16 %v871
      %v874 = vunpack.i.h.bf16 %v871
      %v875 = vmax.f32 %v873, %v874
      %v876 = vrot.slane %v875, 4
      %v877 = vmax.f32 %v875, %v876
      %v878 = vrot.slane %v877, 2
      %v879 = vmax.f32 %v877, %v878
      %v880 = vrot.slane %v879, 1
      %v881 = vmax.f32 %v879, %v880
      %v882 = vpack.i.bf16 %v881, %v881
      %v884 = vsel %vm765, %v450, 4286644096
      %v886 = vunpack.i.l.bf16 %v884
      %v887 = vunpack.i.h.bf16 %v884
      %v888 = vmax.f32 %v886, %v887
      %v889 = vrot.slane %v888, 4
      %v890 = vmax.f32 %v888, %v889
      %v891 = vrot.slane %v890, 2
      %v892 = vmax.f32 %v890, %v891
      %v893 = vrot.slane %v892, 1
      %v894 = vmax.f32 %v892, %v893
      %v895 = vpack.i.bf16 %v894, %v894
      %v897 = vsel %vm765, %v451, 4286644096
      %v899 = vunpack.i.l.bf16 %v897
      %v900 = vunpack.i.h.bf16 %v897
      %v901 = vmax.f32 %v899, %v900
      %v902 = vrot.slane %v901, 4
      %v903 = vmax.f32 %v901, %v902
      %v904 = vrot.slane %v903, 2
      %v905 = vmax.f32 %v903, %v904
      %v906 = vrot.slane %v905, 1
      %v907 = vmax.f32 %v905, %v906
      %v908 = vpack.i.bf16 %v907, %v907
      %v910 = vsel %vm765, %v452, 4286644096
      %v912 = vunpack.i.l.bf16 %v910
      %v913 = vunpack.i.h.bf16 %v910
      %v914 = vmax.f32 %v912, %v913
      %v915 = vrot.slane %v914, 4
      %v916 = vmax.f32 %v914, %v915
      %v917 = vrot.slane %v916, 2
      %v918 = vmax.f32 %v916, %v917
      %v919 = vrot.slane %v918, 1
      %v920 = vmax.f32 %v918, %v919
      %v921 = vpack.i.bf16 %v920, %v920
      %v923 = vsel %vm765, %v467, 4286644096
      %v925 = vunpack.i.l.bf16 %v923
      %v926 = vunpack.i.h.bf16 %v923
      %v927 = vmax.f32 %v925, %v926
      %v928 = vrot.slane %v927, 4
      %v929 = vmax.f32 %v927, %v928
      %v930 = vrot.slane %v929, 2
      %v931 = vmax.f32 %v929, %v930
      %v932 = vrot.slane %v931, 1
      %v933 = vmax.f32 %v931, %v932
      %v934 = vpack.i.bf16 %v933, %v933
      %v936 = vsel %vm765, %v474, 4286644096
      %v938 = vunpack.i.l.bf16 %v936
      %v939 = vunpack.i.h.bf16 %v936
      %v940 = vmax.f32 %v938, %v939
      %v941 = vrot.slane %v940, 4
      %v942 = vmax.f32 %v940, %v941
      %v943 = vrot.slane %v942, 2
      %v944 = vmax.f32 %v942, %v943
      %v945 = vrot.slane %v944, 1
      %v946 = vmax.f32 %v944, %v945
      %v947 = vpack.i.bf16 %v946, %v946
      %v949 = vsel %vm765, %v475, 4286644096
      %v951 = vunpack.i.l.bf16 %v949
      %v952 = vunpack.i.h.bf16 %v949
      %v953 = vmax.f32 %v951, %v952
      %v954 = vrot.slane %v953, 4
      %v955 = vmax.f32 %v953, %v954
      %v956 = vrot.slane %v955, 2
      %v957 = vmax.f32 %v955, %v956
      %v958 = vrot.slane %v957, 1
      %v959 = vmax.f32 %v957, %v958
      %v960 = vpack.i.bf16 %v959, %v959
      %v962 = vsel %vm765, %v476, 4286644096
      %v964 = vunpack.i.l.bf16 %v962
      %v965 = vunpack.i.h.bf16 %v962
      %v966 = vmax.f32 %v964, %v965
      %v967 = vrot.slane %v966, 4
      %v968 = vmax.f32 %v966, %v967
      %v969 = vrot.slane %v968, 2
      %v970 = vmax.f32 %v968, %v969
      %v971 = vrot.slane %v970, 1
      %v972 = vmax.f32 %v970, %v971
      %v973 = vpack.i.bf16 %v972, %v972
      %v975 = vsel %vm765, %v491, 4286644096
      %v977 = vunpack.i.l.bf16 %v975
      %v978 = vunpack.i.h.bf16 %v975
      %v979 = vmax.f32 %v977, %v978
      %v980 = vrot.slane %v979, 4
      %v981 = vmax.f32 %v979, %v980
      %v982 = vrot.slane %v981, 2
      %v983 = vmax.f32 %v981, %v982
      %v984 = vrot.slane %v983, 1
      %v985 = vmax.f32 %v983, %v984
      %v986 = vpack.i.bf16 %v985, %v985
      %v988 = vsel %vm765, %v498, 4286644096
      %v990 = vunpack.i.l.bf16 %v988
      %v991 = vunpack.i.h.bf16 %v988
      %v992 = vmax.f32 %v990, %v991
      %v993 = vrot.slane %v992, 4
      %v994 = vmax.f32 %v992, %v993
      %v995 = vrot.slane %v994, 2
      %v996 = vmax.f32 %v994, %v995
      %v997 = vrot.slane %v996, 1
      %v998 = vmax.f32 %v996, %v997
      %v999 = vpack.i.bf16 %v998, %v998
      %v1001 = vsel %vm765, %v499, 4286644096
      %v1003 = vunpack.i.l.bf16 %v1001
      %v1004 = vunpack.i.h.bf16 %v1001
      %v1005 = vmax.f32 %v1003, %v1004
      %v1006 = vrot.slane %v1005, 4
      %v1007 = vmax.f32 %v1005, %v1006
      %v1008 = vrot.slane %v1007, 2
      %v1009 = vmax.f32 %v1007, %v1008
      %v1010 = vrot.slane %v1009, 1
      %v1011 = vmax.f32 %v1009, %v1010
      %v1012 = vpack.i.bf16 %v1011, %v1011
      %v1014 = vsel %vm765, %v500, 4286644096
      %v1016 = vunpack.i.l.bf16 %v1014
      %v1017 = vunpack.i.h.bf16 %v1014
      %v1018 = vmax.f32 %v1016, %v1017
      %v1019 = vrot.slane %v1018, 4
      %v1020 = vmax.f32 %v1018, %v1019
      %v1021 = vrot.slane %v1020, 2
      %v1022 = vmax.f32 %v1020, %v1021
      %v1023 = vrot.slane %v1022, 1
      %v1024 = vmax.f32 %v1022, %v1023
      %v1025 = vpack.i.bf16 %v1024, %v1024
      %v1027 = vsel %vm765, %v515, 4286644096
      %v1029 = vunpack.i.l.bf16 %v1027
      %v1030 = vunpack.i.h.bf16 %v1027
      %v1031 = vmax.f32 %v1029, %v1030
      %v1032 = vrot.slane %v1031, 4
      %v1033 = vmax.f32 %v1031, %v1032
      %v1034 = vrot.slane %v1033, 2
      %v1035 = vmax.f32 %v1033, %v1034
      %v1036 = vrot.slane %v1035, 1
      %v1037 = vmax.f32 %v1035, %v1036
      %v1038 = vpack.i.bf16 %v1037, %v1037
      %v1040 = vsel %vm765, %v522, 4286644096
      %v1042 = vunpack.i.l.bf16 %v1040
      %v1043 = vunpack.i.h.bf16 %v1040
      %v1044 = vmax.f32 %v1042, %v1043
      %v1045 = vrot.slane %v1044, 4
      %v1046 = vmax.f32 %v1044, %v1045
      %v1047 = vrot.slane %v1046, 2
      %v1048 = vmax.f32 %v1046, %v1047
      %v1049 = vrot.slane %v1048, 1
      %v1050 = vmax.f32 %v1048, %v1049
      %v1051 = vpack.i.bf16 %v1050, %v1050
      %v1053 = vsel %vm765, %v523, 4286644096
      %v1055 = vunpack.i.l.bf16 %v1053
      %v1056 = vunpack.i.h.bf16 %v1053
      %v1057 = vmax.f32 %v1055, %v1056
      %v1058 = vrot.slane %v1057, 4
      %v1059 = vmax.f32 %v1057, %v1058
      %v1060 = vrot.slane %v1059, 2
      %v1061 = vmax.f32 %v1059, %v1060
      %v1062 = vrot.slane %v1061, 1
      %v1063 = vmax.f32 %v1061, %v1062
      %v1064 = vpack.i.bf16 %v1063, %v1063
      %v1066 = vsel %vm765, %v524, 4286644096
      %v1068 = vunpack.i.l.bf16 %v1066
      %v1069 = vunpack.i.h.bf16 %v1066
      %v1070 = vmax.f32 %v1068, %v1069
      %v1071 = vrot.slane %v1070, 4
      %v1072 = vmax.f32 %v1070, %v1071
      %v1073 = vrot.slane %v1072, 2
      %v1074 = vmax.f32 %v1072, %v1073
      %v1075 = vrot.slane %v1074, 1
      %v1076 = vmax.f32 %v1074, %v1075
      %v1077 = vpack.i.bf16 %v1076, %v1076
      %v1079 = vsel %vm765, %v539, 4286644096
      %v1081 = vunpack.i.l.bf16 %v1079
      %v1082 = vunpack.i.h.bf16 %v1079
      %v1083 = vmax.f32 %v1081, %v1082
      %v1084 = vrot.slane %v1083, 4
      %v1085 = vmax.f32 %v1083, %v1084
      %v1086 = vrot.slane %v1085, 2
      %v1087 = vmax.f32 %v1085, %v1086
      %v1088 = vrot.slane %v1087, 1
      %v1089 = vmax.f32 %v1087, %v1088
      %v1090 = vpack.i.bf16 %v1089, %v1089
      %v1092 = vsel %vm765, %v546, 4286644096
      %v1094 = vunpack.i.l.bf16 %v1092
      %v1095 = vunpack.i.h.bf16 %v1092
      %v1096 = vmax.f32 %v1094, %v1095
      %v1097 = vrot.slane %v1096, 4
      %v1098 = vmax.f32 %v1096, %v1097
      %v1099 = vrot.slane %v1098, 2
      %v1100 = vmax.f32 %v1098, %v1099
      %v1101 = vrot.slane %v1100, 1
      %v1102 = vmax.f32 %v1100, %v1101
      %v1103 = vpack.i.bf16 %v1102, %v1102
      %v1105 = vsel %vm765, %v547, 4286644096
      %v1107 = vunpack.i.l.bf16 %v1105
      %v1108 = vunpack.i.h.bf16 %v1105
      %v1109 = vmax.f32 %v1107, %v1108
      %v1110 = vrot.slane %v1109, 4
      %v1111 = vmax.f32 %v1109, %v1110
      %v1112 = vrot.slane %v1111, 2
      %v1113 = vmax.f32 %v1111, %v1112
      %v1114 = vrot.slane %v1113, 1
      %v1115 = vmax.f32 %v1113, %v1114
      %v1116 = vpack.i.bf16 %v1115, %v1115
      %v1118 = vsel %vm765, %v548, 4286644096
      %v1120 = vunpack.i.l.bf16 %v1118
      %v1121 = vunpack.i.h.bf16 %v1118
      %v1122 = vmax.f32 %v1120, %v1121
      %v1123 = vrot.slane %v1122, 4
      %v1124 = vmax.f32 %v1122, %v1123
      %v1125 = vrot.slane %v1124, 2
      %v1126 = vmax.f32 %v1124, %v1125
      %v1127 = vrot.slane %v1126, 1
      %v1128 = vmax.f32 %v1126, %v1127
      %v1129 = vpack.i.bf16 %v1128, %v1128
      %v1131 = vsel %vm765, %v563, 4286644096
      %v1133 = vunpack.i.l.bf16 %v1131
      %v1134 = vunpack.i.h.bf16 %v1131
      %v1135 = vmax.f32 %v1133, %v1134
      %v1136 = vrot.slane %v1135, 4
      %v1137 = vmax.f32 %v1135, %v1136
      %v1138 = vrot.slane %v1137, 2
      %v1139 = vmax.f32 %v1137, %v1138
      %v1140 = vrot.slane %v1139, 1
      %v1141 = vmax.f32 %v1139, %v1140
      %v1142 = vpack.i.bf16 %v1141, %v1141
      %v1144 = vsel %vm765, %v570, 4286644096
      %v1146 = vunpack.i.l.bf16 %v1144
      %v1147 = vunpack.i.h.bf16 %v1144
      %v1148 = vmax.f32 %v1146, %v1147
      %v1149 = vrot.slane %v1148, 4
      %v1150 = vmax.f32 %v1148, %v1149
      %v1151 = vrot.slane %v1150, 2
      %v1152 = vmax.f32 %v1150, %v1151
      %v1153 = vrot.slane %v1152, 1
      %v1154 = vmax.f32 %v1152, %v1153
      %v1155 = vpack.i.bf16 %v1154, %v1154
      %v1157 = vsel %vm765, %v571, 4286644096
      %v1159 = vunpack.i.l.bf16 %v1157
      %v1160 = vunpack.i.h.bf16 %v1157
      %v1161 = vmax.f32 %v1159, %v1160
      %v1162 = vrot.slane %v1161, 4
      %v1163 = vmax.f32 %v1161, %v1162
      %v1164 = vrot.slane %v1163, 2
      %v1165 = vmax.f32 %v1163, %v1164
      %v1166 = vrot.slane %v1165, 1
      %v1167 = vmax.f32 %v1165, %v1166
      %v1168 = vpack.i.bf16 %v1167, %v1167
      %v1170 = vsel %vm765, %v572, 4286644096
      %v1172 = vunpack.i.l.bf16 %v1170
      %v1173 = vunpack.i.h.bf16 %v1170
      %v1174 = vmax.f32 %v1172, %v1173
      %v1175 = vrot.slane %v1174, 4
      %v1176 = vmax.f32 %v1174, %v1175
      %v1177 = vrot.slane %v1176, 2
      %v1178 = vmax.f32 %v1176, %v1177
      %v1179 = vrot.slane %v1178, 1
      %v1180 = vmax.f32 %v1178, %v1179
      %v1181 = vpack.i.bf16 %v1180, %v1180
      %v1183 = vsel %vm765, %v587, 4286644096
      %v1185 = vunpack.i.l.bf16 %v1183
      %v1186 = vunpack.i.h.bf16 %v1183
      %v1187 = vmax.f32 %v1185, %v1186
      %v1188 = vrot.slane %v1187, 4
      %v1189 = vmax.f32 %v1187, %v1188
      %v1190 = vrot.slane %v1189, 2
      %v1191 = vmax.f32 %v1189, %v1190
      %v1192 = vrot.slane %v1191, 1
      %v1193 = vmax.f32 %v1191, %v1192
      %v1194 = vpack.i.bf16 %v1193, %v1193
      %v1196 = vsel %vm765, %v594, 4286644096
      %v1198 = vunpack.i.l.bf16 %v1196
      %v1199 = vunpack.i.h.bf16 %v1196
      %v1200 = vmax.f32 %v1198, %v1199
      %v1201 = vrot.slane %v1200, 4
      %v1202 = vmax.f32 %v1200, %v1201
      %v1203 = vrot.slane %v1202, 2
      %v1204 = vmax.f32 %v1202, %v1203
      %v1205 = vrot.slane %v1204, 1
      %v1206 = vmax.f32 %v1204, %v1205
      %v1207 = vpack.i.bf16 %v1206, %v1206
      %v1209 = vsel %vm765, %v595, 4286644096
      %v1211 = vunpack.i.l.bf16 %v1209
      %v1212 = vunpack.i.h.bf16 %v1209
      %v1213 = vmax.f32 %v1211, %v1212
      %v1214 = vrot.slane %v1213, 4
      %v1215 = vmax.f32 %v1213, %v1214
      %v1216 = vrot.slane %v1215, 2
      %v1217 = vmax.f32 %v1215, %v1216
      %v1218 = vrot.slane %v1217, 1
      %v1219 = vmax.f32 %v1217, %v1218
      %v1220 = vpack.i.bf16 %v1219, %v1219
      %v1222 = vsel %vm765, %v596, 4286644096
      %v1224 = vunpack.i.l.bf16 %v1222
      %v1225 = vunpack.i.h.bf16 %v1222
      %v1226 = vmax.f32 %v1224, %v1225
      %v1227 = vrot.slane %v1226, 4
      %v1228 = vmax.f32 %v1226, %v1227
      %v1229 = vrot.slane %v1228, 2
      %v1230 = vmax.f32 %v1228, %v1229
      %v1231 = vrot.slane %v1230, 1
      %v1232 = vmax.f32 %v1230, %v1231
      %v1233 = vpack.i.bf16 %v1232, %v1232
      %v1235 = vsel %vm765, %v611, 4286644096
      %v1237 = vunpack.i.l.bf16 %v1235
      %v1238 = vunpack.i.h.bf16 %v1235
      %v1239 = vmax.f32 %v1237, %v1238
      %v1240 = vrot.slane %v1239, 4
      %v1241 = vmax.f32 %v1239, %v1240
      %v1242 = vrot.slane %v1241, 2
      %v1243 = vmax.f32 %v1241, %v1242
      %v1244 = vrot.slane %v1243, 1
      %v1245 = vmax.f32 %v1243, %v1244
      %v1246 = vpack.i.bf16 %v1245, %v1245
      %v1248 = vsel %vm765, %v618, 4286644096
      %v1250 = vunpack.i.l.bf16 %v1248
      %v1251 = vunpack.i.h.bf16 %v1248
      %v1252 = vmax.f32 %v1250, %v1251
      %v1253 = vrot.slane %v1252, 4
      %v1254 = vmax.f32 %v1252, %v1253
      %v1255 = vrot.slane %v1254, 2
      %v1256 = vmax.f32 %v1254, %v1255
      %v1257 = vrot.slane %v1256, 1
      %v1258 = vmax.f32 %v1256, %v1257
      %v1259 = vpack.i.bf16 %v1258, %v1258
      %v1261 = vsel %vm765, %v619, 4286644096
      %v1263 = vunpack.i.l.bf16 %v1261
      %v1264 = vunpack.i.h.bf16 %v1261
      %v1265 = vmax.f32 %v1263, %v1264
      %v1266 = vrot.slane %v1265, 4
      %v1267 = vmax.f32 %v1265, %v1266
      %v1268 = vrot.slane %v1267, 2
      %v1269 = vmax.f32 %v1267, %v1268
      %v1270 = vrot.slane %v1269, 1
      %v1271 = vmax.f32 %v1269, %v1270
      %v1272 = vpack.i.bf16 %v1271, %v1271
      %v1274 = vsel %vm765, %v620, 4286644096
      %v1276 = vunpack.i.l.bf16 %v1274
      %v1277 = vunpack.i.h.bf16 %v1274
      %v1278 = vmax.f32 %v1276, %v1277
      %v1279 = vrot.slane %v1278, 4
      %v1280 = vmax.f32 %v1278, %v1279
      %v1281 = vrot.slane %v1280, 2
      %v1282 = vmax.f32 %v1280, %v1281
      %v1283 = vrot.slane %v1282, 1
      %v1284 = vmax.f32 %v1282, %v1283
      %v1285 = vpack.i.bf16 %v1284, %v1284
      %v1287 = vsel %vm765, %v635, 4286644096
      %v1289 = vunpack.i.l.bf16 %v1287
      %v1290 = vunpack.i.h.bf16 %v1287
      %v1291 = vmax.f32 %v1289, %v1290
      %v1292 = vrot.slane %v1291, 4
      %v1293 = vmax.f32 %v1291, %v1292
      %v1294 = vrot.slane %v1293, 2
      %v1295 = vmax.f32 %v1293, %v1294
      %v1296 = vrot.slane %v1295, 1
      %v1297 = vmax.f32 %v1295, %v1296
      %v1298 = vpack.i.bf16 %v1297, %v1297
      %v1300 = vsel %vm765, %v642, 4286644096
      %v1302 = vunpack.i.l.bf16 %v1300
      %v1303 = vunpack.i.h.bf16 %v1300
      %v1304 = vmax.f32 %v1302, %v1303
      %v1305 = vrot.slane %v1304, 4
      %v1306 = vmax.f32 %v1304, %v1305
      %v1307 = vrot.slane %v1306, 2
      %v1308 = vmax.f32 %v1306, %v1307
      %v1309 = vrot.slane %v1308, 1
      %v1310 = vmax.f32 %v1308, %v1309
      %v1311 = vpack.i.bf16 %v1310, %v1310
      %v1313 = vsel %vm765, %v643, 4286644096
      %v1315 = vunpack.i.l.bf16 %v1313
      %v1316 = vunpack.i.h.bf16 %v1313
      %v1317 = vmax.f32 %v1315, %v1316
      %v1318 = vrot.slane %v1317, 4
      %v1319 = vmax.f32 %v1317, %v1318
      %v1320 = vrot.slane %v1319, 2
      %v1321 = vmax.f32 %v1319, %v1320
      %v1322 = vrot.slane %v1321, 1
      %v1323 = vmax.f32 %v1321, %v1322
      %v1324 = vpack.i.bf16 %v1323, %v1323
      %v1326 = vsel %vm765, %v644, 4286644096
      %v1328 = vunpack.i.l.bf16 %v1326
      %v1329 = vunpack.i.h.bf16 %v1326
      %v1330 = vmax.f32 %v1328, %v1329
      %v1331 = vrot.slane %v1330, 4
      %v1332 = vmax.f32 %v1330, %v1331
      %v1333 = vrot.slane %v1332, 2
      %v1334 = vmax.f32 %v1332, %v1333
      %v1335 = vrot.slane %v1334, 1
      %v1336 = vmax.f32 %v1334, %v1335
      %v1337 = vpack.i.bf16 %v1336, %v1336
      %v1339 = vsel %vm765, %v659, 4286644096
      %v1341 = vunpack.i.l.bf16 %v1339
      %v1342 = vunpack.i.h.bf16 %v1339
      %v1343 = vmax.f32 %v1341, %v1342
      %v1344 = vrot.slane %v1343, 4
      %v1345 = vmax.f32 %v1343, %v1344
      %v1346 = vrot.slane %v1345, 2
      %v1347 = vmax.f32 %v1345, %v1346
      %v1348 = vrot.slane %v1347, 1
      %v1349 = vmax.f32 %v1347, %v1348
      %v1350 = vpack.i.bf16 %v1349, %v1349
      %v1352 = vsel %vm765, %v666, 4286644096
      %v1354 = vunpack.i.l.bf16 %v1352
      %v1355 = vunpack.i.h.bf16 %v1352
      %v1356 = vmax.f32 %v1354, %v1355
      %v1357 = vrot.slane %v1356, 4
      %v1358 = vmax.f32 %v1356, %v1357
      %v1359 = vrot.slane %v1358, 2
      %v1360 = vmax.f32 %v1358, %v1359
      %v1361 = vrot.slane %v1360, 1
      %v1362 = vmax.f32 %v1360, %v1361
      %v1363 = vpack.i.bf16 %v1362, %v1362
      %v1365 = vsel %vm765, %v667, 4286644096
      %v1367 = vunpack.i.l.bf16 %v1365
      %v1368 = vunpack.i.h.bf16 %v1365
      %v1369 = vmax.f32 %v1367, %v1368
      %v1370 = vrot.slane %v1369, 4
      %v1371 = vmax.f32 %v1369, %v1370
      %v1372 = vrot.slane %v1371, 2
      %v1373 = vmax.f32 %v1371, %v1372
      %v1374 = vrot.slane %v1373, 1
      %v1375 = vmax.f32 %v1373, %v1374
      %v1376 = vpack.i.bf16 %v1375, %v1375
      %v1378 = vsel %vm765, %v668, 4286644096
      %v1380 = vunpack.i.l.bf16 %v1378
      %v1381 = vunpack.i.h.bf16 %v1378
      %v1382 = vmax.f32 %v1380, %v1381
      %v1383 = vrot.slane %v1382, 4
      %v1384 = vmax.f32 %v1382, %v1383
      %v1385 = vrot.slane %v1384, 2
      %v1386 = vmax.f32 %v1384, %v1385
      %v1387 = vrot.slane %v1386, 1
      %v1388 = vmax.f32 %v1386, %v1387
      %v1389 = vpack.i.bf16 %v1388, %v1388
      %v1391 = vsel %vm765, %v683, 4286644096
      %v1393 = vunpack.i.l.bf16 %v1391
      %v1394 = vunpack.i.h.bf16 %v1391
      %v1395 = vmax.f32 %v1393, %v1394
      %v1396 = vrot.slane %v1395, 4
      %v1397 = vmax.f32 %v1395, %v1396
      %v1398 = vrot.slane %v1397, 2
      %v1399 = vmax.f32 %v1397, %v1398
      %v1400 = vrot.slane %v1399, 1
      %v1401 = vmax.f32 %v1399, %v1400
      %v1402 = vpack.i.bf16 %v1401, %v1401
      %v1404 = vsel %vm765, %v690, 4286644096
      %v1406 = vunpack.i.l.bf16 %v1404
      %v1407 = vunpack.i.h.bf16 %v1404
      %v1408 = vmax.f32 %v1406, %v1407
      %v1409 = vrot.slane %v1408, 4
      %v1410 = vmax.f32 %v1408, %v1409
      %v1411 = vrot.slane %v1410, 2
      %v1412 = vmax.f32 %v1410, %v1411
      %v1413 = vrot.slane %v1412, 1
      %v1414 = vmax.f32 %v1412, %v1413
      %v1415 = vpack.i.bf16 %v1414, %v1414
      %v1417 = vsel %vm765, %v691, 4286644096
      %v1419 = vunpack.i.l.bf16 %v1417
      %v1420 = vunpack.i.h.bf16 %v1417
      %v1421 = vmax.f32 %v1419, %v1420
      %v1422 = vrot.slane %v1421, 4
      %v1423 = vmax.f32 %v1421, %v1422
      %v1424 = vrot.slane %v1423, 2
      %v1425 = vmax.f32 %v1423, %v1424
      %v1426 = vrot.slane %v1425, 1
      %v1427 = vmax.f32 %v1425, %v1426
      %v1428 = vpack.i.bf16 %v1427, %v1427
      %v1430 = vsel %vm765, %v692, 4286644096
      %v1432 = vunpack.i.l.bf16 %v1430
      %v1433 = vunpack.i.h.bf16 %v1430
      %v1434 = vmax.f32 %v1432, %v1433
      %v1435 = vrot.slane %v1434, 4
      %v1436 = vmax.f32 %v1434, %v1435
      %v1437 = vrot.slane %v1436, 2
      %v1438 = vmax.f32 %v1436, %v1437
      %v1439 = vrot.slane %v1438, 1
      %v1440 = vmax.f32 %v1438, %v1439
      %v1441 = vpack.i.bf16 %v1440, %v1440
      %v1443 = vsel %vm765, %v707, 4286644096
      %v1445 = vunpack.i.l.bf16 %v1443
      %v1446 = vunpack.i.h.bf16 %v1443
      %v1447 = vmax.f32 %v1445, %v1446
      %v1448 = vrot.slane %v1447, 4
      %v1449 = vmax.f32 %v1447, %v1448
      %v1450 = vrot.slane %v1449, 2
      %v1451 = vmax.f32 %v1449, %v1450
      %v1452 = vrot.slane %v1451, 1
      %v1453 = vmax.f32 %v1451, %v1452
      %v1454 = vpack.i.bf16 %v1453, %v1453
      %v1456 = vsel %vm765, %v714, 4286644096
      %v1458 = vunpack.i.l.bf16 %v1456
      %v1459 = vunpack.i.h.bf16 %v1456
      %v1460 = vmax.f32 %v1458, %v1459
      %v1461 = vrot.slane %v1460, 4
      %v1462 = vmax.f32 %v1460, %v1461
      %v1463 = vrot.slane %v1462, 2
      %v1464 = vmax.f32 %v1462, %v1463
      %v1465 = vrot.slane %v1464, 1
      %v1466 = vmax.f32 %v1464, %v1465
      %v1467 = vpack.i.bf16 %v1466, %v1466
      %v1469 = vsel %vm765, %v715, 4286644096
      %v1471 = vunpack.i.l.bf16 %v1469
      %v1472 = vunpack.i.h.bf16 %v1469
      %v1473 = vmax.f32 %v1471, %v1472
      %v1474 = vrot.slane %v1473, 4
      %v1475 = vmax.f32 %v1473, %v1474
      %v1476 = vrot.slane %v1475, 2
      %v1477 = vmax.f32 %v1475, %v1476
      %v1478 = vrot.slane %v1477, 1
      %v1479 = vmax.f32 %v1477, %v1478
      %v1480 = vpack.i.bf16 %v1479, %v1479
      %v1482 = vsel %vm765, %v716, 4286644096
      %v1484 = vunpack.i.l.bf16 %v1482
      %v1485 = vunpack.i.h.bf16 %v1482
      %v1486 = vmax.f32 %v1484, %v1485
      %v1487 = vrot.slane %v1486, 4
      %v1488 = vmax.f32 %v1486, %v1487
      %v1489 = vrot.slane %v1488, 2
      %v1490 = vmax.f32 %v1488, %v1489
      %v1491 = vrot.slane %v1490, 1
      %v1492 = vmax.f32 %v1490, %v1491
      %v1493 = vpack.i.bf16 %v1492, %v1492
      %v1495 = vsel %vm765, %v731, 4286644096
      %v1497 = vunpack.i.l.bf16 %v1495
      %v1498 = vunpack.i.h.bf16 %v1495
      %v1499 = vmax.f32 %v1497, %v1498
      %v1500 = vrot.slane %v1499, 4
      %v1501 = vmax.f32 %v1499, %v1500
      %v1502 = vrot.slane %v1501, 2
      %v1503 = vmax.f32 %v1501, %v1502
      %v1504 = vrot.slane %v1503, 1
      %v1505 = vmax.f32 %v1503, %v1504
      %v1506 = vpack.i.bf16 %v1505, %v1505
      %v1508 = vsel %vm765, %v738, 4286644096
      %v1510 = vunpack.i.l.bf16 %v1508
      %v1511 = vunpack.i.h.bf16 %v1508
      %v1512 = vmax.f32 %v1510, %v1511
      %v1513 = vrot.slane %v1512, 4
      %v1514 = vmax.f32 %v1512, %v1513
      %v1515 = vrot.slane %v1514, 2
      %v1516 = vmax.f32 %v1514, %v1515
      %v1517 = vrot.slane %v1516, 1
      %v1518 = vmax.f32 %v1516, %v1517
      %v1519 = vpack.i.bf16 %v1518, %v1518
      %v1521 = vsel %vm765, %v739, 4286644096
      %v1523 = vunpack.i.l.bf16 %v1521
      %v1524 = vunpack.i.h.bf16 %v1521
      %v1525 = vmax.f32 %v1523, %v1524
      %v1526 = vrot.slane %v1525, 4
      %v1527 = vmax.f32 %v1525, %v1526
      %v1528 = vrot.slane %v1527, 2
      %v1529 = vmax.f32 %v1527, %v1528
      %v1530 = vrot.slane %v1529, 1
      %v1531 = vmax.f32 %v1529, %v1530
      %v1532 = vpack.i.bf16 %v1531, %v1531
      %v1534 = vsel %vm765, %v740, 4286644096
      %v1536 = vunpack.i.l.bf16 %v1534
      %v1537 = vunpack.i.h.bf16 %v1534
      %v1538 = vmax.f32 %v1536, %v1537
      %v1539 = vrot.slane %v1538, 4
      %v1540 = vmax.f32 %v1538, %v1539
      %v1541 = vrot.slane %v1540, 2
      %v1542 = vmax.f32 %v1540, %v1541
      %v1543 = vrot.slane %v1542, 1
      %v1544 = vmax.f32 %v1542, %v1543
      %v1545 = vpack.i.bf16 %v1544, %v1544
      %v1547 = vsel %vm765, %v755, 4286644096
      %v1549 = vunpack.i.l.bf16 %v1547
      %v1550 = vunpack.i.h.bf16 %v1547
      %v1551 = vmax.f32 %v1549, %v1550
      %v1552 = vrot.slane %v1551, 4
      %v1553 = vmax.f32 %v1551, %v1552
      %v1554 = vrot.slane %v1553, 2
      %v1555 = vmax.f32 %v1553, %v1554
      %v1556 = vrot.slane %v1555, 1
      %v1557 = vmax.f32 %v1555, %v1556
      %v1558 = vpack.i.bf16 %v1557, %v1557
      %v1560 = vsel %vm765, %v762, 4286644096
      %v1562 = vunpack.i.l.bf16 %v1560
      %v1563 = vunpack.i.h.bf16 %v1560
      %v1564 = vmax.f32 %v1562, %v1563
      %v1565 = vrot.slane %v1564, 4
      %v1566 = vmax.f32 %v1564, %v1565
      %v1567 = vrot.slane %v1566, 2
      %v1568 = vmax.f32 %v1566, %v1567
      %v1569 = vrot.slane %v1568, 1
      %v1570 = vmax.f32 %v1568, %v1569
      %v1571 = vpack.i.bf16 %v1570, %v1570
      %v1573 = vsel %vm765, %v763, 4286644096
      %v1575 = vunpack.i.l.bf16 %v1573
      %v1576 = vunpack.i.h.bf16 %v1573
      %v1577 = vmax.f32 %v1575, %v1576
      %v1578 = vrot.slane %v1577, 4
      %v1579 = vmax.f32 %v1577, %v1578
      %v1580 = vrot.slane %v1579, 2
      %v1581 = vmax.f32 %v1579, %v1580
      %v1582 = vrot.slane %v1581, 1
      %v1583 = vmax.f32 %v1581, %v1582
      %v1584 = vpack.i.bf16 %v1583, %v1583
      %v1586 = vsel %vm765, %v764, 4286644096
      %v1588 = vunpack.i.l.bf16 %v1586
      %v1589 = vunpack.i.h.bf16 %v1586
      %v1590 = vmax.f32 %v1588, %v1589
      %v1591 = vrot.slane %v1590, 4
      %v1592 = vmax.f32 %v1590, %v1591
      %v1593 = vrot.slane %v1592, 2
      %v1594 = vmax.f32 %v1592, %v1593
      %v1595 = vrot.slane %v1594, 1
      %v1596 = vmax.f32 %v1594, %v1595
      %v1597 = vpack.i.bf16 %v1596, %v1596
      %v1607 = vunpack.c.l.s4 1966171168
      %v1608 = vunpack.c.0.s8 %v1607
      %v1609 = vlaneseq
      %v1610 = vshrl.u32 %v1609, 7
      %v1611 = vsub.s32 %v1608, %v1610
      %v1612 = vrot.slane %v343, %v1611
      %v1614 = vunpack.c.l.s4 1966171168
      %v1615 = vunpack.c.0.s8 %v1614
      %v1616 = vlaneseq
      %v1617 = vshrl.u32 %v1616, 7
      %v1618 = vsub.s32 %v1615, %v1617
      %v1619 = vrot.slane %v1612, %v1618
      %v1621 = vunpack.c.l.s4 1966171168
      %v1622 = vunpack.c.0.s8 %v1621
      %v1623 = vlaneseq
      %v1624 = vshrl.u32 %v1623, 7
      %v1625 = vsub.s32 %v1622, %v1624
      %v1626 = vrot.slane %v346, %v1625
      %v1628 = vunpack.c.l.s4 1966171168
      %v1629 = vunpack.c.0.s8 %v1628
      %v1630 = vlaneseq
      %v1631 = vshrl.u32 %v1630, 7
      %v1632 = vsub.s32 %v1629, %v1631
      %v1633 = vrot.slane %v1626, %v1632
      %v1635 = vunpack.c.l.s4 1966171168
      %v1636 = vunpack.c.0.s8 %v1635
      %v1637 = vlaneseq
      %v1638 = vshrl.u32 %v1637, 7
      %v1639 = vsub.s32 %v1636, %v1638
      %v1640 = vrot.slane %v349, %v1639
      %v1642 = vunpack.c.l.s4 1966171168
      %v1643 = vunpack.c.0.s8 %v1642
      %v1644 = vlaneseq
      %v1645 = vshrl.u32 %v1644, 7
      %v1646 = vsub.s32 %v1643, %v1645
      %v1647 = vrot.slane %v1640, %v1646
      %v1649 = vunpack.c.l.s4 1966171168
      %v1650 = vunpack.c.0.s8 %v1649
      %v1651 = vlaneseq
      %v1652 = vshrl.u32 %v1651, 7
      %v1653 = vsub.s32 %v1650, %v1652
      %v1654 = vrot.slane %v352, %v1653
      %v1656 = vunpack.c.l.s4 1966171168
      %v1657 = vunpack.c.0.s8 %v1656
      %v1658 = vlaneseq
      %v1659 = vshrl.u32 %v1658, 7
      %v1660 = vsub.s32 %v1657, %v1659
      %v1661 = vrot.slane %v1654, %v1660
      %v1663 = vunpack.c.l.s4 1966171168
      %v1664 = vunpack.c.0.s8 %v1663
      %v1665 = vlaneseq
      %v1666 = vshrl.u32 %v1665, 7
      %v1667 = vsub.s32 %v1664, %v1666
      %v1668 = vrot.slane %v355, %v1667
      %v1670 = vunpack.c.l.s4 1966171168
      %v1671 = vunpack.c.0.s8 %v1670
      %v1672 = vlaneseq
      %v1673 = vshrl.u32 %v1672, 7
      %v1674 = vsub.s32 %v1671, %v1673
      %v1675 = vrot.slane %v1668, %v1674
      %v1677 = vunpack.c.l.s4 1966171168
      %v1678 = vunpack.c.0.s8 %v1677
      %v1679 = vlaneseq
      %v1680 = vshrl.u32 %v1679, 7
      %v1681 = vsub.s32 %v1678, %v1680
      %v1682 = vrot.slane %v358, %v1681
      %v1684 = vunpack.c.l.s4 1966171168
      %v1685 = vunpack.c.0.s8 %v1684
      %v1686 = vlaneseq
      %v1687 = vshrl.u32 %v1686, 7
      %v1688 = vsub.s32 %v1685, %v1687
      %v1689 = vrot.slane %v1682, %v1688
      %v1691 = vunpack.c.l.s4 1966171168
      %v1692 = vunpack.c.0.s8 %v1691
      %v1693 = vlaneseq
      %v1694 = vshrl.u32 %v1693, 7
      %v1695 = vsub.s32 %v1692, %v1694
      %v1696 = vrot.slane %v361, %v1695
      %v1698 = vunpack.c.l.s4 1966171168
      %v1699 = vunpack.c.0.s8 %v1698
      %v1700 = vlaneseq
      %v1701 = vshrl.u32 %v1700, 7
      %v1702 = vsub.s32 %v1699, %v1701
      %v1703 = vrot.slane %v1696, %v1702
      %v1705 = vunpack.c.l.s4 1966171168
      %v1706 = vunpack.c.0.s8 %v1705
      %v1707 = vlaneseq
      %v1708 = vshrl.u32 %v1707, 7
      %v1709 = vsub.s32 %v1706, %v1708
      %v1710 = vrot.slane %v364, %v1709
      %v1712 = vunpack.c.l.s4 1966171168
      %v1713 = vunpack.c.0.s8 %v1712
      %v1714 = vlaneseq
      %v1715 = vshrl.u32 %v1714, 7
      %v1716 = vsub.s32 %v1713, %v1715
      %v1717 = vrot.slane %v1710, %v1716
      %vm1718 = vsmask.f32 1284
      %vm1719 = vmor %vm186, %vm1718
      %vm1720 = vsmask.f32 2312
      %vm1721 = vmor %vm1719, %vm1720
      %vm1722 = vsmask.f32 3340
      %vm1723 = vmor %vm1721, %vm1722
      %vm1724 = vsmask.f32 4368
      %vm1725 = vmor %vm1723, %vm1724
      %vm1726 = vsmask.f32 5396
      %vm1727 = vmor %vm1725, %vm1726
      %vm1728 = vsmask.f32 6424
      %vm1729 = vmor %vm1727, %vm1728
      %vm1730 = vsmask.f32 7452
      %vm1731 = vmor %vm1729, %vm1730
      %v1732 = vshrl.u32 %v395, 16
      %v1734 = vrot.slane %v1732, 7
      %v1735 = vrot.slane %v1734, 1
      %v1736 = vshll.u32 %v402, 16
      %v1738 = vsel %vm1731, %v1735, %v1736
      %v1739 = vshrl.u32 %v402, 16
      %v1741 = vrot.slane %v1739, 7
      %v1742 = vrot.slane %v1741, 1
      %v1743 = vshll.u32 %v403, 16
      %v1745 = vsel %vm1731, %v1742, %v1743
      %v1746 = vshrl.u32 %v403, 16
      %v1748 = vrot.slane %v1746, 7
      %v1749 = vrot.slane %v1748, 1
      %v1750 = vshll.u32 %v404, 16
      %v1752 = vsel %vm1731, %v1749, %v1750
      %v1753 = vshrl.u32 %v404, 16
      %v1755 = vrot.slane %v1753, 7
      %v1756 = vrot.slane %v1755, 1
      %v1757 = vshll.u32 %v419, 16
      %v1759 = vsel %vm1731, %v1756, %v1757
      %v1760 = vshrl.u32 %v419, 16
      %v1762 = vrot.slane %v1760, 7
      %v1763 = vrot.slane %v1762, 1
      %v1764 = vshll.u32 %v426, 16
      %v1766 = vsel %vm1731, %v1763, %v1764
      %v1767 = vshrl.u32 %v426, 16
      %v1769 = vrot.slane %v1767, 7
      %v1770 = vrot.slane %v1769, 1
      %v1771 = vshll.u32 %v427, 16
      %v1773 = vsel %vm1731, %v1770, %v1771
      %v1774 = vshrl.u32 %v427, 16
      %v1776 = vrot.slane %v1774, 7
      %v1777 = vrot.slane %v1776, 1
      %v1778 = vshll.u32 %v428, 16
      %v1780 = vsel %vm1731, %v1777, %v1778
      %v1781 = vshrl.u32 %v428, 16
      %v1783 = vrot.slane %v1781, 7
      %v1784 = vrot.slane %v1783, 1
      %v1786 = vshll.u32 %v1619, 16
      %v1788 = vsel %vm1731, %v1784, %v1786
      %v1789 = vshrl.u32 %v443, 16
      %v1791 = vrot.slane %v1789, 7
      %v1792 = vrot.slane %v1791, 1
      %v1793 = vshll.u32 %v450, 16
      %v1795 = vsel %vm1731, %v1792, %v1793
      %v1796 = vshrl.u32 %v450, 16
      %v1798 = vrot.slane %v1796, 7
      %v1799 = vrot.slane %v1798, 1
      %v1800 = vshll.u32 %v451, 16
      %v1802 = vsel %vm1731, %v1799, %v1800
      %v1803 = vshrl.u32 %v451, 16
      %v1805 = vrot.slane %v1803, 7
      %v1806 = vrot.slane %v1805, 1
      %v1807 = vshll.u32 %v452, 16
      %v1809 = vsel %vm1731, %v1806, %v1807
      %v1810 = vshrl.u32 %v452, 16
      %v1812 = vrot.slane %v1810, 7
      %v1813 = vrot.slane %v1812, 1
      %v1814 = vshll.u32 %v467, 16
      %v1816 = vsel %vm1731, %v1813, %v1814
      %v1817 = vshrl.u32 %v467, 16
      %v1819 = vrot.slane %v1817, 7
      %v1820 = vrot.slane %v1819, 1
      %v1821 = vshll.u32 %v474, 16
      %v1823 = vsel %vm1731, %v1820, %v1821
      %v1824 = vshrl.u32 %v474, 16
      %v1826 = vrot.slane %v1824, 7
      %v1827 = vrot.slane %v1826, 1
      %v1828 = vshll.u32 %v475, 16
      %v1830 = vsel %vm1731, %v1827, %v1828
      %v1831 = vshrl.u32 %v475, 16
      %v1833 = vrot.slane %v1831, 7
      %v1834 = vrot.slane %v1833, 1
      %v1835 = vshll.u32 %v476, 16
      %v1837 = vsel %vm1731, %v1834, %v1835
      %v1838 = vshrl.u32 %v476, 16
      %v1840 = vrot.slane %v1838, 7
      %v1841 = vrot.slane %v1840, 1
      %v1843 = vshll.u32 %v1633, 16
      %v1845 = vsel %vm1731, %v1841, %v1843
      %v1846 = vshrl.u32 %v491, 16
      %v1848 = vrot.slane %v1846, 7
      %v1849 = vrot.slane %v1848, 1
      %v1850 = vshll.u32 %v498, 16
      %v1852 = vsel %vm1731, %v1849, %v1850
      %v1853 = vshrl.u32 %v498, 16
      %v1855 = vrot.slane %v1853, 7
      %v1856 = vrot.slane %v1855, 1
      %v1857 = vshll.u32 %v499, 16
      %v1859 = vsel %vm1731, %v1856, %v1857
      %v1860 = vshrl.u32 %v499, 16
      %v1862 = vrot.slane %v1860, 7
      %v1863 = vrot.slane %v1862, 1
      %v1864 = vshll.u32 %v500, 16
      %v1866 = vsel %vm1731, %v1863, %v1864
      %v1867 = vshrl.u32 %v500, 16
      %v1869 = vrot.slane %v1867, 7
      %v1870 = vrot.slane %v1869, 1
      %v1871 = vshll.u32 %v515, 16
      %v1873 = vsel %vm1731, %v1870, %v1871
      %v1874 = vshrl.u32 %v515, 16
      %v1876 = vrot.slane %v1874, 7
      %v1877 = vrot.slane %v1876, 1
      %v1878 = vshll.u32 %v522, 16
      %v1880 = vsel %vm1731, %v1877, %v1878
      %v1881 = vshrl.u32 %v522, 16
      %v1883 = vrot.slane %v1881, 7
      %v1884 = vrot.slane %v1883, 1
      %v1885 = vshll.u32 %v523, 16
      %v1887 = vsel %vm1731, %v1884, %v1885
      %v1888 = vshrl.u32 %v523, 16
      %v1890 = vrot.slane %v1888, 7
      %v1891 = vrot.slane %v1890, 1
      %v1892 = vshll.u32 %v524, 16
      %v1894 = vsel %vm1731, %v1891, %v1892
      %v1895 = vshrl.u32 %v524, 16
      %v1897 = vrot.slane %v1895, 7
      %v1898 = vrot.slane %v1897, 1
      %v1900 = vshll.u32 %v1647, 16
      %v1902 = vsel %vm1731, %v1898, %v1900
      %v1903 = vshrl.u32 %v539, 16
      %v1905 = vrot.slane %v1903, 7
      %v1906 = vrot.slane %v1905, 1
      %v1907 = vshll.u32 %v546, 16
      %v1909 = vsel %vm1731, %v1906, %v1907
      %v1910 = vshrl.u32 %v546, 16
      %v1912 = vrot.slane %v1910, 7
      %v1913 = vrot.slane %v1912, 1
      %v1914 = vshll.u32 %v547, 16
      %v1916 = vsel %vm1731, %v1913, %v1914
      %v1917 = vshrl.u32 %v547, 16
      %v1919 = vrot.slane %v1917, 7
      %v1920 = vrot.slane %v1919, 1
      %v1921 = vshll.u32 %v548, 16
      %v1923 = vsel %vm1731, %v1920, %v1921
      %v1924 = vshrl.u32 %v548, 16
      %v1926 = vrot.slane %v1924, 7
      %v1927 = vrot.slane %v1926, 1
      %v1928 = vshll.u32 %v563, 16
      %v1930 = vsel %vm1731, %v1927, %v1928
      %v1931 = vshrl.u32 %v563, 16
      %v1933 = vrot.slane %v1931, 7
      %v1934 = vrot.slane %v1933, 1
      %v1935 = vshll.u32 %v570, 16
      %v1937 = vsel %vm1731, %v1934, %v1935
      %v1938 = vshrl.u32 %v570, 16
      %v1940 = vrot.slane %v1938, 7
      %v1941 = vrot.slane %v1940, 1
      %v1942 = vshll.u32 %v571, 16
      %v1944 = vsel %vm1731, %v1941, %v1942
      %v1945 = vshrl.u32 %v571, 16
      %v1947 = vrot.slane %v1945, 7
      %v1948 = vrot.slane %v1947, 1
      %v1949 = vshll.u32 %v572, 16
      %v1951 = vsel %vm1731, %v1948, %v1949
      %v1952 = vshrl.u32 %v572, 16
      %v1954 = vrot.slane %v1952, 7
      %v1955 = vrot.slane %v1954, 1
      %v1957 = vshll.u32 %v1661, 16
      %v1959 = vsel %vm1731, %v1955, %v1957
      %v1960 = vshrl.u32 %v587, 16
      %v1962 = vrot.slane %v1960, 7
      %v1963 = vrot.slane %v1962, 1
      %v1964 = vshll.u32 %v594, 16
      %v1966 = vsel %vm1731, %v1963, %v1964
      %v1967 = vshrl.u32 %v594, 16
      %v1969 = vrot.slane %v1967, 7
      %v1970 = vrot.slane %v1969, 1
      %v1971 = vshll.u32 %v595, 16
      %v1973 = vsel %vm1731, %v1970, %v1971
      %v1974 = vshrl.u32 %v595, 16
      %v1976 = vrot.slane %v1974, 7
      %v1977 = vrot.slane %v1976, 1
      %v1978 = vshll.u32 %v596, 16
      %v1980 = vsel %vm1731, %v1977, %v1978
      %v1981 = vshrl.u32 %v596, 16
      %v1983 = vrot.slane %v1981, 7
      %v1984 = vrot.slane %v1983, 1
      %v1985 = vshll.u32 %v611, 16
      %v1987 = vsel %vm1731, %v1984, %v1985
      %v1988 = vshrl.u32 %v611, 16
      %v1990 = vrot.slane %v1988, 7
      %v1991 = vrot.slane %v1990, 1
      %v1992 = vshll.u32 %v618, 16
      %v1994 = vsel %vm1731, %v1991, %v1992
      %v1995 = vshrl.u32 %v618, 16
      %v1997 = vrot.slane %v1995, 7
      %v1998 = vrot.slane %v1997, 1
      %v1999 = vshll.u32 %v619, 16
      %v2001 = vsel %vm1731, %v1998, %v1999
      %v2002 = vshrl.u32 %v619, 16
      %v2004 = vrot.slane %v2002, 7
      %v2005 = vrot.slane %v2004, 1
      %v2006 = vshll.u32 %v620, 16
      %v2008 = vsel %vm1731, %v2005, %v2006
      %v2009 = vshrl.u32 %v620, 16
      %v2011 = vrot.slane %v2009, 7
      %v2012 = vrot.slane %v2011, 1
      %v2014 = vshll.u32 %v1675, 16
      %v2016 = vsel %vm1731, %v2012, %v2014
      %v2017 = vshrl.u32 %v635, 16
      %v2019 = vrot.slane %v2017, 7
      %v2020 = vrot.slane %v2019, 1
      %v2021 = vshll.u32 %v642, 16
      %v2023 = vsel %vm1731, %v2020, %v2021
      %v2024 = vshrl.u32 %v642, 16
      %v2026 = vrot.slane %v2024, 7
      %v2027 = vrot.slane %v2026, 1
      %v2028 = vshll.u32 %v643, 16
      %v2030 = vsel %vm1731, %v2027, %v2028
      %v2031 = vshrl.u32 %v643, 16
      %v2033 = vrot.slane %v2031, 7
      %v2034 = vrot.slane %v2033, 1
      %v2035 = vshll.u32 %v644, 16
      %v2037 = vsel %vm1731, %v2034, %v2035
      %v2038 = vshrl.u32 %v644, 16
      %v2040 = vrot.slane %v2038, 7
      %v2041 = vrot.slane %v2040, 1
      %v2042 = vshll.u32 %v659, 16
      %v2044 = vsel %vm1731, %v2041, %v2042
      %v2045 = vshrl.u32 %v659, 16
      %v2047 = vrot.slane %v2045, 7
      %v2048 = vrot.slane %v2047, 1
      %v2049 = vshll.u32 %v666, 16
      %v2051 = vsel %vm1731, %v2048, %v2049
      %v2052 = vshrl.u32 %v666, 16
      %v2054 = vrot.slane %v2052, 7
      %v2055 = vrot.slane %v2054, 1
      %v2056 = vshll.u32 %v667, 16
      %v2058 = vsel %vm1731, %v2055, %v2056
      %v2059 = vshrl.u32 %v667, 16
      %v2061 = vrot.slane %v2059, 7
      %v2062 = vrot.slane %v2061, 1
      %v2063 = vshll.u32 %v668, 16
      %v2065 = vsel %vm1731, %v2062, %v2063
      %v2066 = vshrl.u32 %v668, 16
      %v2068 = vrot.slane %v2066, 7
      %v2069 = vrot.slane %v2068, 1
      %v2071 = vshll.u32 %v1689, 16
      %v2073 = vsel %vm1731, %v2069, %v2071
      %v2074 = vshrl.u32 %v683, 16
      %v2076 = vrot.slane %v2074, 7
      %v2077 = vrot.slane %v2076, 1
      %v2078 = vshll.u32 %v690, 16
      %v2080 = vsel %vm1731, %v2077, %v2078
      %v2081 = vshrl.u32 %v690, 16
      %v2083 = vrot.slane %v2081, 7
      %v2084 = vrot.slane %v2083, 1
      %v2085 = vshll.u32 %v691, 16
      %v2087 = vsel %vm1731, %v2084, %v2085
      %v2088 = vshrl.u32 %v691, 16
      %v2090 = vrot.slane %v2088, 7
      %v2091 = vrot.slane %v2090, 1
      %v2092 = vshll.u32 %v692, 16
      %v2094 = vsel %vm1731, %v2091, %v2092
      %v2095 = vshrl.u32 %v692, 16
      %v2097 = vrot.slane %v2095, 7
      %v2098 = vrot.slane %v2097, 1
      %v2099 = vshll.u32 %v707, 16
      %v2101 = vsel %vm1731, %v2098, %v2099
      %v2102 = vshrl.u32 %v707, 16
      %v2104 = vrot.slane %v2102, 7
      %v2105 = vrot.slane %v2104, 1
      %v2106 = vshll.u32 %v714, 16
      %v2108 = vsel %vm1731, %v2105, %v2106
      %v2109 = vshrl.u32 %v714, 16
      %v2111 = vrot.slane %v2109, 7
      %v2112 = vrot.slane %v2111, 1
      %v2113 = vshll.u32 %v715, 16
      %v2115 = vsel %vm1731, %v2112, %v2113
      %v2116 = vshrl.u32 %v715, 16
      %v2118 = vrot.slane %v2116, 7
      %v2119 = vrot.slane %v2118, 1
      %v2120 = vshll.u32 %v716, 16
      %v2122 = vsel %vm1731, %v2119, %v2120
      %v2123 = vshrl.u32 %v716, 16
      %v2125 = vrot.slane %v2123, 7
      %v2126 = vrot.slane %v2125, 1
      %v2128 = vshll.u32 %v1703, 16
      %v2130 = vsel %vm1731, %v2126, %v2128
      %v2131 = vshrl.u32 %v731, 16
      %v2133 = vrot.slane %v2131, 7
      %v2134 = vrot.slane %v2133, 1
      %v2135 = vshll.u32 %v738, 16
      %v2137 = vsel %vm1731, %v2134, %v2135
      %v2138 = vshrl.u32 %v738, 16
      %v2140 = vrot.slane %v2138, 7
      %v2141 = vrot.slane %v2140, 1
      %v2142 = vshll.u32 %v739, 16
      %v2144 = vsel %vm1731, %v2141, %v2142
      %v2145 = vshrl.u32 %v739, 16
      %v2147 = vrot.slane %v2145, 7
      %v2148 = vrot.slane %v2147, 1
      %v2149 = vshll.u32 %v740, 16
      %v2151 = vsel %vm1731, %v2148, %v2149
      %v2152 = vshrl.u32 %v740, 16
      %v2154 = vrot.slane %v2152, 7
      %v2155 = vrot.slane %v2154, 1
      %v2156 = vshll.u32 %v755, 16
      %v2158 = vsel %vm1731, %v2155, %v2156
      %v2159 = vshrl.u32 %v755, 16
      %v2161 = vrot.slane %v2159, 7
      %v2162 = vrot.slane %v2161, 1
      %v2163 = vshll.u32 %v762, 16
      %v2165 = vsel %vm1731, %v2162, %v2163
      %v2166 = vshrl.u32 %v762, 16
      %v2168 = vrot.slane %v2166, 7
      %v2169 = vrot.slane %v2168, 1
      %v2170 = vshll.u32 %v763, 16
      %v2172 = vsel %vm1731, %v2169, %v2170
      %v2173 = vshrl.u32 %v763, 16
      %v2175 = vrot.slane %v2173, 7
      %v2176 = vrot.slane %v2175, 1
      %v2177 = vshll.u32 %v764, 16
      %v2179 = vsel %vm1731, %v2176, %v2177
      %v2180 = vshrl.u32 %v764, 16
      %v2182 = vrot.slane %v2180, 7
      %v2183 = vrot.slane %v2182, 1
      %v2185 = vshll.u32 %v1717, 16
      %v2187 = vsel %vm1731, %v2183, %v2185
      %v2189 = vsel %vm765, %v1738, 4286644096
      %v2191 = vunpack.i.l.bf16 %v2189
      %v2192 = vunpack.i.h.bf16 %v2189
      %v2193 = vmax.f32 %v2191, %v2192
      %v2194 = vrot.slane %v2193, 4
      %v2195 = vmax.f32 %v2193, %v2194
      %v2196 = vrot.slane %v2195, 2
      %v2197 = vmax.f32 %v2195, %v2196
      %v2198 = vrot.slane %v2197, 1
      %v2199 = vmax.f32 %v2197, %v2198
      %v2200 = vpack.i.bf16 %v2199, %v2199
      %v2202 = vsel %vm765, %v1745, 4286644096
      %v2204 = vunpack.i.l.bf16 %v2202
      %v2205 = vunpack.i.h.bf16 %v2202
      %v2206 = vmax.f32 %v2204, %v2205
      %v2207 = vrot.slane %v2206, 4
      %v2208 = vmax.f32 %v2206, %v2207
      %v2209 = vrot.slane %v2208, 2
      %v2210 = vmax.f32 %v2208, %v2209
      %v2211 = vrot.slane %v2210, 1
      %v2212 = vmax.f32 %v2210, %v2211
      %v2213 = vpack.i.bf16 %v2212, %v2212
      %v2215 = vsel %vm765, %v1752, 4286644096
      %v2217 = vunpack.i.l.bf16 %v2215
      %v2218 = vunpack.i.h.bf16 %v2215
      %v2219 = vmax.f32 %v2217, %v2218
      %v2220 = vrot.slane %v2219, 4
      %v2221 = vmax.f32 %v2219, %v2220
      %v2222 = vrot.slane %v2221, 2
      %v2223 = vmax.f32 %v2221, %v2222
      %v2224 = vrot.slane %v2223, 1
      %v2225 = vmax.f32 %v2223, %v2224
      %v2226 = vpack.i.bf16 %v2225, %v2225
      %v2228 = vsel %vm765, %v1759, 4286644096
      %v2230 = vunpack.i.l.bf16 %v2228
      %v2231 = vunpack.i.h.bf16 %v2228
      %v2232 = vmax.f32 %v2230, %v2231
      %v2233 = vrot.slane %v2232, 4
      %v2234 = vmax.f32 %v2232, %v2233
      %v2235 = vrot.slane %v2234, 2
      %v2236 = vmax.f32 %v2234, %v2235
      %v2237 = vrot.slane %v2236, 1
      %v2238 = vmax.f32 %v2236, %v2237
      %v2239 = vpack.i.bf16 %v2238, %v2238
      %v2241 = vsel %vm765, %v1766, 4286644096
      %v2243 = vunpack.i.l.bf16 %v2241
      %v2244 = vunpack.i.h.bf16 %v2241
      %v2245 = vmax.f32 %v2243, %v2244
      %v2246 = vrot.slane %v2245, 4
      %v2247 = vmax.f32 %v2245, %v2246
      %v2248 = vrot.slane %v2247, 2
      %v2249 = vmax.f32 %v2247, %v2248
      %v2250 = vrot.slane %v2249, 1
      %v2251 = vmax.f32 %v2249, %v2250
      %v2252 = vpack.i.bf16 %v2251, %v2251
      %v2254 = vsel %vm765, %v1773, 4286644096
      %v2256 = vunpack.i.l.bf16 %v2254
      %v2257 = vunpack.i.h.bf16 %v2254
      %v2258 = vmax.f32 %v2256, %v2257
      %v2259 = vrot.slane %v2258, 4
      %v2260 = vmax.f32 %v2258, %v2259
      %v2261 = vrot.slane %v2260, 2
      %v2262 = vmax.f32 %v2260, %v2261
      %v2263 = vrot.slane %v2262, 1
      %v2264 = vmax.f32 %v2262, %v2263
      %v2265 = vpack.i.bf16 %v2264, %v2264
      %v2267 = vsel %vm765, %v1780, 4286644096
      %v2269 = vunpack.i.l.bf16 %v2267
      %v2270 = vunpack.i.h.bf16 %v2267
      %v2271 = vmax.f32 %v2269, %v2270
      %v2272 = vrot.slane %v2271, 4
      %v2273 = vmax.f32 %v2271, %v2272
      %v2274 = vrot.slane %v2273, 2
      %v2275 = vmax.f32 %v2273, %v2274
      %v2276 = vrot.slane %v2275, 1
      %v2277 = vmax.f32 %v2275, %v2276
      %v2278 = vpack.i.bf16 %v2277, %v2277
      %v2280 = vsel %vm765, %v1788, 4286644096
      %v2282 = vunpack.i.l.bf16 %v2280
      %v2283 = vunpack.i.h.bf16 %v2280
      %v2284 = vmax.f32 %v2282, %v2283
      %v2285 = vrot.slane %v2284, 4
      %v2286 = vmax.f32 %v2284, %v2285
      %v2287 = vrot.slane %v2286, 2
      %v2288 = vmax.f32 %v2286, %v2287
      %v2289 = vrot.slane %v2288, 1
      %v2290 = vmax.f32 %v2288, %v2289
      %v2291 = vpack.i.bf16 %v2290, %v2290
      %v2293 = vsel %vm765, %v1795, 4286644096
      %v2295 = vunpack.i.l.bf16 %v2293
      %v2296 = vunpack.i.h.bf16 %v2293
      %v2297 = vmax.f32 %v2295, %v2296
      %v2298 = vrot.slane %v2297, 4
      %v2299 = vmax.f32 %v2297, %v2298
      %v2300 = vrot.slane %v2299, 2
      %v2301 = vmax.f32 %v2299, %v2300
      %v2302 = vrot.slane %v2301, 1
      %v2303 = vmax.f32 %v2301, %v2302
      %v2304 = vpack.i.bf16 %v2303, %v2303
      %v2306 = vsel %vm765, %v1802, 4286644096
      %v2308 = vunpack.i.l.bf16 %v2306
      %v2309 = vunpack.i.h.bf16 %v2306
      %v2310 = vmax.f32 %v2308, %v2309
      %v2311 = vrot.slane %v2310, 4
      %v2312 = vmax.f32 %v2310, %v2311
      %v2313 = vrot.slane %v2312, 2
      %v2314 = vmax.f32 %v2312, %v2313
      %v2315 = vrot.slane %v2314, 1
      %v2316 = vmax.f32 %v2314, %v2315
      %v2317 = vpack.i.bf16 %v2316, %v2316
      %v2319 = vsel %vm765, %v1809, 4286644096
      %v2321 = vunpack.i.l.bf16 %v2319
      %v2322 = vunpack.i.h.bf16 %v2319
      %v2323 = vmax.f32 %v2321, %v2322
      %v2324 = vrot.slane %v2323, 4
      %v2325 = vmax.f32 %v2323, %v2324
      %v2326 = vrot.slane %v2325, 2
      %v2327 = vmax.f32 %v2325, %v2326
      %v2328 = vrot.slane %v2327, 1
      %v2329 = vmax.f32 %v2327, %v2328
      %v2330 = vpack.i.bf16 %v2329, %v2329
      %v2332 = vsel %vm765, %v1816, 4286644096
      %v2334 = vunpack.i.l.bf16 %v2332
      %v2335 = vunpack.i.h.bf16 %v2332
      %v2336 = vmax.f32 %v2334, %v2335
      %v2337 = vrot.slane %v2336, 4
      %v2338 = vmax.f32 %v2336, %v2337
      %v2339 = vrot.slane %v2338, 2
      %v2340 = vmax.f32 %v2338, %v2339
      %v2341 = vrot.slane %v2340, 1
      %v2342 = vmax.f32 %v2340, %v2341
      %v2343 = vpack.i.bf16 %v2342, %v2342
      %v2345 = vsel %vm765, %v1823, 4286644096
      %v2347 = vunpack.i.l.bf16 %v2345
      %v2348 = vunpack.i.h.bf16 %v2345
      %v2349 = vmax.f32 %v2347, %v2348
      %v2350 = vrot.slane %v2349, 4
      %v2351 = vmax.f32 %v2349, %v2350
      %v2352 = vrot.slane %v2351, 2
      %v2353 = vmax.f32 %v2351, %v2352
      %v2354 = vrot.slane %v2353, 1
      %v2355 = vmax.f32 %v2353, %v2354
      %v2356 = vpack.i.bf16 %v2355, %v2355
      %v2358 = vsel %vm765, %v1830, 4286644096
      %v2360 = vunpack.i.l.bf16 %v2358
      %v2361 = vunpack.i.h.bf16 %v2358
      %v2362 = vmax.f32 %v2360, %v2361
      %v2363 = vrot.slane %v2362, 4
      %v2364 = vmax.f32 %v2362, %v2363
      %v2365 = vrot.slane %v2364, 2
      %v2366 = vmax.f32 %v2364, %v2365
      %v2367 = vrot.slane %v2366, 1
      %v2368 = vmax.f32 %v2366, %v2367
      %v2369 = vpack.i.bf16 %v2368, %v2368
      %v2371 = vsel %vm765, %v1837, 4286644096
      %v2373 = vunpack.i.l.bf16 %v2371
      %v2374 = vunpack.i.h.bf16 %v2371
      %v2375 = vmax.f32 %v2373, %v2374
      %v2376 = vrot.slane %v2375, 4
      %v2377 = vmax.f32 %v2375, %v2376
      %v2378 = vrot.slane %v2377, 2
      %v2379 = vmax.f32 %v2377, %v2378
      %v2380 = vrot.slane %v2379, 1
      %v2381 = vmax.f32 %v2379, %v2380
      %v2382 = vpack.i.bf16 %v2381, %v2381
      %v2384 = vsel %vm765, %v1845, 4286644096
      %v2386 = vunpack.i.l.bf16 %v2384
      %v2387 = vunpack.i.h.bf16 %v2384
      %v2388 = vmax.f32 %v2386, %v2387
      %v2389 = vrot.slane %v2388, 4
      %v2390 = vmax.f32 %v2388, %v2389
      %v2391 = vrot.slane %v2390, 2
      %v2392 = vmax.f32 %v2390, %v2391
      %v2393 = vrot.slane %v2392, 1
      %v2394 = vmax.f32 %v2392, %v2393
      %v2395 = vpack.i.bf16 %v2394, %v2394
      %v2397 = vsel %vm765, %v1852, 4286644096
      %v2399 = vunpack.i.l.bf16 %v2397
      %v2400 = vunpack.i.h.bf16 %v2397
      %v2401 = vmax.f32 %v2399, %v2400
      %v2402 = vrot.slane %v2401, 4
      %v2403 = vmax.f32 %v2401, %v2402
      %v2404 = vrot.slane %v2403, 2
      %v2405 = vmax.f32 %v2403, %v2404
      %v2406 = vrot.slane %v2405, 1
      %v2407 = vmax.f32 %v2405, %v2406
      %v2408 = vpack.i.bf16 %v2407, %v2407
      %v2410 = vsel %vm765, %v1859, 4286644096
      %v2412 = vunpack.i.l.bf16 %v2410
      %v2413 = vunpack.i.h.bf16 %v2410
      %v2414 = vmax.f32 %v2412, %v2413
      %v2415 = vrot.slane %v2414, 4
      %v2416 = vmax.f32 %v2414, %v2415
      %v2417 = vrot.slane %v2416, 2
      %v2418 = vmax.f32 %v2416, %v2417
      %v2419 = vrot.slane %v2418, 1
      %v2420 = vmax.f32 %v2418, %v2419
      %v2421 = vpack.i.bf16 %v2420, %v2420
      %v2423 = vsel %vm765, %v1866, 4286644096
      %v2425 = vunpack.i.l.bf16 %v2423
      %v2426 = vunpack.i.h.bf16 %v2423
      %v2427 = vmax.f32 %v2425, %v2426
      %v2428 = vrot.slane %v2427, 4
      %v2429 = vmax.f32 %v2427, %v2428
      %v2430 = vrot.slane %v2429, 2
      %v2431 = vmax.f32 %v2429, %v2430
      %v2432 = vrot.slane %v2431, 1
      %v2433 = vmax.f32 %v2431, %v2432
      %v2434 = vpack.i.bf16 %v2433, %v2433
      %v2436 = vsel %vm765, %v1873, 4286644096
      %v2438 = vunpack.i.l.bf16 %v2436
      %v2439 = vunpack.i.h.bf16 %v2436
      %v2440 = vmax.f32 %v2438, %v2439
      %v2441 = vrot.slane %v2440, 4
      %v2442 = vmax.f32 %v2440, %v2441
      %v2443 = vrot.slane %v2442, 2
      %v2444 = vmax.f32 %v2442, %v2443
      %v2445 = vrot.slane %v2444, 1
      %v2446 = vmax.f32 %v2444, %v2445
      %v2447 = vpack.i.bf16 %v2446, %v2446
      %v2449 = vsel %vm765, %v1880, 4286644096
      %v2451 = vunpack.i.l.bf16 %v2449
      %v2452 = vunpack.i.h.bf16 %v2449
      %v2453 = vmax.f32 %v2451, %v2452
      %v2454 = vrot.slane %v2453, 4
      %v2455 = vmax.f32 %v2453, %v2454
      %v2456 = vrot.slane %v2455, 2
      %v2457 = vmax.f32 %v2455, %v2456
      %v2458 = vrot.slane %v2457, 1
      %v2459 = vmax.f32 %v2457, %v2458
      %v2460 = vpack.i.bf16 %v2459, %v2459
      %v2462 = vsel %vm765, %v1887, 4286644096
      %v2464 = vunpack.i.l.bf16 %v2462
      %v2465 = vunpack.i.h.bf16 %v2462
      %v2466 = vmax.f32 %v2464, %v2465
      %v2467 = vrot.slane %v2466, 4
      %v2468 = vmax.f32 %v2466, %v2467
      %v2469 = vrot.slane %v2468, 2
      %v2470 = vmax.f32 %v2468, %v2469
      %v2471 = vrot.slane %v2470, 1
      %v2472 = vmax.f32 %v2470, %v2471
      %v2473 = vpack.i.bf16 %v2472, %v2472
      %v2475 = vsel %vm765, %v1894, 4286644096
      %v2477 = vunpack.i.l.bf16 %v2475
      %v2478 = vunpack.i.h.bf16 %v2475
      %v2479 = vmax.f32 %v2477, %v2478
      %v2480 = vrot.slane %v2479, 4
      %v2481 = vmax.f32 %v2479, %v2480
      %v2482 = vrot.slane %v2481, 2
      %v2483 = vmax.f32 %v2481, %v2482
      %v2484 = vrot.slane %v2483, 1
      %v2485 = vmax.f32 %v2483, %v2484
      %v2486 = vpack.i.bf16 %v2485, %v2485
      %v2488 = vsel %vm765, %v1902, 4286644096
      %v2490 = vunpack.i.l.bf16 %v2488
      %v2491 = vunpack.i.h.bf16 %v2488
      %v2492 = vmax.f32 %v2490, %v2491
      %v2493 = vrot.slane %v2492, 4
      %v2494 = vmax.f32 %v2492, %v2493
      %v2495 = vrot.slane %v2494, 2
      %v2496 = vmax.f32 %v2494, %v2495
      %v2497 = vrot.slane %v2496, 1
      %v2498 = vmax.f32 %v2496, %v2497
      %v2499 = vpack.i.bf16 %v2498, %v2498
      %v2501 = vsel %vm765, %v1909, 4286644096
      %v2503 = vunpack.i.l.bf16 %v2501
      %v2504 = vunpack.i.h.bf16 %v2501
      %v2505 = vmax.f32 %v2503, %v2504
      %v2506 = vrot.slane %v2505, 4
      %v2507 = vmax.f32 %v2505, %v2506
      %v2508 = vrot.slane %v2507, 2
      %v2509 = vmax.f32 %v2507, %v2508
      %v2510 = vrot.slane %v2509, 1
      %v2511 = vmax.f32 %v2509, %v2510
      %v2512 = vpack.i.bf16 %v2511, %v2511
      %v2514 = vsel %vm765, %v1916, 4286644096
      %v2516 = vunpack.i.l.bf16 %v2514
      %v2517 = vunpack.i.h.bf16 %v2514
      %v2518 = vmax.f32 %v2516, %v2517
      %v2519 = vrot.slane %v2518, 4
      %v2520 = vmax.f32 %v2518, %v2519
      %v2521 = vrot.slane %v2520, 2
      %v2522 = vmax.f32 %v2520, %v2521
      %v2523 = vrot.slane %v2522, 1
      %v2524 = vmax.f32 %v2522, %v2523
      %v2525 = vpack.i.bf16 %v2524, %v2524
      %v2527 = vsel %vm765, %v1923, 4286644096
      %v2529 = vunpack.i.l.bf16 %v2527
      %v2530 = vunpack.i.h.bf16 %v2527
      %v2531 = vmax.f32 %v2529, %v2530
      %v2532 = vrot.slane %v2531, 4
      %v2533 = vmax.f32 %v2531, %v2532
      %v2534 = vrot.slane %v2533, 2
      %v2535 = vmax.f32 %v2533, %v2534
      %v2536 = vrot.slane %v2535, 1
      %v2537 = vmax.f32 %v2535, %v2536
      %v2538 = vpack.i.bf16 %v2537, %v2537
      %v2540 = vsel %vm765, %v1930, 4286644096
      %v2542 = vunpack.i.l.bf16 %v2540
      %v2543 = vunpack.i.h.bf16 %v2540
      %v2544 = vmax.f32 %v2542, %v2543
      %v2545 = vrot.slane %v2544, 4
      %v2546 = vmax.f32 %v2544, %v2545
      %v2547 = vrot.slane %v2546, 2
      %v2548 = vmax.f32 %v2546, %v2547
      %v2549 = vrot.slane %v2548, 1
      %v2550 = vmax.f32 %v2548, %v2549
      %v2551 = vpack.i.bf16 %v2550, %v2550
      %v2553 = vsel %vm765, %v1937, 4286644096
      %v2555 = vunpack.i.l.bf16 %v2553
      %v2556 = vunpack.i.h.bf16 %v2553
      %v2557 = vmax.f32 %v2555, %v2556
      %v2558 = vrot.slane %v2557, 4
      %v2559 = vmax.f32 %v2557, %v2558
      %v2560 = vrot.slane %v2559, 2
      %v2561 = vmax.f32 %v2559, %v2560
      %v2562 = vrot.slane %v2561, 1
      %v2563 = vmax.f32 %v2561, %v2562
      %v2564 = vpack.i.bf16 %v2563, %v2563
      %v2566 = vsel %vm765, %v1944, 4286644096
      %v2568 = vunpack.i.l.bf16 %v2566
      %v2569 = vunpack.i.h.bf16 %v2566
      %v2570 = vmax.f32 %v2568, %v2569
      %v2571 = vrot.slane %v2570, 4
      %v2572 = vmax.f32 %v2570, %v2571
      %v2573 = vrot.slane %v2572, 2
      %v2574 = vmax.f32 %v2572, %v2573
      %v2575 = vrot.slane %v2574, 1
      %v2576 = vmax.f32 %v2574, %v2575
      %v2577 = vpack.i.bf16 %v2576, %v2576
      %v2579 = vsel %vm765, %v1951, 4286644096
      %v2581 = vunpack.i.l.bf16 %v2579
      %v2582 = vunpack.i.h.bf16 %v2579
      %v2583 = vmax.f32 %v2581, %v2582
      %v2584 = vrot.slane %v2583, 4
      %v2585 = vmax.f32 %v2583, %v2584
      %v2586 = vrot.slane %v2585, 2
      %v2587 = vmax.f32 %v2585, %v2586
      %v2588 = vrot.slane %v2587, 1
      %v2589 = vmax.f32 %v2587, %v2588
      %v2590 = vpack.i.bf16 %v2589, %v2589
      %v2592 = vsel %vm765, %v1959, 4286644096
      %v2594 = vunpack.i.l.bf16 %v2592
      %v2595 = vunpack.i.h.bf16 %v2592
      %v2596 = vmax.f32 %v2594, %v2595
      %v2597 = vrot.slane %v2596, 4
      %v2598 = vmax.f32 %v2596, %v2597
      %v2599 = vrot.slane %v2598, 2
      %v2600 = vmax.f32 %v2598, %v2599
      %v2601 = vrot.slane %v2600, 1
      %v2602 = vmax.f32 %v2600, %v2601
      %v2603 = vpack.i.bf16 %v2602, %v2602
      %v2605 = vsel %vm765, %v1966, 4286644096
      %v2607 = vunpack.i.l.bf16 %v2605
      %v2608 = vunpack.i.h.bf16 %v2605
      %v2609 = vmax.f32 %v2607, %v2608
      %v2610 = vrot.slane %v2609, 4
      %v2611 = vmax.f32 %v2609, %v2610
      %v2612 = vrot.slane %v2611, 2
      %v2613 = vmax.f32 %v2611, %v2612
      %v2614 = vrot.slane %v2613, 1
      %v2615 = vmax.f32 %v2613, %v2614
      %v2616 = vpack.i.bf16 %v2615, %v2615
      %v2618 = vsel %vm765, %v1973, 4286644096
      %v2620 = vunpack.i.l.bf16 %v2618
      %v2621 = vunpack.i.h.bf16 %v2618
      %v2622 = vmax.f32 %v2620, %v2621
      %v2623 = vrot.slane %v2622, 4
      %v2624 = vmax.f32 %v2622, %v2623
      %v2625 = vrot.slane %v2624, 2
      %v2626 = vmax.f32 %v2624, %v2625
      %v2627 = vrot.slane %v2626, 1
      %v2628 = vmax.f32 %v2626, %v2627
      %v2629 = vpack.i.bf16 %v2628, %v2628
      %v2631 = vsel %vm765, %v1980, 4286644096
      %v2633 = vunpack.i.l.bf16 %v2631
      %v2634 = vunpack.i.h.bf16 %v2631
      %v2635 = vmax.f32 %v2633, %v2634
      %v2636 = vrot.slane %v2635, 4
      %v2637 = vmax.f32 %v2635, %v2636
      %v2638 = vrot.slane %v2637, 2
      %v2639 = vmax.f32 %v2637, %v2638
      %v2640 = vrot.slane %v2639, 1
      %v2641 = vmax.f32 %v2639, %v2640
      %v2642 = vpack.i.bf16 %v2641, %v2641
      %v2644 = vsel %vm765, %v1987, 4286644096
      %v2646 = vunpack.i.l.bf16 %v2644
      %v2647 = vunpack.i.h.bf16 %v2644
      %v2648 = vmax.f32 %v2646, %v2647
      %v2649 = vrot.slane %v2648, 4
      %v2650 = vmax.f32 %v2648, %v2649
      %v2651 = vrot.slane %v2650, 2
      %v2652 = vmax.f32 %v2650, %v2651
      %v2653 = vrot.slane %v2652, 1
      %v2654 = vmax.f32 %v2652, %v2653
      %v2655 = vpack.i.bf16 %v2654, %v2654
      %v2657 = vsel %vm765, %v1994, 4286644096
      %v2659 = vunpack.i.l.bf16 %v2657
      %v2660 = vunpack.i.h.bf16 %v2657
      %v2661 = vmax.f32 %v2659, %v2660
      %v2662 = vrot.slane %v2661, 4
      %v2663 = vmax.f32 %v2661, %v2662
      %v2664 = vrot.slane %v2663, 2
      %v2665 = vmax.f32 %v2663, %v2664
      %v2666 = vrot.slane %v2665, 1
      %v2667 = vmax.f32 %v2665, %v2666
      %v2668 = vpack.i.bf16 %v2667, %v2667
      %v2670 = vsel %vm765, %v2001, 4286644096
      %v2672 = vunpack.i.l.bf16 %v2670
      %v2673 = vunpack.i.h.bf16 %v2670
      %v2674 = vmax.f32 %v2672, %v2673
      %v2675 = vrot.slane %v2674, 4
      %v2676 = vmax.f32 %v2674, %v2675
      %v2677 = vrot.slane %v2676, 2
      %v2678 = vmax.f32 %v2676, %v2677
      %v2679 = vrot.slane %v2678, 1
      %v2680 = vmax.f32 %v2678, %v2679
      %v2681 = vpack.i.bf16 %v2680, %v2680
      %v2683 = vsel %vm765, %v2008, 4286644096
      %v2685 = vunpack.i.l.bf16 %v2683
      %v2686 = vunpack.i.h.bf16 %v2683
      %v2687 = vmax.f32 %v2685, %v2686
      %v2688 = vrot.slane %v2687, 4
      %v2689 = vmax.f32 %v2687, %v2688
      %v2690 = vrot.slane %v2689, 2
      %v2691 = vmax.f32 %v2689, %v2690
      %v2692 = vrot.slane %v2691, 1
      %v2693 = vmax.f32 %v2691, %v2692
      %v2694 = vpack.i.bf16 %v2693, %v2693
      %v2696 = vsel %vm765, %v2016, 4286644096
      %v2698 = vunpack.i.l.bf16 %v2696
      %v2699 = vunpack.i.h.bf16 %v2696
      %v2700 = vmax.f32 %v2698, %v2699
      %v2701 = vrot.slane %v2700, 4
      %v2702 = vmax.f32 %v2700, %v2701
      %v2703 = vrot.slane %v2702, 2
      %v2704 = vmax.f32 %v2702, %v2703
      %v2705 = vrot.slane %v2704, 1
      %v2706 = vmax.f32 %v2704, %v2705
      %v2707 = vpack.i.bf16 %v2706, %v2706
      %v2709 = vsel %vm765, %v2023, 4286644096
      %v2711 = vunpack.i.l.bf16 %v2709
      %v2712 = vunpack.i.h.bf16 %v2709
      %v2713 = vmax.f32 %v2711, %v2712
      %v2714 = vrot.slane %v2713, 4
      %v2715 = vmax.f32 %v2713, %v2714
      %v2716 = vrot.slane %v2715, 2
      %v2717 = vmax.f32 %v2715, %v2716
      %v2718 = vrot.slane %v2717, 1
      %v2719 = vmax.f32 %v2717, %v2718
      %v2720 = vpack.i.bf16 %v2719, %v2719
      %v2722 = vsel %vm765, %v2030, 4286644096
      %v2724 = vunpack.i.l.bf16 %v2722
      %v2725 = vunpack.i.h.bf16 %v2722
      %v2726 = vmax.f32 %v2724, %v2725
      %v2727 = vrot.slane %v2726, 4
      %v2728 = vmax.f32 %v2726, %v2727
      %v2729 = vrot.slane %v2728, 2
      %v2730 = vmax.f32 %v2728, %v2729
      %v2731 = vrot.slane %v2730, 1
      %v2732 = vmax.f32 %v2730, %v2731
      %v2733 = vpack.i.bf16 %v2732, %v2732
      %v2735 = vsel %vm765, %v2037, 4286644096
      %v2737 = vunpack.i.l.bf16 %v2735
      %v2738 = vunpack.i.h.bf16 %v2735
      %v2739 = vmax.f32 %v2737, %v2738
      %v2740 = vrot.slane %v2739, 4
      %v2741 = vmax.f32 %v2739, %v2740
      %v2742 = vrot.slane %v2741, 2
      %v2743 = vmax.f32 %v2741, %v2742
      %v2744 = vrot.slane %v2743, 1
      %v2745 = vmax.f32 %v2743, %v2744
      %v2746 = vpack.i.bf16 %v2745, %v2745
      %v2748 = vsel %vm765, %v2044, 4286644096
      %v2750 = vunpack.i.l.bf16 %v2748
      %v2751 = vunpack.i.h.bf16 %v2748
      %v2752 = vmax.f32 %v2750, %v2751
      %v2753 = vrot.slane %v2752, 4
      %v2754 = vmax.f32 %v2752, %v2753
      %v2755 = vrot.slane %v2754, 2
      %v2756 = vmax.f32 %v2754, %v2755
      %v2757 = vrot.slane %v2756, 1
      %v2758 = vmax.f32 %v2756, %v2757
      %v2759 = vpack.i.bf16 %v2758, %v2758
      %v2761 = vsel %vm765, %v2051, 4286644096
      %v2763 = vunpack.i.l.bf16 %v2761
      %v2764 = vunpack.i.h.bf16 %v2761
      %v2765 = vmax.f32 %v2763, %v2764
      %v2766 = vrot.slane %v2765, 4
      %v2767 = vmax.f32 %v2765, %v2766
      %v2768 = vrot.slane %v2767, 2
      %v2769 = vmax.f32 %v2767, %v2768
      %v2770 = vrot.slane %v2769, 1
      %v2771 = vmax.f32 %v2769, %v2770
      %v2772 = vpack.i.bf16 %v2771, %v2771
      %v2774 = vsel %vm765, %v2058, 4286644096
      %v2776 = vunpack.i.l.bf16 %v2774
      %v2777 = vunpack.i.h.bf16 %v2774
      %v2778 = vmax.f32 %v2776, %v2777
      %v2779 = vrot.slane %v2778, 4
      %v2780 = vmax.f32 %v2778, %v2779
      %v2781 = vrot.slane %v2780, 2
      %v2782 = vmax.f32 %v2780, %v2781
      %v2783 = vrot.slane %v2782, 1
      %v2784 = vmax.f32 %v2782, %v2783
      %v2785 = vpack.i.bf16 %v2784, %v2784
      %v2787 = vsel %vm765, %v2065, 4286644096
      %v2789 = vunpack.i.l.bf16 %v2787
      %v2790 = vunpack.i.h.bf16 %v2787
      %v2791 = vmax.f32 %v2789, %v2790
      %v2792 = vrot.slane %v2791, 4
      %v2793 = vmax.f32 %v2791, %v2792
      %v2794 = vrot.slane %v2793, 2
      %v2795 = vmax.f32 %v2793, %v2794
      %v2796 = vrot.slane %v2795, 1
      %v2797 = vmax.f32 %v2795, %v2796
      %v2798 = vpack.i.bf16 %v2797, %v2797
      %v2800 = vsel %vm765, %v2073, 4286644096
      %v2802 = vunpack.i.l.bf16 %v2800
      %v2803 = vunpack.i.h.bf16 %v2800
      %v2804 = vmax.f32 %v2802, %v2803
      %v2805 = vrot.slane %v2804, 4
      %v2806 = vmax.f32 %v2804, %v2805
      %v2807 = vrot.slane %v2806, 2
      %v2808 = vmax.f32 %v2806, %v2807
      %v2809 = vrot.slane %v2808, 1
      %v2810 = vmax.f32 %v2808, %v2809
      %v2811 = vpack.i.bf16 %v2810, %v2810
      %v2813 = vsel %vm765, %v2080, 4286644096
      %v2815 = vunpack.i.l.bf16 %v2813
      %v2816 = vunpack.i.h.bf16 %v2813
      %v2817 = vmax.f32 %v2815, %v2816
      %v2818 = vrot.slane %v2817, 4
      %v2819 = vmax.f32 %v2817, %v2818
      %v2820 = vrot.slane %v2819, 2
      %v2821 = vmax.f32 %v2819, %v2820
      %v2822 = vrot.slane %v2821, 1
      %v2823 = vmax.f32 %v2821, %v2822
      %v2824 = vpack.i.bf16 %v2823, %v2823
      %v2826 = vsel %vm765, %v2087, 4286644096
      %v2828 = vunpack.i.l.bf16 %v2826
      %v2829 = vunpack.i.h.bf16 %v2826
      %v2830 = vmax.f32 %v2828, %v2829
      %v2831 = vrot.slane %v2830, 4
      %v2832 = vmax.f32 %v2830, %v2831
      %v2833 = vrot.slane %v2832, 2
      %v2834 = vmax.f32 %v2832, %v2833
      %v2835 = vrot.slane %v2834, 1
      %v2836 = vmax.f32 %v2834, %v2835
      %v2837 = vpack.i.bf16 %v2836, %v2836
      %v2839 = vsel %vm765, %v2094, 4286644096
      %v2841 = vunpack.i.l.bf16 %v2839
      %v2842 = vunpack.i.h.bf16 %v2839
      %v2843 = vmax.f32 %v2841, %v2842
      %v2844 = vrot.slane %v2843, 4
      %v2845 = vmax.f32 %v2843, %v2844
      %v2846 = vrot.slane %v2845, 2
      %v2847 = vmax.f32 %v2845, %v2846
      %v2848 = vrot.slane %v2847, 1
      %v2849 = vmax.f32 %v2847, %v2848
      %v2850 = vpack.i.bf16 %v2849, %v2849
      %v2852 = vsel %vm765, %v2101, 4286644096
      %v2854 = vunpack.i.l.bf16 %v2852
      %v2855 = vunpack.i.h.bf16 %v2852
      %v2856 = vmax.f32 %v2854, %v2855
      %v2857 = vrot.slane %v2856, 4
      %v2858 = vmax.f32 %v2856, %v2857
      %v2859 = vrot.slane %v2858, 2
      %v2860 = vmax.f32 %v2858, %v2859
      %v2861 = vrot.slane %v2860, 1
      %v2862 = vmax.f32 %v2860, %v2861
      %v2863 = vpack.i.bf16 %v2862, %v2862
      %v2865 = vsel %vm765, %v2108, 4286644096
      %v2867 = vunpack.i.l.bf16 %v2865
      %v2868 = vunpack.i.h.bf16 %v2865
      %v2869 = vmax.f32 %v2867, %v2868
      %v2870 = vrot.slane %v2869, 4
      %v2871 = vmax.f32 %v2869, %v2870
      %v2872 = vrot.slane %v2871, 2
      %v2873 = vmax.f32 %v2871, %v2872
      %v2874 = vrot.slane %v2873, 1
      %v2875 = vmax.f32 %v2873, %v2874
      %v2876 = vpack.i.bf16 %v2875, %v2875
      %v2878 = vsel %vm765, %v2115, 4286644096
      %v2880 = vunpack.i.l.bf16 %v2878
      %v2881 = vunpack.i.h.bf16 %v2878
      %v2882 = vmax.f32 %v2880, %v2881
      %v2883 = vrot.slane %v2882, 4
      %v2884 = vmax.f32 %v2882, %v2883
      %v2885 = vrot.slane %v2884, 2
      %v2886 = vmax.f32 %v2884, %v2885
      %v2887 = vrot.slane %v2886, 1
      %v2888 = vmax.f32 %v2886, %v2887
      %v2889 = vpack.i.bf16 %v2888, %v2888
      %v2891 = vsel %vm765, %v2122, 4286644096
      %v2893 = vunpack.i.l.bf16 %v2891
      %v2894 = vunpack.i.h.bf16 %v2891
      %v2895 = vmax.f32 %v2893, %v2894
      %v2896 = vrot.slane %v2895, 4
      %v2897 = vmax.f32 %v2895, %v2896
      %v2898 = vrot.slane %v2897, 2
      %v2899 = vmax.f32 %v2897, %v2898
      %v2900 = vrot.slane %v2899, 1
      %v2901 = vmax.f32 %v2899, %v2900
      %v2902 = vpack.i.bf16 %v2901, %v2901
      %v2904 = vsel %vm765, %v2130, 4286644096
      %v2906 = vunpack.i.l.bf16 %v2904
      %v2907 = vunpack.i.h.bf16 %v2904
      %v2908 = vmax.f32 %v2906, %v2907
      %v2909 = vrot.slane %v2908, 4
      %v2910 = vmax.f32 %v2908, %v2909
      %v2911 = vrot.slane %v2910, 2
      %v2912 = vmax.f32 %v2910, %v2911
      %v2913 = vrot.slane %v2912, 1
      %v2914 = vmax.f32 %v2912, %v2913
      %v2915 = vpack.i.bf16 %v2914, %v2914
      %v2917 = vsel %vm765, %v2137, 4286644096
      %v2919 = vunpack.i.l.bf16 %v2917
      %v2920 = vunpack.i.h.bf16 %v2917
      %v2921 = vmax.f32 %v2919, %v2920
      %v2922 = vrot.slane %v2921, 4
      %v2923 = vmax.f32 %v2921, %v2922
      %v2924 = vrot.slane %v2923, 2
      %v2925 = vmax.f32 %v2923, %v2924
      %v2926 = vrot.slane %v2925, 1
      %v2927 = vmax.f32 %v2925, %v2926
      %v2928 = vpack.i.bf16 %v2927, %v2927
      %v2930 = vsel %vm765, %v2144, 4286644096
      %v2932 = vunpack.i.l.bf16 %v2930
      %v2933 = vunpack.i.h.bf16 %v2930
      %v2934 = vmax.f32 %v2932, %v2933
      %v2935 = vrot.slane %v2934, 4
      %v2936 = vmax.f32 %v2934, %v2935
      %v2937 = vrot.slane %v2936, 2
      %v2938 = vmax.f32 %v2936, %v2937
      %v2939 = vrot.slane %v2938, 1
      %v2940 = vmax.f32 %v2938, %v2939
      %v2941 = vpack.i.bf16 %v2940, %v2940
      %v2943 = vsel %vm765, %v2151, 4286644096
      %v2945 = vunpack.i.l.bf16 %v2943
      %v2946 = vunpack.i.h.bf16 %v2943
      %v2947 = vmax.f32 %v2945, %v2946
      %v2948 = vrot.slane %v2947, 4
      %v2949 = vmax.f32 %v2947, %v2948
      %v2950 = vrot.slane %v2949, 2
      %v2951 = vmax.f32 %v2949, %v2950
      %v2952 = vrot.slane %v2951, 1
      %v2953 = vmax.f32 %v2951, %v2952
      %v2954 = vpack.i.bf16 %v2953, %v2953
      %v2956 = vsel %vm765, %v2158, 4286644096
      %v2958 = vunpack.i.l.bf16 %v2956
      %v2959 = vunpack.i.h.bf16 %v2956
      %v2960 = vmax.f32 %v2958, %v2959
      %v2961 = vrot.slane %v2960, 4
      %v2962 = vmax.f32 %v2960, %v2961
      %v2963 = vrot.slane %v2962, 2
      %v2964 = vmax.f32 %v2962, %v2963
      %v2965 = vrot.slane %v2964, 1
      %v2966 = vmax.f32 %v2964, %v2965
      %v2967 = vpack.i.bf16 %v2966, %v2966
      %v2969 = vsel %vm765, %v2165, 4286644096
      %v2971 = vunpack.i.l.bf16 %v2969
      %v2972 = vunpack.i.h.bf16 %v2969
      %v2973 = vmax.f32 %v2971, %v2972
      %v2974 = vrot.slane %v2973, 4
      %v2975 = vmax.f32 %v2973, %v2974
      %v2976 = vrot.slane %v2975, 2
      %v2977 = vmax.f32 %v2975, %v2976
      %v2978 = vrot.slane %v2977, 1
      %v2979 = vmax.f32 %v2977, %v2978
      %v2980 = vpack.i.bf16 %v2979, %v2979
      %v2982 = vsel %vm765, %v2172, 4286644096
      %v2984 = vunpack.i.l.bf16 %v2982
      %v2985 = vunpack.i.h.bf16 %v2982
      %v2986 = vmax.f32 %v2984, %v2985
      %v2987 = vrot.slane %v2986, 4
      %v2988 = vmax.f32 %v2986, %v2987
      %v2989 = vrot.slane %v2988, 2
      %v2990 = vmax.f32 %v2988, %v2989
      %v2991 = vrot.slane %v2990, 1
      %v2992 = vmax.f32 %v2990, %v2991
      %v2993 = vpack.i.bf16 %v2992, %v2992
      %v2995 = vsel %vm765, %v2179, 4286644096
      %v2997 = vunpack.i.l.bf16 %v2995
      %v2998 = vunpack.i.h.bf16 %v2995
      %v2999 = vmax.f32 %v2997, %v2998
      %v3000 = vrot.slane %v2999, 4
      %v3001 = vmax.f32 %v2999, %v3000
      %v3002 = vrot.slane %v3001, 2
      %v3003 = vmax.f32 %v3001, %v3002
      %v3004 = vrot.slane %v3003, 1
      %v3005 = vmax.f32 %v3003, %v3004
      %v3006 = vpack.i.bf16 %v3005, %v3005
      %v3008 = vsel %vm765, %v2187, 4286644096
      %v3010 = vunpack.i.l.bf16 %v3008
      %v3011 = vunpack.i.h.bf16 %v3008
      %v3012 = vmax.f32 %v3010, %v3011
      %v3013 = vrot.slane %v3012, 4
      %v3014 = vmax.f32 %v3012, %v3013
      %v3015 = vrot.slane %v3014, 2
      %v3016 = vmax.f32 %v3014, %v3015
      %v3017 = vrot.slane %v3016, 1
      %v3018 = vmax.f32 %v3016, %v3017
      %v3019 = vpack.i.bf16 %v3018, %v3018
      %v3020 = vmax.bf16 %v778, %v2200
      %v3021 = vmax.bf16 %v791, %v2213
      %v3022 = vmax.bf16 %v804, %v2226
      %v3023 = vmax.bf16 %v817, %v2239
      %v3024 = vmax.bf16 %v830, %v2252
      %v3025 = vmax.bf16 %v843, %v2265
      %v3026 = vmax.bf16 %v856, %v2278
      %v3027 = vmax.bf16 %v869, %v2291
      %v3028 = vmax.bf16 %v882, %v2304
      %v3029 = vmax.bf16 %v895, %v2317
      %v3030 = vmax.bf16 %v908, %v2330
      %v3031 = vmax.bf16 %v921, %v2343
      %v3032 = vmax.bf16 %v934, %v2356
      %v3033 = vmax.bf16 %v947, %v2369
      %v3034 = vmax.bf16 %v960, %v2382
      %v3035 = vmax.bf16 %v973, %v2395
      %v3036 = vmax.bf16 %v986, %v2408
      %v3037 = vmax.bf16 %v999, %v2421
      %v3038 = vmax.bf16 %v1012, %v2434
      %v3039 = vmax.bf16 %v1025, %v2447
      %v3040 = vmax.bf16 %v1038, %v2460
      %v3041 = vmax.bf16 %v1051, %v2473
      %v3042 = vmax.bf16 %v1064, %v2486
      %v3043 = vmax.bf16 %v1077, %v2499
      %v3044 = vmax.bf16 %v1090, %v2512
      %v3045 = vmax.bf16 %v1103, %v2525
      %v3046 = vmax.bf16 %v1116, %v2538
      %v3047 = vmax.bf16 %v1129, %v2551
      %v3048 = vmax.bf16 %v1142, %v2564
      %v3049 = vmax.bf16 %v1155, %v2577
      %v3050 = vmax.bf16 %v1168, %v2590
      %v3051 = vmax.bf16 %v1181, %v2603
      %v3052 = vmax.bf16 %v1194, %v2616
      %v3053 = vmax.bf16 %v1207, %v2629
      %v3054 = vmax.bf16 %v1220, %v2642
      %v3055 = vmax.bf16 %v1233, %v2655
      %v3056 = vmax.bf16 %v1246, %v2668
      %v3057 = vmax.bf16 %v1259, %v2681
      %v3058 = vmax.bf16 %v1272, %v2694
      %v3059 = vmax.bf16 %v1285, %v2707
      %v3060 = vmax.bf16 %v1298, %v2720
      %v3061 = vmax.bf16 %v1311, %v2733
      %v3062 = vmax.bf16 %v1324, %v2746
      %v3063 = vmax.bf16 %v1337, %v2759
      %v3064 = vmax.bf16 %v1350, %v2772
      %v3065 = vmax.bf16 %v1363, %v2785
      %v3066 = vmax.bf16 %v1376, %v2798
      %v3067 = vmax.bf16 %v1389, %v2811
      %v3068 = vmax.bf16 %v1402, %v2824
      %v3069 = vmax.bf16 %v1415, %v2837
      %v3070 = vmax.bf16 %v1428, %v2850
      %v3071 = vmax.bf16 %v1441, %v2863
      %v3072 = vmax.bf16 %v1454, %v2876
      %v3073 = vmax.bf16 %v1467, %v2889
      %v3074 = vmax.bf16 %v1480, %v2902
      %v3075 = vmax.bf16 %v1493, %v2915
      %v3076 = vmax.bf16 %v1506, %v2928
      %v3077 = vmax.bf16 %v1519, %v2941
      %v3078 = vmax.bf16 %v1532, %v2954
      %v3079 = vmax.bf16 %v1545, %v2967
      %v3080 = vmax.bf16 %v1558, %v2980
      %v3081 = vmax.bf16 %v1571, %v2993
      %v3082 = vmax.bf16 %v1584, %v3006
      %v3083 = vmax.bf16 %v1597, %v3019
      %v3148 = vunpack.c.l.b16 %v3020
      %v3149 = vunpack.c.l.b16 %v3021
      %v3150 = vunpack.c.l.b16 %v3022
      %v3151 = vunpack.c.l.b16 %v3023
      %v3152 = vunpack.c.l.b16 %v3024
      %v3153 = vunpack.c.l.b16 %v3025
      %v3154 = vunpack.c.l.b16 %v3026
      %v3155 = vunpack.c.l.b16 %v3027
      %v3156 = vunpack.c.l.b16 %v3028
      %v3157 = vunpack.c.l.b16 %v3029
      %v3158 = vunpack.c.l.b16 %v3030
      %v3159 = vunpack.c.l.b16 %v3031
      %v3160 = vunpack.c.l.b16 %v3032
      %v3161 = vunpack.c.l.b16 %v3033
      %v3162 = vunpack.c.l.b16 %v3034
      %v3163 = vunpack.c.l.b16 %v3035
      %v3164 = vunpack.c.l.b16 %v3036
      %v3165 = vunpack.c.l.b16 %v3037
      %v3166 = vunpack.c.l.b16 %v3038
      %v3167 = vunpack.c.l.b16 %v3039
      %v3168 = vunpack.c.l.b16 %v3040
      %v3169 = vunpack.c.l.b16 %v3041
      %v3170 = vunpack.c.l.b16 %v3042
      %v3171 = vunpack.c.l.b16 %v3043
      %v3172 = vunpack.c.l.b16 %v3044
      %v3173 = vunpack.c.l.b16 %v3045
      %v3174 = vunpack.c.l.b16 %v3046
      %v3175 = vunpack.c.l.b16 %v3047
      %v3176 = vunpack.c.l.b16 %v3048
      %v3177 = vunpack.c.l.b16 %v3049
      %v3178 = vunpack.c.l.b16 %v3050
      %v3179 = vunpack.c.l.b16 %v3051
      %v3180 = vunpack.c.l.b16 %v3052
      %v3181 = vunpack.c.l.b16 %v3053
      %v3182 = vunpack.c.l.b16 %v3054
      %v3183 = vunpack.c.l.b16 %v3055
      %v3184 = vunpack.c.l.b16 %v3056
      %v3185 = vunpack.c.l.b16 %v3057
      %v3186 = vunpack.c.l.b16 %v3058
      %v3187 = vunpack.c.l.b16 %v3059
      %v3188 = vunpack.c.l.b16 %v3060
      %v3189 = vunpack.c.l.b16 %v3061
      %v3190 = vunpack.c.l.b16 %v3062
      %v3191 = vunpack.c.l.b16 %v3063
      %v3192 = vunpack.c.l.b16 %v3064
      %v3193 = vunpack.c.l.b16 %v3065
      %v3194 = vunpack.c.l.b16 %v3066
      %v3195 = vunpack.c.l.b16 %v3067
      %v3196 = vunpack.c.l.b16 %v3068
      %v3197 = vunpack.c.l.b16 %v3069
      %v3198 = vunpack.c.l.b16 %v3070
      %v3199 = vunpack.c.l.b16 %v3071
      %v3200 = vunpack.c.l.b16 %v3072
      %v3201 = vunpack.c.l.b16 %v3073
      %v3202 = vunpack.c.l.b16 %v3074
      %v3203 = vunpack.c.l.b16 %v3075
      %v3204 = vunpack.c.l.b16 %v3076
      %v3205 = vunpack.c.l.b16 %v3077
      %v3206 = vunpack.c.l.b16 %v3078
      %v3207 = vunpack.c.l.b16 %v3079
      %v3208 = vunpack.c.l.b16 %v3080
      %v3209 = vunpack.c.l.b16 %v3081
      %v3210 = vunpack.c.l.b16 %v3082
      %v3211 = vunpack.c.l.b16 %v3083
      %v3212 = vpack.c.b16 %v3148, %v3148
      %v3213 = vpack.c.b16 %v3149, %v3149
      %v3214 = vpack.c.b16 %v3150, %v3150
      %v3215 = vpack.c.b16 %v3151, %v3151
      %v3216 = vpack.c.b16 %v3152, %v3152
      %v3217 = vpack.c.b16 %v3153, %v3153
      %v3218 = vpack.c.b16 %v3154, %v3154
      %v3219 = vpack.c.b16 %v3155, %v3155
      %v3220 = vpack.c.b16 %v3156, %v3156
      %v3221 = vpack.c.b16 %v3157, %v3157
      %v3222 = vpack.c.b16 %v3158, %v3158
      %v3223 = vpack.c.b16 %v3159, %v3159
      %v3224 = vpack.c.b16 %v3160, %v3160
      %v3225 = vpack.c.b16 %v3161, %v3161
      %v3226 = vpack.c.b16 %v3162, %v3162
      %v3227 = vpack.c.b16 %v3163, %v3163
      %v3228 = vpack.c.b16 %v3164, %v3164
      %v3229 = vpack.c.b16 %v3165, %v3165
      %v3230 = vpack.c.b16 %v3166, %v3166
      %v3231 = vpack.c.b16 %v3167, %v3167
      %v3232 = vpack.c.b16 %v3168, %v3168
      %v3233 = vpack.c.b16 %v3169, %v3169
      %v3234 = vpack.c.b16 %v3170, %v3170
      %v3235 = vpack.c.b16 %v3171, %v3171
      %v3236 = vpack.c.b16 %v3172, %v3172
      %v3237 = vpack.c.b16 %v3173, %v3173
      %v3238 = vpack.c.b16 %v3174, %v3174
      %v3239 = vpack.c.b16 %v3175, %v3175
      %v3240 = vpack.c.b16 %v3176, %v3176
      %v3241 = vpack.c.b16 %v3177, %v3177
      %v3242 = vpack.c.b16 %v3178, %v3178
      %v3243 = vpack.c.b16 %v3179, %v3179
      %v3244 = vpack.c.b16 %v3180, %v3180
      %v3245 = vpack.c.b16 %v3181, %v3181
      %v3246 = vpack.c.b16 %v3182, %v3182
      %v3247 = vpack.c.b16 %v3183, %v3183
      %v3248 = vpack.c.b16 %v3184, %v3184
      %v3249 = vpack.c.b16 %v3185, %v3185
      %v3250 = vpack.c.b16 %v3186, %v3186
      %v3251 = vpack.c.b16 %v3187, %v3187
      %v3252 = vpack.c.b16 %v3188, %v3188
      %v3253 = vpack.c.b16 %v3189, %v3189
      %v3254 = vpack.c.b16 %v3190, %v3190
      %v3255 = vpack.c.b16 %v3191, %v3191
      %v3256 = vpack.c.b16 %v3192, %v3192
      %v3257 = vpack.c.b16 %v3193, %v3193
      %v3258 = vpack.c.b16 %v3194, %v3194
      %v3259 = vpack.c.b16 %v3195, %v3195
      %v3260 = vpack.c.b16 %v3196, %v3196
      %v3261 = vpack.c.b16 %v3197, %v3197
      %v3262 = vpack.c.b16 %v3198, %v3198
      %v3263 = vpack.c.b16 %v3199, %v3199
      %v3264 = vpack.c.b16 %v3200, %v3200
      %v3265 = vpack.c.b16 %v3201, %v3201
      %v3266 = vpack.c.b16 %v3202, %v3202
      %v3267 = vpack.c.b16 %v3203, %v3203
      %v3268 = vpack.c.b16 %v3204, %v3204
      %v3269 = vpack.c.b16 %v3205, %v3205
      %v3270 = vpack.c.b16 %v3206, %v3206
      %v3271 = vpack.c.b16 %v3207, %v3207
      %v3272 = vpack.c.b16 %v3208, %v3208
      %v3273 = vpack.c.b16 %v3209, %v3209
      %v3274 = vpack.c.b16 %v3210, %v3210
      %v3275 = vpack.c.b16 %v3211, %v3211
      %v3276 = vunpack.c.l.b16 %v3212
      %v3277 = vunpack.c.l.b16 %v3213
      %v3278 = vunpack.c.l.b16 %v3214
      %v3279 = vunpack.c.l.b16 %v3215
      %v3280 = vunpack.c.l.b16 %v3216
      %v3281 = vunpack.c.l.b16 %v3217
      %v3282 = vunpack.c.l.b16 %v3218
      %v3283 = vunpack.c.l.b16 %v3219
      %v3284 = vunpack.c.l.b16 %v3220
      %v3285 = vunpack.c.l.b16 %v3221
      %v3286 = vunpack.c.l.b16 %v3222
      %v3287 = vunpack.c.l.b16 %v3223
      %v3288 = vunpack.c.l.b16 %v3224
      %v3289 = vunpack.c.l.b16 %v3225
      %v3290 = vunpack.c.l.b16 %v3226
      %v3291 = vunpack.c.l.b16 %v3227
      %v3292 = vunpack.c.l.b16 %v3228
      %v3293 = vunpack.c.l.b16 %v3229
      %v3294 = vunpack.c.l.b16 %v3230
      %v3295 = vunpack.c.l.b16 %v3231
      %v3296 = vunpack.c.l.b16 %v3232
      %v3297 = vunpack.c.l.b16 %v3233
      %v3298 = vunpack.c.l.b16 %v3234
      %v3299 = vunpack.c.l.b16 %v3235
      %v3300 = vunpack.c.l.b16 %v3236
      %v3301 = vunpack.c.l.b16 %v3237
      %v3302 = vunpack.c.l.b16 %v3238
      %v3303 = vunpack.c.l.b16 %v3239
      %v3304 = vunpack.c.l.b16 %v3240
      %v3305 = vunpack.c.l.b16 %v3241
      %v3306 = vunpack.c.l.b16 %v3242
      %v3307 = vunpack.c.l.b16 %v3243
      %v3308 = vunpack.c.l.b16 %v3244
      %v3309 = vunpack.c.l.b16 %v3245
      %v3310 = vunpack.c.l.b16 %v3246
      %v3311 = vunpack.c.l.b16 %v3247
      %v3312 = vunpack.c.l.b16 %v3248
      %v3313 = vunpack.c.l.b16 %v3249
      %v3314 = vunpack.c.l.b16 %v3250
      %v3315 = vunpack.c.l.b16 %v3251
      %v3316 = vunpack.c.l.b16 %v3252
      %v3317 = vunpack.c.l.b16 %v3253
      %v3318 = vunpack.c.l.b16 %v3254
      %v3319 = vunpack.c.l.b16 %v3255
      %v3320 = vunpack.c.l.b16 %v3256
      %v3321 = vunpack.c.l.b16 %v3257
      %v3322 = vunpack.c.l.b16 %v3258
      %v3323 = vunpack.c.l.b16 %v3259
      %v3324 = vunpack.c.l.b16 %v3260
      %v3325 = vunpack.c.l.b16 %v3261
      %v3326 = vunpack.c.l.b16 %v3262
      %v3327 = vunpack.c.l.b16 %v3263
      %v3328 = vunpack.c.l.b16 %v3264
      %v3329 = vunpack.c.l.b16 %v3265
      %v3330 = vunpack.c.l.b16 %v3266
      %v3331 = vunpack.c.l.b16 %v3267
      %v3332 = vunpack.c.l.b16 %v3268
      %v3333 = vunpack.c.l.b16 %v3269
      %v3334 = vunpack.c.l.b16 %v3270
      %v3335 = vunpack.c.l.b16 %v3271
      %v3336 = vunpack.c.l.b16 %v3272
      %v3337 = vunpack.c.l.b16 %v3273
      %v3338 = vunpack.c.l.b16 %v3274
      %v3339 = vunpack.c.l.b16 %v3275
      %vm3340 = vcmask 1041409
      %v3341 = vsel %vm3340, %v3277, %v3276
      %vm3342 = vcmask 1042434
      %v3343 = vsel %vm3342, %v3278, %v3341
      %vm3344 = vcmask 1043459
      %v3345 = vsel %vm3344, %v3279, %v3343
      %vm3346 = vcmask 1044484
      %v3347 = vsel %vm3346, %v3280, %v3345
      %vm3348 = vcmask 1045509
      %v3349 = vsel %vm3348, %v3281, %v3347
      %vm3350 = vcmask 1046534
      %v3351 = vsel %vm3350, %v3282, %v3349
      %vm3352 = vcmask 1047559
      %v3353 = vsel %vm3352, %v3283, %v3351
      %v3354 = vsel %vm3340, %v3285, %v3284
      %v3355 = vsel %vm3342, %v3286, %v3354
      %v3356 = vsel %vm3344, %v3287, %v3355
      %v3357 = vsel %vm3346, %v3288, %v3356
      %v3358 = vsel %vm3348, %v3289, %v3357
      %v3359 = vsel %vm3350, %v3290, %v3358
      %v3360 = vsel %vm3352, %v3291, %v3359
      %v3361 = vsel %vm3340, %v3293, %v3292
      %v3362 = vsel %vm3342, %v3294, %v3361
      %v3363 = vsel %vm3344, %v3295, %v3362
      %v3364 = vsel %vm3346, %v3296, %v3363
      %v3365 = vsel %vm3348, %v3297, %v3364
      %v3366 = vsel %vm3350, %v3298, %v3365
      %v3367 = vsel %vm3352, %v3299, %v3366
      %v3368 = vsel %vm3340, %v3301, %v3300
      %v3369 = vsel %vm3342, %v3302, %v3368
      %v3370 = vsel %vm3344, %v3303, %v3369
      %v3371 = vsel %vm3346, %v3304, %v3370
      %v3372 = vsel %vm3348, %v3305, %v3371
      %v3373 = vsel %vm3350, %v3306, %v3372
      %v3374 = vsel %vm3352, %v3307, %v3373
      %v3375 = vsel %vm3340, %v3309, %v3308
      %v3376 = vsel %vm3342, %v3310, %v3375
      %v3377 = vsel %vm3344, %v3311, %v3376
      %v3378 = vsel %vm3346, %v3312, %v3377
      %v3379 = vsel %vm3348, %v3313, %v3378
      %v3380 = vsel %vm3350, %v3314, %v3379
      %v3381 = vsel %vm3352, %v3315, %v3380
      %v3382 = vsel %vm3340, %v3317, %v3316
      %v3383 = vsel %vm3342, %v3318, %v3382
      %v3384 = vsel %vm3344, %v3319, %v3383
      %v3385 = vsel %vm3346, %v3320, %v3384
      %v3386 = vsel %vm3348, %v3321, %v3385
      %v3387 = vsel %vm3350, %v3322, %v3386
      %v3388 = vsel %vm3352, %v3323, %v3387
      %v3389 = vsel %vm3340, %v3325, %v3324
      %v3390 = vsel %vm3342, %v3326, %v3389
      %v3391 = vsel %vm3344, %v3327, %v3390
      %v3392 = vsel %vm3346, %v3328, %v3391
      %v3393 = vsel %vm3348, %v3329, %v3392
      %v3394 = vsel %vm3350, %v3330, %v3393
      %v3395 = vsel %vm3352, %v3331, %v3394
      %v3396 = vsel %vm3340, %v3333, %v3332
      %v3397 = vsel %vm3342, %v3334, %v3396
      %v3398 = vsel %vm3344, %v3335, %v3397
      %v3399 = vsel %vm3346, %v3336, %v3398
      %v3400 = vsel %vm3348, %v3337, %v3399
      %v3401 = vsel %vm3350, %v3338, %v3400
      %v3402 = vsel %vm3352, %v3339, %v3401
      %v3403 = vpack.c.b16 %v3353, %v3353
      %v3404 = vpack.c.b16 %v3360, %v3360
      %v3405 = vpack.c.b16 %v3367, %v3367
      %v3406 = vpack.c.b16 %v3374, %v3374
      %v3407 = vpack.c.b16 %v3381, %v3381
      %v3408 = vpack.c.b16 %v3388, %v3388
      %v3409 = vpack.c.b16 %v3395, %v3395
      %v3410 = vpack.c.b16 %v3402, %v3402
      %3419 = vst [vmem:[%s116] sm:$0xf] %v3403
      %3420 = vst [vmem:[%s116 + $0x4] sm:$0xf] %v3404
      %3421 = vst [vmem:[%s116 + $0x8] sm:$0xf] %v3405
      %3422 = vst [vmem:[%s116 + $0xc] sm:$0xf] %v3406
      %3423 = vst [vmem:[%s116 + $0x10] sm:$0xf] %v3407
      %3424 = vst [vmem:[%s116 + $0x14] sm:$0xf] %v3408
      %3425 = vst [vmem:[%s116 + $0x18] sm:$0xf] %v3409
      %3426 = vst [vmem:[%s116 + $0x1c] sm:$0xf] %v3410
      %p3427 = scmp.lt.s32.totalorder %s12, 1
      %s3428 = scalar_select %p3427, %s12, 1
      %s3429 = smul.addr %s3428, 8
      %s3430 = smul.addr %s3429, 4
      %s3431 = scalar_lea.vmem %s1, %s3430
      // Predicated region
      $region25: #{stem_v1_forward.19} parent=23 // pred_check
        %p3432 = pneg %p56
      $region26: #{stem_v1_forward.19} parent=23 // pred_check_branch
        %3434 = sbr.rel (%p3432) target = $region28
      $region27: #{stem_v1_forward.19} parent=23 // pred_region
        _
      $region28: #{stem_v1_forward.19} parent=23 // pred_fallthru
        _
    $region24: #{stem_v1_forward.19} parent=5 // pred_fallthru
      _
    %p3435 = scmp.le.s32.totalorder 2, %s7
    // Predicated region
    $region29: #{stem_v1_forward.19} parent=5 // pred_check
      %p3436 = pneg %p3435
    $region30: #{stem_v1_forward.19} parent=5 // pred_check_branch
      %3438 = sbr.rel (%p3436) target = $region32
    $region31: #{stem_v1_forward.19} parent=5 // pred_region
      %s3439 = ssub.s32 %s7, 2
      // Predicated region
      $region33: #{stem_v1_forward.19} parent=31 // pred_check
        %p3440 = pneg %p62
      $region34: #{stem_v1_forward.19} parent=31 // pred_check_branch
        %3442 = sbr.rel (%p3440) target = $region36
      $region35: #{stem_v1_forward.19} parent=31 // pred_region
        %p3443 = scmp.lt.s32.totalorder %s13, 1
        %s3444 = scalar_select %p3443, %s13, 1
        %s3445 = smul.addr %s3444, 8
        %s3446 = smul.addr %s3445, 4
        %s3447 = scalar_lea.vmem %s1, %s3446
      $region36: #{stem_v1_forward.19} parent=31 // pred_fallthru
        _
    $region32: #{stem_v1_forward.19} parent=5 // pred_fallthru
      _
  $region6: #{stem_v1_forward.19} parent=0 // loop_footer
    %s11 = sadd.s32 1, %s7
  $region7: #{stem_v1_forward.19} parent=0 // loop_footer_branch
    %6 = sbr.rel target = $region3
  $region8: #{stem_v1_forward.19} parent=0 // loop_exit
    _

// kernel: stem_v1_forward.23
$region0: #{stem_v1_forward.23}
  #allocation0 [shape = 'u32[]', space=smem, size = 0x4, offset = 0x4, fixed_abs, tag = 'smem constant byte address 0x4 - core index']
  #allocation1 [shape = 'u32[144,128]{1,0:T(1,128)}', space=vmem, size = 0x12000, scoped, tag = 'internal scratch']
  %s0 = inlined_call_operand.vmem [shape: f32[80,256], index: 0, kind: input, shape index: {}]
  %s1 = inlined_call_operand.vmem [shape: f32[1,256], index: 1, kind: input, shape index: {}]
  %s2 = inlined_call_operand.vmem [shape: f32[1,256], index: 2, kind: input, shape index: {}]
  %s3 = inlined_call_operand.vmem [shape: bf16[80,256], index: 3, kind: output, shape index: {}]
  %s4 = sld [smem:[#allocation0]]
  $region22: #{stem_v1_forward.23} parent=0
    _
  %s6 = ssub.s32 1, %s4
  %s7 = scalar_select 0, %s6, %s4
  // Predicated region
  $region2: #{stem_v1_forward.23} parent=0 // pred_check
    _
  $region3: #{stem_v1_forward.23} parent=0 // pred_check_branch
    %9 = sbr.rel (0) target = $region5
  $region4: #{stem_v1_forward.23} parent=0 // pred_region
    _
  $region5: #{stem_v1_forward.23} parent=0 // pred_fallthru
    _
  // Predicated region
  $region6: #{stem_v1_forward.23} parent=0 // pred_check
    _
  $region7: #{stem_v1_forward.23} parent=0 // pred_check_branch
    %11 = sbr.rel (0) target = $region9
  $region8: #{stem_v1_forward.23} parent=0 // pred_region
    _
  $region9: #{stem_v1_forward.23} parent=0 // pred_fallthru
    _
  // Predicated region
  $region10: #{stem_v1_forward.23} parent=0 // pred_check
    _
  $region11: #{stem_v1_forward.23} parent=0 // pred_check_branch
    %13 = sbr.rel (0) target = $region13
  $region12: #{stem_v1_forward.23} parent=0 // pred_region
    _
  $region13: #{stem_v1_forward.23} parent=0 // pred_fallthru
    _
  %v14 = vld [vmem:[%s0] sm:$0xff]
  %v15 = vld [vmem:[%s0 + $0x8] sm:$0xff]
  %v16 = vld [vmem:[%s0 + $0x10] sm:$0xff]
  %v17 = vld [vmem:[%s0 + $0x18] sm:$0xff]
  %v18 = vld [vmem:[%s0 + $0x20] sm:$0xff]
  %v19 = vld [vmem:[%s0 + $0x28] sm:$0xff]
  %v20 = vld [vmem:[%s0 + $0x30] sm:$0xff]
  %v21 = vld [vmem:[%s0 + $0x38] sm:$0xff]
  %v22 = vld [vmem:[%s0 + $0x40] sm:$0xff]
  %v23 = vld [vmem:[%s0 + $0x48] sm:$0xff]
  %v24 = vld [vmem:[%s0 + $0x50] sm:$0xff]
  %v25 = vld [vmem:[%s0 + $0x58] sm:$0xff]
  %v26 = vld [vmem:[%s0 + $0x60] sm:$0xff]
  %v27 = vld [vmem:[%s0 + $0x68] sm:$0xff]
  %v28 = vld [vmem:[%s0 + $0x70] sm:$0xff]
  %v29 = vld [vmem:[%s0 + $0x78] sm:$0xff]
  %v30 = vld [vmem:[%s0 + $0x80] sm:$0xff]
  %v31 = vld [vmem:[%s0 + $0x88] sm:$0xff]
  %v32 = vld [vmem:[%s0 + $0x90] sm:$0xff]
  %v33 = vld [vmem:[%s0 + $0x98] sm:$0xff]
  %v34 = vld [vmem:[%s1] sm:$0x3]
  %v36 = vlaneseq
  %v37 = vshrl.u32 %v36, 7
  %v38 = vsub.s32 0, %v37
  %v39 = vrot.slane %v34, %v38
  %v40 = vlaneseq
  %v41 = vshrl.u32 %v40, 7
  %v42 = vsub.s32 1, %v41
  %v43 = vrot.slane %v34, %v42
  %v46 = vmul.f32 %v14, %v39
  %v47 = vmul.f32 %v15, %v43
  %v48 = vmul.f32 %v16, %v39
  %v49 = vmul.f32 %v17, %v43
  %v50 = vmul.f32 %v18, %v39
  %v51 = vmul.f32 %v19, %v43
  %v52 = vmul.f32 %v20, %v39
  %v53 = vmul.f32 %v21, %v43
  %v54 = vmul.f32 %v22, %v39
  %v55 = vmul.f32 %v23, %v43
  %v56 = vmul.f32 %v24, %v39
  %v57 = vmul.f32 %v25, %v43
  %v58 = vmul.f32 %v26, %v39
  %v59 = vmul.f32 %v27, %v43
  %v60 = vmul.f32 %v28, %v39
  %v61 = vmul.f32 %v29, %v43
  %v62 = vmul.f32 %v30, %v39
  %v63 = vmul.f32 %v31, %v43
  %v64 = vmul.f32 %v32, %v39
  %v65 = vmul.f32 %v33, %v43
  %v66 = vld [vmem:[%s2] sm:$0x3]
  %v68 = vlaneseq
  %v69 = vshrl.u32 %v68, 7
  %v70 = vsub.s32 0, %v69
  %v71 = vrot.slane %v66, %v70
  %v72 = vlaneseq
  %v73 = vshrl.u32 %v72, 7
  %v74 = vsub.s32 1, %v73
  %v75 = vrot.slane %v66, %v74
  %v78 = vadd.f32 %v46, %v71
  %v79 = vadd.f32 %v47, %v75
  %v80 = vadd.f32 %v48, %v71
  %v81 = vadd.f32 %v49, %v75
  %v82 = vadd.f32 %v50, %v71
  %v83 = vadd.f32 %v51, %v75
  %v84 = vadd.f32 %v52, %v71
  %v85 = vadd.f32 %v53, %v75
  %v86 = vadd.f32 %v54, %v71
  %v87 = vadd.f32 %v55, %v75
  %v88 = vadd.f32 %v56, %v71
  %v89 = vadd.f32 %v57, %v75
  %v90 = vadd.f32 %v58, %v71
  %v91 = vadd.f32 %v59, %v75
  %v92 = vadd.f32 %v60, %v71
  %v93 = vadd.f32 %v61, %v75
  %v94 = vadd.f32 %v62, %v71
  %v95 = vadd.f32 %v63, %v75
  %v96 = vadd.f32 %v64, %v71
  %v97 = vadd.f32 %v65, %v75
  %v98 = vmax.f32 %v78, 0.0
  %v99 = vmax.f32 %v79, 0.0
  %v100 = vmax.f32 %v80, 0.0
  %v101 = vmax.f32 %v81, 0.0
  %v102 = vmax.f32 %v82, 0.0
  %v103 = vmax.f32 %v83, 0.0
  %v104 = vmax.f32 %v84, 0.0
  %v105 = vmax.f32 %v85, 0.0
  %v106 = vmax.f32 %v86, 0.0
  %v107 = vmax.f32 %v87, 0.0
  %v108 = vmax.f32 %v88, 0.0
  %v109 = vmax.f32 %v89, 0.0
  %v110 = vmax.f32 %v90, 0.0
  %v111 = vmax.f32 %v91, 0.0
  %v112 = vmax.f32 %v92, 0.0
  %v113 = vmax.f32 %v93, 0.0
  %v114 = vmax.f32 %v94, 0.0
  %v115 = vmax.f32 %v95, 0.0
  %v116 = vmax.f32 %v96, 0.0
  %v117 = vmax.f32 %v97, 0.0
  %v118 = vpack.c.bf16 %v100, %v98
  %v119 = vpack.c.bf16 %v101, %v99
  %v120 = vpack.c.bf16 %v104, %v102
  %v121 = vpack.c.bf16 %v105, %v103
  %v122 = vpack.c.bf16 %v108, %v106
  %v123 = vpack.c.bf16 %v109, %v107
  %v124 = vpack.c.bf16 %v112, %v110
  %v125 = vpack.c.bf16 %v113, %v111
  %v126 = vpack.c.bf16 %v116, %v114
  %v127 = vpack.c.bf16 %v117, %v115
  %v138 = vunpack.c.l.b16 %v118
  %v139 = vunpack.c.l.b16 %v119
  %v140 = vunpack.c.h.b16 %v118
  %v141 = vunpack.c.h.b16 %v119
  %v142 = vunpack.c.l.b16 %v120
  %v143 = vunpack.c.l.b16 %v121
  %v144 = vunpack.c.h.b16 %v120
  %v145 = vunpack.c.h.b16 %v121
  %v146 = vunpack.c.l.b16 %v122
  %v147 = vunpack.c.l.b16 %v123
  %v148 = vunpack.c.h.b16 %v122
  %v149 = vunpack.c.h.b16 %v123
  %v150 = vunpack.c.l.b16 %v124
  %v151 = vunpack.c.l.b16 %v125
  %v152 = vunpack.c.h.b16 %v124
  %v153 = vunpack.c.h.b16 %v125
  %v154 = vunpack.c.l.b16 %v126
  %v155 = vunpack.c.l.b16 %v127
  %v156 = vunpack.c.h.b16 %v126
  %v157 = vunpack.c.h.b16 %v127
  %v158 = vpack.c.b16 %v139, %v138
  %v159 = vpack.c.b16 %v141, %v140
  %v160 = vpack.c.b16 %v143, %v142
  %v161 = vpack.c.b16 %v145, %v144
  %v162 = vpack.c.b16 %v147, %v146
  %v163 = vpack.c.b16 %v149, %v148
  %v164 = vpack.c.b16 %v151, %v150
  %v165 = vpack.c.b16 %v153, %v152
  %v166 = vpack.c.b16 %v155, %v154
  %v167 = vpack.c.b16 %v157, %v156
  %178 = vst [vmem:[%s3] sm:$0xff] %v158
  %179 = vst [vmem:[%s3 + $0x8] sm:$0xff] %v159
  %180 = vst [vmem:[%s3 + $0x10] sm:$0xff] %v160
  %181 = vst [vmem:[%s3 + $0x18] sm:$0xff] %v161
  %182 = vst [vmem:[%s3 + $0x20] sm:$0xff] %v162
  %183 = vst [vmem:[%s3 + $0x28] sm:$0xff] %v163
  %184 = vst [vmem:[%s3 + $0x30] sm:$0xff] %v164
  %185 = vst [vmem:[%s3 + $0x38] sm:$0xff] %v165
  %186 = vst [vmem:[%s3 + $0x40] sm:$0xff] %v166
  %187 = vst [vmem:[%s3 + $0x48] sm:$0xff] %v167
  // Predicated region
  $region14: #{stem_v1_forward.23} parent=0 // pred_check
    _
  $region15: #{stem_v1_forward.23} parent=0 // pred_check_branch
    %189 = sbr.rel (0) target = $region17
  $region16: #{stem_v1_forward.23} parent=0 // pred_region
    _
  $region17: #{stem_v1_forward.23} parent=0 // pred_fallthru
    _
  // Predicated region
  $region18: #{stem_v1_forward.23} parent=0 // pred_check
    _
  $region19: #{stem_v1_forward.23} parent=0 // pred_check_branch
    %191 = sbr.rel (0) target = $region21
  $region20: #{stem_v1_forward.23} parent=0 // pred_region
    _
  $region21: #{stem_v1_forward.23} parent=0 // pred_fallthru
    _

// kernel: stem_v1_forward.22
$region0: #{stem_v1_forward.22}
  #allocation0 [shape = 'u32[]', space=smem, size = 0x4, offset = 0x4, fixed_abs, tag = 'smem constant byte address 0x4 - core index']
  #allocation1 [shape = 'u32[144,128]{1,0:T(1,128)}', space=vmem, size = 0x12000, scoped, tag = 'internal scratch']
  %s0 = inlined_call_operand.vmem [shape: bf16[80,720], index: 0, kind: input, shape index: {}]
  %s1 = inlined_call_operand.vmem [shape: bf16[720,256], index: 1, kind: input, shape index: {}]
  %s2 = inlined_call_operand.vmem [shape: f32[80,256], index: 2, kind: output, shape index: {0}]
  %s3 = inlined_call_operand.vmem [shape: f32[2,256], index: 3, kind: output, shape index: {1}]
  %4 = xla_tuple %s2, %s3
  %s5 = sld [smem:[#allocation0]]
  $region30: #{stem_v1_forward.22} parent=0
    _
  %s7 = ssub.s32 1, %s5
  %s8 = scalar_select 0, %s7, %s5
  // Predicated region
  $region2: #{stem_v1_forward.22} parent=0 // pred_check
    _
  $region3: #{stem_v1_forward.22} parent=0 // pred_check_branch
    %10 = sbr.rel (0) target = $region5
  $region4: #{stem_v1_forward.22} parent=0 // pred_region
    _
  $region5: #{stem_v1_forward.22} parent=0 // pred_fallthru
    _
  // Predicated region
  $region6: #{stem_v1_forward.22} parent=0 // pred_check
    _
  $region7: #{stem_v1_forward.22} parent=0 // pred_check_branch
    %12 = sbr.rel (0) target = $region9
  $region8: #{stem_v1_forward.22} parent=0 // pred_region
    _
  $region9: #{stem_v1_forward.22} parent=0 // pred_fallthru
    _
  %v14 = vld [vmem:[%s0] sm:$0xff]
  %v15 = vld [vmem:[%s0 + $0x8] sm:$0xff]
  %v16 = vld [vmem:[%s0 + $0x10] sm:$0xff]
  %v17 = vld [vmem:[%s0 + $0x18] sm:$0xff]
  %v18 = vld [vmem:[%s0 + $0x20] sm:$0xff]
  %v19 = vld [vmem:[%s0 + $0x28] sm:$0xff]
  %v20 = vld [vmem:[%s0 + $0x30] sm:$0xff]
  %v21 = vld [vmem:[%s0 + $0x38] sm:$0xff]
  %v22 = vld [vmem:[%s0 + $0x40] sm:$0xff]
  %v23 = vld [vmem:[%s0 + $0x48] sm:$0xff]
  %v24 = vld [vmem:[%s0 + $0x50] sm:$0xff]
  %v25 = vld [vmem:[%s0 + $0x58] sm:$0xff]
  %v26 = vld [vmem:[%s0 + $0x60] sm:$0xff]
  %v27 = vld [vmem:[%s0 + $0x68] sm:$0xff]
  %v28 = vld [vmem:[%s0 + $0x70] sm:$0xff]
  %v29 = vld [vmem:[%s0 + $0x78] sm:$0xff]
  %v30 = vld [vmem:[%s0 + $0x80] sm:$0xff]
  %v31 = vld [vmem:[%s0 + $0x88] sm:$0xff]
  %v32 = vld [vmem:[%s0 + $0x90] sm:$0xff]
  %v33 = vld [vmem:[%s0 + $0x98] sm:$0xff]
  %v34 = vld [vmem:[%s0 + $0xa0] sm:$0xff]
  %v35 = vld [vmem:[%s0 + $0xa8] sm:$0xff]
  %v36 = vld [vmem:[%s0 + $0xb0] sm:$0xff]
  %v37 = vld [vmem:[%s0 + $0xb8] sm:$0xff]
  %v38 = vld [vmem:[%s0 + $0xc0] sm:$0xff]
  %v39 = vld [vmem:[%s0 + $0xc8] sm:$0xff]
  %v40 = vld [vmem:[%s0 + $0xd0] sm:$0xff]
  %v41 = vld [vmem:[%s0 + $0xd8] sm:$0xff]
  %v42 = vld [vmem:[%s0 + $0xe0] sm:$0xff]
  %v43 = vld [vmem:[%s0 + $0xe8] sm:$0xff]
  %v44 = vld [vmem:[%s1] sm:$0xff]
  %v45 = vld [vmem:[%s1 + $0x8] sm:$0xff]
  %v46 = vld [vmem:[%s1 + $0x10] sm:$0xff]
  %v47 = vld [vmem:[%s1 + $0x18] sm:$0xff]
  %v48 = vld [vmem:[%s1 + $0x20] sm:$0xff]
  %v49 = vld [vmem:[%s1 + $0x28] sm:$0xff]
  %v50 = vld [vmem:[%s1 + $0x30] sm:$0xff]
  %v51 = vld [vmem:[%s1 + $0x38] sm:$0xff]
  %v52 = vld [vmem:[%s1 + $0x40] sm:$0xff]
  %v53 = vld [vmem:[%s1 + $0x48] sm:$0xff]
  %v54 = vld [vmem:[%s1 + $0x50] sm:$0xff]
  %v55 = vld [vmem:[%s1 + $0x58] sm:$0xff]
  %v56 = vld [vmem:[%s1 + $0x60] sm:$0xff]
  %v57 = vld [vmem:[%s1 + $0x68] sm:$0xff]
  %v58 = vld [vmem:[%s1 + $0x70] sm:$0xff]
  %v59 = vld [vmem:[%s1 + $0x78] sm:$0xff]
  %v60 = vld [vmem:[%s1 + $0x80] sm:$0xff]
  %v61 = vld [vmem:[%s1 + $0x88] sm:$0xff]
  %v62 = vld [vmem:[%s1 + $0x90] sm:$0xff]
  %v63 = vld [vmem:[%s1 + $0x98] sm:$0xff]
  %v64 = vld [vmem:[%s1 + $0xa0] sm:$0xff]
  %v65 = vld [vmem:[%s1 + $0xa8] sm:$0xff]
  %v66 = vld [vmem:[%s1 + $0xb0] sm:$0xff]
  %v67 = vld [vmem:[%s1 + $0xb8] sm:$0xff]
  %v68 = vld [vmem:[%s1 + $0xc0] sm:$0xff]
  %v69 = vld [vmem:[%s1 + $0xc8] sm:$0xff]
  %v70 = vld [vmem:[%s1 + $0xd0] sm:$0xff]
  %v71 = vld [vmem:[%s1 + $0xd8] sm:$0xff]
  %v72 = vld [vmem:[%s1 + $0xe0] sm:$0xff]
  %v73 = vld [vmem:[%s1 + $0xe8] sm:$0xff]
  %v74 = vld [vmem:[%s1 + $0xf0] sm:$0xff]
  %v75 = vld [vmem:[%s1 + $0xf8] sm:$0xff]
  %v76 = vld [vmem:[%s1 + $0x100] sm:$0xff]
  %v77 = vld [vmem:[%s1 + $0x108] sm:$0xff]
  %v78 = vld [vmem:[%s1 + $0x110] sm:$0xff]
  %v79 = vld [vmem:[%s1 + $0x118] sm:$0xff]
  %v80 = vld [vmem:[%s1 + $0x120] sm:$0xff]
  %v81 = vld [vmem:[%s1 + $0x128] sm:$0xff]
  %v82 = vld [vmem:[%s1 + $0x130] sm:$0xff]
  %v83 = vld [vmem:[%s1 + $0x138] sm:$0xff]
  %v84 = vld [vmem:[%s1 + $0x140] sm:$0xff]
  %v85 = vld [vmem:[%s1 + $0x148] sm:$0xff]
  %v86 = vld [vmem:[%s1 + $0x150] sm:$0xff]
  %v87 = vld [vmem:[%s1 + $0x158] sm:$0xff]
  %v88 = vld [vmem:[%s1 + $0x160] sm:$0xff]
  %v89 = vld [vmem:[%s1 + $0x168] sm:$0xff]
  %v90 = vld [vmem:[%s1 + $0x170] sm:$0xff]
  %v91 = vld [vmem:[%s1 + $0x178] sm:$0xff]
  %v92 = vld [vmem:[%s1 + $0x180] sm:$0xff]
  %v93 = vld [vmem:[%s1 + $0x188] sm:$0xff]
  %v94 = vld [vmem:[%s1 + $0x190] sm:$0xff]
  %v95 = vld [vmem:[%s1 + $0x198] sm:$0xff]
  %v96 = vld [vmem:[%s1 + $0x1a0] sm:$0xff]
  %v97 = vld [vmem:[%s1 + $0x1a8] sm:$0xff]
  %v98 = vld [vmem:[%s1 + $0x1b0] sm:$0xff]
  %v99 = vld [vmem:[%s1 + $0x1b8] sm:$0xff]
  %v100 = vld [vmem:[%s1 + $0x1c0] sm:$0xff]
  %v101 = vld [vmem:[%s1 + $0x1c8] sm:$0xff]
  %v102 = vld [vmem:[%s1 + $0x1d0] sm:$0xff]
  %v103 = vld [vmem:[%s1 + $0x1d8] sm:$0xff]
  %v104 = vld [vmem:[%s1 + $0x1e0] sm:$0xff]
  %v105 = vld [vmem:[%s1 + $0x1e8] sm:$0xff]
  %v106 = vld [vmem:[%s1 + $0x1f0] sm:$0xff]
  %v107 = vld [vmem:[%s1 + $0x1f8] sm:$0xff]
  %v108 = vld [vmem:[%s1 + $0x200] sm:$0xff]
  %v109 = vld [vmem:[%s1 + $0x208] sm:$0xff]
  %v110 = vld [vmem:[%s1 + $0x210] sm:$0xff]
  %v111 = vld [vmem:[%s1 + $0x218] sm:$0xff]
  %v112 = vld [vmem:[%s1 + $0x220] sm:$0xff]
  %v113 = vld [vmem:[%s1 + $0x228] sm:$0xff]
  %v114 = vld [vmem:[%s1 + $0x230] sm:$0xff]
  %v115 = vld [vmem:[%s1 + $0x238] sm:$0xff]
  %v116 = vld [vmem:[%s1 + $0x240] sm:$0xff]
  %v117 = vld [vmem:[%s1 + $0x248] sm:$0xff]
  %v118 = vld [vmem:[%s1 + $0x250] sm:$0xff]
  %v119 = vld [vmem:[%s1 + $0x258] sm:$0xff]
  %v120 = vld [vmem:[%s1 + $0x260] sm:$0xff]
  %v121 = vld [vmem:[%s1 + $0x268] sm:$0xff]
  %v122 = vld [vmem:[%s1 + $0x270] sm:$0xff]
  %v123 = vld [vmem:[%s1 + $0x278] sm:$0xff]
  %v124 = vld [vmem:[%s1 + $0x280] sm:$0xff]
  %v125 = vld [vmem:[%s1 + $0x288] sm:$0xff]
  %v126 = vld [vmem:[%s1 + $0x290] sm:$0xff]
  %v127 = vld [vmem:[%s1 + $0x298] sm:$0xff]
  %v128 = vld [vmem:[%s1 + $0x2a0] sm:$0xff]
  %v129 = vld [vmem:[%s1 + $0x2a8] sm:$0xff]
  %v130 = vld [vmem:[%s1 + $0x2b0] sm:$0xff]
  %v131 = vld [vmem:[%s1 + $0x2b8] sm:$0xff]
  %v132 = vld [vmem:[%s1 + $0x2c0] sm:$0xff]
  %v133 = vld [vmem:[%s1 + $0x2c8] sm:$0xff]
  %v164 = vunpack.c.l.b16 %v14
  %v165 = vunpack.c.h.b16 %v14
  %v166 = vunpack.c.l.b16 %v15
  %v167 = vunpack.c.h.b16 %v15
  %v168 = vunpack.c.l.b16 %v16
  %v169 = vunpack.c.h.b16 %v16
  %v170 = vunpack.c.l.b16 %v17
  %v171 = vunpack.c.h.b16 %v17
  %v172 = vunpack.c.l.b16 %v18
  %v173 = vunpack.c.h.b16 %v18
  %v174 = vunpack.c.l.b16 %v19
  %v175 = vunpack.c.h.b16 %v19
  %v176 = vunpack.c.l.b16 %v20
  %v177 = vunpack.c.h.b16 %v20
  %v178 = vunpack.c.l.b16 %v21
  %v179 = vunpack.c.h.b16 %v21
  %v180 = vunpack.c.l.b16 %v22
  %v181 = vunpack.c.h.b16 %v22
  %v182 = vunpack.c.l.b16 %v23
  %v183 = vunpack.c.h.b16 %v23
  %v184 = vunpack.c.l.b16 %v24
  %v185 = vunpack.c.h.b16 %v24
  %v186 = vunpack.c.l.b16 %v25
  %v187 = vunpack.c.h.b16 %v25
  %v188 = vunpack.c.l.b16 %v26
  %v189 = vunpack.c.h.b16 %v26
  %v190 = vunpack.c.l.b16 %v27
  %v191 = vunpack.c.h.b16 %v27
  %v192 = vunpack.c.l.b16 %v28
  %v193 = vunpack.c.h.b16 %v28
  %v194 = vunpack.c.l.b16 %v29
  %v195 = vunpack.c.h.b16 %v29
  %v196 = vunpack.c.l.b16 %v30
  %v197 = vunpack.c.h.b16 %v30
  %v198 = vunpack.c.l.b16 %v31
  %v199 = vunpack.c.h.b16 %v31
  %v200 = vunpack.c.l.b16 %v32
  %v201 = vunpack.c.h.b16 %v32
  %v202 = vunpack.c.l.b16 %v33
  %v203 = vunpack.c.h.b16 %v33
  %v204 = vunpack.c.l.b16 %v34
  %v205 = vunpack.c.h.b16 %v34
  %v206 = vunpack.c.l.b16 %v35
  %v207 = vunpack.c.h.b16 %v35
  %v208 = vunpack.c.l.b16 %v36
  %v209 = vunpack.c.h.b16 %v36
  %v210 = vunpack.c.l.b16 %v37
  %v211 = vunpack.c.h.b16 %v37
  %v212 = vunpack.c.l.b16 %v38
  %v213 = vunpack.c.h.b16 %v38
  %v214 = vunpack.c.l.b16 %v39
  %v215 = vunpack.c.h.b16 %v39
  %v216 = vunpack.c.l.b16 %v40
  %v217 = vunpack.c.h.b16 %v40
  %v218 = vunpack.c.l.b16 %v41
  %v219 = vunpack.c.h.b16 %v41
  %v220 = vunpack.c.l.b16 %v42
  %v221 = vunpack.c.h.b16 %v42
  %v222 = vunpack.c.l.b16 %v43
  %v223 = vunpack.c.h.b16 %v43
  %v224 = vpack.c.b16 %v170, %v164
  %v225 = vpack.c.b16 %v171, %v165
  %v226 = vpack.c.b16 %v172, %v166
  %v227 = vpack.c.b16 %v173, %v167
  %v228 = vpack.c.b16 %v174, %v168
  %v229 = vpack.c.b16 %v175, %v169
  %v230 = vpack.c.b16 %v182, %v176
  %v231 = vpack.c.b16 %v183, %v177
  %v232 = vpack.c.b16 %v184, %v178
  %v233 = vpack.c.b16 %v185, %v179
  %v234 = vpack.c.b16 %v186, %v180
  %v235 = vpack.c.b16 %v187, %v181
  %v236 = vpack.c.b16 %v194, %v188
  %v237 = vpack.c.b16 %v195, %v189
  %v238 = vpack.c.b16 %v196, %v190
  %v239 = vpack.c.b16 %v197, %v191
  %v240 = vpack.c.b16 %v198, %v192
  %v241 = vpack.c.b16 %v199, %v193
  %v242 = vpack.c.b16 %v206, %v200
  %v243 = vpack.c.b16 %v207, %v201
  %v244 = vpack.c.b16 %v208, %v202
  %v245 = vpack.c.b16 %v209, %v203
  %v246 = vpack.c.b16 %v210, %v204
  %v247 = vpack.c.b16 %v211, %v205
  %v248 = vpack.c.b16 %v218, %v212
  %v249 = vpack.c.b16 %v219, %v213
  %v250 = vpack.c.b16 %v220, %v214
  %v251 = vpack.c.b16 %v221, %v215
  %v252 = vpack.c.b16 %v222, %v216
  %v253 = vpack.c.b16 %v223, %v217
  %v369 = vunpack.c.l.b16 %v44
  %v370 = vunpack.c.h.b16 %v44
  %v371 = vunpack.c.l.b16 %v45
  %v372 = vunpack.c.h.b16 %v45
  %v373 = vunpack.c.l.b16 %v46
  %v374 = vunpack.c.h.b16 %v46
  %v375 = vunpack.c.l.b16 %v47
  %v376 = vunpack.c.h.b16 %v47
  %v377 = vunpack.c.l.b16 %v48
  %v378 = vunpack.c.h.b16 %v48
  %v379 = vunpack.c.l.b16 %v49
  %v380 = vunpack.c.h.b16 %v49
  %v381 = vunpack.c.l.b16 %v50
  %v382 = vunpack.c.h.b16 %v50
  %v383 = vunpack.c.l.b16 %v51
  %v384 = vunpack.c.h.b16 %v51
  %v385 = vunpack.c.l.b16 %v52
  %v386 = vunpack.c.h.b16 %v52
  %v387 = vunpack.c.l.b16 %v53
  %v388 = vunpack.c.h.b16 %v53
  %v389 = vunpack.c.l.b16 %v54
  %v390 = vunpack.c.h.b16 %v54
  %v391 = vunpack.c.l.b16 %v55
  %v392 = vunpack.c.h.b16 %v55
  %v393 = vunpack.c.l.b16 %v56
  %v394 = vunpack.c.h.b16 %v56
  %v395 = vunpack.c.l.b16 %v57
  %v396 = vunpack.c.h.b16 %v57
  %v397 = vunpack.c.l.b16 %v58
  %v398 = vunpack.c.h.b16 %v58
  %v399 = vunpack.c.l.b16 %v59
  %v400 = vunpack.c.h.b16 %v59
  %v401 = vunpack.c.l.b16 %v60
  %v402 = vunpack.c.h.b16 %v60
  %v403 = vunpack.c.l.b16 %v61
  %v404 = vunpack.c.h.b16 %v61
  %v405 = vunpack.c.l.b16 %v62
  %v406 = vunpack.c.h.b16 %v62
  %v407 = vunpack.c.l.b16 %v63
  %v408 = vunpack.c.h.b16 %v63
  %v409 = vunpack.c.l.b16 %v64
  %v410 = vunpack.c.h.b16 %v64
  %v411 = vunpack.c.l.b16 %v65
  %v412 = vunpack.c.h.b16 %v65
  %v413 = vunpack.c.l.b16 %v66
  %v414 = vunpack.c.h.b16 %v66
  %v415 = vunpack.c.l.b16 %v67
  %v416 = vunpack.c.h.b16 %v67
  %v417 = vunpack.c.l.b16 %v68
  %v418 = vunpack.c.h.b16 %v68
  %v419 = vunpack.c.l.b16 %v69
  %v420 = vunpack.c.h.b16 %v69
  %v421 = vunpack.c.l.b16 %v70
  %v422 = vunpack.c.h.b16 %v70
  %v423 = vunpack.c.l.b16 %v71
  %v424 = vunpack.c.h.b16 %v71
  %v425 = vunpack.c.l.b16 %v72
  %v426 = vunpack.c.h.b16 %v72
  %v427 = vunpack.c.l.b16 %v73
  %v428 = vunpack.c.h.b16 %v73
  %v429 = vunpack.c.l.b16 %v74
  %v430 = vunpack.c.h.b16 %v74
  %v431 = vunpack.c.l.b16 %v75
  %v432 = vunpack.c.h.b16 %v75
  %v433 = vunpack.c.l.b16 %v76
  %v434 = vunpack.c.h.b16 %v76
  %v435 = vunpack.c.l.b16 %v77
  %v436 = vunpack.c.h.b16 %v77
  %v437 = vunpack.c.l.b16 %v78
  %v438 = vunpack.c.h.b16 %v78
  %v439 = vunpack.c.l.b16 %v79
  %v440 = vunpack.c.h.b16 %v79
  %v441 = vunpack.c.l.b16 %v80
  %v442 = vunpack.c.h.b16 %v80
  %v443 = vunpack.c.l.b16 %v81
  %v444 = vunpack.c.h.b16 %v81
  %v445 = vunpack.c.l.b16 %v82
  %v446 = vunpack.c.h.b16 %v82
  %v447 = vunpack.c.l.b16 %v83
  %v448 = vunpack.c.h.b16 %v83
  %v449 = vunpack.c.l.b16 %v84
  %v450 = vunpack.c.h.b16 %v84
  %v451 = vunpack.c.l.b16 %v85
  %v452 = vunpack.c.h.b16 %v85
  %v453 = vunpack.c.l.b16 %v86
  %v454 = vunpack.c.h.b16 %v86
  %v455 = vunpack.c.l.b16 %v87
  %v456 = vunpack.c.h.b16 %v87
  %v457 = vunpack.c.l.b16 %v88
  %v458 = vunpack.c.h.b16 %v88
  %v459 = vunpack.c.l.b16 %v89
  %v460 = vunpack.c.h.b16 %v89
  %v461 = vunpack.c.l.b16 %v90
  %v462 = vunpack.c.h.b16 %v90
  %v463 = vunpack.c.l.b16 %v91
  %v464 = vunpack.c.h.b16 %v91
  %v465 = vunpack.c.l.b16 %v92
  %v466 = vunpack.c.h.b16 %v92
  %v467 = vunpack.c.l.b16 %v93
  %v468 = vunpack.c.h.b16 %v93
  %v469 = vunpack.c.l.b16 %v94
  %v470 = vunpack.c.h.b16 %v94
  %v471 = vunpack.c.l.b16 %v95
  %v472 = vunpack.c.h.b16 %v95
  %v473 = vunpack.c.l.b16 %v96
  %v474 = vunpack.c.h.b16 %v96
  %v475 = vunpack.c.l.b16 %v97
  %v476 = vunpack.c.h.b16 %v97
  %v477 = vunpack.c.l.b16 %v98
  %v478 = vunpack.c.h.b16 %v98
  %v479 = vunpack.c.l.b16 %v99
  %v480 = vunpack.c.h.b16 %v99
  %v481 = vunpack.c.l.b16 %v100
  %v482 = vunpack.c.h.b16 %v100
  %v483 = vunpack.c.l.b16 %v101
  %v484 = vunpack.c.h.b16 %v101
  %v485 = vunpack.c.l.b16 %v102
  %v486 = vunpack.c.h.b16 %v102
  %v487 = vunpack.c.l.b16 %v103
  %v488 = vunpack.c.h.b16 %v103
  %v489 = vunpack.c.l.b16 %v104
  %v490 = vunpack.c.h.b16 %v104
  %v491 = vunpack.c.l.b16 %v105
  %v492 = vunpack.c.h.b16 %v105
  %v493 = vunpack.c.l.b16 %v106
  %v494 = vunpack.c.h.b16 %v106
  %v495 = vunpack.c.l.b16 %v107
  %v496 = vunpack.c.h.b16 %v107
  %v497 = vunpack.c.l.b16 %v108
  %v498 = vunpack.c.h.b16 %v108
  %v499 = vunpack.c.l.b16 %v109
  %v500 = vunpack.c.h.b16 %v109
  %v501 = vunpack.c.l.b16 %v110
  %v502 = vunpack.c.h.b16 %v110
  %v503 = vunpack.c.l.b16 %v111
  %v504 = vunpack.c.h.b16 %v111
  %v505 = vunpack.c.l.b16 %v112
  %v506 = vunpack.c.h.b16 %v112
  %v507 = vunpack.c.l.b16 %v113
  %v508 = vunpack.c.h.b16 %v113
  %v509 = vunpack.c.l.b16 %v114
  %v510 = vunpack.c.h.b16 %v114
  %v511 = vunpack.c.l.b16 %v115
  %v512 = vunpack.c.h.b16 %v115
  %v513 = vunpack.c.l.b16 %v116
  %v514 = vunpack.c.h.b16 %v116
  %v515 = vunpack.c.l.b16 %v117
  %v516 = vunpack.c.h.b16 %v117
  %v517 = vunpack.c.l.b16 %v118
  %v518 = vunpack.c.h.b16 %v118
  %v519 = vunpack.c.l.b16 %v119
  %v520 = vunpack.c.h.b16 %v119
  %v521 = vunpack.c.l.b16 %v120
  %v522 = vunpack.c.h.b16 %v120
  %v523 = vunpack.c.l.b16 %v121
  %v524 = vunpack.c.h.b16 %v121
  %v525 = vunpack.c.l.b16 %v122
  %v526 = vunpack.c.h.b16 %v122
  %v527 = vunpack.c.l.b16 %v123
  %v528 = vunpack.c.h.b16 %v123
  %v529 = vunpack.c.l.b16 %v124
  %v530 = vunpack.c.h.b16 %v124
  %v531 = vunpack.c.l.b16 %v125
  %v532 = vunpack.c.h.b16 %v125
  %v533 = vunpack.c.l.b16 %v126
  %v534 = vunpack.c.h.b16 %v126
  %v535 = vunpack.c.l.b16 %v127
  %v536 = vunpack.c.h.b16 %v127
  %v537 = vunpack.c.l.b16 %v128
  %v538 = vunpack.c.h.b16 %v128
  %v539 = vunpack.c.l.b16 %v129
  %v540 = vunpack.c.h.b16 %v129
  %v541 = vunpack.c.l.b16 %v130
  %v542 = vunpack.c.h.b16 %v130
  %v543 = vunpack.c.l.b16 %v131
  %v544 = vunpack.c.h.b16 %v131
  %v545 = vunpack.c.l.b16 %v132
  %v546 = vunpack.c.h.b16 %v132
  %v547 = vunpack.c.l.b16 %v133
  %v548 = vunpack.c.h.b16 %v133
  %v549 = vpack.c.b16 %v371, %v369
  %v550 = vpack.c.b16 %v372, %v370
  %v551 = vpack.c.b16 %v375, %v373
  %v552 = vpack.c.b16 %v376, %v374
  %v553 = vpack.c.b16 %v379, %v377
  %v554 = vpack.c.b16 %v380, %v378
  %v555 = vpack.c.b16 %v383, %v381
  %v556 = vpack.c.b16 %v384, %v382
  %v557 = vpack.c.b16 %v387, %v385
  %v558 = vpack.c.b16 %v388, %v386
  %v559 = vpack.c.b16 %v391, %v389
  %v560 = vpack.c.b16 %v392, %v390
  %v561 = vpack.c.b16 %v395, %v393
  %v562 = vpack.c.b16 %v396, %v394
  %v563 = vpack.c.b16 %v399, %v397
  %v564 = vpack.c.b16 %v400, %v398
  %v565 = vpack.c.b16 %v403, %v401
  %v566 = vpack.c.b16 %v404, %v402
  %v567 = vpack.c.b16 %v407, %v405
  %v568 = vpack.c.b16 %v408, %v406
  %v569 = vpack.c.b16 %v411, %v409
  %v570 = vpack.c.b16 %v412, %v410
  %v571 = vpack.c.b16 %v415, %v413
  %v572 = vpack.c.b16 %v416, %v414
  %v573 = vpack.c.b16 %v419, %v417
  %v574 = vpack.c.b16 %v420, %v418
  %v575 = vpack.c.b16 %v423, %v421
  %v576 = vpack.c.b16 %v424, %v422
  %v577 = vpack.c.b16 %v427, %v425
  %v578 = vpack.c.b16 %v428, %v426
  %v579 = vpack.c.b16 %v431, %v429
  %v580 = vpack.c.b16 %v432, %v430
  %v581 = vpack.c.b16 %v435, %v433
  %v582 = vpack.c.b16 %v436, %v434
  %v583 = vpack.c.b16 %v439, %v437
  %v584 = vpack.c.b16 %v440, %v438
  %v585 = vpack.c.b16 %v443, %v441
  %v586 = vpack.c.b16 %v444, %v442
  %v587 = vpack.c.b16 %v447, %v445
  %v588 = vpack.c.b16 %v448, %v446
  %v589 = vpack.c.b16 %v451, %v449
  %v590 = vpack.c.b16 %v452, %v450
  %v591 = vpack.c.b16 %v455, %v453
  %v592 = vpack.c.b16 %v456, %v454
  %v593 = vpack.c.b16 %v459, %v457
  %v594 = vpack.c.b16 %v460, %v458
  %v595 = vpack.c.b16 %v463, %v461
  %v596 = vpack.c.b16 %v464, %v462
  %v597 = vpack.c.b16 %v467, %v465
  %v598 = vpack.c.b16 %v468, %v466
  %v599 = vpack.c.b16 %v471, %v469
  %v600 = vpack.c.b16 %v472, %v470
  %v601 = vpack.c.b16 %v475, %v473
  %v602 = vpack.c.b16 %v476, %v474
  %v603 = vpack.c.b16 %v479, %v477
  %v604 = vpack.c.b16 %v480, %v478
  %v605 = vpack.c.b16 %v483, %v481
  %v606 = vpack.c.b16 %v484, %v482
  %v607 = vpack.c.b16 %v487, %v485
  %v608 = vpack.c.b16 %v488, %v486
  %v609 = vpack.c.b16 %v491, %v489
  %v610 = vpack.c.b16 %v492, %v490
  %v611 = vpack.c.b16 %v495, %v493
  %v612 = vpack.c.b16 %v496, %v494
  %v613 = vpack.c.b16 %v499, %v497
  %v614 = vpack.c.b16 %v500, %v498
  %v615 = vpack.c.b16 %v503, %v501
  %v616 = vpack.c.b16 %v504, %v502
  %v617 = vpack.c.b16 %v507, %v505
  %v618 = vpack.c.b16 %v508, %v506
  %v619 = vpack.c.b16 %v511, %v509
  %v620 = vpack.c.b16 %v512, %v510
  %v621 = vpack.c.b16 %v515, %v513
  %v622 = vpack.c.b16 %v516, %v514
  %v623 = vpack.c.b16 %v519, %v517
  %v624 = vpack.c.b16 %v520, %v518
  %v625 = vpack.c.b16 %v523, %v521
  %v626 = vpack.c.b16 %v524, %v522
  %v627 = vpack.c.b16 %v527, %v525
  %v628 = vpack.c.b16 %v528, %v526
  %v629 = vpack.c.b16 %v531, %v529
  %v630 = vpack.c.b16 %v532, %v530
  %v631 = vpack.c.b16 %v535, %v533
  %v632 = vpack.c.b16 %v536, %v534
  %v633 = vpack.c.b16 %v539, %v537
  %v634 = vpack.c.b16 %v540, %v538
  %v635 = vpack.c.b16 %v543, %v541
  %v636 = vpack.c.b16 %v544, %v542
  %v637 = vpack.c.b16 %v547, %v545
  %v638 = vpack.c.b16 %v548, %v546
  %vm729 = vcmask 654336
  %v731 = vsel %vm729, %v229, 0
  %v734 = vsel %vm729, %v235, 0
  %v737 = vsel %vm729, %v241, 0
  %v740 = vsel %vm729, %v247, 0
  %v743 = vsel %vm729, %v253, 0
  %745 = vmatprep.subr.bf16.mxu0 %v564
  %746 = vmatpush1.bf16.msra.mxu0 %v563
  %747 = vmatprep.subr.bf16.mxu0 %v562
  %748 = vmatpush1.bf16.msra.mxu0 %v561
  %749 = vmatprep.subr.bf16.mxu0 %v560
  %750 = vmatpush1.bf16.msra.mxu0 %v559
  %751 = vmatprep.subr.bf16.mxu0 %v558
  %752 = vmatpush1.bf16.msra.mxu0 %v557
  %753 = vmatprep.subr.bf16.mxu0 %v556
  %754 = vmatpush1.bf16.msra.mxu0 %v555
  %755 = vmatprep.subr.bf16.mxu0 %v554
  %756 = vmatpush1.bf16.msra.mxu0 %v553
  %757 = vmatprep.subr.bf16.mxu0 %v552
  %758 = vmatpush1.bf16.msra.mxu0 %v551
  %759 = vmatprep.subr.bf16.mxu0 %v550
  %760 = vmatpush1.bf16.msra.mxu0 %v549
  %761 = vmatprep.subr.bf16.mxu0 %v580
  %762 = vmatpush2.bf16.msra.mxu0 %v579
  %763 = vmatprep.subr.bf16.mxu0 %v578
  %764 = vmatpush2.bf16.msra.mxu0 %v577
  %765 = vmatprep.subr.bf16.mxu0 %v576
  %766 = vmatpush2.bf16.msra.mxu0 %v575
  %767 = vmatprep.subr.bf16.mxu0 %v574
  %768 = vmatpush2.bf16.msra.mxu0 %v573
  %769 = vmatprep.subr.bf16.mxu0 %v572
  %770 = vmatpush2.bf16.msra.mxu0 %v571
  %771 = vmatprep.subr.bf16.mxu0 %v570
  %772 = vmatpush2.bf16.msra.mxu0 %v569
  %773 = vmatprep.subr.bf16.mxu0 %v568
  %774 = vmatpush2.bf16.msra.mxu0 %v567
  %775 = vmatprep.subr.bf16.mxu0 %v566
  %776 = vmatpush2.bf16.msra.mxu0 %v565
  %777 = vmatprep.mubr.bf16.mxu0 %v225
  %778 = vmatmul.mubr.bf16.gmra.mxu0 %v224
  %v779 = vpop.f32.mrf.mxu0
  %v780 = vadd.f32 0.0, %v779
  %v781 = vpop.f32.mrf.mxu0
  %v782 = vadd.f32 0.0, %v781
  %v783 = vpop.f32.mrf.mxu0
  %v784 = vadd.f32 0.0, %v783
  %v785 = vpop.f32.mrf.mxu0
  %v786 = vadd.f32 0.0, %v785
  %787 = vmatprep.mubr.bf16.mxu0 %v231
  %788 = vmatmul.mubr.bf16.gmra.mxu0 %v230
  %v789 = vpop.f32.mrf.mxu0
  %v790 = vadd.f32 0.0, %v789
  %v791 = vpop.f32.mrf.mxu0
  %v792 = vadd.f32 0.0, %v791
  %v793 = vpop.f32.mrf.mxu0
  %v794 = vadd.f32 0.0, %v793
  %v795 = vpop.f32.mrf.mxu0
  %v796 = vadd.f32 0.0, %v795
  %797 = vmatprep.mubr.bf16.mxu0 %v237
  %798 = vmatmul.mubr.bf16.gmra.mxu0 %v236
  %v799 = vpop.f32.mrf.mxu0
  %v800 = vadd.f32 0.0, %v799
  %v801 = vpop.f32.mrf.mxu0
  %v802 = vadd.f32 0.0, %v801
  %v803 = vpop.f32.mrf.mxu0
  %v804 = vadd.f32 0.0, %v803
  %v805 = vpop.f32.mrf.mxu0
  %v806 = vadd.f32 0.0, %v805
  %807 = vmatprep.mubr.bf16.mxu0 %v243
  %808 = vmatmul.mubr.bf16.gmra.mxu0 %v242
  %v809 = vpop.f32.mrf.mxu0
  %v810 = vadd.f32 0.0, %v809
  %v811 = vpop.f32.mrf.mxu0
  %v812 = vadd.f32 0.0, %v811
  %v813 = vpop.f32.mrf.mxu0
  %v814 = vadd.f32 0.0, %v813
  %v815 = vpop.f32.mrf.mxu0
  %v816 = vadd.f32 0.0, %v815
  %817 = vmatprep.mubr.bf16.mxu0 %v249
  %818 = vmatmul.mubr.bf16.gmra.mxu0 %v248
  %v819 = vpop.f32.mrf.mxu0
  %v820 = vadd.f32 0.0, %v819
  %v821 = vpop.f32.mrf.mxu0
  %v822 = vadd.f32 0.0, %v821
  %v823 = vpop.f32.mrf.mxu0
  %v824 = vadd.f32 0.0, %v823
  %v825 = vpop.f32.mrf.mxu0
  %v826 = vadd.f32 0.0, %v825
  %827 = vdwg.mxu0
  %828 = vmatprep.subr.bf16.mxu0 %v596
  %829 = vmatpush1.bf16.msra.mxu0 %v595
  %830 = vmatprep.subr.bf16.mxu0 %v594
  %831 = vmatpush1.bf16.msra.mxu0 %v593
  %832 = vmatprep.subr.bf16.mxu0 %v592
  %833 = vmatpush1.bf16.msra.mxu0 %v591
  %834 = vmatprep.subr.bf16.mxu0 %v590
  %835 = vmatpush1.bf16.msra.mxu0 %v589
  %836 = vmatprep.subr.bf16.mxu0 %v588
  %837 = vmatpush1.bf16.msra.mxu0 %v587
  %838 = vmatprep.subr.bf16.mxu0 %v586
  %839 = vmatpush1.bf16.msra.mxu0 %v585
  %840 = vmatprep.subr.bf16.mxu0 %v584
  %841 = vmatpush1.bf16.msra.mxu0 %v583
  %842 = vmatprep.subr.bf16.mxu0 %v582
  %843 = vmatpush1.bf16.msra.mxu0 %v581
  %844 = vmatprep.subr.bf16.mxu0 %v612
  %845 = vmatpush2.bf16.msra.mxu0 %v611
  %846 = vmatprep.subr.bf16.mxu0 %v610
  %847 = vmatpush2.bf16.msra.mxu0 %v609
  %848 = vmatprep.subr.bf16.mxu0 %v608
  %849 = vmatpush2.bf16.msra.mxu0 %v607
  %850 = vmatprep.subr.bf16.mxu0 %v606
  %851 = vmatpush2.bf16.msra.mxu0 %v605
  %852 = vmatprep.subr.bf16.mxu0 %v604
  %853 = vmatpush2.bf16.msra.mxu0 %v603
  %854 = vmatprep.subr.bf16.mxu0 %v602
  %855 = vmatpush2.bf16.msra.mxu0 %v601
  %856 = vmatprep.subr.bf16.mxu0 %v600
  %857 = vmatpush2.bf16.msra.mxu0 %v599
  %858 = vmatprep.subr.bf16.mxu0 %v598
  %859 = vmatpush2.bf16.msra.mxu0 %v597
  %860 = vmatprep.mubr.bf16.mxu0 %v227
  %861 = vmatmul.mubr.bf16.gmra.mxu0 %v226
  %v862 = vpop.f32.mrf.mxu0
  %v863 = vadd.f32 %v780, %v862
  %v864 = vpop.f32.mrf.mxu0
  %v865 = vadd.f32 %v782, %v864
  %v866 = vpop.f32.mrf.mxu0
  %v867 = vadd.f32 %v784, %v866
  %v868 = vpop.f32.mrf.mxu0
  %v869 = vadd.f32 %v786, %v868
  %870 = vmatprep.mubr.bf16.mxu0 %v233
  %871 = vmatmul.mubr.bf16.gmra.mxu0 %v232
  %v872 = vpop.f32.mrf.mxu0
  %v873 = vadd.f32 %v790, %v872
  %v874 = vpop.f32.mrf.mxu0
  %v875 = vadd.f32 %v792, %v874
  %v876 = vpop.f32.mrf.mxu0
  %v877 = vadd.f32 %v794, %v876
  %v878 = vpop.f32.mrf.mxu0
  %v879 = vadd.f32 %v796, %v878
  %880 = vmatprep.mubr.bf16.mxu0 %v239
  %881 = vmatmul.mubr.bf16.gmra.mxu0 %v238
  %v882 = vpop.f32.mrf.mxu0
  %v883 = vadd.f32 %v800, %v882
  %v884 = vpop.f32.mrf.mxu0
  %v885 = vadd.f32 %v802, %v884
  %v886 = vpop.f32.mrf.mxu0
  %v887 = vadd.f32 %v804, %v886
  %v888 = vpop.f32.mrf.mxu0
  %v889 = vadd.f32 %v806, %v888
  %890 = vmatprep.mubr.bf16.mxu0 %v245
  %891 = vmatmul.mubr.bf16.gmra.mxu0 %v244
  %v892 = vpop.f32.mrf.mxu0
  %v893 = vadd.f32 %v810, %v892
  %v894 = vpop.f32.mrf.mxu0
  %v895 = vadd.f32 %v812, %v894
  %v896 = vpop.f32.mrf.mxu0
  %v897 = vadd.f32 %v814, %v896
  %v898 = vpop.f32.mrf.mxu0
  %v899 = vadd.f32 %v816, %v898
  %900 = vmatprep.mubr.bf16.mxu0 %v251
  %901 = vmatmul.mubr.bf16.gmra.mxu0 %v250
  %v902 = vpop.f32.mrf.mxu0
  %v903 = vadd.f32 %v820, %v902
  %v904 = vpop.f32.mrf.mxu0
  %v905 = vadd.f32 %v822, %v904
  %v906 = vpop.f32.mrf.mxu0
  %v907 = vadd.f32 %v824, %v906
  %v908 = vpop.f32.mrf.mxu0
  %v909 = vadd.f32 %v826, %v908
  %910 = vdwg.mxu0
  %911 = vmatprep.subr.bf16.mxu0 %v628
  %912 = vmatpush1.bf16.msra.mxu0 %v627
  %913 = vmatprep.subr.bf16.mxu0 %v626
  %914 = vmatpush1.bf16.msra.mxu0 %v625
  %915 = vmatprep.subr.bf16.mxu0 %v624
  %916 = vmatpush1.bf16.msra.mxu0 %v623
  %917 = vmatprep.subr.bf16.mxu0 %v622
  %918 = vmatpush1.bf16.msra.mxu0 %v621
  %919 = vmatprep.subr.bf16.mxu0 %v620
  %920 = vmatpush1.bf16.msra.mxu0 %v619
  %921 = vmatprep.subr.bf16.mxu0 %v618
  %922 = vmatpush1.bf16.msra.mxu0 %v617
  %923 = vmatprep.subr.bf16.mxu0 %v616
  %924 = vmatpush1.bf16.msra.mxu0 %v615
  %925 = vmatprep.subr.bf16.mxu0 %v614
  %926 = vmatpush1.bf16.msra.mxu0 %v613
  %927 = vmatprep.subr.bf16.mxu0 0
  %928 = vmatpush2.bf16.msra.mxu0 0
  %929 = vmatprep.subr.bf16.mxu0 0
  %930 = vmatpush2.bf16.msra.mxu0 0
  %931 = vmatprep.subr.bf16.mxu0 0
  %932 = vmatpush2.bf16.msra.mxu0 0
  %933 = vmatprep.subr.bf16.mxu0 %v638
  %934 = vmatpush2.bf16.msra.mxu0 %v637
  %935 = vmatprep.subr.bf16.mxu0 %v636
  %936 = vmatpush2.bf16.msra.mxu0 %v635
  %937 = vmatprep.subr.bf16.mxu0 %v634
  %938 = vmatpush2.bf16.msra.mxu0 %v633
  %939 = vmatprep.subr.bf16.mxu0 %v632
  %940 = vmatpush2.bf16.msra.mxu0 %v631
  %941 = vmatprep.subr.bf16.mxu0 %v630
  %942 = vmatpush2.bf16.msra.mxu0 %v629
  %943 = vmatprep.mubr.bf16.mxu0 %v731
  %944 = vmatmul.mubr.bf16.gmra.mxu0 %v228
  %v945 = vpop.f32.mrf.mxu0
  %v946 = vadd.f32 %v863, %v945
  %v947 = vpop.f32.mrf.mxu0
  %v948 = vadd.f32 %v865, %v947
  %v949 = vpop.f32.mrf.mxu0
  %v950 = vadd.f32 %v867, %v949
  %v951 = vpop.f32.mrf.mxu0
  %v952 = vadd.f32 %v869, %v951
  %953 = vmatprep.mubr.bf16.mxu0 %v734
  %954 = vmatmul.mubr.bf16.gmra.mxu0 %v234
  %v955 = vpop.f32.mrf.mxu0
  %v956 = vadd.f32 %v873, %v955
  %v957 = vpop.f32.mrf.mxu0
  %v958 = vadd.f32 %v875, %v957
  %v959 = vpop.f32.mrf.mxu0
  %v960 = vadd.f32 %v877, %v959
  %v961 = vpop.f32.mrf.mxu0
  %v962 = vadd.f32 %v879, %v961
  %963 = vmatprep.mubr.bf16.mxu0 %v737
  %964 = vmatmul.mubr.bf16.gmra.mxu0 %v240
  %v965 = vpop.f32.mrf.mxu0
  %v966 = vadd.f32 %v883, %v965
  %v967 = vpop.f32.mrf.mxu0
  %v968 = vadd.f32 %v885, %v967
  %v969 = vpop.f32.mrf.mxu0
  %v970 = vadd.f32 %v887, %v969
  %v971 = vpop.f32.mrf.mxu0
  %v972 = vadd.f32 %v889, %v971
  %973 = vmatprep.mubr.bf16.mxu0 %v740
  %974 = vmatmul.mubr.bf16.gmra.mxu0 %v246
  %v975 = vpop.f32.mrf.mxu0
  %v976 = vadd.f32 %v893, %v975
  %v977 = vpop.f32.mrf.mxu0
  %v978 = vadd.f32 %v895, %v977
  %v979 = vpop.f32.mrf.mxu0
  %v980 = vadd.f32 %v897, %v979
  %v981 = vpop.f32.mrf.mxu0
  %v982 = vadd.f32 %v899, %v981
  %983 = vmatprep.mubr.bf16.mxu0 %v743
  %984 = vmatmul.mubr.bf16.gmra.mxu0 %v252
  %v985 = vpop.f32.mrf.mxu0
  %v986 = vadd.f32 %v903, %v985
  %v987 = vpop.f32.mrf.mxu0
  %v988 = vadd.f32 %v905, %v987
  %v989 = vpop.f32.mrf.mxu0
  %v990 = vadd.f32 %v907, %v989
  %v991 = vpop.f32.mrf.mxu0
  %v992 = vadd.f32 %v909, %v991
  %993 = vdwg.mxu0
  %994 = vst [vmem:[%s2] sm:$0xff] %v946
  %995 = vst [vmem:[%s2 + $0x8] sm:$0xff] %v948
  %996 = vst [vmem:[%s2 + $0x10] sm:$0xff] %v950
  %997 = vst [vmem:[%s2 + $0x18] sm:$0xff] %v952
  %998 = vst [vmem:[%s2 + $0x20] sm:$0xff] %v956
  %999 = vst [vmem:[%s2 + $0x28] sm:$0xff] %v958
  %1000 = vst [vmem:[%s2 + $0x30] sm:$0xff] %v960
  %1001 = vst [vmem:[%s2 + $0x38] sm:$0xff] %v962
  %1002 = vst [vmem:[%s2 + $0x40] sm:$0xff] %v966
  %1003 = vst [vmem:[%s2 + $0x48] sm:$0xff] %v968
  %1004 = vst [vmem:[%s2 + $0x50] sm:$0xff] %v970
  %1005 = vst [vmem:[%s2 + $0x58] sm:$0xff] %v972
  %1006 = vst [vmem:[%s2 + $0x60] sm:$0xff] %v976
  %1007 = vst [vmem:[%s2 + $0x68] sm:$0xff] %v978
  %1008 = vst [vmem:[%s2 + $0x70] sm:$0xff] %v980
  %1009 = vst [vmem:[%s2 + $0x78] sm:$0xff] %v982
  %1010 = vst [vmem:[%s2 + $0x80] sm:$0xff] %v986
  %1011 = vst [vmem:[%s2 + $0x88] sm:$0xff] %v988
  %1012 = vst [vmem:[%s2 + $0x90] sm:$0xff] %v990
  %1013 = vst [vmem:[%s2 + $0x98] sm:$0xff] %v992
  %p1014 = scmp.eq.s32.totalorder 0, 0
  // Predicated region
  $region10: #{stem_v1_forward.22} parent=0 // pred_check
    %p1015 = pneg %p1014
  $region11: #{stem_v1_forward.22} parent=0 // pred_check_branch
    %1017 = sbr.rel (%p1015) target = $region13
  $region12: #{stem_v1_forward.22} parent=0 // pred_region
    %1018 = vst [vmem:[%s3] sm:$0xf] 0.0
  $region13: #{stem_v1_forward.22} parent=0 // pred_fallthru
    _
  %v1019 = vld [vmem:[%s3] sm:$0xf]
  %v1020 = vadd.f32 %v946, %v950
  %v1021 = vadd.f32 %v1020, %v956
  %v1022 = vadd.f32 %v1021, %v960
  %v1023 = vadd.f32 %v1022, %v966
  %v1024 = vadd.f32 %v1023, %v970
  %v1025 = vadd.f32 %v1024, %v976
  %v1026 = vadd.f32 %v1025, %v980
  %v1027 = vadd.f32 %v1026, %v986
  %v1028 = vadd.f32 %v1027, %v990
  %v1029 = vrot.slane %v1028, 4
  %v1030 = vadd.f32 %v1028, %v1029
  %v1031 = vrot.slane %v1030, 2
  %v1032 = vadd.f32 %v1030, %v1031
  %v1033 = vrot.slane %v1032, 1
  %v1034 = vadd.f32 %v1032, %v1033
  %v1035 = vadd.f32 %v948, %v952
  %v1036 = vadd.f32 %v1035, %v958
  %v1037 = vadd.f32 %v1036, %v962
  %v1038 = vadd.f32 %v1037, %v968
  %v1039 = vadd.f32 %v1038, %v972
  %v1040 = vadd.f32 %v1039, %v978
  %v1041 = vadd.f32 %v1040, %v982
  %v1042 = vadd.f32 %v1041, %v988
  %v1043 = vadd.f32 %v1042, %v992
  %v1044 = vrot.slane %v1043, 4
  %v1045 = vadd.f32 %v1043, %v1044
  %v1046 = vrot.slane %v1045, 2
  %v1047 = vadd.f32 %v1045, %v1046
  %v1048 = vrot.slane %v1047, 1
  %v1049 = vadd.f32 %v1047, %v1048
  %v1050 = vmul.f32 %v946, %v946
  %v1051 = vmul.f32 %v948, %v948
  %v1052 = vmul.f32 %v950, %v950
  %v1053 = vmul.f32 %v952, %v952
  %v1054 = vmul.f32 %v956, %v956
  %v1055 = vmul.f32 %v958, %v958
  %v1056 = vmul.f32 %v960, %v960
  %v1057 = vmul.f32 %v962, %v962
  %v1058 = vmul.f32 %v966, %v966
  %v1059 = vmul.f32 %v968, %v968
  %v1060 = vmul.f32 %v970, %v970
  %v1061 = vmul.f32 %v972, %v972
  %v1062 = vmul.f32 %v976, %v976
  %v1063 = vmul.f32 %v978, %v978
  %v1064 = vmul.f32 %v980, %v980
  %v1065 = vmul.f32 %v982, %v982
  %v1066 = vmul.f32 %v986, %v986
  %v1067 = vmul.f32 %v988, %v988
  %v1068 = vmul.f32 %v990, %v990
  %v1069 = vmul.f32 %v992, %v992
  %v1070 = vadd.f32 %v1050, %v1052
  %v1071 = vadd.f32 %v1070, %v1054
  %v1072 = vadd.f32 %v1071, %v1056
  %v1073 = vadd.f32 %v1072, %v1058
  %v1074 = vadd.f32 %v1073, %v1060
  %v1075 = vadd.f32 %v1074, %v1062
  %v1076 = vadd.f32 %v1075, %v1064
  %v1077 = vadd.f32 %v1076, %v1066
  %v1078 = vadd.f32 %v1077, %v1068
  %v1079 = vrot.slane %v1078, 4
  %v1080 = vadd.f32 %v1078, %v1079
  %v1081 = vrot.slane %v1080, 2
  %v1082 = vadd.f32 %v1080, %v1081
  %v1083 = vrot.slane %v1082, 1
  %v1084 = vadd.f32 %v1082, %v1083
  %v1085 = vadd.f32 %v1051, %v1053
  %v1086 = vadd.f32 %v1085, %v1055
  %v1087 = vadd.f32 %v1086, %v1057
  %v1088 = vadd.f32 %v1087, %v1059
  %v1089 = vadd.f32 %v1088, %v1061
  %v1090 = vadd.f32 %v1089, %v1063
  %v1091 = vadd.f32 %v1090, %v1065
  %v1092 = vadd.f32 %v1091, %v1067
  %v1093 = vadd.f32 %v1092, %v1069
  %v1094 = vrot.slane %v1093, 4
  %v1095 = vadd.f32 %v1093, %v1094
  %v1096 = vrot.slane %v1095, 2
  %v1097 = vadd.f32 %v1095, %v1096
  %v1098 = vrot.slane %v1097, 1
  %v1099 = vadd.f32 %v1097, %v1098
  %vm1100 = vcmask 1040384
  %v1101 = vsel %vm1100, %v1034, %v1084
  %v1102 = vsel %vm1100, %v1049, %v1099
  %v1105 = vcombine.low %v1101, %v1102
  %v1107 = vunpack.c.l.s4 1983009808
  %v1108 = vunpack.c.0.s8 %v1107
  %v1109 = vlaneseq
  %v1110 = vshrl.u32 %v1109, 7
  %v1111 = vsub.s32 %v1108, %v1110
  %v1112 = vrot.slane %v1105, %v1111
  %v1114 = vadd.f32 %v1019, %v1112
  %1115 = vst [vmem:[%s3] sm:$0xf] %v1114
  // Predicated region
  $region14: #{stem_v1_forward.22} parent=0 // pred_check
    _
  $region15: #{stem_v1_forward.22} parent=0 // pred_check_branch
    %1117 = sbr.rel (0) target = $region17
  $region16: #{stem_v1_forward.22} parent=0 // pred_region
    _
  $region17: #{stem_v1_forward.22} parent=0 // pred_fallthru
    _
  // Predicated region
  $region18: #{stem_v1_forward.22} parent=0 // pred_check
    _
  $region19: #{stem_v1_forward.22} parent=0 // pred_check_branch
    %1119 = sbr.rel (0) target = $region21
  $region20: #{stem_v1_forward.22} parent=0 // pred_region
    _
  $region21: #{stem_v1_forward.22} parent=0 // pred_fallthru
    _
  // Predicated region
  $region22: #{stem_v1_forward.22} parent=0 // pred_check
    _
  $region23: #{stem_v1_forward.22} parent=0 // pred_check_branch
    %1121 = sbr.rel (0) target = $region25
  $region24: #{stem_v1_forward.22} parent=0 // pred_region
    _
  $region25: #{stem_v1_forward.22} parent=0 // pred_fallthru
    _
  // Predicated region
  $region26: #{stem_v1_forward.22} parent=0 // pred_check
    _
  $region27: #{stem_v1_forward.22} parent=0 // pred_check_branch
    %1123 = sbr.rel (0) target = $region29
  $region28: #{stem_v1_forward.22} parent=0 // pred_region
    _
  $region29: #{stem_v1_forward.22} parent=0 // pred_fallthru
    _

// kernel: stem_v1_forward.25
$region0: #{stem_v1_forward.25}
  #allocation0 [shape = 'u32[]', space=smem, size = 0x4, offset = 0x4, fixed_abs, tag = 'smem constant byte address 0x4 - core index']
  #allocation1 [shape = 'u32[144,128]{1,0:T(1,128)}', space=vmem, size = 0x12000, scoped, tag = 'internal scratch']
  %s0 = inlined_call_operand.vmem [shape: f32[16,256], index: 0, kind: input, shape index: {}]
  %s1 = inlined_call_operand.vmem [shape: f32[1,256], index: 1, kind: input, shape index: {}]
  %s2 = inlined_call_operand.vmem [shape: f32[1,256], index: 2, kind: input, shape index: {}]
  %s3 = inlined_call_operand.vmem [shape: f32[16,256], index: 3, kind: output, shape index: {}]
  %s4 = sld [smem:[#allocation0]]
  $region22: #{stem_v1_forward.25} parent=0
    _
  %s6 = ssub.s32 1, %s4
  %s7 = scalar_select 0, %s6, %s4
  // Predicated region
  $region2: #{stem_v1_forward.25} parent=0 // pred_check
    _
  $region3: #{stem_v1_forward.25} parent=0 // pred_check_branch
    %9 = sbr.rel (0) target = $region5
  $region4: #{stem_v1_forward.25} parent=0 // pred_region
    _
  $region5: #{stem_v1_forward.25} parent=0 // pred_fallthru
    _
  // Predicated region
  $region6: #{stem_v1_forward.25} parent=0 // pred_check
    _
  $region7: #{stem_v1_forward.25} parent=0 // pred_check_branch
    %11 = sbr.rel (0) target = $region9
  $region8: #{stem_v1_forward.25} parent=0 // pred_region
    _
  $region9: #{stem_v1_forward.25} parent=0 // pred_fallthru
    _
  // Predicated region
  $region10: #{stem_v1_forward.25} parent=0 // pred_check
    _
  $region11: #{stem_v1_forward.25} parent=0 // pred_check_branch
    %13 = sbr.rel (0) target = $region13
  $region12: #{stem_v1_forward.25} parent=0 // pred_region
    _
  $region13: #{stem_v1_forward.25} parent=0 // pred_fallthru
    _
  %v14 = vld [vmem:[%s0] sm:$0xff]
  %v15 = vld [vmem:[%s0 + $0x8] sm:$0xff]
  %v16 = vld [vmem:[%s0 + $0x10] sm:$0xff]
  %v17 = vld [vmem:[%s0 + $0x18] sm:$0xff]
  %v18 = vld [vmem:[%s1] sm:$0x3]
  %v20 = vlaneseq
  %v21 = vshrl.u32 %v20, 7
  %v22 = vsub.s32 0, %v21
  %v23 = vrot.slane %v18, %v22
  %v24 = vlaneseq
  %v25 = vshrl.u32 %v24, 7
  %v26 = vsub.s32 1, %v25
  %v27 = vrot.slane %v18, %v26
  %v30 = vmul.f32 %v14, %v23
  %v31 = vmul.f32 %v15, %v27
  %v32 = vmul.f32 %v16, %v23
  %v33 = vmul.f32 %v17, %v27
  %v34 = vld [vmem:[%s2] sm:$0x3]
  %v36 = vlaneseq
  %v37 = vshrl.u32 %v36, 7
  %v38 = vsub.s32 0, %v37
  %v39 = vrot.slane %v34, %v38
  %v40 = vlaneseq
  %v41 = vshrl.u32 %v40, 7
  %v42 = vsub.s32 1, %v41
  %v43 = vrot.slane %v34, %v42
  %v46 = vadd.f32 %v30, %v39
  %v47 = vadd.f32 %v31, %v43
  %v48 = vadd.f32 %v32, %v39
  %v49 = vadd.f32 %v33, %v43
  %v50 = vmax.f32 %v46, 0.0
  %v51 = vmax.f32 %v47, 0.0
  %v52 = vmax.f32 %v48, 0.0
  %v53 = vmax.f32 %v49, 0.0
  %54 = vst [vmem:[%s3] sm:$0xff] %v50
  %55 = vst [vmem:[%s3 + $0x8] sm:$0xff] %v51
  %56 = vst [vmem:[%s3 + $0x10] sm:$0xff] %v52
  %57 = vst [vmem:[%s3 + $0x18] sm:$0xff] %v53
  // Predicated region
  $region14: #{stem_v1_forward.25} parent=0 // pred_check
    _
  $region15: #{stem_v1_forward.25} parent=0 // pred_check_branch
    %59 = sbr.rel (0) target = $region17
  $region16: #{stem_v1_forward.25} parent=0 // pred_region
    _
  $region17: #{stem_v1_forward.25} parent=0 // pred_fallthru
    _
  // Predicated region
  $region18: #{stem_v1_forward.25} parent=0 // pred_check
    _
  $region19: #{stem_v1_forward.25} parent=0 // pred_check_branch
    %61 = sbr.rel (0) target = $region21
  $region20: #{stem_v1_forward.25} parent=0 // pred_region
    _
  $region21: #{stem_v1_forward.25} parent=0 // pred_fallthru
    _

// kernel: stem_v1_forward.24
$region0: #{stem_v1_forward.24}
  #allocation0 [shape = 'u32[]', space=smem, size = 0x4, offset = 0x4, fixed_abs, tag = 'smem constant byte address 0x4 - core index']
  #allocation1 [shape = 'u32[144,128]{1,0:T(1,128)}', space=vmem, size = 0x12000, scoped, tag = 'internal scratch']
  %s0 = inlined_call_operand.vmem [shape: bf16[16,1728], index: 0, kind: input, shape index: {}]
  %s1 = inlined_call_operand.vmem [shape: bf16[1728,256], index: 1, kind: input, shape index: {}]
  %s2 = inlined_call_operand.vmem [shape: f32[16,256], index: 2, kind: output, shape index: {0}]
  %s3 = inlined_call_operand.vmem [shape: f32[2,256], index: 3, kind: output, shape index: {1}]
  %4 = xla_tuple %s2, %s3
  %s5 = sld [smem:[#allocation0]]
  $region30: #{stem_v1_forward.24} parent=0
    _
  %s7 = ssub.s32 1, %s5
  %s8 = scalar_select 0, %s7, %s5
  // Predicated region
  $region2: #{stem_v1_forward.24} parent=0 // pred_check
    _
  $region3: #{stem_v1_forward.24} parent=0 // pred_check_branch
    %10 = sbr.rel (0) target = $region5
  $region4: #{stem_v1_forward.24} parent=0 // pred_region
    _
  $region5: #{stem_v1_forward.24} parent=0 // pred_fallthru
    _
  // Predicated region
  $region6: #{stem_v1_forward.24} parent=0 // pred_check
    _
  $region7: #{stem_v1_forward.24} parent=0 // pred_check_branch
    %12 = sbr.rel (0) target = $region9
  $region8: #{stem_v1_forward.24} parent=0 // pred_region
    _
  $region9: #{stem_v1_forward.24} parent=0 // pred_fallthru
    _
  %v14 = vld [vmem:[%s0] sm:$0xff]
  %v15 = vld [vmem:[%s0 + $0x8] sm:$0xff]
  %v16 = vld [vmem:[%s0 + $0x10] sm:$0xff]
  %v17 = vld [vmem:[%s0 + $0x18] sm:$0xff]
  %v18 = vld [vmem:[%s0 + $0x20] sm:$0xff]
  %v19 = vld [vmem:[%s0 + $0x28] sm:$0xff]
  %v20 = vld [vmem:[%s0 + $0x30] sm:$0xff]
  %v21 = vld [vmem:[%s0 + $0x38] sm:$0xff]
  %v22 = vld [vmem:[%s0 + $0x40] sm:$0xff]
  %v23 = vld [vmem:[%s0 + $0x48] sm:$0xff]
  %v24 = vld [vmem:[%s0 + $0x50] sm:$0xff]
  %v25 = vld [vmem:[%s0 + $0x58] sm:$0xff]
  %v26 = vld [vmem:[%s0 + $0x60] sm:$0xff]
  %v27 = vld [vmem:[%s0 + $0x68] sm:$0xff]
  %v28 = vld [vmem:[%s1] sm:$0xff]
  %v29 = vld [vmem:[%s1 + $0x8] sm:$0xff]
  %v30 = vld [vmem:[%s1 + $0x10] sm:$0xff]
  %v31 = vld [vmem:[%s1 + $0x18] sm:$0xff]
  %v32 = vld [vmem:[%s1 + $0x20] sm:$0xff]
  %v33 = vld [vmem:[%s1 + $0x28] sm:$0xff]
  %v34 = vld [vmem:[%s1 + $0x30] sm:$0xff]
  %v35 = vld [vmem:[%s1 + $0x38] sm:$0xff]
  %v36 = vld [vmem:[%s1 + $0x40] sm:$0xff]
  %v37 = vld [vmem:[%s1 + $0x48] sm:$0xff]
  %v38 = vld [vmem:[%s1 + $0x50] sm:$0xff]
  %v39 = vld [vmem:[%s1 + $0x58] sm:$0xff]
  %v40 = vld [vmem:[%s1 + $0x60] sm:$0xff]
  %v41 = vld [vmem:[%s1 + $0x68] sm:$0xff]
  %v42 = vld [vmem:[%s1 + $0x70] sm:$0xff]
  %v43 = vld [vmem:[%s1 + $0x78] sm:$0xff]
  %v44 = vld [vmem:[%s1 + $0x80] sm:$0xff]
  %v45 = vld [vmem:[%s1 + $0x88] sm:$0xff]
  %v46 = vld [vmem:[%s1 + $0x90] sm:$0xff]
  %v47 = vld [vmem:[%s1 + $0x98] sm:$0xff]
  %v48 = vld [vmem:[%s1 + $0xa0] sm:$0xff]
  %v49 = vld [vmem:[%s1 + $0xa8] sm:$0xff]
  %v50 = vld [vmem:[%s1 + $0xb0] sm:$0xff]
  %v51 = vld [vmem:[%s1 + $0xb8] sm:$0xff]
  %v52 = vld [vmem:[%s1 + $0xc0] sm:$0xff]
  %v53 = vld [vmem:[%s1 + $0xc8] sm:$0xff]
  %v54 = vld [vmem:[%s1 + $0xd0] sm:$0xff]
  %v55 = vld [vmem:[%s1 + $0xd8] sm:$0xff]
  %v56 = vld [vmem:[%s1 + $0xe0] sm:$0xff]
  %v57 = vld [vmem:[%s1 + $0xe8] sm:$0xff]
  %v58 = vld [vmem:[%s1 + $0xf0] sm:$0xff]
  %v59 = vld [vmem:[%s1 + $0xf8] sm:$0xff]
  %v60 = vld [vmem:[%s1 + $0x100] sm:$0xff]
  %v61 = vld [vmem:[%s1 + $0x108] sm:$0xff]
  %v62 = vld [vmem:[%s1 + $0x110] sm:$0xff]
  %v63 = vld [vmem:[%s1 + $0x118] sm:$0xff]
  %v64 = vld [vmem:[%s1 + $0x120] sm:$0xff]
  %v65 = vld [vmem:[%s1 + $0x128] sm:$0xff]
  %v66 = vld [vmem:[%s1 + $0x130] sm:$0xff]
  %v67 = vld [vmem:[%s1 + $0x138] sm:$0xff]
  %v68 = vld [vmem:[%s1 + $0x140] sm:$0xff]
  %v69 = vld [vmem:[%s1 + $0x148] sm:$0xff]
  %v70 = vld [vmem:[%s1 + $0x150] sm:$0xff]
  %v71 = vld [vmem:[%s1 + $0x158] sm:$0xff]
  %v72 = vld [vmem:[%s1 + $0x160] sm:$0xff]
  %v73 = vld [vmem:[%s1 + $0x168] sm:$0xff]
  %v74 = vld [vmem:[%s1 + $0x170] sm:$0xff]
  %v75 = vld [vmem:[%s1 + $0x178] sm:$0xff]
  %v76 = vld [vmem:[%s1 + $0x180] sm:$0xff]
  %v77 = vld [vmem:[%s1 + $0x188] sm:$0xff]
  %v78 = vld [vmem:[%s1 + $0x190] sm:$0xff]
  %v79 = vld [vmem:[%s1 + $0x198] sm:$0xff]
  %v80 = vld [vmem:[%s1 + $0x1a0] sm:$0xff]
  %v81 = vld [vmem:[%s1 + $0x1a8] sm:$0xff]
  %v82 = vld [vmem:[%s1 + $0x1b0] sm:$0xff]
  %v83 = vld [vmem:[%s1 + $0x1b8] sm:$0xff]
  %v84 = vld [vmem:[%s1 + $0x1c0] sm:$0xff]
  %v85 = vld [vmem:[%s1 + $0x1c8] sm:$0xff]
  %v86 = vld [vmem:[%s1 + $0x1d0] sm:$0xff]
  %v87 = vld [vmem:[%s1 + $0x1d8] sm:$0xff]
  %v88 = vld [vmem:[%s1 + $0x1e0] sm:$0xff]
  %v89 = vld [vmem:[%s1 + $0x1e8] sm:$0xff]
  %v90 = vld [vmem:[%s1 + $0x1f0] sm:$0xff]
  %v91 = vld [vmem:[%s1 + $0x1f8] sm:$0xff]
  %v92 = vld [vmem:[%s1 + $0x200] sm:$0xff]
  %v93 = vld [vmem:[%s1 + $0x208] sm:$0xff]
  %v94 = vld [vmem:[%s1 + $0x210] sm:$0xff]
  %v95 = vld [vmem:[%s1 + $0x218] sm:$0xff]
  %v96 = vld [vmem:[%s1 + $0x220] sm:$0xff]
  %v97 = vld [vmem:[%s1 + $0x228] sm:$0xff]
  %v98 = vld [vmem:[%s1 + $0x230] sm:$0xff]
  %v99 = vld [vmem:[%s1 + $0x238] sm:$0xff]
  %v100 = vld [vmem:[%s1 + $0x240] sm:$0xff]
  %v101 = vld [vmem:[%s1 + $0x248] sm:$0xff]
  %v102 = vld [vmem:[%s1 + $0x250] sm:$0xff]
  %v103 = vld [vmem:[%s1 + $0x258] sm:$0xff]
  %v104 = vld [vmem:[%s1 + $0x260] sm:$0xff]
  %v105 = vld [vmem:[%s1 + $0x268] sm:$0xff]
  %v106 = vld [vmem:[%s1 + $0x270] sm:$0xff]
  %v107 = vld [vmem:[%s1 + $0x278] sm:$0xff]
  %v108 = vld [vmem:[%s1 + $0x280] sm:$0xff]
  %v109 = vld [vmem:[%s1 + $0x288] sm:$0xff]
  %v110 = vld [vmem:[%s1 + $0x290] sm:$0xff]
  %v111 = vld [vmem:[%s1 + $0x298] sm:$0xff]
  %v112 = vld [vmem:[%s1 + $0x2a0] sm:$0xff]
  %v113 = vld [vmem:[%s1 + $0x2a8] sm:$0xff]
  %v114 = vld [vmem:[%s1 + $0x2b0] sm:$0xff]
  %v115 = vld [vmem:[%s1 + $0x2b8] sm:$0xff]
  %v116 = vld [vmem:[%s1 + $0x2c0] sm:$0xff]
  %v117 = vld [vmem:[%s1 + $0x2c8] sm:$0xff]
  %v118 = vld [vmem:[%s1 + $0x2d0] sm:$0xff]
  %v119 = vld [vmem:[%s1 + $0x2d8] sm:$0xff]
  %v120 = vld [vmem:[%s1 + $0x2e0] sm:$0xff]
  %v121 = vld [vmem:[%s1 + $0x2e8] sm:$0xff]
  %v122 = vld [vmem:[%s1 + $0x2f0] sm:$0xff]
  %v123 = vld [vmem:[%s1 + $0x2f8] sm:$0xff]
  %v124 = vld [vmem:[%s1 + $0x300] sm:$0xff]
  %v125 = vld [vmem:[%s1 + $0x308] sm:$0xff]
  %v126 = vld [vmem:[%s1 + $0x310] sm:$0xff]
  %v127 = vld [vmem:[%s1 + $0x318] sm:$0xff]
  %v128 = vld [vmem:[%s1 + $0x320] sm:$0xff]
  %v129 = vld [vmem:[%s1 + $0x328] sm:$0xff]
  %v130 = vld [vmem:[%s1 + $0x330] sm:$0xff]
  %v131 = vld [vmem:[%s1 + $0x338] sm:$0xff]
  %v132 = vld [vmem:[%s1 + $0x340] sm:$0xff]
  %v133 = vld [vmem:[%s1 + $0x348] sm:$0xff]
  %v134 = vld [vmem:[%s1 + $0x350] sm:$0xff]
  %v135 = vld [vmem:[%s1 + $0x358] sm:$0xff]
  %v136 = vld [vmem:[%s1 + $0x360] sm:$0xff]
  %v137 = vld [vmem:[%s1 + $0x368] sm:$0xff]
  %v138 = vld [vmem:[%s1 + $0x370] sm:$0xff]
  %v139 = vld [vmem:[%s1 + $0x378] sm:$0xff]
  %v140 = vld [vmem:[%s1 + $0x380] sm:$0xff]
  %v141 = vld [vmem:[%s1 + $0x388] sm:$0xff]
  %v142 = vld [vmem:[%s1 + $0x390] sm:$0xff]
  %v143 = vld [vmem:[%s1 + $0x398] sm:$0xff]
  %v144 = vld [vmem:[%s1 + $0x3a0] sm:$0xff]
  %v145 = vld [vmem:[%s1 + $0x3a8] sm:$0xff]
  %v146 = vld [vmem:[%s1 + $0x3b0] sm:$0xff]
  %v147 = vld [vmem:[%s1 + $0x3b8] sm:$0xff]
  %v148 = vld [vmem:[%s1 + $0x3c0] sm:$0xff]
  %v149 = vld [vmem:[%s1 + $0x3c8] sm:$0xff]
  %v150 = vld [vmem:[%s1 + $0x3d0] sm:$0xff]
  %v151 = vld [vmem:[%s1 + $0x3d8] sm:$0xff]
  %v152 = vld [vmem:[%s1 + $0x3e0] sm:$0xff]
  %v153 = vld [vmem:[%s1 + $0x3e8] sm:$0xff]
  %v154 = vld [vmem:[%s1 + $0x3f0] sm:$0xff]
  %v155 = vld [vmem:[%s1 + $0x3f8] sm:$0xff]
  %v156 = vld [vmem:[%s1 + $0x400] sm:$0xff]
  %v157 = vld [vmem:[%s1 + $0x408] sm:$0xff]
  %v158 = vld [vmem:[%s1 + $0x410] sm:$0xff]
  %v159 = vld [vmem:[%s1 + $0x418] sm:$0xff]
  %v160 = vld [vmem:[%s1 + $0x420] sm:$0xff]
  %v161 = vld [vmem:[%s1 + $0x428] sm:$0xff]
  %v162 = vld [vmem:[%s1 + $0x430] sm:$0xff]
  %v163 = vld [vmem:[%s1 + $0x438] sm:$0xff]
  %v164 = vld [vmem:[%s1 + $0x440] sm:$0xff]
  %v165 = vld [vmem:[%s1 + $0x448] sm:$0xff]
  %v166 = vld [vmem:[%s1 + $0x450] sm:$0xff]
  %v167 = vld [vmem:[%s1 + $0x458] sm:$0xff]
  %v168 = vld [vmem:[%s1 + $0x460] sm:$0xff]
  %v169 = vld [vmem:[%s1 + $0x468] sm:$0xff]
  %v170 = vld [vmem:[%s1 + $0x470] sm:$0xff]
  %v171 = vld [vmem:[%s1 + $0x478] sm:$0xff]
  %v172 = vld [vmem:[%s1 + $0x480] sm:$0xff]
  %v173 = vld [vmem:[%s1 + $0x488] sm:$0xff]
  %v174 = vld [vmem:[%s1 + $0x490] sm:$0xff]
  %v175 = vld [vmem:[%s1 + $0x498] sm:$0xff]
  %v176 = vld [vmem:[%s1 + $0x4a0] sm:$0xff]
  %v177 = vld [vmem:[%s1 + $0x4a8] sm:$0xff]
  %v178 = vld [vmem:[%s1 + $0x4b0] sm:$0xff]
  %v179 = vld [vmem:[%s1 + $0x4b8] sm:$0xff]
  %v180 = vld [vmem:[%s1 + $0x4c0] sm:$0xff]
  %v181 = vld [vmem:[%s1 + $0x4c8] sm:$0xff]
  %v182 = vld [vmem:[%s1 + $0x4d0] sm:$0xff]
  %v183 = vld [vmem:[%s1 + $0x4d8] sm:$0xff]
  %v184 = vld [vmem:[%s1 + $0x4e0] sm:$0xff]
  %v185 = vld [vmem:[%s1 + $0x4e8] sm:$0xff]
  %v186 = vld [vmem:[%s1 + $0x4f0] sm:$0xff]
  %v187 = vld [vmem:[%s1 + $0x4f8] sm:$0xff]
  %v188 = vld [vmem:[%s1 + $0x500] sm:$0xff]
  %v189 = vld [vmem:[%s1 + $0x508] sm:$0xff]
  %v190 = vld [vmem:[%s1 + $0x510] sm:$0xff]
  %v191 = vld [vmem:[%s1 + $0x518] sm:$0xff]
  %v192 = vld [vmem:[%s1 + $0x520] sm:$0xff]
  %v193 = vld [vmem:[%s1 + $0x528] sm:$0xff]
  %v194 = vld [vmem:[%s1 + $0x530] sm:$0xff]
  %v195 = vld [vmem:[%s1 + $0x538] sm:$0xff]
  %v196 = vld [vmem:[%s1 + $0x540] sm:$0xff]
  %v197 = vld [vmem:[%s1 + $0x548] sm:$0xff]
  %v198 = vld [vmem:[%s1 + $0x550] sm:$0xff]
  %v199 = vld [vmem:[%s1 + $0x558] sm:$0xff]
  %v200 = vld [vmem:[%s1 + $0x560] sm:$0xff]
  %v201 = vld [vmem:[%s1 + $0x568] sm:$0xff]
  %v202 = vld [vmem:[%s1 + $0x570] sm:$0xff]
  %v203 = vld [vmem:[%s1 + $0x578] sm:$0xff]
  %v204 = vld [vmem:[%s1 + $0x580] sm:$0xff]
  %v205 = vld [vmem:[%s1 + $0x588] sm:$0xff]
  %v206 = vld [vmem:[%s1 + $0x590] sm:$0xff]
  %v207 = vld [vmem:[%s1 + $0x598] sm:$0xff]
  %v208 = vld [vmem:[%s1 + $0x5a0] sm:$0xff]
  %v209 = vld [vmem:[%s1 + $0x5a8] sm:$0xff]
  %v210 = vld [vmem:[%s1 + $0x5b0] sm:$0xff]
  %v211 = vld [vmem:[%s1 + $0x5b8] sm:$0xff]
  %v212 = vld [vmem:[%s1 + $0x5c0] sm:$0xff]
  %v213 = vld [vmem:[%s1 + $0x5c8] sm:$0xff]
  %v214 = vld [vmem:[%s1 + $0x5d0] sm:$0xff]
  %v215 = vld [vmem:[%s1 + $0x5d8] sm:$0xff]
  %v216 = vld [vmem:[%s1 + $0x5e0] sm:$0xff]
  %v217 = vld [vmem:[%s1 + $0x5e8] sm:$0xff]
  %v218 = vld [vmem:[%s1 + $0x5f0] sm:$0xff]
  %v219 = vld [vmem:[%s1 + $0x5f8] sm:$0xff]
  %v220 = vld [vmem:[%s1 + $0x600] sm:$0xff]
  %v221 = vld [vmem:[%s1 + $0x608] sm:$0xff]
  %v222 = vld [vmem:[%s1 + $0x610] sm:$0xff]
  %v223 = vld [vmem:[%s1 + $0x618] sm:$0xff]
  %v224 = vld [vmem:[%s1 + $0x620] sm:$0xff]
  %v225 = vld [vmem:[%s1 + $0x628] sm:$0xff]
  %v226 = vld [vmem:[%s1 + $0x630] sm:$0xff]
  %v227 = vld [vmem:[%s1 + $0x638] sm:$0xff]
  %v228 = vld [vmem:[%s1 + $0x640] sm:$0xff]
  %v229 = vld [vmem:[%s1 + $0x648] sm:$0xff]
  %v230 = vld [vmem:[%s1 + $0x650] sm:$0xff]
  %v231 = vld [vmem:[%s1 + $0x658] sm:$0xff]
  %v232 = vld [vmem:[%s1 + $0x660] sm:$0xff]
  %v233 = vld [vmem:[%s1 + $0x668] sm:$0xff]
  %v234 = vld [vmem:[%s1 + $0x670] sm:$0xff]
  %v235 = vld [vmem:[%s1 + $0x678] sm:$0xff]
  %v236 = vld [vmem:[%s1 + $0x680] sm:$0xff]
  %v237 = vld [vmem:[%s1 + $0x688] sm:$0xff]
  %v238 = vld [vmem:[%s1 + $0x690] sm:$0xff]
  %v239 = vld [vmem:[%s1 + $0x698] sm:$0xff]
  %v240 = vld [vmem:[%s1 + $0x6a0] sm:$0xff]
  %v241 = vld [vmem:[%s1 + $0x6a8] sm:$0xff]
  %v242 = vld [vmem:[%s1 + $0x6b0] sm:$0xff]
  %v243 = vld [vmem:[%s1 + $0x6b8] sm:$0xff]
  %v258 = vunpack.c.l.b16 %v14
  %v259 = vunpack.c.h.b16 %v14
  %v260 = vunpack.c.l.b16 %v15
  %v261 = vunpack.c.h.b16 %v15
  %v262 = vunpack.c.l.b16 %v16
  %v263 = vunpack.c.h.b16 %v16
  %v264 = vunpack.c.l.b16 %v17
  %v265 = vunpack.c.h.b16 %v17
  %v266 = vunpack.c.l.b16 %v18
  %v267 = vunpack.c.h.b16 %v18
  %v268 = vunpack.c.l.b16 %v19
  %v269 = vunpack.c.h.b16 %v19
  %v270 = vunpack.c.l.b16 %v20
  %v271 = vunpack.c.h.b16 %v20
  %v272 = vunpack.c.l.b16 %v21
  %v273 = vunpack.c.h.b16 %v21
  %v274 = vunpack.c.l.b16 %v22
  %v275 = vunpack.c.h.b16 %v22
  %v276 = vunpack.c.l.b16 %v23
  %v277 = vunpack.c.h.b16 %v23
  %v278 = vunpack.c.l.b16 %v24
  %v279 = vunpack.c.h.b16 %v24
  %v280 = vunpack.c.l.b16 %v25
  %v281 = vunpack.c.h.b16 %v25
  %v282 = vunpack.c.l.b16 %v26
  %v283 = vunpack.c.h.b16 %v26
  %v284 = vunpack.c.l.b16 %v27
  %v285 = vunpack.c.h.b16 %v27
  %v286 = vpack.c.b16 %v272, %v258
  %v287 = vpack.c.b16 %v273, %v259
  %v288 = vpack.c.b16 %v274, %v260
  %v289 = vpack.c.b16 %v275, %v261
  %v290 = vpack.c.b16 %v276, %v262
  %v291 = vpack.c.b16 %v277, %v263
  %v292 = vpack.c.b16 %v278, %v264
  %v293 = vpack.c.b16 %v279, %v265
  %v294 = vpack.c.b16 %v280, %v266
  %v295 = vpack.c.b16 %v281, %v267
  %v296 = vpack.c.b16 %v282, %v268
  %v297 = vpack.c.b16 %v283, %v269
  %v298 = vpack.c.b16 %v284, %v270
  %v299 = vpack.c.b16 %v285, %v271
  %v529 = vunpack.c.l.b16 %v28
  %v530 = vunpack.c.h.b16 %v28
  %v531 = vunpack.c.l.b16 %v29
  %v532 = vunpack.c.h.b16 %v29
  %v533 = vunpack.c.l.b16 %v30
  %v534 = vunpack.c.h.b16 %v30
  %v535 = vunpack.c.l.b16 %v31
  %v536 = vunpack.c.h.b16 %v31
  %v537 = vunpack.c.l.b16 %v32
  %v538 = vunpack.c.h.b16 %v32
  %v539 = vunpack.c.l.b16 %v33
  %v540 = vunpack.c.h.b16 %v33
  %v541 = vunpack.c.l.b16 %v34
  %v542 = vunpack.c.h.b16 %v34
  %v543 = vunpack.c.l.b16 %v35
  %v544 = vunpack.c.h.b16 %v35
  %v545 = vunpack.c.l.b16 %v36
  %v546 = vunpack.c.h.b16 %v36
  %v547 = vunpack.c.l.b16 %v37
  %v548 = vunpack.c.h.b16 %v37
  %v549 = vunpack.c.l.b16 %v38
  %v550 = vunpack.c.h.b16 %v38
  %v551 = vunpack.c.l.b16 %v39
  %v552 = vunpack.c.h.b16 %v39
  %v553 = vunpack.c.l.b16 %v40
  %v554 = vunpack.c.h.b16 %v40
  %v555 = vunpack.c.l.b16 %v41
  %v556 = vunpack.c.h.b16 %v41
  %v557 = vunpack.c.l.b16 %v42
  %v558 = vunpack.c.h.b16 %v42
  %v559 = vunpack.c.l.b16 %v43
  %v560 = vunpack.c.h.b16 %v43
  %v561 = vunpack.c.l.b16 %v44
  %v562 = vunpack.c.h.b16 %v44
  %v563 = vunpack.c.l.b16 %v45
  %v564 = vunpack.c.h.b16 %v45
  %v565 = vunpack.c.l.b16 %v46
  %v566 = vunpack.c.h.b16 %v46
  %v567 = vunpack.c.l.b16 %v47
  %v568 = vunpack.c.h.b16 %v47
  %v569 = vunpack.c.l.b16 %v48
  %v570 = vunpack.c.h.b16 %v48
  %v571 = vunpack.c.l.b16 %v49
  %v572 = vunpack.c.h.b16 %v49
  %v573 = vunpack.c.l.b16 %v50
  %v574 = vunpack.c.h.b16 %v50
  %v575 = vunpack.c.l.b16 %v51
  %v576 = vunpack.c.h.b16 %v51
  %v577 = vunpack.c.l.b16 %v52
  %v578 = vunpack.c.h.b16 %v52
  %v579 = vunpack.c.l.b16 %v53
  %v580 = vunpack.c.h.b16 %v53
  %v581 = vunpack.c.l.b16 %v54
  %v582 = vunpack.c.h.b16 %v54
  %v583 = vunpack.c.l.b16 %v55
  %v584 = vunpack.c.h.b16 %v55
  %v585 = vunpack.c.l.b16 %v56
  %v586 = vunpack.c.h.b16 %v56
  %v587 = vunpack.c.l.b16 %v57
  %v588 = vunpack.c.h.b16 %v57
  %v589 = vunpack.c.l.b16 %v58
  %v590 = vunpack.c.h.b16 %v58
  %v591 = vunpack.c.l.b16 %v59
  %v592 = vunpack.c.h.b16 %v59
  %v593 = vunpack.c.l.b16 %v60
  %v594 = vunpack.c.h.b16 %v60
  %v595 = vunpack.c.l.b16 %v61
  %v596 = vunpack.c.h.b16 %v61
  %v597 = vunpack.c.l.b16 %v62
  %v598 = vunpack.c.h.b16 %v62
  %v599 = vunpack.c.l.b16 %v63
  %v600 = vunpack.c.h.b16 %v63
  %v601 = vunpack.c.l.b16 %v64
  %v602 = vunpack.c.h.b16 %v64
  %v603 = vunpack.c.l.b16 %v65
  %v604 = vunpack.c.h.b16 %v65
  %v605 = vunpack.c.l.b16 %v66
  %v606 = vunpack.c.h.b16 %v66
  %v607 = vunpack.c.l.b16 %v67
  %v608 = vunpack.c.h.b16 %v67
  %v609 = vunpack.c.l.b16 %v68
  %v610 = vunpack.c.h.b16 %v68
  %v611 = vunpack.c.l.b16 %v69
  %v612 = vunpack.c.h.b16 %v69
  %v613 = vunpack.c.l.b16 %v70
  %v614 = vunpack.c.h.b16 %v70
  %v615 = vunpack.c.l.b16 %v71
  %v616 = vunpack.c.h.b16 %v71
  %v617 = vunpack.c.l.b16 %v72
  %v618 = vunpack.c.h.b16 %v72
  %v619 = vunpack.c.l.b16 %v73
  %v620 = vunpack.c.h.b16 %v73
  %v621 = vunpack.c.l.b16 %v74
  %v622 = vunpack.c.h.b16 %v74
  %v623 = vunpack.c.l.b16 %v75
  %v624 = vunpack.c.h.b16 %v75
  %v625 = vunpack.c.l.b16 %v76
  %v626 = vunpack.c.h.b16 %v76
  %v627 = vunpack.c.l.b16 %v77
  %v628 = vunpack.c.h.b16 %v77
  %v629 = vunpack.c.l.b16 %v78
  %v630 = vunpack.c.h.b16 %v78
  %v631 = vunpack.c.l.b16 %v79
  %v632 = vunpack.c.h.b16 %v79
  %v633 = vunpack.c.l.b16 %v80
  %v634 = vunpack.c.h.b16 %v80
  %v635 = vunpack.c.l.b16 %v81
  %v636 = vunpack.c.h.b16 %v81
  %v637 = vunpack.c.l.b16 %v82
  %v638 = vunpack.c.h.b16 %v82
  %v639 = vunpack.c.l.b16 %v83
  %v640 = vunpack.c.h.b16 %v83
  %v641 = vunpack.c.l.b16 %v84
  %v642 = vunpack.c.h.b16 %v84
  %v643 = vunpack.c.l.b16 %v85
  %v644 = vunpack.c.h.b16 %v85
  %v645 = vunpack.c.l.b16 %v86
  %v646 = vunpack.c.h.b16 %v86
  %v647 = vunpack.c.l.b16 %v87
  %v648 = vunpack.c.h.b16 %v87
  %v649 = vunpack.c.l.b16 %v88
  %v650 = vunpack.c.h.b16 %v88
  %v651 = vunpack.c.l.b16 %v89
  %v652 = vunpack.c.h.b16 %v89
  %v653 = vunpack.c.l.b16 %v90
  %v654 = vunpack.c.h.b16 %v90
  %v655 = vunpack.c.l.b16 %v91
  %v656 = vunpack.c.h.b16 %v91
  %v657 = vunpack.c.l.b16 %v92
  %v658 = vunpack.c.h.b16 %v92
  %v659 = vunpack.c.l.b16 %v93
  %v660 = vunpack.c.h.b16 %v93
  %v661 = vunpack.c.l.b16 %v94
  %v662 = vunpack.c.h.b16 %v94
  %v663 = vunpack.c.l.b16 %v95
  %v664 = vunpack.c.h.b16 %v95
  %v665 = vunpack.c.l.b16 %v96
  %v666 = vunpack.c.h.b16 %v96
  %v667 = vunpack.c.l.b16 %v97
  %v668 = vunpack.c.h.b16 %v97
  %v669 = vunpack.c.l.b16 %v98
  %v670 = vunpack.c.h.b16 %v98
  %v671 = vunpack.c.l.b16 %v99
  %v672 = vunpack.c.h.b16 %v99
  %v673 = vunpack.c.l.b16 %v100
  %v674 = vunpack.c.h.b16 %v100
  %v675 = vunpack.c.l.b16 %v101
  %v676 = vunpack.c.h.b16 %v101
  %v677 = vunpack.c.l.b16 %v102
  %v678 = vunpack.c.h.b16 %v102
  %v679 = vunpack.c.l.b16 %v103
  %v680 = vunpack.c.h.b16 %v103
  %v681 = vunpack.c.l.b16 %v104
  %v682 = vunpack.c.h.b16 %v104
  %v683 = vunpack.c.l.b16 %v105
  %v684 = vunpack.c.h.b16 %v105
  %v685 = vunpack.c.l.b16 %v106
  %v686 = vunpack.c.h.b16 %v106
  %v687 = vunpack.c.l.b16 %v107
  %v688 = vunpack.c.h.b16 %v107
  %v689 = vunpack.c.l.b16 %v108
  %v690 = vunpack.c.h.b16 %v108
  %v691 = vunpack.c.l.b16 %v109
  %v692 = vunpack.c.h.b16 %v109
  %v693 = vunpack.c.l.b16 %v110
  %v694 = vunpack.c.h.b16 %v110
  %v695 = vunpack.c.l.b16 %v111
  %v696 = vunpack.c.h.b16 %v111
  %v697 = vunpack.c.l.b16 %v112
  %v698 = vunpack.c.h.b16 %v112
  %v699 = vunpack.c.l.b16 %v113
  %v700 = vunpack.c.h.b16 %v113
  %v701 = vunpack.c.l.b16 %v114
  %v702 = vunpack.c.h.b16 %v114
  %v703 = vunpack.c.l.b16 %v115
  %v704 = vunpack.c.h.b16 %v115
  %v705 = vunpack.c.l.b16 %v116
  %v706 = vunpack.c.h.b16 %v116
  %v707 = vunpack.c.l.b16 %v117
  %v708 = vunpack.c.h.b16 %v117
  %v709 = vunpack.c.l.b16 %v118
  %v710 = vunpack.c.h.b16 %v118
  %v711 = vunpack.c.l.b16 %v119
  %v712 = vunpack.c.h.b16 %v119
  %v713 = vunpack.c.l.b16 %v120
  %v714 = vunpack.c.h.b16 %v120
  %v715 = vunpack.c.l.b16 %v121
  %v716 = vunpack.c.h.b16 %v121
  %v717 = vunpack.c.l.b16 %v122
  %v718 = vunpack.c.h.b16 %v122
  %v719 = vunpack.c.l.b16 %v123
  %v720 = vunpack.c.h.b16 %v123
  %v721 = vunpack.c.l.b16 %v124
  %v722 = vunpack.c.h.b16 %v124
  %v723 = vunpack.c.l.b16 %v125
  %v724 = vunpack.c.h.b16 %v125
  %v725 = vunpack.c.l.b16 %v126
  %v726 = vunpack.c.h.b16 %v126
  %v727 = vunpack.c.l.b16 %v127
  %v728 = vunpack.c.h.b16 %v127
  %v729 = vunpack.c.l.b16 %v128
  %v730 = vunpack.c.h.b16 %v128
  %v731 = vunpack.c.l.b16 %v129
  %v732 = vunpack.c.h.b16 %v129
  %v733 = vunpack.c.l.b16 %v130
  %v734 = vunpack.c.h.b16 %v130
  %v735 = vunpack.c.l.b16 %v131
  %v736 = vunpack.c.h.b16 %v131
  %v737 = vunpack.c.l.b16 %v132
  %v738 = vunpack.c.h.b16 %v132
  %v739 = vunpack.c.l.b16 %v133
  %v740 = vunpack.c.h.b16 %v133
  %v741 = vunpack.c.l.b16 %v134
  %v742 = vunpack.c.h.b16 %v134
  %v743 = vunpack.c.l.b16 %v135
  %v744 = vunpack.c.h.b16 %v135
  %v745 = vunpack.c.l.b16 %v136
  %v746 = vunpack.c.h.b16 %v136
  %v747 = vunpack.c.l.b16 %v137
  %v748 = vunpack.c.h.b16 %v137
  %v749 = vunpack.c.l.b16 %v138
  %v750 = vunpack.c.h.b16 %v138
  %v751 = vunpack.c.l.b16 %v139
  %v752 = vunpack.c.h.b16 %v139
  %v753 = vunpack.c.l.b16 %v140
  %v754 = vunpack.c.h.b16 %v140
  %v755 = vunpack.c.l.b16 %v141
  %v756 = vunpack.c.h.b16 %v141
  %v757 = vunpack.c.l.b16 %v142
  %v758 = vunpack.c.h.b16 %v142
  %v759 = vunpack.c.l.b16 %v143
  %v760 = vunpack.c.h.b16 %v143
  %v761 = vunpack.c.l.b16 %v144
  %v762 = vunpack.c.h.b16 %v144
  %v763 = vunpack.c.l.b16 %v145
  %v764 = vunpack.c.h.b16 %v145
  %v765 = vunpack.c.l.b16 %v146
  %v766 = vunpack.c.h.b16 %v146
  %v767 = vunpack.c.l.b16 %v147
  %v768 = vunpack.c.h.b16 %v147
  %v769 = vunpack.c.l.b16 %v148
  %v770 = vunpack.c.h.b16 %v148
  %v771 = vunpack.c.l.b16 %v149
  %v772 = vunpack.c.h.b16 %v149
  %v773 = vunpack.c.l.b16 %v150
  %v774 = vunpack.c.h.b16 %v150
  %v775 = vunpack.c.l.b16 %v151
  %v776 = vunpack.c.h.b16 %v151
  %v777 = vunpack.c.l.b16 %v152
  %v778 = vunpack.c.h.b16 %v152
  %v779 = vunpack.c.l.b16 %v153
  %v780 = vunpack.c.h.b16 %v153
  %v781 = vunpack.c.l.b16 %v154
  %v782 = vunpack.c.h.b16 %v154
  %v783 = vunpack.c.l.b16 %v155
  %v784 = vunpack.c.h.b16 %v155
  %v785 = vunpack.c.l.b16 %v156
  %v786 = vunpack.c.h.b16 %v156
  %v787 = vunpack.c.l.b16 %v157
  %v788 = vunpack.c.h.b16 %v157
  %v789 = vunpack.c.l.b16 %v158
  %v790 = vunpack.c.h.b16 %v158
  %v791 = vunpack.c.l.b16 %v159
  %v792 = vunpack.c.h.b16 %v159
  %v793 = vunpack.c.l.b16 %v160
  %v794 = vunpack.c.h.b16 %v160
  %v795 = vunpack.c.l.b16 %v161
  %v796 = vunpack.c.h.b16 %v161
  %v797 = vunpack.c.l.b16 %v162
  %v798 = vunpack.c.h.b16 %v162
  %v799 = vunpack.c.l.b16 %v163
  %v800 = vunpack.c.h.b16 %v163
  %v801 = vunpack.c.l.b16 %v164
  %v802 = vunpack.c.h.b16 %v164
  %v803 = vunpack.c.l.b16 %v165
  %v804 = vunpack.c.h.b16 %v165
  %v805 = vunpack.c.l.b16 %v166
  %v806 = vunpack.c.h.b16 %v166
  %v807 = vunpack.c.l.b16 %v167
  %v808 = vunpack.c.h.b16 %v167
  %v809 = vunpack.c.l.b16 %v168
  %v810 = vunpack.c.h.b16 %v168
  %v811 = vunpack.c.l.b16 %v169
  %v812 = vunpack.c.h.b16 %v169
  %v813 = vunpack.c.l.b16 %v170
  %v814 = vunpack.c.h.b16 %v170
  %v815 = vunpack.c.l.b16 %v171
  %v816 = vunpack.c.h.b16 %v171
  %v817 = vunpack.c.l.b16 %v172
  %v818 = vunpack.c.h.b16 %v172
  %v819 = vunpack.c.l.b16 %v173
  %v820 = vunpack.c.h.b16 %v173
  %v821 = vunpack.c.l.b16 %v174
  %v822 = vunpack.c.h.b16 %v174
  %v823 = vunpack.c.l.b16 %v175
  %v824 = vunpack.c.h.b16 %v175
  %v825 = vunpack.c.l.b16 %v176
  %v826 = vunpack.c.h.b16 %v176
  %v827 = vunpack.c.l.b16 %v177
  %v828 = vunpack.c.h.b16 %v177
  %v829 = vunpack.c.l.b16 %v178
  %v830 = vunpack.c.h.b16 %v178
  %v831 = vunpack.c.l.b16 %v179
  %v832 = vunpack.c.h.b16 %v179
  %v833 = vunpack.c.l.b16 %v180
  %v834 = vunpack.c.h.b16 %v180
  %v835 = vunpack.c.l.b16 %v181
  %v836 = vunpack.c.h.b16 %v181
  %v837 = vunpack.c.l.b16 %v182
  %v838 = vunpack.c.h.b16 %v182
  %v839 = vunpack.c.l.b16 %v183
  %v840 = vunpack.c.h.b16 %v183
  %v841 = vunpack.c.l.b16 %v184
  %v842 = vunpack.c.h.b16 %v184
  %v843 = vunpack.c.l.b16 %v185
  %v844 = vunpack.c.h.b16 %v185
  %v845 = vunpack.c.l.b16 %v186
  %v846 = vunpack.c.h.b16 %v186
  %v847 = vunpack.c.l.b16 %v187
  %v848 = vunpack.c.h.b16 %v187
  %v849 = vunpack.c.l.b16 %v188
  %v850 = vunpack.c.h.b16 %v188
  %v851 = vunpack.c.l.b16 %v189
  %v852 = vunpack.c.h.b16 %v189
  %v853 = vunpack.c.l.b16 %v190
  %v854 = vunpack.c.h.b16 %v190
  %v855 = vunpack.c.l.b16 %v191
  %v856 = vunpack.c.h.b16 %v191
  %v857 = vunpack.c.l.b16 %v192
  %v858 = vunpack.c.h.b16 %v192
  %v859 = vunpack.c.l.b16 %v193
  %v860 = vunpack.c.h.b16 %v193
  %v861 = vunpack.c.l.b16 %v194
  %v862 = vunpack.c.h.b16 %v194
  %v863 = vunpack.c.l.b16 %v195
  %v864 = vunpack.c.h.b16 %v195
  %v865 = vunpack.c.l.b16 %v196
  %v866 = vunpack.c.h.b16 %v196
  %v867 = vunpack.c.l.b16 %v197
  %v868 = vunpack.c.h.b16 %v197
  %v869 = vunpack.c.l.b16 %v198
  %v870 = vunpack.c.h.b16 %v198
  %v871 = vunpack.c.l.b16 %v199
  %v872 = vunpack.c.h.b16 %v199
  %v873 = vunpack.c.l.b16 %v200
  %v874 = vunpack.c.h.b16 %v200
  %v875 = vunpack.c.l.b16 %v201
  %v876 = vunpack.c.h.b16 %v201
  %v877 = vunpack.c.l.b16 %v202
  %v878 = vunpack.c.h.b16 %v202
  %v879 = vunpack.c.l.b16 %v203
  %v880 = vunpack.c.h.b16 %v203
  %v881 = vunpack.c.l.b16 %v204
  %v882 = vunpack.c.h.b16 %v204
  %v883 = vunpack.c.l.b16 %v205
  %v884 = vunpack.c.h.b16 %v205
  %v885 = vunpack.c.l.b16 %v206
  %v886 = vunpack.c.h.b16 %v206
  %v887 = vunpack.c.l.b16 %v207
  %v888 = vunpack.c.h.b16 %v207
  %v889 = vunpack.c.l.b16 %v208
  %v890 = vunpack.c.h.b16 %v208
  %v891 = vunpack.c.l.b16 %v209
  %v892 = vunpack.c.h.b16 %v209
  %v893 = vunpack.c.l.b16 %v210
  %v894 = vunpack.c.h.b16 %v210
  %v895 = vunpack.c.l.b16 %v211
  %v896 = vunpack.c.h.b16 %v211
  %v897 = vunpack.c.l.b16 %v212
  %v898 = vunpack.c.h.b16 %v212
  %v899 = vunpack.c.l.b16 %v213
  %v900 = vunpack.c.h.b16 %v213
  %v901 = vunpack.c.l.b16 %v214
  %v902 = vunpack.c.h.b16 %v214
  %v903 = vunpack.c.l.b16 %v215
  %v904 = vunpack.c.h.b16 %v215
  %v905 = vunpack.c.l.b16 %v216
  %v906 = vunpack.c.h.b16 %v216
  %v907 = vunpack.c.l.b16 %v217
  %v908 = vunpack.c.h.b16 %v217
  %v909 = vunpack.c.l.b16 %v218
  %v910 = vunpack.c.h.b16 %v218
  %v911 = vunpack.c.l.b16 %v219
  %v912 = vunpack.c.h.b16 %v219
  %v913 = vunpack.c.l.b16 %v220
  %v914 = vunpack.c.h.b16 %v220
  %v915 = vunpack.c.l.b16 %v221
  %v916 = vunpack.c.h.b16 %v221
  %v917 = vunpack.c.l.b16 %v222
  %v918 = vunpack.c.h.b16 %v222
  %v919 = vunpack.c.l.b16 %v223
  %v920 = vunpack.c.h.b16 %v223
  %v921 = vunpack.c.l.b16 %v224
  %v922 = vunpack.c.h.b16 %v224
  %v923 = vunpack.c.l.b16 %v225
  %v924 = vunpack.c.h.b16 %v225
  %v925 = vunpack.c.l.b16 %v226
  %v926 = vunpack.c.h.b16 %v226
  %v927 = vunpack.c.l.b16 %v227
  %v928 = vunpack.c.h.b16 %v227
  %v929 = vunpack.c.l.b16 %v228
  %v930 = vunpack.c.h.b16 %v228
  %v931 = vunpack.c.l.b16 %v229
  %v932 = vunpack.c.h.b16 %v229
  %v933 = vunpack.c.l.b16 %v230
  %v934 = vunpack.c.h.b16 %v230
  %v935 = vunpack.c.l.b16 %v231
  %v936 = vunpack.c.h.b16 %v231
  %v937 = vunpack.c.l.b16 %v232
  %v938 = vunpack.c.h.b16 %v232
  %v939 = vunpack.c.l.b16 %v233
  %v940 = vunpack.c.h.b16 %v233
  %v941 = vunpack.c.l.b16 %v234
  %v942 = vunpack.c.h.b16 %v234
  %v943 = vunpack.c.l.b16 %v235
  %v944 = vunpack.c.h.b16 %v235
  %v945 = vunpack.c.l.b16 %v236
  %v946 = vunpack.c.h.b16 %v236
  %v947 = vunpack.c.l.b16 %v237
  %v948 = vunpack.c.h.b16 %v237
  %v949 = vunpack.c.l.b16 %v238
  %v950 = vunpack.c.h.b16 %v238
  %v951 = vunpack.c.l.b16 %v239
  %v952 = vunpack.c.h.b16 %v239
  %v953 = vunpack.c.l.b16 %v240
  %v954 = vunpack.c.h.b16 %v240
  %v955 = vunpack.c.l.b16 %v241
  %v956 = vunpack.c.h.b16 %v241
  %v957 = vunpack.c.l.b16 %v242
  %v958 = vunpack.c.h.b16 %v242
  %v959 = vunpack.c.l.b16 %v243
  %v960 = vunpack.c.h.b16 %v243
  %v961 = vpack.c.b16 %v531, %v529
  %v962 = vpack.c.b16 %v532, %v530
  %v963 = vpack.c.b16 %v535, %v533
  %v964 = vpack.c.b16 %v536, %v534
  %v965 = vpack.c.b16 %v539, %v537
  %v966 = vpack.c.b16 %v540, %v538
  %v967 = vpack.c.b16 %v543, %v541
  %v968 = vpack.c.b16 %v544, %v542
  %v969 = vpack.c.b16 %v547, %v545
  %v970 = vpack.c.b16 %v548, %v546
  %v971 = vpack.c.b16 %v551, %v549
  %v972 = vpack.c.b16 %v552, %v550
  %v973 = vpack.c.b16 %v555, %v553
  %v974 = vpack.c.b16 %v556, %v554
  %v975 = vpack.c.b16 %v559, %v557
  %v976 = vpack.c.b16 %v560, %v558
  %v977 = vpack.c.b16 %v563, %v561
  %v978 = vpack.c.b16 %v564, %v562
  %v979 = vpack.c.b16 %v567, %v565
  %v980 = vpack.c.b16 %v568, %v566
  %v981 = vpack.c.b16 %v571, %v569
  %v982 = vpack.c.b16 %v572, %v570
  %v983 = vpack.c.b16 %v575, %v573
  %v984 = vpack.c.b16 %v576, %v574
  %v985 = vpack.c.b16 %v579, %v577
  %v986 = vpack.c.b16 %v580, %v578
  %v987 = vpack.c.b16 %v583, %v581
  %v988 = vpack.c.b16 %v584, %v582
  %v989 = vpack.c.b16 %v587, %v585
  %v990 = vpack.c.b16 %v588, %v586
  %v991 = vpack.c.b16 %v591, %v589
  %v992 = vpack.c.b16 %v592, %v590
  %v993 = vpack.c.b16 %v595, %v593
  %v994 = vpack.c.b16 %v596, %v594
  %v995 = vpack.c.b16 %v599, %v597
  %v996 = vpack.c.b16 %v600, %v598
  %v997 = vpack.c.b16 %v603, %v601
  %v998 = vpack.c.b16 %v604, %v602
  %v999 = vpack.c.b16 %v607, %v605
  %v1000 = vpack.c.b16 %v608, %v606
  %v1001 = vpack.c.b16 %v611, %v609
  %v1002 = vpack.c.b16 %v612, %v610
  %v1003 = vpack.c.b16 %v615, %v613
  %v1004 = vpack.c.b16 %v616, %v614
  %v1005 = vpack.c.b16 %v619, %v617
  %v1006 = vpack.c.b16 %v620, %v618
  %v1007 = vpack.c.b16 %v623, %v621
  %v1008 = vpack.c.b16 %v624, %v622
  %v1009 = vpack.c.b16 %v627, %v625
  %v1010 = vpack.c.b16 %v628, %v626
  %v1011 = vpack.c.b16 %v631, %v629
  %v1012 = vpack.c.b16 %v632, %v630
  %v1013 = vpack.c.b16 %v635, %v633
  %v1014 = vpack.c.b16 %v636, %v634
  %v1015 = vpack.c.b16 %v639, %v637
  %v1016 = vpack.c.b16 %v640, %v638
  %v1017 = vpack.c.b16 %v643, %v641
  %v1018 = vpack.c.b16 %v644, %v642
  %v1019 = vpack.c.b16 %v647, %v645
  %v1020 = vpack.c.b16 %v648, %v646
  %v1021 = vpack.c.b16 %v651, %v649
  %v1022 = vpack.c.b16 %v652, %v650
  %v1023 = vpack.c.b16 %v655, %v653
  %v1024 = vpack.c.b16 %v656, %v654
  %v1025 = vpack.c.b16 %v659, %v657
  %v1026 = vpack.c.b16 %v660, %v658
  %v1027 = vpack.c.b16 %v663, %v661
  %v1028 = vpack.c.b16 %v664, %v662
  %v1029 = vpack.c.b16 %v667, %v665
  %v1030 = vpack.c.b16 %v668, %v666
  %v1031 = vpack.c.b16 %v671, %v669
  %v1032 = vpack.c.b16 %v672, %v670
  %v1033 = vpack.c.b16 %v675, %v673
  %v1034 = vpack.c.b16 %v676, %v674
  %v1035 = vpack.c.b16 %v679, %v677
  %v1036 = vpack.c.b16 %v680, %v678
  %v1037 = vpack.c.b16 %v683, %v681
  %v1038 = vpack.c.b16 %v684, %v682
  %v1039 = vpack.c.b16 %v687, %v685
  %v1040 = vpack.c.b16 %v688, %v686
  %v1041 = vpack.c.b16 %v691, %v689
  %v1042 = vpack.c.b16 %v692, %v690
  %v1043 = vpack.c.b16 %v695, %v693
  %v1044 = vpack.c.b16 %v696, %v694
  %v1045 = vpack.c.b16 %v699, %v697
  %v1046 = vpack.c.b16 %v700, %v698
  %v1047 = vpack.c.b16 %v703, %v701
  %v1048 = vpack.c.b16 %v704, %v702
  %v1049 = vpack.c.b16 %v707, %v705
  %v1050 = vpack.c.b16 %v708, %v706
  %v1051 = vpack.c.b16 %v711, %v709
  %v1052 = vpack.c.b16 %v712, %v710
  %v1053 = vpack.c.b16 %v715, %v713
  %v1054 = vpack.c.b16 %v716, %v714
  %v1055 = vpack.c.b16 %v719, %v717
  %v1056 = vpack.c.b16 %v720, %v718
  %v1057 = vpack.c.b16 %v723, %v721
  %v1058 = vpack.c.b16 %v724, %v722
  %v1059 = vpack.c.b16 %v727, %v725
  %v1060 = vpack.c.b16 %v728, %v726
  %v1061 = vpack.c.b16 %v731, %v729
  %v1062 = vpack.c.b16 %v732, %v730
  %v1063 = vpack.c.b16 %v735, %v733
  %v1064 = vpack.c.b16 %v736, %v734
  %v1065 = vpack.c.b16 %v739, %v737
  %v1066 = vpack.c.b16 %v740, %v738
  %v1067 = vpack.c.b16 %v743, %v741
  %v1068 = vpack.c.b16 %v744, %v742
  %v1069 = vpack.c.b16 %v747, %v745
  %v1070 = vpack.c.b16 %v748, %v746
  %v1071 = vpack.c.b16 %v751, %v749
  %v1072 = vpack.c.b16 %v752, %v750
  %v1073 = vpack.c.b16 %v755, %v753
  %v1074 = vpack.c.b16 %v756, %v754
  %v1075 = vpack.c.b16 %v759, %v757
  %v1076 = vpack.c.b16 %v760, %v758
  %v1077 = vpack.c.b16 %v763, %v761
  %v1078 = vpack.c.b16 %v764, %v762
  %v1079 = vpack.c.b16 %v767, %v765
  %v1080 = vpack.c.b16 %v768, %v766
  %v1081 = vpack.c.b16 %v771, %v769
  %v1082 = vpack.c.b16 %v772, %v770
  %v1083 = vpack.c.b16 %v775, %v773
  %v1084 = vpack.c.b16 %v776, %v774
  %v1085 = vpack.c.b16 %v779, %v777
  %v1086 = vpack.c.b16 %v780, %v778
  %v1087 = vpack.c.b16 %v783, %v781
  %v1088 = vpack.c.b16 %v784, %v782
  %v1089 = vpack.c.b16 %v787, %v785
  %v1090 = vpack.c.b16 %v788, %v786
  %v1091 = vpack.c.b16 %v791, %v789
  %v1092 = vpack.c.b16 %v792, %v790
  %v1093 = vpack.c.b16 %v795, %v793
  %v1094 = vpack.c.b16 %v796, %v794
  %v1095 = vpack.c.b16 %v799, %v797
  %v1096 = vpack.c.b16 %v800, %v798
  %v1097 = vpack.c.b16 %v803, %v801
  %v1098 = vpack.c.b16 %v804, %v802
  %v1099 = vpack.c.b16 %v807, %v805
  %v1100 = vpack.c.b16 %v808, %v806
  %v1101 = vpack.c.b16 %v811, %v809
  %v1102 = vpack.c.b16 %v812, %v810
  %v1103 = vpack.c.b16 %v815, %v813
  %v1104 = vpack.c.b16 %v816, %v814
  %v1105 = vpack.c.b16 %v819, %v817
  %v1106 = vpack.c.b16 %v820, %v818
  %v1107 = vpack.c.b16 %v823, %v821
  %v1108 = vpack.c.b16 %v824, %v822
  %v1109 = vpack.c.b16 %v827, %v825
  %v1110 = vpack.c.b16 %v828, %v826
  %v1111 = vpack.c.b16 %v831, %v829
  %v1112 = vpack.c.b16 %v832, %v830
  %v1113 = vpack.c.b16 %v835, %v833
  %v1114 = vpack.c.b16 %v836, %v834
  %v1115 = vpack.c.b16 %v839, %v837
  %v1116 = vpack.c.b16 %v840, %v838
  %v1117 = vpack.c.b16 %v843, %v841
  %v1118 = vpack.c.b16 %v844, %v842
  %v1119 = vpack.c.b16 %v847, %v845
  %v1120 = vpack.c.b16 %v848, %v846
  %v1121 = vpack.c.b16 %v851, %v849
  %v1122 = vpack.c.b16 %v852, %v850
  %v1123 = vpack.c.b16 %v855, %v853
  %v1124 = vpack.c.b16 %v856, %v854
  %v1125 = vpack.c.b16 %v859, %v857
  %v1126 = vpack.c.b16 %v860, %v858
  %v1127 = vpack.c.b16 %v863, %v861
  %v1128 = vpack.c.b16 %v864, %v862
  %v1129 = vpack.c.b16 %v867, %v865
  %v1130 = vpack.c.b16 %v868, %v866
  %v1131 = vpack.c.b16 %v871, %v869
  %v1132 = vpack.c.b16 %v872, %v870
  %v1133 = vpack.c.b16 %v875, %v873
  %v1134 = vpack.c.b16 %v876, %v874
  %v1135 = vpack.c.b16 %v879, %v877
  %v1136 = vpack.c.b16 %v880, %v878
  %v1137 = vpack.c.b16 %v883, %v881
  %v1138 = vpack.c.b16 %v884, %v882
  %v1139 = vpack.c.b16 %v887, %v885
  %v1140 = vpack.c.b16 %v888, %v886
  %v1141 = vpack.c.b16 %v891, %v889
  %v1142 = vpack.c.b16 %v892, %v890
  %v1143 = vpack.c.b16 %v895, %v893
  %v1144 = vpack.c.b16 %v896, %v894
  %v1145 = vpack.c.b16 %v899, %v897
  %v1146 = vpack.c.b16 %v900, %v898
  %v1147 = vpack.c.b16 %v903, %v901
  %v1148 = vpack.c.b16 %v904, %v902
  %v1149 = vpack.c.b16 %v907, %v905
  %v1150 = vpack.c.b16 %v908, %v906
  %v1151 = vpack.c.b16 %v911, %v909
  %v1152 = vpack.c.b16 %v912, %v910
  %v1153 = vpack.c.b16 %v915, %v913
  %v1154 = vpack.c.b16 %v916, %v914
  %v1155 = vpack.c.b16 %v919, %v917
  %v1156 = vpack.c.b16 %v920, %v918
  %v1157 = vpack.c.b16 %v923, %v921
  %v1158 = vpack.c.b16 %v924, %v922
  %v1159 = vpack.c.b16 %v927, %v925
  %v1160 = vpack.c.b16 %v928, %v926
  %v1161 = vpack.c.b16 %v931, %v929
  %v1162 = vpack.c.b16 %v932, %v930
  %v1163 = vpack.c.b16 %v935, %v933
  %v1164 = vpack.c.b16 %v936, %v934
  %v1165 = vpack.c.b16 %v939, %v937
  %v1166 = vpack.c.b16 %v940, %v938
  %v1167 = vpack.c.b16 %v943, %v941
  %v1168 = vpack.c.b16 %v944, %v942
  %v1169 = vpack.c.b16 %v947, %v945
  %v1170 = vpack.c.b16 %v948, %v946
  %v1171 = vpack.c.b16 %v951, %v949
  %v1172 = vpack.c.b16 %v952, %v950
  %v1173 = vpack.c.b16 %v955, %v953
  %v1174 = vpack.c.b16 %v956, %v954
  %v1175 = vpack.c.b16 %v959, %v957
  %v1176 = vpack.c.b16 %v960, %v958
  %vm1393 = vcmask 523264
  %v1395 = vsel %vm1393, %v299, 0
  %1397 = vmatprep.subr.bf16.mxu0 %v976
  %1398 = vmatpush1.bf16.msra.mxu0 %v975
  %1399 = vmatprep.subr.bf16.mxu0 %v974
  %1400 = vmatpush1.bf16.msra.mxu0 %v973
  %1401 = vmatprep.subr.bf16.mxu0 %v972
  %1402 = vmatpush1.bf16.msra.mxu0 %v971
  %1403 = vmatprep.subr.bf16.mxu0 %v970
  %1404 = vmatpush1.bf16.msra.mxu0 %v969
  %1405 = vmatprep.subr.bf16.mxu0 %v968
  %1406 = vmatpush1.bf16.msra.mxu0 %v967
  %1407 = vmatprep.subr.bf16.mxu0 %v966
  %1408 = vmatpush1.bf16.msra.mxu0 %v965
  %1409 = vmatprep.subr.bf16.mxu0 %v964
  %1410 = vmatpush1.bf16.msra.mxu0 %v963
  %1411 = vmatprep.subr.bf16.mxu0 %v962
  %1412 = vmatpush1.bf16.msra.mxu0 %v961
  %1413 = vmatprep.subr.bf16.mxu0 %v992
  %1414 = vmatpush2.bf16.msra.mxu0 %v991
  %1415 = vmatprep.subr.bf16.mxu0 %v990
  %1416 = vmatpush2.bf16.msra.mxu0 %v989
  %1417 = vmatprep.subr.bf16.mxu0 %v988
  %1418 = vmatpush2.bf16.msra.mxu0 %v987
  %1419 = vmatprep.subr.bf16.mxu0 %v986
  %1420 = vmatpush2.bf16.msra.mxu0 %v985
  %1421 = vmatprep.subr.bf16.mxu0 %v984
  %1422 = vmatpush2.bf16.msra.mxu0 %v983
  %1423 = vmatprep.subr.bf16.mxu0 %v982
  %1424 = vmatpush2.bf16.msra.mxu0 %v981
  %1425 = vmatprep.subr.bf16.mxu0 %v980
  %1426 = vmatpush2.bf16.msra.mxu0 %v979
  %1427 = vmatprep.subr.bf16.mxu0 %v978
  %1428 = vmatpush2.bf16.msra.mxu0 %v977
  %1429 = vmatprep.mubr.bf16.mxu0 %v287
  %1430 = vmatmul.mubr.bf16.gmra.mxu0 %v286
  %v1431 = vpop.f32.mrf.mxu0
  %v1432 = vadd.f32 0.0, %v1431
  %v1433 = vpop.f32.mrf.mxu0
  %v1434 = vadd.f32 0.0, %v1433
  %v1435 = vpop.f32.mrf.mxu0
  %v1436 = vadd.f32 0.0, %v1435
  %v1437 = vpop.f32.mrf.mxu0
  %v1438 = vadd.f32 0.0, %v1437
  %1439 = vdwg.mxu0
  %1440 = vmatprep.subr.bf16.mxu0 %v1008
  %1441 = vmatpush1.bf16.msra.mxu0 %v1007
  %1442 = vmatprep.subr.bf16.mxu0 %v1006
  %1443 = vmatpush1.bf16.msra.mxu0 %v1005
  %1444 = vmatprep.subr.bf16.mxu0 %v1004
  %1445 = vmatpush1.bf16.msra.mxu0 %v1003
  %1446 = vmatprep.subr.bf16.mxu0 %v1002
  %1447 = vmatpush1.bf16.msra.mxu0 %v1001
  %1448 = vmatprep.subr.bf16.mxu0 %v1000
  %1449 = vmatpush1.bf16.msra.mxu0 %v999
  %1450 = vmatprep.subr.bf16.mxu0 %v998
  %1451 = vmatpush1.bf16.msra.mxu0 %v997
  %1452 = vmatprep.subr.bf16.mxu0 %v996
  %1453 = vmatpush1.bf16.msra.mxu0 %v995
  %1454 = vmatprep.subr.bf16.mxu0 %v994
  %1455 = vmatpush1.bf16.msra.mxu0 %v993
  %1456 = vmatprep.subr.bf16.mxu0 %v1024
  %1457 = vmatpush2.bf16.msra.mxu0 %v1023
  %1458 = vmatprep.subr.bf16.mxu0 %v1022
  %1459 = vmatpush2.bf16.msra.mxu0 %v1021
  %1460 = vmatprep.subr.bf16.mxu0 %v1020
  %1461 = vmatpush2.bf16.msra.mxu0 %v1019
  %1462 = vmatprep.subr.bf16.mxu0 %v1018
  %1463 = vmatpush2.bf16.msra.mxu0 %v1017
  %1464 = vmatprep.subr.bf16.mxu0 %v1016
  %1465 = vmatpush2.bf16.msra.mxu0 %v1015
  %1466 = vmatprep.subr.bf16.mxu0 %v1014
  %1467 = vmatpush2.bf16.msra.mxu0 %v1013
  %1468 = vmatprep.subr.bf16.mxu0 %v1012
  %1469 = vmatpush2.bf16.msra.mxu0 %v1011
  %1470 = vmatprep.subr.bf16.mxu0 %v1010
  %1471 = vmatpush2.bf16.msra.mxu0 %v1009
  %1472 = vmatprep.mubr.bf16.mxu0 %v289
  %1473 = vmatmul.mubr.bf16.gmra.mxu0 %v288
  %v1474 = vpop.f32.mrf.mxu0
  %v1475 = vadd.f32 %v1432, %v1474
  %v1476 = vpop.f32.mrf.mxu0
  %v1477 = vadd.f32 %v1434, %v1476
  %v1478 = vpop.f32.mrf.mxu0
  %v1479 = vadd.f32 %v1436, %v1478
  %v1480 = vpop.f32.mrf.mxu0
  %v1481 = vadd.f32 %v1438, %v1480
  %1482 = vdwg.mxu0
  %1483 = vmatprep.subr.bf16.mxu0 %v1040
  %1484 = vmatpush1.bf16.msra.mxu0 %v1039
  %1485 = vmatprep.subr.bf16.mxu0 %v1038
  %1486 = vmatpush1.bf16.msra.mxu0 %v1037
  %1487 = vmatprep.subr.bf16.mxu0 %v1036
  %1488 = vmatpush1.bf16.msra.mxu0 %v1035
  %1489 = vmatprep.subr.bf16.mxu0 %v1034
  %1490 = vmatpush1.bf16.msra.mxu0 %v1033
  %1491 = vmatprep.subr.bf16.mxu0 %v1032
  %1492 = vmatpush1.bf16.msra.mxu0 %v1031
  %1493 = vmatprep.subr.bf16.mxu0 %v1030
  %1494 = vmatpush1.bf16.msra.mxu0 %v1029
  %1495 = vmatprep.subr.bf16.mxu0 %v1028
  %1496 = vmatpush1.bf16.msra.mxu0 %v1027
  %1497 = vmatprep.subr.bf16.mxu0 %v1026
  %1498 = vmatpush1.bf16.msra.mxu0 %v1025
  %1499 = vmatprep.subr.bf16.mxu0 %v1056
  %1500 = vmatpush2.bf16.msra.mxu0 %v1055
  %1501 = vmatprep.subr.bf16.mxu0 %v1054
  %1502 = vmatpush2.bf16.msra.mxu0 %v1053
  %1503 = vmatprep.subr.bf16.mxu0 %v1052
  %1504 = vmatpush2.bf16.msra.mxu0 %v1051
  %1505 = vmatprep.subr.bf16.mxu0 %v1050
  %1506 = vmatpush2.bf16.msra.mxu0 %v1049
  %1507 = vmatprep.subr.bf16.mxu0 %v1048
  %1508 = vmatpush2.bf16.msra.mxu0 %v1047
  %1509 = vmatprep.subr.bf16.mxu0 %v1046
  %1510 = vmatpush2.bf16.msra.mxu0 %v1045
  %1511 = vmatprep.subr.bf16.mxu0 %v1044
  %1512 = vmatpush2.bf16.msra.mxu0 %v1043
  %1513 = vmatprep.subr.bf16.mxu0 %v1042
  %1514 = vmatpush2.bf16.msra.mxu0 %v1041
  %1515 = vmatprep.mubr.bf16.mxu0 %v291
  %1516 = vmatmul.mubr.bf16.gmra.mxu0 %v290
  %v1517 = vpop.f32.mrf.mxu0
  %v1518 = vadd.f32 %v1475, %v1517
  %v1519 = vpop.f32.mrf.mxu0
  %v1520 = vadd.f32 %v1477, %v1519
  %v1521 = vpop.f32.mrf.mxu0
  %v1522 = vadd.f32 %v1479, %v1521
  %v1523 = vpop.f32.mrf.mxu0
  %v1524 = vadd.f32 %v1481, %v1523
  %1525 = vdwg.mxu0
  %1526 = vmatprep.subr.bf16.mxu0 %v1072
  %1527 = vmatpush1.bf16.msra.mxu0 %v1071
  %1528 = vmatprep.subr.bf16.mxu0 %v1070
  %1529 = vmatpush1.bf16.msra.mxu0 %v1069
  %1530 = vmatprep.subr.bf16.mxu0 %v1068
  %1531 = vmatpush1.bf16.msra.mxu0 %v1067
  %1532 = vmatprep.subr.bf16.mxu0 %v1066
  %1533 = vmatpush1.bf16.msra.mxu0 %v1065
  %1534 = vmatprep.subr.bf16.mxu0 %v1064
  %1535 = vmatpush1.bf16.msra.mxu0 %v1063
  %1536 = vmatprep.subr.bf16.mxu0 %v1062
  %1537 = vmatpush1.bf16.msra.mxu0 %v1061
  %1538 = vmatprep.subr.bf16.mxu0 %v1060
  %1539 = vmatpush1.bf16.msra.mxu0 %v1059
  %1540 = vmatprep.subr.bf16.mxu0 %v1058
  %1541 = vmatpush1.bf16.msra.mxu0 %v1057
  %1542 = vmatprep.subr.bf16.mxu0 %v1088
  %1543 = vmatpush2.bf16.msra.mxu0 %v1087
  %1544 = vmatprep.subr.bf16.mxu0 %v1086
  %1545 = vmatpush2.bf16.msra.mxu0 %v1085
  %1546 = vmatprep.subr.bf16.mxu0 %v1084
  %1547 = vmatpush2.bf16.msra.mxu0 %v1083
  %1548 = vmatprep.subr.bf16.mxu0 %v1082
  %1549 = vmatpush2.bf16.msra.mxu0 %v1081
  %1550 = vmatprep.subr.bf16.mxu0 %v1080
  %1551 = vmatpush2.bf16.msra.mxu0 %v1079
  %1552 = vmatprep.subr.bf16.mxu0 %v1078
  %1553 = vmatpush2.bf16.msra.mxu0 %v1077
  %1554 = vmatprep.subr.bf16.mxu0 %v1076
  %1555 = vmatpush2.bf16.msra.mxu0 %v1075
  %1556 = vmatprep.subr.bf16.mxu0 %v1074
  %1557 = vmatpush2.bf16.msra.mxu0 %v1073
  %1558 = vmatprep.mubr.bf16.mxu0 %v293
  %1559 = vmatmul.mubr.bf16.gmra.mxu0 %v292
  %v1560 = vpop.f32.mrf.mxu0
  %v1561 = vadd.f32 %v1518, %v1560
  %v1562 = vpop.f32.mrf.mxu0
  %v1563 = vadd.f32 %v1520, %v1562
  %v1564 = vpop.f32.mrf.mxu0
  %v1565 = vadd.f32 %v1522, %v1564
  %v1566 = vpop.f32.mrf.mxu0
  %v1567 = vadd.f32 %v1524, %v1566
  %1568 = vdwg.mxu0
  %1569 = vmatprep.subr.bf16.mxu0 %v1104
  %1570 = vmatpush1.bf16.msra.mxu0 %v1103
  %1571 = vmatprep.subr.bf16.mxu0 %v1102
  %1572 = vmatpush1.bf16.msra.mxu0 %v1101
  %1573 = vmatprep.subr.bf16.mxu0 %v1100
  %1574 = vmatpush1.bf16.msra.mxu0 %v1099
  %1575 = vmatprep.subr.bf16.mxu0 %v1098
  %1576 = vmatpush1.bf16.msra.mxu0 %v1097
  %1577 = vmatprep.subr.bf16.mxu0 %v1096
  %1578 = vmatpush1.bf16.msra.mxu0 %v1095
  %1579 = vmatprep.subr.bf16.mxu0 %v1094
  %1580 = vmatpush1.bf16.msra.mxu0 %v1093
  %1581 = vmatprep.subr.bf16.mxu0 %v1092
  %1582 = vmatpush1.bf16.msra.mxu0 %v1091
  %1583 = vmatprep.subr.bf16.mxu0 %v1090
  %1584 = vmatpush1.bf16.msra.mxu0 %v1089
  %1585 = vmatprep.subr.bf16.mxu0 %v1120
  %1586 = vmatpush2.bf16.msra.mxu0 %v1119
  %1587 = vmatprep.subr.bf16.mxu0 %v1118
  %1588 = vmatpush2.bf16.msra.mxu0 %v1117
  %1589 = vmatprep.subr.bf16.mxu0 %v1116
  %1590 = vmatpush2.bf16.msra.mxu0 %v1115
  %1591 = vmatprep.subr.bf16.mxu0 %v1114
  %1592 = vmatpush2.bf16.msra.mxu0 %v1113
  %1593 = vmatprep.subr.bf16.mxu0 %v1112
  %1594 = vmatpush2.bf16.msra.mxu0 %v1111
  %1595 = vmatprep.subr.bf16.mxu0 %v1110
  %1596 = vmatpush2.bf16.msra.mxu0 %v1109
  %1597 = vmatprep.subr.bf16.mxu0 %v1108
  %1598 = vmatpush2.bf16.msra.mxu0 %v1107
  %1599 = vmatprep.subr.bf16.mxu0 %v1106
  %1600 = vmatpush2.bf16.msra.mxu0 %v1105
  %1601 = vmatprep.mubr.bf16.mxu0 %v295
  %1602 = vmatmul.mubr.bf16.gmra.mxu0 %v294
  %v1603 = vpop.f32.mrf.mxu0
  %v1604 = vadd.f32 %v1561, %v1603
  %v1605 = vpop.f32.mrf.mxu0
  %v1606 = vadd.f32 %v1563, %v1605
  %v1607 = vpop.f32.mrf.mxu0
  %v1608 = vadd.f32 %v1565, %v1607
  %v1609 = vpop.f32.mrf.mxu0
  %v1610 = vadd.f32 %v1567, %v1609
  %1611 = vdwg.mxu0
  %1612 = vmatprep.subr.bf16.mxu0 %v1136
  %1613 = vmatpush1.bf16.msra.mxu0 %v1135
  %1614 = vmatprep.subr.bf16.mxu0 %v1134
  %1615 = vmatpush1.bf16.msra.mxu0 %v1133
  %1616 = vmatprep.subr.bf16.mxu0 %v1132
  %1617 = vmatpush1.bf16.msra.mxu0 %v1131
  %1618 = vmatprep.subr.bf16.mxu0 %v1130
  %1619 = vmatpush1.bf16.msra.mxu0 %v1129
  %1620 = vmatprep.subr.bf16.mxu0 %v1128
  %1621 = vmatpush1.bf16.msra.mxu0 %v1127
  %1622 = vmatprep.subr.bf16.mxu0 %v1126
  %1623 = vmatpush1.bf16.msra.mxu0 %v1125
  %1624 = vmatprep.subr.bf16.mxu0 %v1124
  %1625 = vmatpush1.bf16.msra.mxu0 %v1123
  %1626 = vmatprep.subr.bf16.mxu0 %v1122
  %1627 = vmatpush1.bf16.msra.mxu0 %v1121
  %1628 = vmatprep.subr.bf16.mxu0 %v1152
  %1629 = vmatpush2.bf16.msra.mxu0 %v1151
  %1630 = vmatprep.subr.bf16.mxu0 %v1150
  %1631 = vmatpush2.bf16.msra.mxu0 %v1149
  %1632 = vmatprep.subr.bf16.mxu0 %v1148
  %1633 = vmatpush2.bf16.msra.mxu0 %v1147
  %1634 = vmatprep.subr.bf16.mxu0 %v1146
  %1635 = vmatpush2.bf16.msra.mxu0 %v1145
  %1636 = vmatprep.subr.bf16.mxu0 %v1144
  %1637 = vmatpush2.bf16.msra.mxu0 %v1143
  %1638 = vmatprep.subr.bf16.mxu0 %v1142
  %1639 = vmatpush2.bf16.msra.mxu0 %v1141
  %1640 = vmatprep.subr.bf16.mxu0 %v1140
  %1641 = vmatpush2.bf16.msra.mxu0 %v1139
  %1642 = vmatprep.subr.bf16.mxu0 %v1138
  %1643 = vmatpush2.bf16.msra.mxu0 %v1137
  %1644 = vmatprep.mubr.bf16.mxu0 %v297
  %1645 = vmatmul.mubr.bf16.gmra.mxu0 %v296
  %v1646 = vpop.f32.mrf.mxu0
  %v1647 = vadd.f32 %v1604, %v1646
  %v1648 = vpop.f32.mrf.mxu0
  %v1649 = vadd.f32 %v1606, %v1648
  %v1650 = vpop.f32.mrf.mxu0
  %v1651 = vadd.f32 %v1608, %v1650
  %v1652 = vpop.f32.mrf.mxu0
  %v1653 = vadd.f32 %v1610, %v1652
  %1654 = vdwg.mxu0
  %1655 = vmatprep.subr.bf16.mxu0 %v1168
  %1656 = vmatpush1.bf16.msra.mxu0 %v1167
  %1657 = vmatprep.subr.bf16.mxu0 %v1166
  %1658 = vmatpush1.bf16.msra.mxu0 %v1165
  %1659 = vmatprep.subr.bf16.mxu0 %v1164
  %1660 = vmatpush1.bf16.msra.mxu0 %v1163
  %1661 = vmatprep.subr.bf16.mxu0 %v1162
  %1662 = vmatpush1.bf16.msra.mxu0 %v1161
  %1663 = vmatprep.subr.bf16.mxu0 %v1160
  %1664 = vmatpush1.bf16.msra.mxu0 %v1159
  %1665 = vmatprep.subr.bf16.mxu0 %v1158
  %1666 = vmatpush1.bf16.msra.mxu0 %v1157
  %1667 = vmatprep.subr.bf16.mxu0 %v1156
  %1668 = vmatpush1.bf16.msra.mxu0 %v1155
  %1669 = vmatprep.subr.bf16.mxu0 %v1154
  %1670 = vmatpush1.bf16.msra.mxu0 %v1153
  %1671 = vmatprep.subr.bf16.mxu0 0
  %1672 = vmatpush2.bf16.msra.mxu0 0
  %1673 = vmatprep.subr.bf16.mxu0 0
  %1674 = vmatpush2.bf16.msra.mxu0 0
  %1675 = vmatprep.subr.bf16.mxu0 0
  %1676 = vmatpush2.bf16.msra.mxu0 0
  %1677 = vmatprep.subr.bf16.mxu0 0
  %1678 = vmatpush2.bf16.msra.mxu0 0
  %1679 = vmatprep.subr.bf16.mxu0 %v1176
  %1680 = vmatpush2.bf16.msra.mxu0 %v1175
  %1681 = vmatprep.subr.bf16.mxu0 %v1174
  %1682 = vmatpush2.bf16.msra.mxu0 %v1173
  %1683 = vmatprep.subr.bf16.mxu0 %v1172
  %1684 = vmatpush2.bf16.msra.mxu0 %v1171
  %1685 = vmatprep.subr.bf16.mxu0 %v1170
  %1686 = vmatpush2.bf16.msra.mxu0 %v1169
  %1687 = vmatprep.mubr.bf16.mxu0 %v1395
  %1688 = vmatmul.mubr.bf16.gmra.mxu0 %v298
  %v1689 = vpop.f32.mrf.mxu0
  %v1690 = vadd.f32 %v1647, %v1689
  %v1691 = vpop.f32.mrf.mxu0
  %v1692 = vadd.f32 %v1649, %v1691
  %v1693 = vpop.f32.mrf.mxu0
  %v1694 = vadd.f32 %v1651, %v1693
  %v1695 = vpop.f32.mrf.mxu0
  %v1696 = vadd.f32 %v1653, %v1695
  %1697 = vdwg.mxu0
  %1698 = vst [vmem:[%s2] sm:$0xff] %v1690
  %1699 = vst [vmem:[%s2 + $0x8] sm:$0xff] %v1692
  %1700 = vst [vmem:[%s2 + $0x10] sm:$0xff] %v1694
  %1701 = vst [vmem:[%s2 + $0x18] sm:$0xff] %v1696
  %p1702 = scmp.eq.s32.totalorder 0, 0
  // Predicated region
  $region10: #{stem_v1_forward.24} parent=0 // pred_check
    %p1703 = pneg %p1702
  $region11: #{stem_v1_forward.24} parent=0 // pred_check_branch
    %1705 = sbr.rel (%p1703) target = $region13
  $region12: #{stem_v1_forward.24} parent=0 // pred_region
    %1706 = vst [vmem:[%s3] sm:$0xf] 0.0
  $region13: #{stem_v1_forward.24} parent=0 // pred_fallthru
    _
  %v1707 = vld [vmem:[%s3] sm:$0xf]
  %v1708 = vadd.f32 %v1690, %v1694
  %v1709 = vrot.slane %v1708, 4
  %v1710 = vadd.f32 %v1708, %v1709
  %v1711 = vrot.slane %v1710, 2
  %v1712 = vadd.f32 %v1710, %v1711
  %v1713 = vrot.slane %v1712, 1
  %v1714 = vadd.f32 %v1712, %v1713
  %v1715 = vadd.f32 %v1692, %v1696
  %v1716 = vrot.slane %v1715, 4
  %v1717 = vadd.f32 %v1715, %v1716
  %v1718 = vrot.slane %v1717, 2
  %v1719 = vadd.f32 %v1717, %v1718
  %v1720 = vrot.slane %v1719, 1
  %v1721 = vadd.f32 %v1719, %v1720
  %v1722 = vmul.f32 %v1690, %v1690
  %v1723 = vmul.f32 %v1692, %v1692
  %v1724 = vmul.f32 %v1694, %v1694
  %v1725 = vmul.f32 %v1696, %v1696
  %v1726 = vadd.f32 %v1722, %v1724
  %v1727 = vrot.slane %v1726, 4
  %v1728 = vadd.f32 %v1726, %v1727
  %v1729 = vrot.slane %v1728, 2
  %v1730 = vadd.f32 %v1728, %v1729
  %v1731 = vrot.slane %v1730, 1
  %v1732 = vadd.f32 %v1730, %v1731
  %v1733 = vadd.f32 %v1723, %v1725
  %v1734 = vrot.slane %v1733, 4
  %v1735 = vadd.f32 %v1733, %v1734
  %v1736 = vrot.slane %v1735, 2
  %v1737 = vadd.f32 %v1735, %v1736
  %v1738 = vrot.slane %v1737, 1
  %v1739 = vadd.f32 %v1737, %v1738
  %vm1740 = vcmask 1040384
  %v1741 = vsel %vm1740, %v1714, %v1732
  %v1742 = vsel %vm1740, %v1721, %v1739
  %v1745 = vcombine.low %v1741, %v1742
  %v1747 = vunpack.c.l.s4 1983009808
  %v1748 = vunpack.c.0.s8 %v1747
  %v1749 = vlaneseq
  %v1750 = vshrl.u32 %v1749, 7
  %v1751 = vsub.s32 %v1748, %v1750
  %v1752 = vrot.slane %v1745, %v1751
  %v1754 = vadd.f32 %v1707, %v1752
  %1755 = vst [vmem:[%s3] sm:$0xf] %v1754
  // Predicated region
  $region14: #{stem_v1_forward.24} parent=0 // pred_check
    _
  $region15: #{stem_v1_forward.24} parent=0 // pred_check_branch
    %1757 = sbr.rel (0) target = $region17
  $region16: #{stem_v1_forward.24} parent=0 // pred_region
    _
  $region17: #{stem_v1_forward.24} parent=0 // pred_fallthru
    _
  // Predicated region
  $region18: #{stem_v1_forward.24} parent=0 // pred_check
    _
  $region19: #{stem_v1_forward.24} parent=0 // pred_check_branch
    %1759 = sbr.rel (0) target = $region21
  $region20: #{stem_v1_forward.24} parent=0 // pred_region
    _
  $region21: #{stem_v1_forward.24} parent=0 // pred_fallthru
    _
  // Predicated region
  $region22: #{stem_v1_forward.24} parent=0 // pred_check
    _
  $region23: #{stem_v1_forward.24} parent=0 // pred_check_branch
    %1761 = sbr.rel (0) target = $region25
  $region24: #{stem_v1_forward.24} parent=0 // pred_region
    _
  $region25: #{stem_v1_forward.24} parent=0 // pred_fallthru
    _
  // Predicated region
  $region26: #{stem_v1_forward.24} parent=0 // pred_check
    _
  $region27: #{stem_v1_forward.24} parent=0 // pred_check_branch
    %1763 = sbr.rel (0) target = $region29
  $region28: #{stem_v1_forward.24} parent=0 // pred_region
    _
  $region29: #{stem_v1_forward.24} parent=0 // pred_fallthru
    _

</llo_original>
